<compile_context>
chip_gen: v7x
topology: tpu7x:2x2x1
jax: 0.10.0
libtpu: 0.0.40
codegen_flags: <defaults>
</compile_context>

<pallas_src>
import jax
import jax.numpy as jnp
from jax.experimental import pallas as pl
from jax.experimental.pallas import tpu as pltpu


# ----------------------------------------------------------------------------
# Fused kernel: folded music MLP + classifier MLP (int8 weight-only quant)
# ----------------------------------------------------------------------------
def fused_model_kernel(music_w_ref,   # SMEM (14,)  f32: [0:13]=w_eff, [13]=b_eff
                       lyric_ref,     # VMEM (B, L)      f32
                       mfcc_t_ref,    # VMEM (B, 13, M)  f32 (MFCC, lane-dense M)
                       chord_ref,     # VMEM (B, C)      f32
                       w1q_ref,       # VMEM (3328, 1024) int8 (cols padded)
                       s1_ref,        # VMEM (1, 1024)    f32 per-col scale
                       b1_ref,        # VMEM (1, 1024)    f32
                       w2q_ref,       # VMEM (1024, 512)  int8 (rows padded)
                       s2_ref,        # VMEM (1, 512)     f32 per-col scale
                       b2_ref,        # VMEM (1, 512)     f32
                       w3_ref,        # VMEM (512, 1)     bf16
                       b3_ref,        # VMEM (1, 1)       f32
                       o_ref):        # VMEM (B, 1)       f32
    L = lyric_ref.shape[1]
    M = mfcc_t_ref.shape[2]
    C = chord_ref.shape[1]

    # --- music MLP, folded: music[b,m] = b_eff + sum_k w_eff[k]*mfcc[b,m,k] ---
    # Scalars from SMEM broadcast over a lane-dense (B, M) view; pure VPU work.
    music = music_w_ref[13] + music_w_ref[0] * mfcc_t_ref[:, 0, :]
    for k in range(1, 13):
        music = music + music_w_ref[k] * mfcc_t_ref[:, k, :]

    lyric_bf = lyric_ref[...].astype(jnp.bfloat16)
    music_bf = music.astype(jnp.bfloat16)
    chord_bf = chord_ref[...].astype(jnp.bfloat16)

    # --- classifier1: three partial matmuls against W1 row blocks (no scratch).
    # int8 -> bf16 widening is exact; the per-output-column scale is applied to
    # the f32 accumulator before the bias add.
    h1 = jnp.dot(lyric_bf, w1q_ref[0:L, :].astype(jnp.bfloat16),
                 preferred_element_type=jnp.float32)
    h1 = h1 + jnp.dot(music_bf, w1q_ref[L:L + M, :].astype(jnp.bfloat16),
                      preferred_element_type=jnp.float32)
    h1 = h1 + jnp.dot(chord_bf, w1q_ref[L + M:L + M + C, :].astype(jnp.bfloat16),
                      preferred_element_type=jnp.float32)
    h1 = jnp.maximum(h1 * s1_ref[...] + b1_ref[...], 0.0).astype(jnp.bfloat16)

    # --- classifier2 ---
    h2 = jnp.dot(h1, w2q_ref[...].astype(jnp.bfloat16),
                 preferred_element_type=jnp.float32)
    h2 = jnp.maximum(h2 * s2_ref[...] + b2_ref[...], 0.0).astype(jnp.bfloat16)

    # --- classifier3 + sigmoid ---
    logits = jnp.dot(h2, w3_ref[...],
                     preferred_element_type=jnp.float32) + b3_ref[...]
    o_ref[...] = jax.nn.sigmoid(logits)


def fused_forward(music_w, lyric_2d, mfcc_t, chord_2d,
                  w1_q, s1, b1, w2_q, s2, b2, w3, b3):
    B = lyric_2d.shape[0]
    n_feat = lyric_2d.shape[1] + mfcc_t.shape[2] + chord_2d.shape[1]
    assert w1_q.shape[0] == n_feat, "feature sizes must sum to classifier1 fan-in"

    smem = pl.BlockSpec(memory_space=pltpu.MemorySpace.SMEM)
    vmem = pl.BlockSpec(memory_space=pltpu.MemorySpace.VMEM)

    # Accurate cost hint: the call is DMA-bound (int8 weights dominate bytes),
    # compute is tiny -> lets XLA overlap it with surrounding ops.
    flops = (2 * B * (w1_q.shape[0] * w1_q.shape[1]
                      + w2_q.shape[0] * w2_q.shape[1]
                      + w3.shape[0] * w3.shape[1])
             + 2 * B * 13 * mfcc_t.shape[2])
    bytes_accessed = (w1_q.size + w2_q.size            # int8 weights
                      + 2 * w3.size                    # bf16
                      + 4 * (s1.size + b1.size + s2.size + b2.size
                             + b3.size + music_w.size)
                      + 4 * (lyric_2d.size + mfcc_t.size + chord_2d.size)
                      + 4 * B)
    cost = pl.CostEstimate(flops=int(flops), transcendentals=int(B),
                           bytes_accessed=int(bytes_accessed))

    return pl.pallas_call(
        fused_model_kernel,
        out_shape=jax.ShapeDtypeStruct((B, 1), jnp.float32),
        in_specs=[smem] + [vmem] * 11,
        out_specs=vmem,
        compiler_params=pltpu.CompilerParams(
            vmem_limit_bytes=32 * 1024 * 1024),
        cost_estimate=cost,
    )(music_w, lyric_2d, mfcc_t, chord_2d,
      w1_q, s1, b1, w2_q, s2, b2, w3, b3)


# ----------------------------------------------------------------------------
# Parameter init (PyTorch nn.Linear-style uniform(-1/sqrt(fan_in))), fp32.
# Weights stored as (in_features, out_features) so kernels compute x @ W + b.
# ----------------------------------------------------------------------------
def init_params(key):
    def linear(key, fan_in, fan_out):
        kw, kb = jax.random.split(key)
        bound = 1.0 / jnp.sqrt(fan_in)
        w = jax.random.uniform(kw, (fan_in, fan_out), jnp.float32, -bound, bound)
        b = jax.random.uniform(kb, (1, fan_out), jnp.float32, -bound, bound)
        return w, b

    keys = jax.random.split(key, 5)
    p = {}
    p["w_m1"], p["b_m1"] = linear(keys[0], 13, 10)      # music_layer
    p["w_m2"], p["b_m2"] = linear(keys[1], 10, 1)       # music_layer_2
    p["w_c1"], p["b_c1"] = linear(keys[2], 3328, 1000)  # classifier1
    p["w_c2"], p["b_c2"] = linear(keys[3], 1000, 512)   # classifier2
    p["w_c3"], p["b_c3"] = linear(keys[4], 512, 1)      # classifier3
    return p


def _quantize_per_col(w):
    """Symmetric per-output-channel int8 weight-only quantization."""
    amax = jnp.max(jnp.abs(w), axis=0, keepdims=True)          # (1, N)
    scale = jnp.maximum(amax, 1e-8) / 127.0
    q = jnp.clip(jnp.round(w / scale), -127.0, 127.0).astype(jnp.int8)
    return q, scale.astype(jnp.float32)


def prepare_params(params):
    """One-time prep: fold music MLP, pad 1000->1024, int8-quantize W1/W2."""
    # music_layer -> music_layer_2 has NO activation between them in the
    # reference module, so it is one affine map:
    #   w_eff = W1 @ W2 (13,),  b_eff = b1 @ W2 + b2 (scalar).
    w_eff = (params["w_m1"] @ params["w_m2"]).reshape(-1)                  # (13,)
    b_eff = (params["b_m1"] @ params["w_m2"]).reshape(-1) + \
        params["b_m2"].reshape(-1)                                         # (1,)
    music_w = jnp.concatenate([w_eff, b_eff]).astype(jnp.float32)          # (14,)

    pad_n = 1024 - 1000
    w_c1 = jnp.pad(params["w_c1"], ((0, 0), (0, pad_n)))                   # (3328,1024)
    b_c1 = jnp.pad(params["b_c1"], ((0, 0), (0, pad_n)))                   # (1,1024)
    w_c2 = jnp.pad(params["w_c2"], ((0, pad_n), (0, 0)))                   # (1024,512)

    w1_q, s1 = _quantize_per_col(w_c1)   # pad cols are all-zero -> q=0, safe
    w2_q, s2 = _quantize_per_col(w_c2)   # pad rows are all-zero -> q=0, safe

    return {
        "music_w": music_w,
        "w1_q": w1_q, "s1": s1, "b1": b_c1.astype(jnp.float32),
        "w2_q": w2_q, "s2": s2, "b2": params["b_c2"].astype(jnp.float32),
        "w3": params["w_c3"].astype(jnp.bfloat16),
        "b3": params["b_c3"].astype(jnp.float32),
    }


# ----------------------------------------------------------------------------
# Full forward (mirrors MusicModel.forward)
# ----------------------------------------------------------------------------
@jax.jit
def music_model_forward(kparams, lyric_feature, mfcc_feature, chord_feature):
    # lyric_feature: (B, 1, L) ; mfcc_feature: (B, M, 13) ; chord_feature: (B, C, 1)
    B, M, _ = mfcc_feature.shape
    L = lyric_feature.shape[2]
    C = chord_feature.shape[1]

    # 2-D, lane-dense views (equivalent to torch's transpose/concat row layout).
    lyric_2d = lyric_feature.reshape(B, L)
    chord_2d = chord_feature.reshape(B, C)
    mfcc_t = jnp.transpose(mfcc_feature, (0, 2, 1))  # (B, 13, M), M on lanes

    out = fused_forward(kparams["music_w"], lyric_2d, mfcc_t, chord_2d,
                        kparams["w1_q"], kparams["s1"], kparams["b1"],
                        kparams["w2_q"], kparams["s2"], kparams["b2"],
                        kparams["w3"], kparams["b3"])
    return out.reshape(B, 1, 1)


# ----------------------------------------------------------------------------
if __name__ == "__main__":
    key = jax.random.PRNGKey(0)
    kp, kl, km, kc = jax.random.split(key, 4)

    B = 2
    L_LYRIC = 1024   # lyric tokens
    M_FRAMES = 1280  # MFCC frames (13 coefficients each)
    C_CHORD = 1024   # chord features
    assert L_LYRIC + M_FRAMES + C_CHORD == 3328  # required by classifier1

    params = init_params(kp)
    kparams = prepare_params(params)

    lyric = jax.random.normal(kl, (B, 1, L_LYRIC), jnp.float32)
    mfcc = jax.random.normal(km, (B, M_FRAMES, 13), jnp.float32)
    chord = jax.random.normal(kc, (B, C_CHORD, 1), jnp.float32)

    out = music_model_forward(kparams, lyric, mfcc, chord)
    out = jax.block_until_ready(out)
    assert out.shape == (B, 1, 1)
    assert bool(jnp.all((out >= 0.0) & (out <= 1.0)))
    print("KERNEL_OK")
</pallas_src>

<mosaic_0001>
module attributes {stable_mosaic.version = 11 : i64} {
  func.func @fused_model_kernel(%arg0: memref<14xf32, #tpu.memory_space<smem>>, %arg1: memref<2x1024xf32, #tpu.memory_space<vmem>>, %arg2: memref<2x13x1280xf32, #tpu.memory_space<vmem>>, %arg3: memref<2x1024xf32, #tpu.memory_space<vmem>>, %arg4: memref<3328x1024xi8, #tpu.memory_space<vmem>>, %arg5: memref<1x1024xf32, #tpu.memory_space<vmem>>, %arg6: memref<1x1024xf32, #tpu.memory_space<vmem>>, %arg7: memref<1024x512xi8, #tpu.memory_space<vmem>>, %arg8: memref<1x512xf32, #tpu.memory_space<vmem>>, %arg9: memref<1x512xf32, #tpu.memory_space<vmem>>, %arg10: memref<512x1xbf16, #tpu.memory_space<vmem>>, %arg11: memref<1x1xf32, #tpu.memory_space<vmem>>, %arg12: memref<2x1xf32, #tpu.memory_space<vmem>>) attributes {dimension_semantics = [], scalar_prefetch = 0 : i64, scratch_operands = 0 : i64, tpu.core_type = #tpu.core_type<tc>} {
    %c13 = arith.constant 13 : index
    %0 = memref.load %arg0[%c13] : memref<14xf32, #tpu.memory_space<smem>>
    %c0 = arith.constant 0 : index
    %1 = memref.load %arg0[%c0] : memref<14xf32, #tpu.memory_space<smem>>
    %c0_0 = arith.constant 0 : index
    %c0_1 = arith.constant 0 : index
    %c0_2 = arith.constant 0 : index
    %2 = vector.load %arg2[%c0_0, %c0_1, %c0_2] : memref<2x13x1280xf32, #tpu.memory_space<vmem>>, vector<2x1x1280xf32>
    %3 = vector.shape_cast %2 : vector<2x1x1280xf32> to vector<2x1280xf32>
    %4 = vector.broadcast %1 : f32 to vector<2x1280xf32>
    %5 = arith.mulf %4, %3 : vector<2x1280xf32>
    %6 = vector.broadcast %0 : f32 to vector<2x1280xf32>
    %7 = arith.addf %6, %5 : vector<2x1280xf32>
    %c1 = arith.constant 1 : index
    %8 = memref.load %arg0[%c1] : memref<14xf32, #tpu.memory_space<smem>>
    %c0_3 = arith.constant 0 : index
    %c1_4 = arith.constant 1 : index
    %c0_5 = arith.constant 0 : index
    %9 = vector.load %arg2[%c0_3, %c1_4, %c0_5] : memref<2x13x1280xf32, #tpu.memory_space<vmem>>, vector<2x1x1280xf32>
    %10 = vector.shape_cast %9 : vector<2x1x1280xf32> to vector<2x1280xf32>
    %11 = vector.broadcast %8 : f32 to vector<2x1280xf32>
    %12 = arith.mulf %11, %10 : vector<2x1280xf32>
    %13 = arith.addf %7, %12 : vector<2x1280xf32>
    %c2 = arith.constant 2 : index
    %14 = memref.load %arg0[%c2] : memref<14xf32, #tpu.memory_space<smem>>
    %c0_6 = arith.constant 0 : index
    %c2_7 = arith.constant 2 : index
    %c0_8 = arith.constant 0 : index
    %15 = vector.load %arg2[%c0_6, %c2_7, %c0_8] : memref<2x13x1280xf32, #tpu.memory_space<vmem>>, vector<2x1x1280xf32>
    %16 = vector.shape_cast %15 : vector<2x1x1280xf32> to vector<2x1280xf32>
    %17 = vector.broadcast %14 : f32 to vector<2x1280xf32>
    %18 = arith.mulf %17, %16 : vector<2x1280xf32>
    %19 = arith.addf %13, %18 : vector<2x1280xf32>
    %c3 = arith.constant 3 : index
    %20 = memref.load %arg0[%c3] : memref<14xf32, #tpu.memory_space<smem>>
    %c0_9 = arith.constant 0 : index
    %c3_10 = arith.constant 3 : index
    %c0_11 = arith.constant 0 : index
    %21 = vector.load %arg2[%c0_9, %c3_10, %c0_11] : memref<2x13x1280xf32, #tpu.memory_space<vmem>>, vector<2x1x1280xf32>
    %22 = vector.shape_cast %21 : vector<2x1x1280xf32> to vector<2x1280xf32>
    %23 = vector.broadcast %20 : f32 to vector<2x1280xf32>
    %24 = arith.mulf %23, %22 : vector<2x1280xf32>
    %25 = arith.addf %19, %24 : vector<2x1280xf32>
    %c4 = arith.constant 4 : index
    %26 = memref.load %arg0[%c4] : memref<14xf32, #tpu.memory_space<smem>>
    %c0_12 = arith.constant 0 : index
    %c4_13 = arith.constant 4 : index
    %c0_14 = arith.constant 0 : index
    %27 = vector.load %arg2[%c0_12, %c4_13, %c0_14] : memref<2x13x1280xf32, #tpu.memory_space<vmem>>, vector<2x1x1280xf32>
    %28 = vector.shape_cast %27 : vector<2x1x1280xf32> to vector<2x1280xf32>
    %29 = vector.broadcast %26 : f32 to vector<2x1280xf32>
    %30 = arith.mulf %29, %28 : vector<2x1280xf32>
    %31 = arith.addf %25, %30 : vector<2x1280xf32>
    %c5 = arith.constant 5 : index
    %32 = memref.load %arg0[%c5] : memref<14xf32, #tpu.memory_space<smem>>
    %c0_15 = arith.constant 0 : index
    %c5_16 = arith.constant 5 : index
    %c0_17 = arith.constant 0 : index
    %33 = vector.load %arg2[%c0_15, %c5_16, %c0_17] : memref<2x13x1280xf32, #tpu.memory_space<vmem>>, vector<2x1x1280xf32>
    %34 = vector.shape_cast %33 : vector<2x1x1280xf32> to vector<2x1280xf32>
    %35 = vector.broadcast %32 : f32 to vector<2x1280xf32>
    %36 = arith.mulf %35, %34 : vector<2x1280xf32>
    %37 = arith.addf %31, %36 : vector<2x1280xf32>
    %c6 = arith.constant 6 : index
    %38 = memref.load %arg0[%c6] : memref<14xf32, #tpu.memory_space<smem>>
    %c0_18 = arith.constant 0 : index
    %c6_19 = arith.constant 6 : index
    %c0_20 = arith.constant 0 : index
    %39 = vector.load %arg2[%c0_18, %c6_19, %c0_20] : memref<2x13x1280xf32, #tpu.memory_space<vmem>>, vector<2x1x1280xf32>
    %40 = vector.shape_cast %39 : vector<2x1x1280xf32> to vector<2x1280xf32>
    %41 = vector.broadcast %38 : f32 to vector<2x1280xf32>
    %42 = arith.mulf %41, %40 : vector<2x1280xf32>
    %43 = arith.addf %37, %42 : vector<2x1280xf32>
    %c7 = arith.constant 7 : index
    %44 = memref.load %arg0[%c7] : memref<14xf32, #tpu.memory_space<smem>>
    %c0_21 = arith.constant 0 : index
    %c7_22 = arith.constant 7 : index
    %c0_23 = arith.constant 0 : index
    %45 = vector.load %arg2[%c0_21, %c7_22, %c0_23] : memref<2x13x1280xf32, #tpu.memory_space<vmem>>, vector<2x1x1280xf32>
    %46 = vector.shape_cast %45 : vector<2x1x1280xf32> to vector<2x1280xf32>
    %47 = vector.broadcast %44 : f32 to vector<2x1280xf32>
    %48 = arith.mulf %47, %46 : vector<2x1280xf32>
    %49 = arith.addf %43, %48 : vector<2x1280xf32>
    %c8 = arith.constant 8 : index
    %50 = memref.load %arg0[%c8] : memref<14xf32, #tpu.memory_space<smem>>
    %c0_24 = arith.constant 0 : index
    %c8_25 = arith.constant 8 : index
    %c0_26 = arith.constant 0 : index
    %51 = vector.load %arg2[%c0_24, %c8_25, %c0_26] : memref<2x13x1280xf32, #tpu.memory_space<vmem>>, vector<2x1x1280xf32>
    %52 = vector.shape_cast %51 : vector<2x1x1280xf32> to vector<2x1280xf32>
    %53 = vector.broadcast %50 : f32 to vector<2x1280xf32>
    %54 = arith.mulf %53, %52 : vector<2x1280xf32>
    %55 = arith.addf %49, %54 : vector<2x1280xf32>
    %c9 = arith.constant 9 : index
    %56 = memref.load %arg0[%c9] : memref<14xf32, #tpu.memory_space<smem>>
    %c0_27 = arith.constant 0 : index
    %c9_28 = arith.constant 9 : index
    %c0_29 = arith.constant 0 : index
    %57 = vector.load %arg2[%c0_27, %c9_28, %c0_29] : memref<2x13x1280xf32, #tpu.memory_space<vmem>>, vector<2x1x1280xf32>
    %58 = vector.shape_cast %57 : vector<2x1x1280xf32> to vector<2x1280xf32>
    %59 = vector.broadcast %56 : f32 to vector<2x1280xf32>
    %60 = arith.mulf %59, %58 : vector<2x1280xf32>
    %61 = arith.addf %55, %60 : vector<2x1280xf32>
    %c10 = arith.constant 10 : index
    %62 = memref.load %arg0[%c10] : memref<14xf32, #tpu.memory_space<smem>>
    %c0_30 = arith.constant 0 : index
    %c10_31 = arith.constant 10 : index
    %c0_32 = arith.constant 0 : index
    %63 = vector.load %arg2[%c0_30, %c10_31, %c0_32] : memref<2x13x1280xf32, #tpu.memory_space<vmem>>, vector<2x1x1280xf32>
    %64 = vector.shape_cast %63 : vector<2x1x1280xf32> to vector<2x1280xf32>
    %65 = vector.broadcast %62 : f32 to vector<2x1280xf32>
    %66 = arith.mulf %65, %64 : vector<2x1280xf32>
    %67 = arith.addf %61, %66 : vector<2x1280xf32>
    %c11 = arith.constant 11 : index
    %68 = memref.load %arg0[%c11] : memref<14xf32, #tpu.memory_space<smem>>
    %c0_33 = arith.constant 0 : index
    %c11_34 = arith.constant 11 : index
    %c0_35 = arith.constant 0 : index
    %69 = vector.load %arg2[%c0_33, %c11_34, %c0_35] : memref<2x13x1280xf32, #tpu.memory_space<vmem>>, vector<2x1x1280xf32>
    %70 = vector.shape_cast %69 : vector<2x1x1280xf32> to vector<2x1280xf32>
    %71 = vector.broadcast %68 : f32 to vector<2x1280xf32>
    %72 = arith.mulf %71, %70 : vector<2x1280xf32>
    %73 = arith.addf %67, %72 : vector<2x1280xf32>
    %c12 = arith.constant 12 : index
    %74 = memref.load %arg0[%c12] : memref<14xf32, #tpu.memory_space<smem>>
    %c0_36 = arith.constant 0 : index
    %c12_37 = arith.constant 12 : index
    %c0_38 = arith.constant 0 : index
    %75 = vector.load %arg2[%c0_36, %c12_37, %c0_38] : memref<2x13x1280xf32, #tpu.memory_space<vmem>>, vector<2x1x1280xf32>
    %76 = vector.shape_cast %75 : vector<2x1x1280xf32> to vector<2x1280xf32>
    %77 = vector.broadcast %74 : f32 to vector<2x1280xf32>
    %78 = arith.mulf %77, %76 : vector<2x1280xf32>
    %79 = arith.addf %73, %78 : vector<2x1280xf32>
    %c0_39 = arith.constant 0 : index
    %c0_40 = arith.constant 0 : index
    %80 = vector.load %arg1[%c0_39, %c0_40] : memref<2x1024xf32, #tpu.memory_space<vmem>>, vector<2x1024xf32>
    %81 = arith.truncf %80 : vector<2x1024xf32> to vector<2x1024xbf16>
    %82 = arith.truncf %79 : vector<2x1280xf32> to vector<2x1280xbf16>
    %c0_41 = arith.constant 0 : index
    %c0_42 = arith.constant 0 : index
    %83 = vector.load %arg3[%c0_41, %c0_42] : memref<2x1024xf32, #tpu.memory_space<vmem>>, vector<2x1024xf32>
    %84 = arith.truncf %83 : vector<2x1024xf32> to vector<2x1024xbf16>
    %c0_43 = arith.constant 0 : index
    %c0_44 = arith.constant 0 : index
    %85 = vector.load %arg4[%c0_43, %c0_44] : memref<3328x1024xi8, #tpu.memory_space<vmem>>, vector<1024x1024xi8>
    %86 = arith.sitofp %85 : vector<1024x1024xi8> to vector<1024x1024xbf16>
    %cst = arith.constant dense<0.000000e+00> : vector<2x1024xf32>
    %87 = tpu.matmul %81, %86, %cst {dimension_numbers = #tpu.dot_dimension_numbers<[1], [0], [0], [1], [0, 0, 1, 1], [], []>} : vector<2x1024xbf16>, vector<1024x1024xbf16>, vector<2x1024xf32> -> vector<2x1024xf32>
    %c1024 = arith.constant 1024 : index
    %c0_45 = arith.constant 0 : index
    %88 = vector.load %arg4[%c1024, %c0_45] : memref<3328x1024xi8, #tpu.memory_space<vmem>>, vector<1280x1024xi8>
    %89 = arith.sitofp %88 : vector<1280x1024xi8> to vector<1280x1024xbf16>
    %cst_46 = arith.constant dense<0.000000e+00> : vector<2x1024xf32>
    %90 = tpu.matmul %82, %89, %cst_46 {dimension_numbers = #tpu.dot_dimension_numbers<[1], [0], [0], [1], [0, 0, 1, 1], [], []>} : vector<2x1280xbf16>, vector<1280x1024xbf16>, vector<2x1024xf32> -> vector<2x1024xf32>
    %91 = arith.addf %87, %90 : vector<2x1024xf32>
    %c2304 = arith.constant 2304 : index
    %c0_47 = arith.constant 0 : index
    %92 = vector.load %arg4[%c2304, %c0_47] : memref<3328x1024xi8, #tpu.memory_space<vmem>>, vector<1024x1024xi8>
    %93 = arith.sitofp %92 : vector<1024x1024xi8> to vector<1024x1024xbf16>
    %cst_48 = arith.constant dense<0.000000e+00> : vector<2x1024xf32>
    %94 = tpu.matmul %84, %93, %cst_48 {dimension_numbers = #tpu.dot_dimension_numbers<[1], [0], [0], [1], [0, 0, 1, 1], [], []>} : vector<2x1024xbf16>, vector<1024x1024xbf16>, vector<2x1024xf32> -> vector<2x1024xf32>
    %95 = arith.addf %91, %94 : vector<2x1024xf32>
    %c0_49 = arith.constant 0 : index
    %c0_50 = arith.constant 0 : index
    %96 = vector.load %arg5[%c0_49, %c0_50] : memref<1x1024xf32, #tpu.memory_space<vmem>>, vector<1x1024xf32>
    %97 = vector.broadcast %96 : vector<1x1024xf32> to vector<2x1024xf32>
    %98 = arith.mulf %95, %97 : vector<2x1024xf32>
    %c0_51 = arith.constant 0 : index
    %c0_52 = arith.constant 0 : index
    %99 = vector.load %arg6[%c0_51, %c0_52] : memref<1x1024xf32, #tpu.memory_space<vmem>>, vector<1x1024xf32>
    %100 = vector.broadcast %99 : vector<1x1024xf32> to vector<2x1024xf32>
    %101 = arith.addf %98, %100 : vector<2x1024xf32>
    %cst_53 = arith.constant 0.000000e+00 : f32
    %102 = vector.broadcast %cst_53 : f32 to vector<2x1024xf32>
    %103 = arith.maximumf %101, %102 : vector<2x1024xf32>
    %104 = arith.truncf %103 : vector<2x1024xf32> to vector<2x1024xbf16>
    %c0_54 = arith.constant 0 : index
    %c0_55 = arith.constant 0 : index
    %105 = vector.load %arg7[%c0_54, %c0_55] : memref<1024x512xi8, #tpu.memory_space<vmem>>, vector<1024x512xi8>
    %106 = arith.sitofp %105 : vector<1024x512xi8> to vector<1024x512xbf16>
    %cst_56 = arith.constant dense<0.000000e+00> : vector<2x512xf32>
    %107 = tpu.matmul %104, %106, %cst_56 {dimension_numbers = #tpu.dot_dimension_numbers<[1], [0], [0], [1], [0, 0, 1, 1], [], []>} : vector<2x1024xbf16>, vector<1024x512xbf16>, vector<2x512xf32> -> vector<2x512xf32>
    %c0_57 = arith.constant 0 : index
    %c0_58 = arith.constant 0 : index
    %108 = vector.load %arg8[%c0_57, %c0_58] : memref<1x512xf32, #tpu.memory_space<vmem>>, vector<1x512xf32>
    %109 = vector.broadcast %108 : vector<1x512xf32> to vector<2x512xf32>
    %110 = arith.mulf %107, %109 : vector<2x512xf32>
    %c0_59 = arith.constant 0 : index
    %c0_60 = arith.constant 0 : index
    %111 = vector.load %arg9[%c0_59, %c0_60] : memref<1x512xf32, #tpu.memory_space<vmem>>, vector<1x512xf32>
    %112 = vector.broadcast %111 : vector<1x512xf32> to vector<2x512xf32>
    %113 = arith.addf %110, %112 : vector<2x512xf32>
    %cst_61 = arith.constant 0.000000e+00 : f32
    %114 = vector.broadcast %cst_61 : f32 to vector<2x512xf32>
    %115 = arith.maximumf %113, %114 : vector<2x512xf32>
    %116 = arith.truncf %115 : vector<2x512xf32> to vector<2x512xbf16>
    %c0_62 = arith.constant 0 : index
    %c0_63 = arith.constant 0 : index
    %117 = vector.load %arg10[%c0_62, %c0_63] : memref<512x1xbf16, #tpu.memory_space<vmem>>, vector<512x1xbf16>
    %cst_64 = arith.constant dense<0.000000e+00> : vector<2x1xf32>
    %118 = tpu.matmul %116, %117, %cst_64 {dimension_numbers = #tpu.dot_dimension_numbers<[1], [0], [0], [1], [0, 0, 1, 1], [], []>} : vector<2x512xbf16>, vector<512x1xbf16>, vector<2x1xf32> -> vector<2x1xf32>
    %c0_65 = arith.constant 0 : index
    %c0_66 = arith.constant 0 : index
    %119 = vector.load %arg11[%c0_65, %c0_66] : memref<1x1xf32, #tpu.memory_space<vmem>>, vector<1x1xf32>
    %120 = vector.broadcast %119 : vector<1x1xf32> to vector<2x1xf32>
    %121 = arith.addf %118, %120 : vector<2x1xf32>
    %122 = arith.negf %121 : vector<2x1xf32>
    %123 = math.exp %122 : vector<2x1xf32>
    %cst_67 = arith.constant 1.000000e+00 : f32
    %124 = vector.broadcast %cst_67 : f32 to vector<2x1xf32>
    %125 = arith.addf %124, %123 : vector<2x1xf32>
    %126 = arith.divf %124, %125 : vector<2x1xf32>
    %c0_68 = arith.constant 0 : index
    %c0_69 = arith.constant 0 : index
    %127 = vector.load %arg12[%c0_68, %c0_69] : memref<2x1xf32, #tpu.memory_space<vmem>>, vector<2x1xf32>
    tpu.vector_store %arg12[%c0_68, %c0_69], %126 {strides = array<i32>} : memref<2x1xf32, #tpu.memory_space<vmem>>, vector<2x1xf32>,
    return
  }
}

</mosaic_0001>

<llo_original>
// kernel: music_model_forward.1
$region0: #{music_model_forward.1}
  #allocation0 [shape = 'u32[]', space=smem, size = 0x4, offset = 0x4, fixed_abs, tag = 'smem constant byte address 0x4 - core index']
  #allocation1 [shape = 'u32[144,128]{1,0:T(1,128)}', space=vmem, size = 0x12000, scoped, tag = 'internal scratch']
  #allocation2 [shape = 'f32[1,1]{1,0:T(1,128)S(1)}', space=vmem, size = 0x200, scoped, tag = 'scoped memory for music_model_forward.1']
  %s0 = inlined_call_operand.hbm [shape: f32[14], index: 0, kind: input, shape index: {}]
  %s1 = inlined_call_operand.vmem [shape: f32[2,1024], index: 1, kind: input, shape index: {}]
  %s2 = inlined_call_operand.vmem [shape: f32[2,13,1280], index: 2, kind: input, shape index: {}]
  %s3 = inlined_call_operand.vmem [shape: f32[2,1024], index: 3, kind: input, shape index: {}]
  %s4 = inlined_call_operand.hbm [shape: s8[3328,1024], index: 4, kind: input, shape index: {}]
  %s5 = inlined_call_operand.hbm [shape: f32[1,1024], index: 5, kind: input, shape index: {}]
  %s6 = inlined_call_operand.hbm [shape: f32[1,1024], index: 6, kind: input, shape index: {}]
  %s7 = inlined_call_operand.hbm [shape: s8[1024,512], index: 7, kind: input, shape index: {}]
  %s8 = inlined_call_operand.hbm [shape: f32[1,512], index: 8, kind: input, shape index: {}]
  %s9 = inlined_call_operand.hbm [shape: f32[1,512], index: 9, kind: input, shape index: {}]
  %s10 = inlined_call_operand.vmem [shape: bf16[512,1], index: 10, kind: input, shape index: {}]
  %s11 = inlined_call_operand.<no memory space> [shape: f32[1,1], index: 11, kind: input, shape index: {}]
  %s12 = inlined_call_operand.vmem [shape: f32[2,1], index: 12, kind: output, shape index: {}]
  %s13 = sld [smem:[#allocation0]]
  $region86: #{music_model_forward.1} parent=0
    _
  %s15 = ssub.s32 1, %s13
  %s16 = scalar_select 0, %s15, %s13
  %v17 = vstv %s11
  %18 = vst [vmem:[#allocation2] sm:$0x1] %v17
  $region1: #{music_model_forward.1} parent=0
    #allocation3 [shape = 'u8[512]{0}', space=smem, size = 0x200, scoped, tag = 'input window, operand 0, single buffered']
    #allocation4 [shape = 's32[1]{0}', space=sflag, size = 0x4, scoped, tag = 'scoped memory for music_model_forward.1']
    #allocation5 [shape = 's32[1]{0}', space=sflag, size = 0x4, scoped, tag = 'scoped memory for music_model_forward.1']
    #allocation6 [shape = 'u8[3407872]{0}', space=vmem, size = 0x340000, scoped, tag = 'input window, operand 4, single buffered']
    #allocation7 [shape = 'u8[4096]{0}', space=vmem, size = 0x1000, scoped, tag = 'input window, operand 5, single buffered']
    #allocation8 [shape = 's32[1]{0}', space=sflag, size = 0x4, scoped, tag = 'scoped memory for music_model_forward.1']
    #allocation9 [shape = 'u8[4096]{0}', space=vmem, size = 0x1000, scoped, tag = 'input window, operand 6, single buffered']
    #allocation10 [shape = 'u8[524288]{0}', space=vmem, size = 0x80000, scoped, tag = 'input window, operand 7, single buffered']
    #allocation11 [shape = 's32[1]{0}', space=sflag, size = 0x4, scoped, tag = 'scoped memory for music_model_forward.1']
    #allocation12 [shape = 'u8[2048]{0}', space=vmem, size = 0x800, scoped, tag = 'input window, operand 8, single buffered']
    #allocation13 [shape = 'u8[2048]{0}', space=vmem, size = 0x800, scoped, tag = 'input window, operand 9, single buffered']
    #allocation14 [shape = 's32[1]{0}', space=sflag, size = 0x4, scoped, tag = 'scoped memory for music_model_forward.1']
    %19 = vsyncpa [#allocation5], 0
    %20 = vsyncpa [#allocation4], 0
    %21 = vsyncpa [#allocation8], 0
    %22 = vsyncpa [#allocation11], 0
    %23 = vsyncpa [#allocation14], 0
    // Predicated region
    $region2: #{music_model_forward.1} parent=1 // pred_check
      _
    $region3: #{music_model_forward.1} parent=1 // pred_check_branch
      %25 = sbr.rel (0) target = $region5
    $region4: #{music_model_forward.1} parent=1 // pred_region
      %s27 = ssub.s32 16, 16
      %28 = vsyncadd [#allocation5], %s27
      %31 = dma.hbm_to_smem %s0, 16, [#allocation3], [#allocation5]
    $region5: #{music_model_forward.1} parent=1 // pred_fallthru
      _
    // Predicated region
    $region6: #{music_model_forward.1} parent=1 // pred_check
      _
    $region7: #{music_model_forward.1} parent=1 // pred_check_branch
      %33 = sbr.rel (0) target = $region9
    $region8: #{music_model_forward.1} parent=1 // pred_region
      _
    $region9: #{music_model_forward.1} parent=1 // pred_fallthru
      _
    // Predicated region
    $region10: #{music_model_forward.1} parent=1 // pred_check
      _
    $region11: #{music_model_forward.1} parent=1 // pred_check_branch
      %35 = sbr.rel (0) target = $region13
    $region12: #{music_model_forward.1} parent=1 // pred_region
      _
    $region13: #{music_model_forward.1} parent=1 // pred_fallthru
      _
    // Predicated region
    $region14: #{music_model_forward.1} parent=1 // pred_check
      _
    $region15: #{music_model_forward.1} parent=1 // pred_check_branch
      %37 = sbr.rel (0) target = $region17
    $region16: #{music_model_forward.1} parent=1 // pred_region
      _
    $region17: #{music_model_forward.1} parent=1 // pred_fallthru
      _
    // Predicated region
    $region18: #{music_model_forward.1} parent=1 // pred_check
      _
    $region19: #{music_model_forward.1} parent=1 // pred_check_branch
      %39 = sbr.rel (0) target = $region21
    $region20: #{music_model_forward.1} parent=1 // pred_region
      %s41 = ssub.s32 106496, 106496
      %42 = vsyncadd [#allocation4], %s41
      %s43 = sshll.u32 [#allocation6], 4
      %s44 = int_to_ptr.vmem [resolvable:$true] %s43
      %49 = dma.hbm_to_vmem [thread:$0]  %s4, 106496, %s44, [#allocation4], 1024, 1024, 64
    $region21: #{music_model_forward.1} parent=1 // pred_fallthru
      _
    // Predicated region
    $region22: #{music_model_forward.1} parent=1 // pred_check
      _
    $region23: #{music_model_forward.1} parent=1 // pred_check_branch
      %51 = sbr.rel (0) target = $region25
    $region24: #{music_model_forward.1} parent=1 // pred_region
      %s53 = ssub.s32 128, 128
      %54 = vsyncadd [#allocation8], %s53
      %s56 = sshll.u32 [#allocation7], 4
      %s57 = int_to_ptr.vmem [resolvable:$true] %s56
      %59 = dma.hbm_to_vmem [thread:$0]  %s5, 128, %s57, [#allocation8]
    $region25: #{music_model_forward.1} parent=1 // pred_fallthru
      _
    // Predicated region
    $region26: #{music_model_forward.1} parent=1 // pred_check
      _
    $region27: #{music_model_forward.1} parent=1 // pred_check_branch
      %61 = sbr.rel (0) target = $region29
    $region28: #{music_model_forward.1} parent=1 // pred_region
      %s63 = ssub.s32 128, 128
      %64 = vsyncadd [#allocation8], %s63
      %s66 = sshll.u32 [#allocation9], 4
      %s67 = int_to_ptr.vmem [resolvable:$true] %s66
      %69 = dma.hbm_to_vmem [thread:$0]  %s6, 128, %s67, [#allocation8]
    $region29: #{music_model_forward.1} parent=1 // pred_fallthru
      _
    // Predicated region
    $region30: #{music_model_forward.1} parent=1 // pred_check
      _
    $region31: #{music_model_forward.1} parent=1 // pred_check_branch
      %71 = sbr.rel (0) target = $region33
    $region32: #{music_model_forward.1} parent=1 // pred_region
      %s73 = ssub.s32 16384, 16384
      %74 = vsyncadd [#allocation11], %s73
      %s75 = sshll.u32 [#allocation10], 4
      %s76 = int_to_ptr.vmem [resolvable:$true] %s75
      %81 = dma.hbm_to_vmem [thread:$0]  %s7, 16384, %s76, [#allocation11], 512, 512, 32
    $region33: #{music_model_forward.1} parent=1 // pred_fallthru
      _
    // Predicated region
    $region34: #{music_model_forward.1} parent=1 // pred_check
      _
    $region35: #{music_model_forward.1} parent=1 // pred_check_branch
      %83 = sbr.rel (0) target = $region37
    $region36: #{music_model_forward.1} parent=1 // pred_region
      %s85 = ssub.s32 64, 64
      %86 = vsyncadd [#allocation11], %s85
      %s88 = sshll.u32 [#allocation12], 4
      %s89 = int_to_ptr.vmem [resolvable:$true] %s88
      %91 = dma.hbm_to_vmem [thread:$0]  %s8, 64, %s89, [#allocation11]
    $region37: #{music_model_forward.1} parent=1 // pred_fallthru
      _
    // Predicated region
    $region38: #{music_model_forward.1} parent=1 // pred_check
      _
    $region39: #{music_model_forward.1} parent=1 // pred_check_branch
      %93 = sbr.rel (0) target = $region41
    $region40: #{music_model_forward.1} parent=1 // pred_region
      %s95 = ssub.s32 64, 64
      %96 = vsyncadd [#allocation14], %s95
      %s98 = sshll.u32 [#allocation13], 4
      %s99 = int_to_ptr.vmem [resolvable:$true] %s98
      %101 = dma.hbm_to_vmem [thread:$0]  %s9, 64, %s99, [#allocation14]
    $region41: #{music_model_forward.1} parent=1 // pred_fallthru
      _
    // Predicated region
    $region42: #{music_model_forward.1} parent=1 // pred_check
      _
    $region43: #{music_model_forward.1} parent=1 // pred_check_branch
      %103 = sbr.rel (0) target = $region45
    $region44: #{music_model_forward.1} parent=1 // pred_region
      _
    $region45: #{music_model_forward.1} parent=1 // pred_fallthru
      _
    // Predicated region
    $region46: #{music_model_forward.1} parent=1 // pred_check
      _
    $region47: #{music_model_forward.1} parent=1 // pred_check_branch
      %105 = sbr.rel (0) target = $region49
    $region48: #{music_model_forward.1} parent=1 // pred_region
      _
    $region49: #{music_model_forward.1} parent=1 // pred_fallthru
      _
    // Predicated region
    $region50: #{music_model_forward.1} parent=1 // pred_check
      _
    $region51: #{music_model_forward.1} parent=1 // pred_check_branch
      %107 = sbr.rel (0) target = $region53
    $region52: #{music_model_forward.1} parent=1 // pred_region
      %108 = dma.done [#allocation5], 16
    $region53: #{music_model_forward.1} parent=1 // pred_fallthru
      _
    // Predicated region
    $region54: #{music_model_forward.1} parent=1 // pred_check
      _
    $region55: #{music_model_forward.1} parent=1 // pred_check_branch
      %110 = sbr.rel (0) target = $region57
    $region56: #{music_model_forward.1} parent=1 // pred_region
      %111 = dma.done [#allocation4], 106496
    $region57: #{music_model_forward.1} parent=1 // pred_fallthru
      _
    // Predicated region
    $region58: #{music_model_forward.1} parent=1 // pred_check
      _
    $region59: #{music_model_forward.1} parent=1 // pred_check_branch
      %113 = sbr.rel (0) target = $region61
    $region60: #{music_model_forward.1} parent=1 // pred_region
      %114 = dma.done [#allocation8], 128
    $region61: #{music_model_forward.1} parent=1 // pred_fallthru
      _
    // Predicated region
    $region62: #{music_model_forward.1} parent=1 // pred_check
      _
    $region63: #{music_model_forward.1} parent=1 // pred_check_branch
      %116 = sbr.rel (0) target = $region65
    $region64: #{music_model_forward.1} parent=1 // pred_region
      %117 = dma.done [#allocation8], 128
    $region65: #{music_model_forward.1} parent=1 // pred_fallthru
      _
    // Predicated region
    $region66: #{music_model_forward.1} parent=1 // pred_check
      _
    $region67: #{music_model_forward.1} parent=1 // pred_check_branch
      %119 = sbr.rel (0) target = $region69
    $region68: #{music_model_forward.1} parent=1 // pred_region
      %120 = dma.done [#allocation11], 16384
    $region69: #{music_model_forward.1} parent=1 // pred_fallthru
      _
    // Predicated region
    $region70: #{music_model_forward.1} parent=1 // pred_check
      _
    $region71: #{music_model_forward.1} parent=1 // pred_check_branch
      %122 = sbr.rel (0) target = $region73
    $region72: #{music_model_forward.1} parent=1 // pred_region
      %123 = dma.done [#allocation11], 64
    $region73: #{music_model_forward.1} parent=1 // pred_fallthru
      _
    // Predicated region
    $region74: #{music_model_forward.1} parent=1 // pred_check
      _
    $region75: #{music_model_forward.1} parent=1 // pred_check_branch
      %125 = sbr.rel (0) target = $region77
    $region76: #{music_model_forward.1} parent=1 // pred_region
      %126 = dma.done [#allocation14], 64
    $region77: #{music_model_forward.1} parent=1 // pred_fallthru
      _
    %127 = sfence
    %s129 = sld [smem:[#allocation3 + $0xd]]
    %s130 = sld [smem:[#allocation3]]
    %v131 = vld [vmem:[%s2] ss:$8 sm:$0xf]
    %v132 = vld [vmem:[%s2] ss:$8 sm:$0xf0]
    %v133 = vor.u32 %v131, %v132
    %s134 = scalar_lea.vmem %s2, 64
    %v135 = vld [vmem:[%s134] ss:$8 sm:$0x3]
    %s136 = scalar_lea.vmem %s2, 160
    %v137 = vld [vmem:[%s136] ss:$8 sm:$0xf]
    %v138 = vld [vmem:[%s136] ss:$8 sm:$0xf0]
    %v139 = vor.u32 %v137, %v138
    %s140 = scalar_lea.vmem %s2, 224
    %v141 = vld [vmem:[%s140] ss:$8 sm:$0x3]
    %v142 = vstv %s130
    %v143 = vmul.f32 %v142, %v133
    %v144 = vmul.f32 %v142, %v135
    %v145 = vmul.f32 %v142, %v139
    %v146 = vmul.f32 %v142, %v141
    %v147 = vstv %s129
    %v148 = vadd.f32 %v147, %v143
    %v149 = vadd.f32 %v147, %v144
    %v150 = vadd.f32 %v147, %v145
    %v151 = vadd.f32 %v147, %v146
    %s152 = sld [smem:[#allocation3 + $0x1]]
    %s153 = scalar_lea.vmem %s2, 1
    %v154 = vld [vmem:[%s153] ss:$8 sm:$0xf]
    %v155 = vld [vmem:[%s153] ss:$8 sm:$0xf0]
    %v156 = vor.u32 %v154, %v155
    %s157 = scalar_lea.vmem %s2, 65
    %v158 = vld [vmem:[%s157] ss:$8 sm:$0x3]
    %s159 = scalar_lea.vmem %s2, 161
    %v160 = vld [vmem:[%s159] ss:$8 sm:$0xf]
    %v161 = vld [vmem:[%s159] ss:$8 sm:$0xf0]
    %v162 = vor.u32 %v160, %v161
    %s163 = scalar_lea.vmem %s2, 225
    %v164 = vld [vmem:[%s163] ss:$8 sm:$0x3]
    %v165 = vstv %s152
    %v166 = vmul.f32 %v165, %v156
    %v167 = vmul.f32 %v165, %v158
    %v168 = vmul.f32 %v165, %v162
    %v169 = vmul.f32 %v165, %v164
    %v170 = vadd.f32 %v148, %v166
    %v171 = vadd.f32 %v149, %v167
    %v172 = vadd.f32 %v150, %v168
    %v173 = vadd.f32 %v151, %v169
    %s174 = sld [smem:[#allocation3 + $0x2]]
    %s175 = scalar_lea.vmem %s2, 2
    %v176 = vld [vmem:[%s175] ss:$8 sm:$0xf]
    %v177 = vld [vmem:[%s175] ss:$8 sm:$0xf0]
    %v178 = vor.u32 %v176, %v177
    %s179 = scalar_lea.vmem %s2, 66
    %v180 = vld [vmem:[%s179] ss:$8 sm:$0x3]
    %s181 = scalar_lea.vmem %s2, 162
    %v182 = vld [vmem:[%s181] ss:$8 sm:$0xf]
    %v183 = vld [vmem:[%s181] ss:$8 sm:$0xf0]
    %v184 = vor.u32 %v182, %v183
    %s185 = scalar_lea.vmem %s2, 226
    %v186 = vld [vmem:[%s185] ss:$8 sm:$0x3]
    %v187 = vstv %s174
    %v188 = vmul.f32 %v187, %v178
    %v189 = vmul.f32 %v187, %v180
    %v190 = vmul.f32 %v187, %v184
    %v191 = vmul.f32 %v187, %v186
    %v192 = vadd.f32 %v170, %v188
    %v193 = vadd.f32 %v171, %v189
    %v194 = vadd.f32 %v172, %v190
    %v195 = vadd.f32 %v173, %v191
    %s196 = sld [smem:[#allocation3 + $0x3]]
    %s197 = scalar_lea.vmem %s2, 3
    %v198 = vld [vmem:[%s197] ss:$8 sm:$0xf]
    %v199 = vld [vmem:[%s197] ss:$8 sm:$0xf0]
    %v200 = vor.u32 %v198, %v199
    %s201 = scalar_lea.vmem %s2, 67
    %v202 = vld [vmem:[%s201] ss:$8 sm:$0x3]
    %s203 = scalar_lea.vmem %s2, 163
    %v204 = vld [vmem:[%s203] ss:$8 sm:$0xf]
    %v205 = vld [vmem:[%s203] ss:$8 sm:$0xf0]
    %v206 = vor.u32 %v204, %v205
    %s207 = scalar_lea.vmem %s2, 227
    %v208 = vld [vmem:[%s207] ss:$8 sm:$0x3]
    %v209 = vstv %s196
    %v210 = vmul.f32 %v209, %v200
    %v211 = vmul.f32 %v209, %v202
    %v212 = vmul.f32 %v209, %v206
    %v213 = vmul.f32 %v209, %v208
    %v214 = vadd.f32 %v192, %v210
    %v215 = vadd.f32 %v193, %v211
    %v216 = vadd.f32 %v194, %v212
    %v217 = vadd.f32 %v195, %v213
    %s218 = sld [smem:[#allocation3 + $0x4]]
    %s219 = scalar_lea.vmem %s2, 4
    %v220 = vld [vmem:[%s219] ss:$8 sm:$0xf]
    %v221 = vld [vmem:[%s219] ss:$8 sm:$0xf0]
    %v222 = vor.u32 %v220, %v221
    %s223 = scalar_lea.vmem %s2, 68
    %v224 = vld [vmem:[%s223] ss:$8 sm:$0x3]
    %s225 = scalar_lea.vmem %s2, 164
    %v226 = vld [vmem:[%s225] ss:$8 sm:$0xf]
    %v227 = vld [vmem:[%s225] ss:$8 sm:$0xf0]
    %v228 = vor.u32 %v226, %v227
    %s229 = scalar_lea.vmem %s2, 228
    %v230 = vld [vmem:[%s229] ss:$8 sm:$0x3]
    %v231 = vstv %s218
    %v232 = vmul.f32 %v231, %v222
    %v233 = vmul.f32 %v231, %v224
    %v234 = vmul.f32 %v231, %v228
    %v235 = vmul.f32 %v231, %v230
    %v236 = vadd.f32 %v214, %v232
    %v237 = vadd.f32 %v215, %v233
    %v238 = vadd.f32 %v216, %v234
    %v239 = vadd.f32 %v217, %v235
    %s240 = sld [smem:[#allocation3 + $0x5]]
    %s241 = scalar_lea.vmem %s2, 5
    %v242 = vld [vmem:[%s241] ss:$8 sm:$0xf]
    %v243 = vld [vmem:[%s241] ss:$8 sm:$0xf0]
    %v244 = vor.u32 %v242, %v243
    %s245 = scalar_lea.vmem %s2, 69
    %v246 = vld [vmem:[%s245] ss:$8 sm:$0x3]
    %s247 = scalar_lea.vmem %s2, 165
    %v248 = vld [vmem:[%s247] ss:$8 sm:$0xf]
    %v249 = vld [vmem:[%s247] ss:$8 sm:$0xf0]
    %v250 = vor.u32 %v248, %v249
    %s251 = scalar_lea.vmem %s2, 229
    %v252 = vld [vmem:[%s251] ss:$8 sm:$0x3]
    %v253 = vstv %s240
    %v254 = vmul.f32 %v253, %v244
    %v255 = vmul.f32 %v253, %v246
    %v256 = vmul.f32 %v253, %v250
    %v257 = vmul.f32 %v253, %v252
    %v258 = vadd.f32 %v236, %v254
    %v259 = vadd.f32 %v237, %v255
    %v260 = vadd.f32 %v238, %v256
    %v261 = vadd.f32 %v239, %v257
    %s262 = sld [smem:[#allocation3 + $0x6]]
    %s263 = scalar_lea.vmem %s2, 6
    %v264 = vld [vmem:[%s263] ss:$8 sm:$0xf]
    %v265 = vld [vmem:[%s263] ss:$8 sm:$0xf0]
    %v266 = vor.u32 %v264, %v265
    %s267 = scalar_lea.vmem %s2, 70
    %v268 = vld [vmem:[%s267] ss:$8 sm:$0x3]
    %s269 = scalar_lea.vmem %s2, 166
    %v270 = vld [vmem:[%s269] ss:$8 sm:$0xf]
    %v271 = vld [vmem:[%s269] ss:$8 sm:$0xf0]
    %v272 = vor.u32 %v270, %v271
    %s273 = scalar_lea.vmem %s2, 230
    %v274 = vld [vmem:[%s273] ss:$8 sm:$0x3]
    %v275 = vstv %s262
    %v276 = vmul.f32 %v275, %v266
    %v277 = vmul.f32 %v275, %v268
    %v278 = vmul.f32 %v275, %v272
    %v279 = vmul.f32 %v275, %v274
    %v280 = vadd.f32 %v258, %v276
    %v281 = vadd.f32 %v259, %v277
    %v282 = vadd.f32 %v260, %v278
    %v283 = vadd.f32 %v261, %v279
    %s284 = sld [smem:[#allocation3 + $0x7]]
    %s285 = scalar_lea.vmem %s2, 7
    %v286 = vld [vmem:[%s285] ss:$8 sm:$0xf]
    %v287 = vld [vmem:[%s285] ss:$8 sm:$0xf0]
    %v288 = vor.u32 %v286, %v287
    %s289 = scalar_lea.vmem %s2, 71
    %v290 = vld [vmem:[%s289] ss:$8 sm:$0x3]
    %s291 = scalar_lea.vmem %s2, 167
    %v292 = vld [vmem:[%s291] ss:$8 sm:$0xf]
    %v293 = vld [vmem:[%s291] ss:$8 sm:$0xf0]
    %v294 = vor.u32 %v292, %v293
    %s295 = scalar_lea.vmem %s2, 231
    %v296 = vld [vmem:[%s295] ss:$8 sm:$0x3]
    %v297 = vstv %s284
    %v298 = vmul.f32 %v297, %v288
    %v299 = vmul.f32 %v297, %v290
    %v300 = vmul.f32 %v297, %v294
    %v301 = vmul.f32 %v297, %v296
    %v302 = vadd.f32 %v280, %v298
    %v303 = vadd.f32 %v281, %v299
    %v304 = vadd.f32 %v282, %v300
    %v305 = vadd.f32 %v283, %v301
    %s306 = sld [smem:[#allocation3 + $0x8]]
    %s307 = scalar_lea.vmem %s2, 80
    %v308 = vld [vmem:[%s307] ss:$8 sm:$0xf]
    %v309 = vld [vmem:[%s307] ss:$8 sm:$0xf0]
    %v310 = vor.u32 %v308, %v309
    %s311 = scalar_lea.vmem %s2, 144
    %v312 = vld [vmem:[%s311] ss:$8 sm:$0x3]
    %s313 = scalar_lea.vmem %s2, 240
    %v314 = vld [vmem:[%s313] ss:$8 sm:$0xf]
    %v315 = vld [vmem:[%s313] ss:$8 sm:$0xf0]
    %v316 = vor.u32 %v314, %v315
    %s317 = scalar_lea.vmem %s2, 304
    %v318 = vld [vmem:[%s317] ss:$8 sm:$0x3]
    %v319 = vstv %s306
    %v320 = vmul.f32 %v319, %v310
    %v321 = vmul.f32 %v319, %v312
    %v322 = vmul.f32 %v319, %v316
    %v323 = vmul.f32 %v319, %v318
    %v324 = vadd.f32 %v302, %v320
    %v325 = vadd.f32 %v303, %v321
    %v326 = vadd.f32 %v304, %v322
    %v327 = vadd.f32 %v305, %v323
    %s328 = sld [smem:[#allocation3 + $0x9]]
    %s329 = scalar_lea.vmem %s2, 81
    %v330 = vld [vmem:[%s329] ss:$8 sm:$0xf]
    %v331 = vld [vmem:[%s329] ss:$8 sm:$0xf0]
    %v332 = vor.u32 %v330, %v331
    %s333 = scalar_lea.vmem %s2, 145
    %v334 = vld [vmem:[%s333] ss:$8 sm:$0x3]
    %s335 = scalar_lea.vmem %s2, 241
    %v336 = vld [vmem:[%s335] ss:$8 sm:$0xf]
    %v337 = vld [vmem:[%s335] ss:$8 sm:$0xf0]
    %v338 = vor.u32 %v336, %v337
    %s339 = scalar_lea.vmem %s2, 305
    %v340 = vld [vmem:[%s339] ss:$8 sm:$0x3]
    %v341 = vstv %s328
    %v342 = vmul.f32 %v341, %v332
    %v343 = vmul.f32 %v341, %v334
    %v344 = vmul.f32 %v341, %v338
    %v345 = vmul.f32 %v341, %v340
    %v346 = vadd.f32 %v324, %v342
    %v347 = vadd.f32 %v325, %v343
    %v348 = vadd.f32 %v326, %v344
    %v349 = vadd.f32 %v327, %v345
    %s350 = sld [smem:[#allocation3 + $0xa]]
    %s351 = scalar_lea.vmem %s2, 82
    %v352 = vld [vmem:[%s351] ss:$8 sm:$0xf]
    %v353 = vld [vmem:[%s351] ss:$8 sm:$0xf0]
    %v354 = vor.u32 %v352, %v353
    %s355 = scalar_lea.vmem %s2, 146
    %v356 = vld [vmem:[%s355] ss:$8 sm:$0x3]
    %s357 = scalar_lea.vmem %s2, 242
    %v358 = vld [vmem:[%s357] ss:$8 sm:$0xf]
    %v359 = vld [vmem:[%s357] ss:$8 sm:$0xf0]
    %v360 = vor.u32 %v358, %v359
    %s361 = scalar_lea.vmem %s2, 306
    %v362 = vld [vmem:[%s361] ss:$8 sm:$0x3]
    %v363 = vstv %s350
    %v364 = vmul.f32 %v363, %v354
    %v365 = vmul.f32 %v363, %v356
    %v366 = vmul.f32 %v363, %v360
    %v367 = vmul.f32 %v363, %v362
    %v368 = vadd.f32 %v346, %v364
    %v369 = vadd.f32 %v347, %v365
    %v370 = vadd.f32 %v348, %v366
    %v371 = vadd.f32 %v349, %v367
    %s372 = sld [smem:[#allocation3 + $0xb]]
    %s373 = scalar_lea.vmem %s2, 83
    %v374 = vld [vmem:[%s373] ss:$8 sm:$0xf]
    %v375 = vld [vmem:[%s373] ss:$8 sm:$0xf0]
    %v376 = vor.u32 %v374, %v375
    %s377 = scalar_lea.vmem %s2, 147
    %v378 = vld [vmem:[%s377] ss:$8 sm:$0x3]
    %s379 = scalar_lea.vmem %s2, 243
    %v380 = vld [vmem:[%s379] ss:$8 sm:$0xf]
    %v381 = vld [vmem:[%s379] ss:$8 sm:$0xf0]
    %v382 = vor.u32 %v380, %v381
    %s383 = scalar_lea.vmem %s2, 307
    %v384 = vld [vmem:[%s383] ss:$8 sm:$0x3]
    %v385 = vstv %s372
    %v386 = vmul.f32 %v385, %v376
    %v387 = vmul.f32 %v385, %v378
    %v388 = vmul.f32 %v385, %v382
    %v389 = vmul.f32 %v385, %v384
    %v390 = vadd.f32 %v368, %v386
    %v391 = vadd.f32 %v369, %v387
    %v392 = vadd.f32 %v370, %v388
    %v393 = vadd.f32 %v371, %v389
    %s394 = sld [smem:[#allocation3 + $0xc]]
    %s395 = scalar_lea.vmem %s2, 84
    %v396 = vld [vmem:[%s395] ss:$8 sm:$0xf]
    %v397 = vld [vmem:[%s395] ss:$8 sm:$0xf0]
    %v398 = vor.u32 %v396, %v397
    %s399 = scalar_lea.vmem %s2, 148
    %v400 = vld [vmem:[%s399] ss:$8 sm:$0x3]
    %s401 = scalar_lea.vmem %s2, 244
    %v402 = vld [vmem:[%s401] ss:$8 sm:$0xf]
    %v403 = vld [vmem:[%s401] ss:$8 sm:$0xf0]
    %v404 = vor.u32 %v402, %v403
    %s405 = scalar_lea.vmem %s2, 308
    %v406 = vld [vmem:[%s405] ss:$8 sm:$0x3]
    %v407 = vstv %s394
    %v408 = vmul.f32 %v407, %v398
    %v409 = vmul.f32 %v407, %v400
    %v410 = vmul.f32 %v407, %v404
    %v411 = vmul.f32 %v407, %v406
    %v412 = vadd.f32 %v390, %v408
    %v413 = vadd.f32 %v391, %v409
    %v414 = vadd.f32 %v392, %v410
    %v415 = vadd.f32 %v393, %v411
    %v416 = vld [vmem:[%s1] sm:$0xff]
    %v417 = vld [vmem:[%s1 + $0x8] sm:$0xff]
    %v420 = vcombine.high %v416, %v416
    %v422 = vunpack.c.l.s4 1983009808
    %v423 = vunpack.c.0.s8 %v422
    %v424 = vlaneseq
    %v425 = vshrl.u32 %v424, 7
    %v426 = vsub.s32 %v423, %v425
    %v427 = vrot.slane %v416, %v426
    %v429 = vunpack.c.l.s4 1983009808
    %v430 = vunpack.c.0.s8 %v429
    %v431 = vlaneseq
    %v432 = vshrl.u32 %v431, 7
    %v433 = vsub.s32 %v430, %v432
    %v434 = vrot.slane %v420, %v433
    %v435 = vcombine.high %v427, %v427
    %v436 = vcombine.high %v434, %v434
    %v437 = vcombine.high %v417, %v417
    %v439 = vunpack.c.l.s4 1983009808
    %v440 = vunpack.c.0.s8 %v439
    %v441 = vlaneseq
    %v442 = vshrl.u32 %v441, 7
    %v443 = vsub.s32 %v440, %v442
    %v444 = vrot.slane %v417, %v443
    %v446 = vunpack.c.l.s4 1983009808
    %v447 = vunpack.c.0.s8 %v446
    %v448 = vlaneseq
    %v449 = vshrl.u32 %v448, 7
    %v450 = vsub.s32 %v447, %v449
    %v451 = vrot.slane %v437, %v450
    %v452 = vcombine.high %v444, %v444
    %v453 = vcombine.high %v451, %v451
    %v462 = vpack.c.bf16 %v427, %v427
    %v463 = vpack.c.bf16 %v435, %v435
    %v464 = vpack.c.bf16 %v434, %v434
    %v465 = vpack.c.bf16 %v436, %v436
    %v466 = vpack.c.bf16 %v444, %v444
    %v467 = vpack.c.bf16 %v452, %v452
    %v468 = vpack.c.bf16 %v451, %v451
    %v469 = vpack.c.bf16 %v453, %v453
    %v474 = vlaneseq
    %v475 = vshrl.u32 %v474, 7
    %v476 = vsub.s32 0, %v475
    %v477 = vrot.slane %v412, %v476
    %v478 = vlaneseq
    %v479 = vshrl.u32 %v478, 7
    %v480 = vsub.s32 1, %v479
    %v481 = vrot.slane %v412, %v480
    %v482 = vlaneseq
    %v483 = vshrl.u32 %v482, 7
    %v484 = vsub.s32 2, %v483
    %v485 = vrot.slane %v412, %v484
    %v486 = vlaneseq
    %v487 = vshrl.u32 %v486, 7
    %v488 = vsub.s32 3, %v487
    %v489 = vrot.slane %v412, %v488
    %v490 = vlaneseq
    %v491 = vshrl.u32 %v490, 7
    %v492 = vsub.s32 4, %v491
    %v493 = vrot.slane %v412, %v492
    %v494 = vlaneseq
    %v495 = vshrl.u32 %v494, 7
    %v496 = vsub.s32 5, %v495
    %v497 = vrot.slane %v412, %v496
    %v498 = vlaneseq
    %v499 = vshrl.u32 %v498, 7
    %v500 = vsub.s32 6, %v499
    %v501 = vrot.slane %v412, %v500
    %v502 = vlaneseq
    %v503 = vshrl.u32 %v502, 7
    %v504 = vsub.s32 7, %v503
    %v505 = vrot.slane %v412, %v504
    %v506 = vlaneseq
    %v507 = vshrl.u32 %v506, 7
    %v508 = vsub.s32 0, %v507
    %v509 = vrot.slane %v413, %v508
    %v510 = vlaneseq
    %v511 = vshrl.u32 %v510, 7
    %v512 = vsub.s32 1, %v511
    %v513 = vrot.slane %v413, %v512
    %v514 = vlaneseq
    %v515 = vshrl.u32 %v514, 7
    %v516 = vsub.s32 0, %v515
    %v517 = vrot.slane %v414, %v516
    %v518 = vlaneseq
    %v519 = vshrl.u32 %v518, 7
    %v520 = vsub.s32 1, %v519
    %v521 = vrot.slane %v414, %v520
    %v522 = vlaneseq
    %v523 = vshrl.u32 %v522, 7
    %v524 = vsub.s32 2, %v523
    %v525 = vrot.slane %v414, %v524
    %v526 = vlaneseq
    %v527 = vshrl.u32 %v526, 7
    %v528 = vsub.s32 3, %v527
    %v529 = vrot.slane %v414, %v528
    %v530 = vlaneseq
    %v531 = vshrl.u32 %v530, 7
    %v532 = vsub.s32 4, %v531
    %v533 = vrot.slane %v414, %v532
    %v534 = vlaneseq
    %v535 = vshrl.u32 %v534, 7
    %v536 = vsub.s32 5, %v535
    %v537 = vrot.slane %v414, %v536
    %v538 = vlaneseq
    %v539 = vshrl.u32 %v538, 7
    %v540 = vsub.s32 6, %v539
    %v541 = vrot.slane %v414, %v540
    %v542 = vlaneseq
    %v543 = vshrl.u32 %v542, 7
    %v544 = vsub.s32 7, %v543
    %v545 = vrot.slane %v414, %v544
    %v546 = vlaneseq
    %v547 = vshrl.u32 %v546, 7
    %v548 = vsub.s32 0, %v547
    %v549 = vrot.slane %v415, %v548
    %v550 = vlaneseq
    %v551 = vshrl.u32 %v550, 7
    %v552 = vsub.s32 1, %v551
    %v553 = vrot.slane %v415, %v552
    %v574 = vpack.c.bf16 %v477, %v477
    %v575 = vpack.c.bf16 %v481, %v481
    %v576 = vpack.c.bf16 %v485, %v485
    %v577 = vpack.c.bf16 %v489, %v489
    %v578 = vpack.c.bf16 %v493, %v493
    %v579 = vpack.c.bf16 %v497, %v497
    %v580 = vpack.c.bf16 %v501, %v501
    %v581 = vpack.c.bf16 %v505, %v505
    %v582 = vpack.c.bf16 %v509, %v509
    %v583 = vpack.c.bf16 %v513, %v513
    %v584 = vpack.c.bf16 %v517, %v517
    %v585 = vpack.c.bf16 %v521, %v521
    %v586 = vpack.c.bf16 %v525, %v525
    %v587 = vpack.c.bf16 %v529, %v529
    %v588 = vpack.c.bf16 %v533, %v533
    %v589 = vpack.c.bf16 %v537, %v537
    %v590 = vpack.c.bf16 %v541, %v541
    %v591 = vpack.c.bf16 %v545, %v545
    %v592 = vpack.c.bf16 %v549, %v549
    %v593 = vpack.c.bf16 %v553, %v553
    %v594 = vld [vmem:[%s3] sm:$0xff]
    %v595 = vld [vmem:[%s3 + $0x8] sm:$0xff]
    %v598 = vcombine.high %v594, %v594
    %v600 = vunpack.c.l.s4 1983009808
    %v601 = vunpack.c.0.s8 %v600
    %v602 = vlaneseq
    %v603 = vshrl.u32 %v602, 7
    %v604 = vsub.s32 %v601, %v603
    %v605 = vrot.slane %v594, %v604
    %v607 = vunpack.c.l.s4 1983009808
    %v608 = vunpack.c.0.s8 %v607
    %v609 = vlaneseq
    %v610 = vshrl.u32 %v609, 7
    %v611 = vsub.s32 %v608, %v610
    %v612 = vrot.slane %v598, %v611
    %v613 = vcombine.high %v605, %v605
    %v614 = vcombine.high %v612, %v612
    %v615 = vcombine.high %v595, %v595
    %v617 = vunpack.c.l.s4 1983009808
    %v618 = vunpack.c.0.s8 %v617
    %v619 = vlaneseq
    %v620 = vshrl.u32 %v619, 7
    %v621 = vsub.s32 %v618, %v620
    %v622 = vrot.slane %v595, %v621
    %v624 = vunpack.c.l.s4 1983009808
    %v625 = vunpack.c.0.s8 %v624
    %v626 = vlaneseq
    %v627 = vshrl.u32 %v626, 7
    %v628 = vsub.s32 %v625, %v627
    %v629 = vrot.slane %v615, %v628
    %v630 = vcombine.high %v622, %v622
    %v631 = vcombine.high %v629, %v629
    %v640 = vpack.c.bf16 %v605, %v605
    %v641 = vpack.c.bf16 %v613, %v613
    %v642 = vpack.c.bf16 %v612, %v612
    %v643 = vpack.c.bf16 %v614, %v614
    %v644 = vpack.c.bf16 %v622, %v622
    %v645 = vpack.c.bf16 %v630, %v630
    %v646 = vpack.c.bf16 %v629, %v629
    %v647 = vpack.c.bf16 %v631, %v631
    %v648 = vld [vmem:[#allocation6] sm:$0xff]
    %v649 = vld [vmem:[#allocation6 + $0x8] sm:$0xff]
    %v650 = vld [vmem:[#allocation6 + $0x10] sm:$0xff]
    %v651 = vld [vmem:[#allocation6 + $0x18] sm:$0xff]
    %v652 = vld [vmem:[#allocation6 + $0x20] sm:$0xff]
    %v653 = vld [vmem:[#allocation6 + $0x28] sm:$0xff]
    %v654 = vld [vmem:[#allocation6 + $0x30] sm:$0xff]
    %v655 = vld [vmem:[#allocation6 + $0x38] sm:$0xff]
    %v656 = vld [vmem:[#allocation6 + $0x40] sm:$0xff]
    %v657 = vld [vmem:[#allocation6 + $0x48] sm:$0xff]
    %v658 = vld [vmem:[#allocation6 + $0x50] sm:$0xff]
    %v659 = vld [vmem:[#allocation6 + $0x58] sm:$0xff]
    %v660 = vld [vmem:[#allocation6 + $0x60] sm:$0xff]
    %v661 = vld [vmem:[#allocation6 + $0x68] sm:$0xff]
    %v662 = vld [vmem:[#allocation6 + $0x70] sm:$0xff]
    %v663 = vld [vmem:[#allocation6 + $0x78] sm:$0xff]
    %v664 = vld [vmem:[#allocation6 + $0x80] sm:$0xff]
    %v665 = vld [vmem:[#allocation6 + $0x88] sm:$0xff]
    %v666 = vld [vmem:[#allocation6 + $0x90] sm:$0xff]
    %v667 = vld [vmem:[#allocation6 + $0x98] sm:$0xff]
    %v668 = vld [vmem:[#allocation6 + $0xa0] sm:$0xff]
    %v669 = vld [vmem:[#allocation6 + $0xa8] sm:$0xff]
    %v670 = vld [vmem:[#allocation6 + $0xb0] sm:$0xff]
    %v671 = vld [vmem:[#allocation6 + $0xb8] sm:$0xff]
    %v672 = vld [vmem:[#allocation6 + $0xc0] sm:$0xff]
    %v673 = vld [vmem:[#allocation6 + $0xc8] sm:$0xff]
    %v674 = vld [vmem:[#allocation6 + $0xd0] sm:$0xff]
    %v675 = vld [vmem:[#allocation6 + $0xd8] sm:$0xff]
    %v676 = vld [vmem:[#allocation6 + $0xe0] sm:$0xff]
    %v677 = vld [vmem:[#allocation6 + $0xe8] sm:$0xff]
    %v678 = vld [vmem:[#allocation6 + $0xf0] sm:$0xff]
    %v679 = vld [vmem:[#allocation6 + $0xf8] sm:$0xff]
    %v680 = vld [vmem:[#allocation6 + $0x100] sm:$0xff]
    %v681 = vld [vmem:[#allocation6 + $0x108] sm:$0xff]
    %v682 = vld [vmem:[#allocation6 + $0x110] sm:$0xff]
    %v683 = vld [vmem:[#allocation6 + $0x118] sm:$0xff]
    %v684 = vld [vmem:[#allocation6 + $0x120] sm:$0xff]
    %v685 = vld [vmem:[#allocation6 + $0x128] sm:$0xff]
    %v686 = vld [vmem:[#allocation6 + $0x130] sm:$0xff]
    %v687 = vld [vmem:[#allocation6 + $0x138] sm:$0xff]
    %v688 = vld [vmem:[#allocation6 + $0x140] sm:$0xff]
    %v689 = vld [vmem:[#allocation6 + $0x148] sm:$0xff]
    %v690 = vld [vmem:[#allocation6 + $0x150] sm:$0xff]
    %v691 = vld [vmem:[#allocation6 + $0x158] sm:$0xff]
    %v692 = vld [vmem:[#allocation6 + $0x160] sm:$0xff]
    %v693 = vld [vmem:[#allocation6 + $0x168] sm:$0xff]
    %v694 = vld [vmem:[#allocation6 + $0x170] sm:$0xff]
    %v695 = vld [vmem:[#allocation6 + $0x178] sm:$0xff]
    %v696 = vld [vmem:[#allocation6 + $0x180] sm:$0xff]
    %v697 = vld [vmem:[#allocation6 + $0x188] sm:$0xff]
    %v698 = vld [vmem:[#allocation6 + $0x190] sm:$0xff]
    %v699 = vld [vmem:[#allocation6 + $0x198] sm:$0xff]
    %v700 = vld [vmem:[#allocation6 + $0x1a0] sm:$0xff]
    %v701 = vld [vmem:[#allocation6 + $0x1a8] sm:$0xff]
    %v702 = vld [vmem:[#allocation6 + $0x1b0] sm:$0xff]
    %v703 = vld [vmem:[#allocation6 + $0x1b8] sm:$0xff]
    %v704 = vld [vmem:[#allocation6 + $0x1c0] sm:$0xff]
    %v705 = vld [vmem:[#allocation6 + $0x1c8] sm:$0xff]
    %v706 = vld [vmem:[#allocation6 + $0x1d0] sm:$0xff]
    %v707 = vld [vmem:[#allocation6 + $0x1d8] sm:$0xff]
    %v708 = vld [vmem:[#allocation6 + $0x1e0] sm:$0xff]
    %v709 = vld [vmem:[#allocation6 + $0x1e8] sm:$0xff]
    %v710 = vld [vmem:[#allocation6 + $0x1f0] sm:$0xff]
    %v711 = vld [vmem:[#allocation6 + $0x1f8] sm:$0xff]
    %v712 = vld [vmem:[#allocation6 + $0x200] sm:$0xff]
    %v713 = vld [vmem:[#allocation6 + $0x208] sm:$0xff]
    %v714 = vld [vmem:[#allocation6 + $0x210] sm:$0xff]
    %v715 = vld [vmem:[#allocation6 + $0x218] sm:$0xff]
    %v716 = vld [vmem:[#allocation6 + $0x220] sm:$0xff]
    %v717 = vld [vmem:[#allocation6 + $0x228] sm:$0xff]
    %v718 = vld [vmem:[#allocation6 + $0x230] sm:$0xff]
    %v719 = vld [vmem:[#allocation6 + $0x238] sm:$0xff]
    %v720 = vld [vmem:[#allocation6 + $0x240] sm:$0xff]
    %v721 = vld [vmem:[#allocation6 + $0x248] sm:$0xff]
    %v722 = vld [vmem:[#allocation6 + $0x250] sm:$0xff]
    %v723 = vld [vmem:[#allocation6 + $0x258] sm:$0xff]
    %v724 = vld [vmem:[#allocation6 + $0x260] sm:$0xff]
    %v725 = vld [vmem:[#allocation6 + $0x268] sm:$0xff]
    %v726 = vld [vmem:[#allocation6 + $0x270] sm:$0xff]
    %v727 = vld [vmem:[#allocation6 + $0x278] sm:$0xff]
    %v728 = vld [vmem:[#allocation6 + $0x280] sm:$0xff]
    %v729 = vld [vmem:[#allocation6 + $0x288] sm:$0xff]
    %v730 = vld [vmem:[#allocation6 + $0x290] sm:$0xff]
    %v731 = vld [vmem:[#allocation6 + $0x298] sm:$0xff]
    %v732 = vld [vmem:[#allocation6 + $0x2a0] sm:$0xff]
    %v733 = vld [vmem:[#allocation6 + $0x2a8] sm:$0xff]
    %v734 = vld [vmem:[#allocation6 + $0x2b0] sm:$0xff]
    %v735 = vld [vmem:[#allocation6 + $0x2b8] sm:$0xff]
    %v736 = vld [vmem:[#allocation6 + $0x2c0] sm:$0xff]
    %v737 = vld [vmem:[#allocation6 + $0x2c8] sm:$0xff]
    %v738 = vld [vmem:[#allocation6 + $0x2d0] sm:$0xff]
    %v739 = vld [vmem:[#allocation6 + $0x2d8] sm:$0xff]
    %v740 = vld [vmem:[#allocation6 + $0x2e0] sm:$0xff]
    %v741 = vld [vmem:[#allocation6 + $0x2e8] sm:$0xff]
    %v742 = vld [vmem:[#allocation6 + $0x2f0] sm:$0xff]
    %v743 = vld [vmem:[#allocation6 + $0x2f8] sm:$0xff]
    %v744 = vld [vmem:[#allocation6 + $0x300] sm:$0xff]
    %v745 = vld [vmem:[#allocation6 + $0x308] sm:$0xff]
    %v746 = vld [vmem:[#allocation6 + $0x310] sm:$0xff]
    %v747 = vld [vmem:[#allocation6 + $0x318] sm:$0xff]
    %v748 = vld [vmem:[#allocation6 + $0x320] sm:$0xff]
    %v749 = vld [vmem:[#allocation6 + $0x328] sm:$0xff]
    %v750 = vld [vmem:[#allocation6 + $0x330] sm:$0xff]
    %v751 = vld [vmem:[#allocation6 + $0x338] sm:$0xff]
    %v752 = vld [vmem:[#allocation6 + $0x340] sm:$0xff]
    %v753 = vld [vmem:[#allocation6 + $0x348] sm:$0xff]
    %v754 = vld [vmem:[#allocation6 + $0x350] sm:$0xff]
    %v755 = vld [vmem:[#allocation6 + $0x358] sm:$0xff]
    %v756 = vld [vmem:[#allocation6 + $0x360] sm:$0xff]
    %v757 = vld [vmem:[#allocation6 + $0x368] sm:$0xff]
    %v758 = vld [vmem:[#allocation6 + $0x370] sm:$0xff]
    %v759 = vld [vmem:[#allocation6 + $0x378] sm:$0xff]
    %v760 = vld [vmem:[#allocation6 + $0x380] sm:$0xff]
    %v761 = vld [vmem:[#allocation6 + $0x388] sm:$0xff]
    %v762 = vld [vmem:[#allocation6 + $0x390] sm:$0xff]
    %v763 = vld [vmem:[#allocation6 + $0x398] sm:$0xff]
    %v764 = vld [vmem:[#allocation6 + $0x3a0] sm:$0xff]
    %v765 = vld [vmem:[#allocation6 + $0x3a8] sm:$0xff]
    %v766 = vld [vmem:[#allocation6 + $0x3b0] sm:$0xff]
    %v767 = vld [vmem:[#allocation6 + $0x3b8] sm:$0xff]
    %v768 = vld [vmem:[#allocation6 + $0x3c0] sm:$0xff]
    %v769 = vld [vmem:[#allocation6 + $0x3c8] sm:$0xff]
    %v770 = vld [vmem:[#allocation6 + $0x3d0] sm:$0xff]
    %v771 = vld [vmem:[#allocation6 + $0x3d8] sm:$0xff]
    %v772 = vld [vmem:[#allocation6 + $0x3e0] sm:$0xff]
    %v773 = vld [vmem:[#allocation6 + $0x3e8] sm:$0xff]
    %v774 = vld [vmem:[#allocation6 + $0x3f0] sm:$0xff]
    %v775 = vld [vmem:[#allocation6 + $0x3f8] sm:$0xff]
    %v776 = vld [vmem:[#allocation6 + $0x400] sm:$0xff]
    %v777 = vld [vmem:[#allocation6 + $0x408] sm:$0xff]
    %v778 = vld [vmem:[#allocation6 + $0x410] sm:$0xff]
    %v779 = vld [vmem:[#allocation6 + $0x418] sm:$0xff]
    %v780 = vld [vmem:[#allocation6 + $0x420] sm:$0xff]
    %v781 = vld [vmem:[#allocation6 + $0x428] sm:$0xff]
    %v782 = vld [vmem:[#allocation6 + $0x430] sm:$0xff]
    %v783 = vld [vmem:[#allocation6 + $0x438] sm:$0xff]
    %v784 = vld [vmem:[#allocation6 + $0x440] sm:$0xff]
    %v785 = vld [vmem:[#allocation6 + $0x448] sm:$0xff]
    %v786 = vld [vmem:[#allocation6 + $0x450] sm:$0xff]
    %v787 = vld [vmem:[#allocation6 + $0x458] sm:$0xff]
    %v788 = vld [vmem:[#allocation6 + $0x460] sm:$0xff]
    %v789 = vld [vmem:[#allocation6 + $0x468] sm:$0xff]
    %v790 = vld [vmem:[#allocation6 + $0x470] sm:$0xff]
    %v791 = vld [vmem:[#allocation6 + $0x478] sm:$0xff]
    %v792 = vld [vmem:[#allocation6 + $0x480] sm:$0xff]
    %v793 = vld [vmem:[#allocation6 + $0x488] sm:$0xff]
    %v794 = vld [vmem:[#allocation6 + $0x490] sm:$0xff]
    %v795 = vld [vmem:[#allocation6 + $0x498] sm:$0xff]
    %v796 = vld [vmem:[#allocation6 + $0x4a0] sm:$0xff]
    %v797 = vld [vmem:[#allocation6 + $0x4a8] sm:$0xff]
    %v798 = vld [vmem:[#allocation6 + $0x4b0] sm:$0xff]
    %v799 = vld [vmem:[#allocation6 + $0x4b8] sm:$0xff]
    %v800 = vld [vmem:[#allocation6 + $0x4c0] sm:$0xff]
    %v801 = vld [vmem:[#allocation6 + $0x4c8] sm:$0xff]
    %v802 = vld [vmem:[#allocation6 + $0x4d0] sm:$0xff]
    %v803 = vld [vmem:[#allocation6 + $0x4d8] sm:$0xff]
    %v804 = vld [vmem:[#allocation6 + $0x4e0] sm:$0xff]
    %v805 = vld [vmem:[#allocation6 + $0x4e8] sm:$0xff]
    %v806 = vld [vmem:[#allocation6 + $0x4f0] sm:$0xff]
    %v807 = vld [vmem:[#allocation6 + $0x4f8] sm:$0xff]
    %v808 = vld [vmem:[#allocation6 + $0x500] sm:$0xff]
    %v809 = vld [vmem:[#allocation6 + $0x508] sm:$0xff]
    %v810 = vld [vmem:[#allocation6 + $0x510] sm:$0xff]
    %v811 = vld [vmem:[#allocation6 + $0x518] sm:$0xff]
    %v812 = vld [vmem:[#allocation6 + $0x520] sm:$0xff]
    %v813 = vld [vmem:[#allocation6 + $0x528] sm:$0xff]
    %v814 = vld [vmem:[#allocation6 + $0x530] sm:$0xff]
    %v815 = vld [vmem:[#allocation6 + $0x538] sm:$0xff]
    %v816 = vld [vmem:[#allocation6 + $0x540] sm:$0xff]
    %v817 = vld [vmem:[#allocation6 + $0x548] sm:$0xff]
    %v818 = vld [vmem:[#allocation6 + $0x550] sm:$0xff]
    %v819 = vld [vmem:[#allocation6 + $0x558] sm:$0xff]
    %v820 = vld [vmem:[#allocation6 + $0x560] sm:$0xff]
    %v821 = vld [vmem:[#allocation6 + $0x568] sm:$0xff]
    %v822 = vld [vmem:[#allocation6 + $0x570] sm:$0xff]
    %v823 = vld [vmem:[#allocation6 + $0x578] sm:$0xff]
    %v824 = vld [vmem:[#allocation6 + $0x580] sm:$0xff]
    %v825 = vld [vmem:[#allocation6 + $0x588] sm:$0xff]
    %v826 = vld [vmem:[#allocation6 + $0x590] sm:$0xff]
    %v827 = vld [vmem:[#allocation6 + $0x598] sm:$0xff]
    %v828 = vld [vmem:[#allocation6 + $0x5a0] sm:$0xff]
    %v829 = vld [vmem:[#allocation6 + $0x5a8] sm:$0xff]
    %v830 = vld [vmem:[#allocation6 + $0x5b0] sm:$0xff]
    %v831 = vld [vmem:[#allocation6 + $0x5b8] sm:$0xff]
    %v832 = vld [vmem:[#allocation6 + $0x5c0] sm:$0xff]
    %v833 = vld [vmem:[#allocation6 + $0x5c8] sm:$0xff]
    %v834 = vld [vmem:[#allocation6 + $0x5d0] sm:$0xff]
    %v835 = vld [vmem:[#allocation6 + $0x5d8] sm:$0xff]
    %v836 = vld [vmem:[#allocation6 + $0x5e0] sm:$0xff]
    %v837 = vld [vmem:[#allocation6 + $0x5e8] sm:$0xff]
    %v838 = vld [vmem:[#allocation6 + $0x5f0] sm:$0xff]
    %v839 = vld [vmem:[#allocation6 + $0x5f8] sm:$0xff]
    %v840 = vld [vmem:[#allocation6 + $0x600] sm:$0xff]
    %v841 = vld [vmem:[#allocation6 + $0x608] sm:$0xff]
    %v842 = vld [vmem:[#allocation6 + $0x610] sm:$0xff]
    %v843 = vld [vmem:[#allocation6 + $0x618] sm:$0xff]
    %v844 = vld [vmem:[#allocation6 + $0x620] sm:$0xff]
    %v845 = vld [vmem:[#allocation6 + $0x628] sm:$0xff]
    %v846 = vld [vmem:[#allocation6 + $0x630] sm:$0xff]
    %v847 = vld [vmem:[#allocation6 + $0x638] sm:$0xff]
    %v848 = vld [vmem:[#allocation6 + $0x640] sm:$0xff]
    %v849 = vld [vmem:[#allocation6 + $0x648] sm:$0xff]
    %v850 = vld [vmem:[#allocation6 + $0x650] sm:$0xff]
    %v851 = vld [vmem:[#allocation6 + $0x658] sm:$0xff]
    %v852 = vld [vmem:[#allocation6 + $0x660] sm:$0xff]
    %v853 = vld [vmem:[#allocation6 + $0x668] sm:$0xff]
    %v854 = vld [vmem:[#allocation6 + $0x670] sm:$0xff]
    %v855 = vld [vmem:[#allocation6 + $0x678] sm:$0xff]
    %v856 = vld [vmem:[#allocation6 + $0x680] sm:$0xff]
    %v857 = vld [vmem:[#allocation6 + $0x688] sm:$0xff]
    %v858 = vld [vmem:[#allocation6 + $0x690] sm:$0xff]
    %v859 = vld [vmem:[#allocation6 + $0x698] sm:$0xff]
    %v860 = vld [vmem:[#allocation6 + $0x6a0] sm:$0xff]
    %v861 = vld [vmem:[#allocation6 + $0x6a8] sm:$0xff]
    %v862 = vld [vmem:[#allocation6 + $0x6b0] sm:$0xff]
    %v863 = vld [vmem:[#allocation6 + $0x6b8] sm:$0xff]
    %v864 = vld [vmem:[#allocation6 + $0x6c0] sm:$0xff]
    %v865 = vld [vmem:[#allocation6 + $0x6c8] sm:$0xff]
    %v866 = vld [vmem:[#allocation6 + $0x6d0] sm:$0xff]
    %v867 = vld [vmem:[#allocation6 + $0x6d8] sm:$0xff]
    %v868 = vld [vmem:[#allocation6 + $0x6e0] sm:$0xff]
    %v869 = vld [vmem:[#allocation6 + $0x6e8] sm:$0xff]
    %v870 = vld [vmem:[#allocation6 + $0x6f0] sm:$0xff]
    %v871 = vld [vmem:[#allocation6 + $0x6f8] sm:$0xff]
    %v872 = vld [vmem:[#allocation6 + $0x700] sm:$0xff]
    %v873 = vld [vmem:[#allocation6 + $0x708] sm:$0xff]
    %v874 = vld [vmem:[#allocation6 + $0x710] sm:$0xff]
    %v875 = vld [vmem:[#allocation6 + $0x718] sm:$0xff]
    %v876 = vld [vmem:[#allocation6 + $0x720] sm:$0xff]
    %v877 = vld [vmem:[#allocation6 + $0x728] sm:$0xff]
    %v878 = vld [vmem:[#allocation6 + $0x730] sm:$0xff]
    %v879 = vld [vmem:[#allocation6 + $0x738] sm:$0xff]
    %v880 = vld [vmem:[#allocation6 + $0x740] sm:$0xff]
    %v881 = vld [vmem:[#allocation6 + $0x748] sm:$0xff]
    %v882 = vld [vmem:[#allocation6 + $0x750] sm:$0xff]
    %v883 = vld [vmem:[#allocation6 + $0x758] sm:$0xff]
    %v884 = vld [vmem:[#allocation6 + $0x760] sm:$0xff]
    %v885 = vld [vmem:[#allocation6 + $0x768] sm:$0xff]
    %v886 = vld [vmem:[#allocation6 + $0x770] sm:$0xff]
    %v887 = vld [vmem:[#allocation6 + $0x778] sm:$0xff]
    %v888 = vld [vmem:[#allocation6 + $0x780] sm:$0xff]
    %v889 = vld [vmem:[#allocation6 + $0x788] sm:$0xff]
    %v890 = vld [vmem:[#allocation6 + $0x790] sm:$0xff]
    %v891 = vld [vmem:[#allocation6 + $0x798] sm:$0xff]
    %v892 = vld [vmem:[#allocation6 + $0x7a0] sm:$0xff]
    %v893 = vld [vmem:[#allocation6 + $0x7a8] sm:$0xff]
    %v894 = vld [vmem:[#allocation6 + $0x7b0] sm:$0xff]
    %v895 = vld [vmem:[#allocation6 + $0x7b8] sm:$0xff]
    %v896 = vld [vmem:[#allocation6 + $0x7c0] sm:$0xff]
    %v897 = vld [vmem:[#allocation6 + $0x7c8] sm:$0xff]
    %v898 = vld [vmem:[#allocation6 + $0x7d0] sm:$0xff]
    %v899 = vld [vmem:[#allocation6 + $0x7d8] sm:$0xff]
    %v900 = vld [vmem:[#allocation6 + $0x7e0] sm:$0xff]
    %v901 = vld [vmem:[#allocation6 + $0x7e8] sm:$0xff]
    %v902 = vld [vmem:[#allocation6 + $0x7f0] sm:$0xff]
    %v903 = vld [vmem:[#allocation6 + $0x7f8] sm:$0xff]
    %v904 = vunpack.c.l.s8.bf16 %v648
    %v905 = vunpack.c.l.s8.bf16 %v649
    %v906 = vunpack.c.l.s8.bf16 %v650
    %v907 = vunpack.c.l.s8.bf16 %v651
    %v908 = vunpack.c.l.s8.bf16 %v652
    %v909 = vunpack.c.l.s8.bf16 %v653
    %v910 = vunpack.c.l.s8.bf16 %v654
    %v911 = vunpack.c.l.s8.bf16 %v655
    %v912 = vunpack.c.h.s8.bf16 %v648
    %v913 = vunpack.c.h.s8.bf16 %v649
    %v914 = vunpack.c.h.s8.bf16 %v650
    %v915 = vunpack.c.h.s8.bf16 %v651
    %v916 = vunpack.c.h.s8.bf16 %v652
    %v917 = vunpack.c.h.s8.bf16 %v653
    %v918 = vunpack.c.h.s8.bf16 %v654
    %v919 = vunpack.c.h.s8.bf16 %v655
    %v920 = vunpack.c.l.s8.bf16 %v656
    %v921 = vunpack.c.l.s8.bf16 %v657
    %v922 = vunpack.c.l.s8.bf16 %v658
    %v923 = vunpack.c.l.s8.bf16 %v659
    %v924 = vunpack.c.l.s8.bf16 %v660
    %v925 = vunpack.c.l.s8.bf16 %v661
    %v926 = vunpack.c.l.s8.bf16 %v662
    %v927 = vunpack.c.l.s8.bf16 %v663
    %v928 = vunpack.c.h.s8.bf16 %v656
    %v929 = vunpack.c.h.s8.bf16 %v657
    %v930 = vunpack.c.h.s8.bf16 %v658
    %v931 = vunpack.c.h.s8.bf16 %v659
    %v932 = vunpack.c.h.s8.bf16 %v660
    %v933 = vunpack.c.h.s8.bf16 %v661
    %v934 = vunpack.c.h.s8.bf16 %v662
    %v935 = vunpack.c.h.s8.bf16 %v663
    %v936 = vunpack.c.l.s8.bf16 %v664
    %v937 = vunpack.c.l.s8.bf16 %v665
    %v938 = vunpack.c.l.s8.bf16 %v666
    %v939 = vunpack.c.l.s8.bf16 %v667
    %v940 = vunpack.c.l.s8.bf16 %v668
    %v941 = vunpack.c.l.s8.bf16 %v669
    %v942 = vunpack.c.l.s8.bf16 %v670
    %v943 = vunpack.c.l.s8.bf16 %v671
    %v944 = vunpack.c.h.s8.bf16 %v664
    %v945 = vunpack.c.h.s8.bf16 %v665
    %v946 = vunpack.c.h.s8.bf16 %v666
    %v947 = vunpack.c.h.s8.bf16 %v667
    %v948 = vunpack.c.h.s8.bf16 %v668
    %v949 = vunpack.c.h.s8.bf16 %v669
    %v950 = vunpack.c.h.s8.bf16 %v670
    %v951 = vunpack.c.h.s8.bf16 %v671
    %v952 = vunpack.c.l.s8.bf16 %v672
    %v953 = vunpack.c.l.s8.bf16 %v673
    %v954 = vunpack.c.l.s8.bf16 %v674
    %v955 = vunpack.c.l.s8.bf16 %v675
    %v956 = vunpack.c.l.s8.bf16 %v676
    %v957 = vunpack.c.l.s8.bf16 %v677
    %v958 = vunpack.c.l.s8.bf16 %v678
    %v959 = vunpack.c.l.s8.bf16 %v679
    %v960 = vunpack.c.h.s8.bf16 %v672
    %v961 = vunpack.c.h.s8.bf16 %v673
    %v962 = vunpack.c.h.s8.bf16 %v674
    %v963 = vunpack.c.h.s8.bf16 %v675
    %v964 = vunpack.c.h.s8.bf16 %v676
    %v965 = vunpack.c.h.s8.bf16 %v677
    %v966 = vunpack.c.h.s8.bf16 %v678
    %v967 = vunpack.c.h.s8.bf16 %v679
    %v968 = vunpack.c.l.s8.bf16 %v680
    %v969 = vunpack.c.l.s8.bf16 %v681
    %v970 = vunpack.c.l.s8.bf16 %v682
    %v971 = vunpack.c.l.s8.bf16 %v683
    %v972 = vunpack.c.l.s8.bf16 %v684
    %v973 = vunpack.c.l.s8.bf16 %v685
    %v974 = vunpack.c.l.s8.bf16 %v686
    %v975 = vunpack.c.l.s8.bf16 %v687
    %v976 = vunpack.c.h.s8.bf16 %v680
    %v977 = vunpack.c.h.s8.bf16 %v681
    %v978 = vunpack.c.h.s8.bf16 %v682
    %v979 = vunpack.c.h.s8.bf16 %v683
    %v980 = vunpack.c.h.s8.bf16 %v684
    %v981 = vunpack.c.h.s8.bf16 %v685
    %v982 = vunpack.c.h.s8.bf16 %v686
    %v983 = vunpack.c.h.s8.bf16 %v687
    %v984 = vunpack.c.l.s8.bf16 %v688
    %v985 = vunpack.c.l.s8.bf16 %v689
    %v986 = vunpack.c.l.s8.bf16 %v690
    %v987 = vunpack.c.l.s8.bf16 %v691
    %v988 = vunpack.c.l.s8.bf16 %v692
    %v989 = vunpack.c.l.s8.bf16 %v693
    %v990 = vunpack.c.l.s8.bf16 %v694
    %v991 = vunpack.c.l.s8.bf16 %v695
    %v992 = vunpack.c.h.s8.bf16 %v688
    %v993 = vunpack.c.h.s8.bf16 %v689
    %v994 = vunpack.c.h.s8.bf16 %v690
    %v995 = vunpack.c.h.s8.bf16 %v691
    %v996 = vunpack.c.h.s8.bf16 %v692
    %v997 = vunpack.c.h.s8.bf16 %v693
    %v998 = vunpack.c.h.s8.bf16 %v694
    %v999 = vunpack.c.h.s8.bf16 %v695
    %v1000 = vunpack.c.l.s8.bf16 %v696
    %v1001 = vunpack.c.l.s8.bf16 %v697
    %v1002 = vunpack.c.l.s8.bf16 %v698
    %v1003 = vunpack.c.l.s8.bf16 %v699
    %v1004 = vunpack.c.l.s8.bf16 %v700
    %v1005 = vunpack.c.l.s8.bf16 %v701
    %v1006 = vunpack.c.l.s8.bf16 %v702
    %v1007 = vunpack.c.l.s8.bf16 %v703
    %v1008 = vunpack.c.h.s8.bf16 %v696
    %v1009 = vunpack.c.h.s8.bf16 %v697
    %v1010 = vunpack.c.h.s8.bf16 %v698
    %v1011 = vunpack.c.h.s8.bf16 %v699
    %v1012 = vunpack.c.h.s8.bf16 %v700
    %v1013 = vunpack.c.h.s8.bf16 %v701
    %v1014 = vunpack.c.h.s8.bf16 %v702
    %v1015 = vunpack.c.h.s8.bf16 %v703
    %v1016 = vunpack.c.l.s8.bf16 %v704
    %v1017 = vunpack.c.l.s8.bf16 %v705
    %v1018 = vunpack.c.l.s8.bf16 %v706
    %v1019 = vunpack.c.l.s8.bf16 %v707
    %v1020 = vunpack.c.l.s8.bf16 %v708
    %v1021 = vunpack.c.l.s8.bf16 %v709
    %v1022 = vunpack.c.l.s8.bf16 %v710
    %v1023 = vunpack.c.l.s8.bf16 %v711
    %v1024 = vunpack.c.h.s8.bf16 %v704
    %v1025 = vunpack.c.h.s8.bf16 %v705
    %v1026 = vunpack.c.h.s8.bf16 %v706
    %v1027 = vunpack.c.h.s8.bf16 %v707
    %v1028 = vunpack.c.h.s8.bf16 %v708
    %v1029 = vunpack.c.h.s8.bf16 %v709
    %v1030 = vunpack.c.h.s8.bf16 %v710
    %v1031 = vunpack.c.h.s8.bf16 %v711
    %v1032 = vunpack.c.l.s8.bf16 %v712
    %v1033 = vunpack.c.l.s8.bf16 %v713
    %v1034 = vunpack.c.l.s8.bf16 %v714
    %v1035 = vunpack.c.l.s8.bf16 %v715
    %v1036 = vunpack.c.l.s8.bf16 %v716
    %v1037 = vunpack.c.l.s8.bf16 %v717
    %v1038 = vunpack.c.l.s8.bf16 %v718
    %v1039 = vunpack.c.l.s8.bf16 %v719
    %v1040 = vunpack.c.h.s8.bf16 %v712
    %v1041 = vunpack.c.h.s8.bf16 %v713
    %v1042 = vunpack.c.h.s8.bf16 %v714
    %v1043 = vunpack.c.h.s8.bf16 %v715
    %v1044 = vunpack.c.h.s8.bf16 %v716
    %v1045 = vunpack.c.h.s8.bf16 %v717
    %v1046 = vunpack.c.h.s8.bf16 %v718
    %v1047 = vunpack.c.h.s8.bf16 %v719
    %v1048 = vunpack.c.l.s8.bf16 %v720
    %v1049 = vunpack.c.l.s8.bf16 %v721
    %v1050 = vunpack.c.l.s8.bf16 %v722
    %v1051 = vunpack.c.l.s8.bf16 %v723
    %v1052 = vunpack.c.l.s8.bf16 %v724
    %v1053 = vunpack.c.l.s8.bf16 %v725
    %v1054 = vunpack.c.l.s8.bf16 %v726
    %v1055 = vunpack.c.l.s8.bf16 %v727
    %v1056 = vunpack.c.h.s8.bf16 %v720
    %v1057 = vunpack.c.h.s8.bf16 %v721
    %v1058 = vunpack.c.h.s8.bf16 %v722
    %v1059 = vunpack.c.h.s8.bf16 %v723
    %v1060 = vunpack.c.h.s8.bf16 %v724
    %v1061 = vunpack.c.h.s8.bf16 %v725
    %v1062 = vunpack.c.h.s8.bf16 %v726
    %v1063 = vunpack.c.h.s8.bf16 %v727
    %v1064 = vunpack.c.l.s8.bf16 %v728
    %v1065 = vunpack.c.l.s8.bf16 %v729
    %v1066 = vunpack.c.l.s8.bf16 %v730
    %v1067 = vunpack.c.l.s8.bf16 %v731
    %v1068 = vunpack.c.l.s8.bf16 %v732
    %v1069 = vunpack.c.l.s8.bf16 %v733
    %v1070 = vunpack.c.l.s8.bf16 %v734
    %v1071 = vunpack.c.l.s8.bf16 %v735
    %v1072 = vunpack.c.h.s8.bf16 %v728
    %v1073 = vunpack.c.h.s8.bf16 %v729
    %v1074 = vunpack.c.h.s8.bf16 %v730
    %v1075 = vunpack.c.h.s8.bf16 %v731
    %v1076 = vunpack.c.h.s8.bf16 %v732
    %v1077 = vunpack.c.h.s8.bf16 %v733
    %v1078 = vunpack.c.h.s8.bf16 %v734
    %v1079 = vunpack.c.h.s8.bf16 %v735
    %v1080 = vunpack.c.l.s8.bf16 %v736
    %v1081 = vunpack.c.l.s8.bf16 %v737
    %v1082 = vunpack.c.l.s8.bf16 %v738
    %v1083 = vunpack.c.l.s8.bf16 %v739
    %v1084 = vunpack.c.l.s8.bf16 %v740
    %v1085 = vunpack.c.l.s8.bf16 %v741
    %v1086 = vunpack.c.l.s8.bf16 %v742
    %v1087 = vunpack.c.l.s8.bf16 %v743
    %v1088 = vunpack.c.h.s8.bf16 %v736
    %v1089 = vunpack.c.h.s8.bf16 %v737
    %v1090 = vunpack.c.h.s8.bf16 %v738
    %v1091 = vunpack.c.h.s8.bf16 %v739
    %v1092 = vunpack.c.h.s8.bf16 %v740
    %v1093 = vunpack.c.h.s8.bf16 %v741
    %v1094 = vunpack.c.h.s8.bf16 %v742
    %v1095 = vunpack.c.h.s8.bf16 %v743
    %v1096 = vunpack.c.l.s8.bf16 %v744
    %v1097 = vunpack.c.l.s8.bf16 %v745
    %v1098 = vunpack.c.l.s8.bf16 %v746
    %v1099 = vunpack.c.l.s8.bf16 %v747
    %v1100 = vunpack.c.l.s8.bf16 %v748
    %v1101 = vunpack.c.l.s8.bf16 %v749
    %v1102 = vunpack.c.l.s8.bf16 %v750
    %v1103 = vunpack.c.l.s8.bf16 %v751
    %v1104 = vunpack.c.h.s8.bf16 %v744
    %v1105 = vunpack.c.h.s8.bf16 %v745
    %v1106 = vunpack.c.h.s8.bf16 %v746
    %v1107 = vunpack.c.h.s8.bf16 %v747
    %v1108 = vunpack.c.h.s8.bf16 %v748
    %v1109 = vunpack.c.h.s8.bf16 %v749
    %v1110 = vunpack.c.h.s8.bf16 %v750
    %v1111 = vunpack.c.h.s8.bf16 %v751
    %v1112 = vunpack.c.l.s8.bf16 %v752
    %v1113 = vunpack.c.l.s8.bf16 %v753
    %v1114 = vunpack.c.l.s8.bf16 %v754
    %v1115 = vunpack.c.l.s8.bf16 %v755
    %v1116 = vunpack.c.l.s8.bf16 %v756
    %v1117 = vunpack.c.l.s8.bf16 %v757
    %v1118 = vunpack.c.l.s8.bf16 %v758
    %v1119 = vunpack.c.l.s8.bf16 %v759
    %v1120 = vunpack.c.h.s8.bf16 %v752
    %v1121 = vunpack.c.h.s8.bf16 %v753
    %v1122 = vunpack.c.h.s8.bf16 %v754
    %v1123 = vunpack.c.h.s8.bf16 %v755
    %v1124 = vunpack.c.h.s8.bf16 %v756
    %v1125 = vunpack.c.h.s8.bf16 %v757
    %v1126 = vunpack.c.h.s8.bf16 %v758
    %v1127 = vunpack.c.h.s8.bf16 %v759
    %v1128 = vunpack.c.l.s8.bf16 %v760
    %v1129 = vunpack.c.l.s8.bf16 %v761
    %v1130 = vunpack.c.l.s8.bf16 %v762
    %v1131 = vunpack.c.l.s8.bf16 %v763
    %v1132 = vunpack.c.l.s8.bf16 %v764
    %v1133 = vunpack.c.l.s8.bf16 %v765
    %v1134 = vunpack.c.l.s8.bf16 %v766
    %v1135 = vunpack.c.l.s8.bf16 %v767
    %v1136 = vunpack.c.h.s8.bf16 %v760
    %v1137 = vunpack.c.h.s8.bf16 %v761
    %v1138 = vunpack.c.h.s8.bf16 %v762
    %v1139 = vunpack.c.h.s8.bf16 %v763
    %v1140 = vunpack.c.h.s8.bf16 %v764
    %v1141 = vunpack.c.h.s8.bf16 %v765
    %v1142 = vunpack.c.h.s8.bf16 %v766
    %v1143 = vunpack.c.h.s8.bf16 %v767
    %v1144 = vunpack.c.l.s8.bf16 %v768
    %v1145 = vunpack.c.l.s8.bf16 %v769
    %v1146 = vunpack.c.l.s8.bf16 %v770
    %v1147 = vunpack.c.l.s8.bf16 %v771
    %v1148 = vunpack.c.l.s8.bf16 %v772
    %v1149 = vunpack.c.l.s8.bf16 %v773
    %v1150 = vunpack.c.l.s8.bf16 %v774
    %v1151 = vunpack.c.l.s8.bf16 %v775
    %v1152 = vunpack.c.h.s8.bf16 %v768
    %v1153 = vunpack.c.h.s8.bf16 %v769
    %v1154 = vunpack.c.h.s8.bf16 %v770
    %v1155 = vunpack.c.h.s8.bf16 %v771
    %v1156 = vunpack.c.h.s8.bf16 %v772
    %v1157 = vunpack.c.h.s8.bf16 %v773
    %v1158 = vunpack.c.h.s8.bf16 %v774
    %v1159 = vunpack.c.h.s8.bf16 %v775
    %v1160 = vunpack.c.l.s8.bf16 %v776
    %v1161 = vunpack.c.l.s8.bf16 %v777
    %v1162 = vunpack.c.l.s8.bf16 %v778
    %v1163 = vunpack.c.l.s8.bf16 %v779
    %v1164 = vunpack.c.l.s8.bf16 %v780
    %v1165 = vunpack.c.l.s8.bf16 %v781
    %v1166 = vunpack.c.l.s8.bf16 %v782
    %v1167 = vunpack.c.l.s8.bf16 %v783
    %v1168 = vunpack.c.h.s8.bf16 %v776
    %v1169 = vunpack.c.h.s8.bf16 %v777
    %v1170 = vunpack.c.h.s8.bf16 %v778
    %v1171 = vunpack.c.h.s8.bf16 %v779
    %v1172 = vunpack.c.h.s8.bf16 %v780
    %v1173 = vunpack.c.h.s8.bf16 %v781
    %v1174 = vunpack.c.h.s8.bf16 %v782
    %v1175 = vunpack.c.h.s8.bf16 %v783
    %v1176 = vunpack.c.l.s8.bf16 %v784
    %v1177 = vunpack.c.l.s8.bf16 %v785
    %v1178 = vunpack.c.l.s8.bf16 %v786
    %v1179 = vunpack.c.l.s8.bf16 %v787
    %v1180 = vunpack.c.l.s8.bf16 %v788
    %v1181 = vunpack.c.l.s8.bf16 %v789
    %v1182 = vunpack.c.l.s8.bf16 %v790
    %v1183 = vunpack.c.l.s8.bf16 %v791
    %v1184 = vunpack.c.h.s8.bf16 %v784
    %v1185 = vunpack.c.h.s8.bf16 %v785
    %v1186 = vunpack.c.h.s8.bf16 %v786
    %v1187 = vunpack.c.h.s8.bf16 %v787
    %v1188 = vunpack.c.h.s8.bf16 %v788
    %v1189 = vunpack.c.h.s8.bf16 %v789
    %v1190 = vunpack.c.h.s8.bf16 %v790
    %v1191 = vunpack.c.h.s8.bf16 %v791
    %v1192 = vunpack.c.l.s8.bf16 %v792
    %v1193 = vunpack.c.l.s8.bf16 %v793
    %v1194 = vunpack.c.l.s8.bf16 %v794
    %v1195 = vunpack.c.l.s8.bf16 %v795
    %v1196 = vunpack.c.l.s8.bf16 %v796
    %v1197 = vunpack.c.l.s8.bf16 %v797
    %v1198 = vunpack.c.l.s8.bf16 %v798
    %v1199 = vunpack.c.l.s8.bf16 %v799
    %v1200 = vunpack.c.h.s8.bf16 %v792
    %v1201 = vunpack.c.h.s8.bf16 %v793
    %v1202 = vunpack.c.h.s8.bf16 %v794
    %v1203 = vunpack.c.h.s8.bf16 %v795
    %v1204 = vunpack.c.h.s8.bf16 %v796
    %v1205 = vunpack.c.h.s8.bf16 %v797
    %v1206 = vunpack.c.h.s8.bf16 %v798
    %v1207 = vunpack.c.h.s8.bf16 %v799
    %v1208 = vunpack.c.l.s8.bf16 %v800
    %v1209 = vunpack.c.l.s8.bf16 %v801
    %v1210 = vunpack.c.l.s8.bf16 %v802
    %v1211 = vunpack.c.l.s8.bf16 %v803
    %v1212 = vunpack.c.l.s8.bf16 %v804
    %v1213 = vunpack.c.l.s8.bf16 %v805
    %v1214 = vunpack.c.l.s8.bf16 %v806
    %v1215 = vunpack.c.l.s8.bf16 %v807
    %v1216 = vunpack.c.h.s8.bf16 %v800
    %v1217 = vunpack.c.h.s8.bf16 %v801
    %v1218 = vunpack.c.h.s8.bf16 %v802
    %v1219 = vunpack.c.h.s8.bf16 %v803
    %v1220 = vunpack.c.h.s8.bf16 %v804
    %v1221 = vunpack.c.h.s8.bf16 %v805
    %v1222 = vunpack.c.h.s8.bf16 %v806
    %v1223 = vunpack.c.h.s8.bf16 %v807
    %v1224 = vunpack.c.l.s8.bf16 %v808
    %v1225 = vunpack.c.l.s8.bf16 %v809
    %v1226 = vunpack.c.l.s8.bf16 %v810
    %v1227 = vunpack.c.l.s8.bf16 %v811
    %v1228 = vunpack.c.l.s8.bf16 %v812
    %v1229 = vunpack.c.l.s8.bf16 %v813
    %v1230 = vunpack.c.l.s8.bf16 %v814
    %v1231 = vunpack.c.l.s8.bf16 %v815
    %v1232 = vunpack.c.h.s8.bf16 %v808
    %v1233 = vunpack.c.h.s8.bf16 %v809
    %v1234 = vunpack.c.h.s8.bf16 %v810
    %v1235 = vunpack.c.h.s8.bf16 %v811
    %v1236 = vunpack.c.h.s8.bf16 %v812
    %v1237 = vunpack.c.h.s8.bf16 %v813
    %v1238 = vunpack.c.h.s8.bf16 %v814
    %v1239 = vunpack.c.h.s8.bf16 %v815
    %v1240 = vunpack.c.l.s8.bf16 %v816
    %v1241 = vunpack.c.l.s8.bf16 %v817
    %v1242 = vunpack.c.l.s8.bf16 %v818
    %v1243 = vunpack.c.l.s8.bf16 %v819
    %v1244 = vunpack.c.l.s8.bf16 %v820
    %v1245 = vunpack.c.l.s8.bf16 %v821
    %v1246 = vunpack.c.l.s8.bf16 %v822
    %v1247 = vunpack.c.l.s8.bf16 %v823
    %v1248 = vunpack.c.h.s8.bf16 %v816
    %v1249 = vunpack.c.h.s8.bf16 %v817
    %v1250 = vunpack.c.h.s8.bf16 %v818
    %v1251 = vunpack.c.h.s8.bf16 %v819
    %v1252 = vunpack.c.h.s8.bf16 %v820
    %v1253 = vunpack.c.h.s8.bf16 %v821
    %v1254 = vunpack.c.h.s8.bf16 %v822
    %v1255 = vunpack.c.h.s8.bf16 %v823
    %v1256 = vunpack.c.l.s8.bf16 %v824
    %v1257 = vunpack.c.l.s8.bf16 %v825
    %v1258 = vunpack.c.l.s8.bf16 %v826
    %v1259 = vunpack.c.l.s8.bf16 %v827
    %v1260 = vunpack.c.l.s8.bf16 %v828
    %v1261 = vunpack.c.l.s8.bf16 %v829
    %v1262 = vunpack.c.l.s8.bf16 %v830
    %v1263 = vunpack.c.l.s8.bf16 %v831
    %v1264 = vunpack.c.h.s8.bf16 %v824
    %v1265 = vunpack.c.h.s8.bf16 %v825
    %v1266 = vunpack.c.h.s8.bf16 %v826
    %v1267 = vunpack.c.h.s8.bf16 %v827
    %v1268 = vunpack.c.h.s8.bf16 %v828
    %v1269 = vunpack.c.h.s8.bf16 %v829
    %v1270 = vunpack.c.h.s8.bf16 %v830
    %v1271 = vunpack.c.h.s8.bf16 %v831
    %v1272 = vunpack.c.l.s8.bf16 %v832
    %v1273 = vunpack.c.l.s8.bf16 %v833
    %v1274 = vunpack.c.l.s8.bf16 %v834
    %v1275 = vunpack.c.l.s8.bf16 %v835
    %v1276 = vunpack.c.l.s8.bf16 %v836
    %v1277 = vunpack.c.l.s8.bf16 %v837
    %v1278 = vunpack.c.l.s8.bf16 %v838
    %v1279 = vunpack.c.l.s8.bf16 %v839
    %v1280 = vunpack.c.h.s8.bf16 %v832
    %v1281 = vunpack.c.h.s8.bf16 %v833
    %v1282 = vunpack.c.h.s8.bf16 %v834
    %v1283 = vunpack.c.h.s8.bf16 %v835
    %v1284 = vunpack.c.h.s8.bf16 %v836
    %v1285 = vunpack.c.h.s8.bf16 %v837
    %v1286 = vunpack.c.h.s8.bf16 %v838
    %v1287 = vunpack.c.h.s8.bf16 %v839
    %v1288 = vunpack.c.l.s8.bf16 %v840
    %v1289 = vunpack.c.l.s8.bf16 %v841
    %v1290 = vunpack.c.l.s8.bf16 %v842
    %v1291 = vunpack.c.l.s8.bf16 %v843
    %v1292 = vunpack.c.l.s8.bf16 %v844
    %v1293 = vunpack.c.l.s8.bf16 %v845
    %v1294 = vunpack.c.l.s8.bf16 %v846
    %v1295 = vunpack.c.l.s8.bf16 %v847
    %v1296 = vunpack.c.h.s8.bf16 %v840
    %v1297 = vunpack.c.h.s8.bf16 %v841
    %v1298 = vunpack.c.h.s8.bf16 %v842
    %v1299 = vunpack.c.h.s8.bf16 %v843
    %v1300 = vunpack.c.h.s8.bf16 %v844
    %v1301 = vunpack.c.h.s8.bf16 %v845
    %v1302 = vunpack.c.h.s8.bf16 %v846
    %v1303 = vunpack.c.h.s8.bf16 %v847
    %v1304 = vunpack.c.l.s8.bf16 %v848
    %v1305 = vunpack.c.l.s8.bf16 %v849
    %v1306 = vunpack.c.l.s8.bf16 %v850
    %v1307 = vunpack.c.l.s8.bf16 %v851
    %v1308 = vunpack.c.l.s8.bf16 %v852
    %v1309 = vunpack.c.l.s8.bf16 %v853
    %v1310 = vunpack.c.l.s8.bf16 %v854
    %v1311 = vunpack.c.l.s8.bf16 %v855
    %v1312 = vunpack.c.h.s8.bf16 %v848
    %v1313 = vunpack.c.h.s8.bf16 %v849
    %v1314 = vunpack.c.h.s8.bf16 %v850
    %v1315 = vunpack.c.h.s8.bf16 %v851
    %v1316 = vunpack.c.h.s8.bf16 %v852
    %v1317 = vunpack.c.h.s8.bf16 %v853
    %v1318 = vunpack.c.h.s8.bf16 %v854
    %v1319 = vunpack.c.h.s8.bf16 %v855
    %v1320 = vunpack.c.l.s8.bf16 %v856
    %v1321 = vunpack.c.l.s8.bf16 %v857
    %v1322 = vunpack.c.l.s8.bf16 %v858
    %v1323 = vunpack.c.l.s8.bf16 %v859
    %v1324 = vunpack.c.l.s8.bf16 %v860
    %v1325 = vunpack.c.l.s8.bf16 %v861
    %v1326 = vunpack.c.l.s8.bf16 %v862
    %v1327 = vunpack.c.l.s8.bf16 %v863
    %v1328 = vunpack.c.h.s8.bf16 %v856
    %v1329 = vunpack.c.h.s8.bf16 %v857
    %v1330 = vunpack.c.h.s8.bf16 %v858
    %v1331 = vunpack.c.h.s8.bf16 %v859
    %v1332 = vunpack.c.h.s8.bf16 %v860
    %v1333 = vunpack.c.h.s8.bf16 %v861
    %v1334 = vunpack.c.h.s8.bf16 %v862
    %v1335 = vunpack.c.h.s8.bf16 %v863
    %v1336 = vunpack.c.l.s8.bf16 %v864
    %v1337 = vunpack.c.l.s8.bf16 %v865
    %v1338 = vunpack.c.l.s8.bf16 %v866
    %v1339 = vunpack.c.l.s8.bf16 %v867
    %v1340 = vunpack.c.l.s8.bf16 %v868
    %v1341 = vunpack.c.l.s8.bf16 %v869
    %v1342 = vunpack.c.l.s8.bf16 %v870
    %v1343 = vunpack.c.l.s8.bf16 %v871
    %v1344 = vunpack.c.h.s8.bf16 %v864
    %v1345 = vunpack.c.h.s8.bf16 %v865
    %v1346 = vunpack.c.h.s8.bf16 %v866
    %v1347 = vunpack.c.h.s8.bf16 %v867
    %v1348 = vunpack.c.h.s8.bf16 %v868
    %v1349 = vunpack.c.h.s8.bf16 %v869
    %v1350 = vunpack.c.h.s8.bf16 %v870
    %v1351 = vunpack.c.h.s8.bf16 %v871
    %v1352 = vunpack.c.l.s8.bf16 %v872
    %v1353 = vunpack.c.l.s8.bf16 %v873
    %v1354 = vunpack.c.l.s8.bf16 %v874
    %v1355 = vunpack.c.l.s8.bf16 %v875
    %v1356 = vunpack.c.l.s8.bf16 %v876
    %v1357 = vunpack.c.l.s8.bf16 %v877
    %v1358 = vunpack.c.l.s8.bf16 %v878
    %v1359 = vunpack.c.l.s8.bf16 %v879
    %v1360 = vunpack.c.h.s8.bf16 %v872
    %v1361 = vunpack.c.h.s8.bf16 %v873
    %v1362 = vunpack.c.h.s8.bf16 %v874
    %v1363 = vunpack.c.h.s8.bf16 %v875
    %v1364 = vunpack.c.h.s8.bf16 %v876
    %v1365 = vunpack.c.h.s8.bf16 %v877
    %v1366 = vunpack.c.h.s8.bf16 %v878
    %v1367 = vunpack.c.h.s8.bf16 %v879
    %v1368 = vunpack.c.l.s8.bf16 %v880
    %v1369 = vunpack.c.l.s8.bf16 %v881
    %v1370 = vunpack.c.l.s8.bf16 %v882
    %v1371 = vunpack.c.l.s8.bf16 %v883
    %v1372 = vunpack.c.l.s8.bf16 %v884
    %v1373 = vunpack.c.l.s8.bf16 %v885
    %v1374 = vunpack.c.l.s8.bf16 %v886
    %v1375 = vunpack.c.l.s8.bf16 %v887
    %v1376 = vunpack.c.h.s8.bf16 %v880
    %v1377 = vunpack.c.h.s8.bf16 %v881
    %v1378 = vunpack.c.h.s8.bf16 %v882
    %v1379 = vunpack.c.h.s8.bf16 %v883
    %v1380 = vunpack.c.h.s8.bf16 %v884
    %v1381 = vunpack.c.h.s8.bf16 %v885
    %v1382 = vunpack.c.h.s8.bf16 %v886
    %v1383 = vunpack.c.h.s8.bf16 %v887
    %v1384 = vunpack.c.l.s8.bf16 %v888
    %v1385 = vunpack.c.l.s8.bf16 %v889
    %v1386 = vunpack.c.l.s8.bf16 %v890
    %v1387 = vunpack.c.l.s8.bf16 %v891
    %v1388 = vunpack.c.l.s8.bf16 %v892
    %v1389 = vunpack.c.l.s8.bf16 %v893
    %v1390 = vunpack.c.l.s8.bf16 %v894
    %v1391 = vunpack.c.l.s8.bf16 %v895
    %v1392 = vunpack.c.h.s8.bf16 %v888
    %v1393 = vunpack.c.h.s8.bf16 %v889
    %v1394 = vunpack.c.h.s8.bf16 %v890
    %v1395 = vunpack.c.h.s8.bf16 %v891
    %v1396 = vunpack.c.h.s8.bf16 %v892
    %v1397 = vunpack.c.h.s8.bf16 %v893
    %v1398 = vunpack.c.h.s8.bf16 %v894
    %v1399 = vunpack.c.h.s8.bf16 %v895
    %v1400 = vunpack.c.l.s8.bf16 %v896
    %v1401 = vunpack.c.l.s8.bf16 %v897
    %v1402 = vunpack.c.l.s8.bf16 %v898
    %v1403 = vunpack.c.l.s8.bf16 %v899
    %v1404 = vunpack.c.l.s8.bf16 %v900
    %v1405 = vunpack.c.l.s8.bf16 %v901
    %v1406 = vunpack.c.l.s8.bf16 %v902
    %v1407 = vunpack.c.l.s8.bf16 %v903
    %v1408 = vunpack.c.h.s8.bf16 %v896
    %v1409 = vunpack.c.h.s8.bf16 %v897
    %v1410 = vunpack.c.h.s8.bf16 %v898
    %v1411 = vunpack.c.h.s8.bf16 %v899
    %v1412 = vunpack.c.h.s8.bf16 %v900
    %v1413 = vunpack.c.h.s8.bf16 %v901
    %v1414 = vunpack.c.h.s8.bf16 %v902
    %v1415 = vunpack.c.h.s8.bf16 %v903
    %v1416 = vld [vmem:[#allocation6 + $0x800] sm:$0xff]
    %v1417 = vld [vmem:[#allocation6 + $0x808] sm:$0xff]
    %v1418 = vld [vmem:[#allocation6 + $0x810] sm:$0xff]
    %v1419 = vld [vmem:[#allocation6 + $0x818] sm:$0xff]
    %v1420 = vld [vmem:[#allocation6 + $0x820] sm:$0xff]
    %v1421 = vld [vmem:[#allocation6 + $0x828] sm:$0xff]
    %v1422 = vld [vmem:[#allocation6 + $0x830] sm:$0xff]
    %v1423 = vld [vmem:[#allocation6 + $0x838] sm:$0xff]
    %v1424 = vld [vmem:[#allocation6 + $0x840] sm:$0xff]
    %v1425 = vld [vmem:[#allocation6 + $0x848] sm:$0xff]
    %v1426 = vld [vmem:[#allocation6 + $0x850] sm:$0xff]
    %v1427 = vld [vmem:[#allocation6 + $0x858] sm:$0xff]
    %v1428 = vld [vmem:[#allocation6 + $0x860] sm:$0xff]
    %v1429 = vld [vmem:[#allocation6 + $0x868] sm:$0xff]
    %v1430 = vld [vmem:[#allocation6 + $0x870] sm:$0xff]
    %v1431 = vld [vmem:[#allocation6 + $0x878] sm:$0xff]
    %v1432 = vld [vmem:[#allocation6 + $0x880] sm:$0xff]
    %v1433 = vld [vmem:[#allocation6 + $0x888] sm:$0xff]
    %v1434 = vld [vmem:[#allocation6 + $0x890] sm:$0xff]
    %v1435 = vld [vmem:[#allocation6 + $0x898] sm:$0xff]
    %v1436 = vld [vmem:[#allocation6 + $0x8a0] sm:$0xff]
    %v1437 = vld [vmem:[#allocation6 + $0x8a8] sm:$0xff]
    %v1438 = vld [vmem:[#allocation6 + $0x8b0] sm:$0xff]
    %v1439 = vld [vmem:[#allocation6 + $0x8b8] sm:$0xff]
    %v1440 = vld [vmem:[#allocation6 + $0x8c0] sm:$0xff]
    %v1441 = vld [vmem:[#allocation6 + $0x8c8] sm:$0xff]
    %v1442 = vld [vmem:[#allocation6 + $0x8d0] sm:$0xff]
    %v1443 = vld [vmem:[#allocation6 + $0x8d8] sm:$0xff]
    %v1444 = vld [vmem:[#allocation6 + $0x8e0] sm:$0xff]
    %v1445 = vld [vmem:[#allocation6 + $0x8e8] sm:$0xff]
    %v1446 = vld [vmem:[#allocation6 + $0x8f0] sm:$0xff]
    %v1447 = vld [vmem:[#allocation6 + $0x8f8] sm:$0xff]
    %v1448 = vld [vmem:[#allocation6 + $0x900] sm:$0xff]
    %v1449 = vld [vmem:[#allocation6 + $0x908] sm:$0xff]
    %v1450 = vld [vmem:[#allocation6 + $0x910] sm:$0xff]
    %v1451 = vld [vmem:[#allocation6 + $0x918] sm:$0xff]
    %v1452 = vld [vmem:[#allocation6 + $0x920] sm:$0xff]
    %v1453 = vld [vmem:[#allocation6 + $0x928] sm:$0xff]
    %v1454 = vld [vmem:[#allocation6 + $0x930] sm:$0xff]
    %v1455 = vld [vmem:[#allocation6 + $0x938] sm:$0xff]
    %v1456 = vld [vmem:[#allocation6 + $0x940] sm:$0xff]
    %v1457 = vld [vmem:[#allocation6 + $0x948] sm:$0xff]
    %v1458 = vld [vmem:[#allocation6 + $0x950] sm:$0xff]
    %v1459 = vld [vmem:[#allocation6 + $0x958] sm:$0xff]
    %v1460 = vld [vmem:[#allocation6 + $0x960] sm:$0xff]
    %v1461 = vld [vmem:[#allocation6 + $0x968] sm:$0xff]
    %v1462 = vld [vmem:[#allocation6 + $0x970] sm:$0xff]
    %v1463 = vld [vmem:[#allocation6 + $0x978] sm:$0xff]
    %v1464 = vld [vmem:[#allocation6 + $0x980] sm:$0xff]
    %v1465 = vld [vmem:[#allocation6 + $0x988] sm:$0xff]
    %v1466 = vld [vmem:[#allocation6 + $0x990] sm:$0xff]
    %v1467 = vld [vmem:[#allocation6 + $0x998] sm:$0xff]
    %v1468 = vld [vmem:[#allocation6 + $0x9a0] sm:$0xff]
    %v1469 = vld [vmem:[#allocation6 + $0x9a8] sm:$0xff]
    %v1470 = vld [vmem:[#allocation6 + $0x9b0] sm:$0xff]
    %v1471 = vld [vmem:[#allocation6 + $0x9b8] sm:$0xff]
    %v1472 = vld [vmem:[#allocation6 + $0x9c0] sm:$0xff]
    %v1473 = vld [vmem:[#allocation6 + $0x9c8] sm:$0xff]
    %v1474 = vld [vmem:[#allocation6 + $0x9d0] sm:$0xff]
    %v1475 = vld [vmem:[#allocation6 + $0x9d8] sm:$0xff]
    %v1476 = vld [vmem:[#allocation6 + $0x9e0] sm:$0xff]
    %v1477 = vld [vmem:[#allocation6 + $0x9e8] sm:$0xff]
    %v1478 = vld [vmem:[#allocation6 + $0x9f0] sm:$0xff]
    %v1479 = vld [vmem:[#allocation6 + $0x9f8] sm:$0xff]
    %v1480 = vld [vmem:[#allocation6 + $0xa00] sm:$0xff]
    %v1481 = vld [vmem:[#allocation6 + $0xa08] sm:$0xff]
    %v1482 = vld [vmem:[#allocation6 + $0xa10] sm:$0xff]
    %v1483 = vld [vmem:[#allocation6 + $0xa18] sm:$0xff]
    %v1484 = vld [vmem:[#allocation6 + $0xa20] sm:$0xff]
    %v1485 = vld [vmem:[#allocation6 + $0xa28] sm:$0xff]
    %v1486 = vld [vmem:[#allocation6 + $0xa30] sm:$0xff]
    %v1487 = vld [vmem:[#allocation6 + $0xa38] sm:$0xff]
    %v1488 = vld [vmem:[#allocation6 + $0xa40] sm:$0xff]
    %v1489 = vld [vmem:[#allocation6 + $0xa48] sm:$0xff]
    %v1490 = vld [vmem:[#allocation6 + $0xa50] sm:$0xff]
    %v1491 = vld [vmem:[#allocation6 + $0xa58] sm:$0xff]
    %v1492 = vld [vmem:[#allocation6 + $0xa60] sm:$0xff]
    %v1493 = vld [vmem:[#allocation6 + $0xa68] sm:$0xff]
    %v1494 = vld [vmem:[#allocation6 + $0xa70] sm:$0xff]
    %v1495 = vld [vmem:[#allocation6 + $0xa78] sm:$0xff]
    %v1496 = vld [vmem:[#allocation6 + $0xa80] sm:$0xff]
    %v1497 = vld [vmem:[#allocation6 + $0xa88] sm:$0xff]
    %v1498 = vld [vmem:[#allocation6 + $0xa90] sm:$0xff]
    %v1499 = vld [vmem:[#allocation6 + $0xa98] sm:$0xff]
    %v1500 = vld [vmem:[#allocation6 + $0xaa0] sm:$0xff]
    %v1501 = vld [vmem:[#allocation6 + $0xaa8] sm:$0xff]
    %v1502 = vld [vmem:[#allocation6 + $0xab0] sm:$0xff]
    %v1503 = vld [vmem:[#allocation6 + $0xab8] sm:$0xff]
    %v1504 = vld [vmem:[#allocation6 + $0xac0] sm:$0xff]
    %v1505 = vld [vmem:[#allocation6 + $0xac8] sm:$0xff]
    %v1506 = vld [vmem:[#allocation6 + $0xad0] sm:$0xff]
    %v1507 = vld [vmem:[#allocation6 + $0xad8] sm:$0xff]
    %v1508 = vld [vmem:[#allocation6 + $0xae0] sm:$0xff]
    %v1509 = vld [vmem:[#allocation6 + $0xae8] sm:$0xff]
    %v1510 = vld [vmem:[#allocation6 + $0xaf0] sm:$0xff]
    %v1511 = vld [vmem:[#allocation6 + $0xaf8] sm:$0xff]
    %v1512 = vld [vmem:[#allocation6 + $0xb00] sm:$0xff]
    %v1513 = vld [vmem:[#allocation6 + $0xb08] sm:$0xff]
    %v1514 = vld [vmem:[#allocation6 + $0xb10] sm:$0xff]
    %v1515 = vld [vmem:[#allocation6 + $0xb18] sm:$0xff]
    %v1516 = vld [vmem:[#allocation6 + $0xb20] sm:$0xff]
    %v1517 = vld [vmem:[#allocation6 + $0xb28] sm:$0xff]
    %v1518 = vld [vmem:[#allocation6 + $0xb30] sm:$0xff]
    %v1519 = vld [vmem:[#allocation6 + $0xb38] sm:$0xff]
    %v1520 = vld [vmem:[#allocation6 + $0xb40] sm:$0xff]
    %v1521 = vld [vmem:[#allocation6 + $0xb48] sm:$0xff]
    %v1522 = vld [vmem:[#allocation6 + $0xb50] sm:$0xff]
    %v1523 = vld [vmem:[#allocation6 + $0xb58] sm:$0xff]
    %v1524 = vld [vmem:[#allocation6 + $0xb60] sm:$0xff]
    %v1525 = vld [vmem:[#allocation6 + $0xb68] sm:$0xff]
    %v1526 = vld [vmem:[#allocation6 + $0xb70] sm:$0xff]
    %v1527 = vld [vmem:[#allocation6 + $0xb78] sm:$0xff]
    %v1528 = vld [vmem:[#allocation6 + $0xb80] sm:$0xff]
    %v1529 = vld [vmem:[#allocation6 + $0xb88] sm:$0xff]
    %v1530 = vld [vmem:[#allocation6 + $0xb90] sm:$0xff]
    %v1531 = vld [vmem:[#allocation6 + $0xb98] sm:$0xff]
    %v1532 = vld [vmem:[#allocation6 + $0xba0] sm:$0xff]
    %v1533 = vld [vmem:[#allocation6 + $0xba8] sm:$0xff]
    %v1534 = vld [vmem:[#allocation6 + $0xbb0] sm:$0xff]
    %v1535 = vld [vmem:[#allocation6 + $0xbb8] sm:$0xff]
    %v1536 = vld [vmem:[#allocation6 + $0xbc0] sm:$0xff]
    %v1537 = vld [vmem:[#allocation6 + $0xbc8] sm:$0xff]
    %v1538 = vld [vmem:[#allocation6 + $0xbd0] sm:$0xff]
    %v1539 = vld [vmem:[#allocation6 + $0xbd8] sm:$0xff]
    %v1540 = vld [vmem:[#allocation6 + $0xbe0] sm:$0xff]
    %v1541 = vld [vmem:[#allocation6 + $0xbe8] sm:$0xff]
    %v1542 = vld [vmem:[#allocation6 + $0xbf0] sm:$0xff]
    %v1543 = vld [vmem:[#allocation6 + $0xbf8] sm:$0xff]
    %v1544 = vld [vmem:[#allocation6 + $0xc00] sm:$0xff]
    %v1545 = vld [vmem:[#allocation6 + $0xc08] sm:$0xff]
    %v1546 = vld [vmem:[#allocation6 + $0xc10] sm:$0xff]
    %v1547 = vld [vmem:[#allocation6 + $0xc18] sm:$0xff]
    %v1548 = vld [vmem:[#allocation6 + $0xc20] sm:$0xff]
    %v1549 = vld [vmem:[#allocation6 + $0xc28] sm:$0xff]
    %v1550 = vld [vmem:[#allocation6 + $0xc30] sm:$0xff]
    %v1551 = vld [vmem:[#allocation6 + $0xc38] sm:$0xff]
    %v1552 = vld [vmem:[#allocation6 + $0xc40] sm:$0xff]
    %v1553 = vld [vmem:[#allocation6 + $0xc48] sm:$0xff]
    %v1554 = vld [vmem:[#allocation6 + $0xc50] sm:$0xff]
    %v1555 = vld [vmem:[#allocation6 + $0xc58] sm:$0xff]
    %v1556 = vld [vmem:[#allocation6 + $0xc60] sm:$0xff]
    %v1557 = vld [vmem:[#allocation6 + $0xc68] sm:$0xff]
    %v1558 = vld [vmem:[#allocation6 + $0xc70] sm:$0xff]
    %v1559 = vld [vmem:[#allocation6 + $0xc78] sm:$0xff]
    %v1560 = vld [vmem:[#allocation6 + $0xc80] sm:$0xff]
    %v1561 = vld [vmem:[#allocation6 + $0xc88] sm:$0xff]
    %v1562 = vld [vmem:[#allocation6 + $0xc90] sm:$0xff]
    %v1563 = vld [vmem:[#allocation6 + $0xc98] sm:$0xff]
    %v1564 = vld [vmem:[#allocation6 + $0xca0] sm:$0xff]
    %v1565 = vld [vmem:[#allocation6 + $0xca8] sm:$0xff]
    %v1566 = vld [vmem:[#allocation6 + $0xcb0] sm:$0xff]
    %v1567 = vld [vmem:[#allocation6 + $0xcb8] sm:$0xff]
    %v1568 = vld [vmem:[#allocation6 + $0xcc0] sm:$0xff]
    %v1569 = vld [vmem:[#allocation6 + $0xcc8] sm:$0xff]
    %v1570 = vld [vmem:[#allocation6 + $0xcd0] sm:$0xff]
    %v1571 = vld [vmem:[#allocation6 + $0xcd8] sm:$0xff]
    %v1572 = vld [vmem:[#allocation6 + $0xce0] sm:$0xff]
    %v1573 = vld [vmem:[#allocation6 + $0xce8] sm:$0xff]
    %v1574 = vld [vmem:[#allocation6 + $0xcf0] sm:$0xff]
    %v1575 = vld [vmem:[#allocation6 + $0xcf8] sm:$0xff]
    %v1576 = vld [vmem:[#allocation6 + $0xd00] sm:$0xff]
    %v1577 = vld [vmem:[#allocation6 + $0xd08] sm:$0xff]
    %v1578 = vld [vmem:[#allocation6 + $0xd10] sm:$0xff]
    %v1579 = vld [vmem:[#allocation6 + $0xd18] sm:$0xff]
    %v1580 = vld [vmem:[#allocation6 + $0xd20] sm:$0xff]
    %v1581 = vld [vmem:[#allocation6 + $0xd28] sm:$0xff]
    %v1582 = vld [vmem:[#allocation6 + $0xd30] sm:$0xff]
    %v1583 = vld [vmem:[#allocation6 + $0xd38] sm:$0xff]
    %v1584 = vld [vmem:[#allocation6 + $0xd40] sm:$0xff]
    %v1585 = vld [vmem:[#allocation6 + $0xd48] sm:$0xff]
    %v1586 = vld [vmem:[#allocation6 + $0xd50] sm:$0xff]
    %v1587 = vld [vmem:[#allocation6 + $0xd58] sm:$0xff]
    %v1588 = vld [vmem:[#allocation6 + $0xd60] sm:$0xff]
    %v1589 = vld [vmem:[#allocation6 + $0xd68] sm:$0xff]
    %v1590 = vld [vmem:[#allocation6 + $0xd70] sm:$0xff]
    %v1591 = vld [vmem:[#allocation6 + $0xd78] sm:$0xff]
    %v1592 = vld [vmem:[#allocation6 + $0xd80] sm:$0xff]
    %v1593 = vld [vmem:[#allocation6 + $0xd88] sm:$0xff]
    %v1594 = vld [vmem:[#allocation6 + $0xd90] sm:$0xff]
    %v1595 = vld [vmem:[#allocation6 + $0xd98] sm:$0xff]
    %v1596 = vld [vmem:[#allocation6 + $0xda0] sm:$0xff]
    %v1597 = vld [vmem:[#allocation6 + $0xda8] sm:$0xff]
    %v1598 = vld [vmem:[#allocation6 + $0xdb0] sm:$0xff]
    %v1599 = vld [vmem:[#allocation6 + $0xdb8] sm:$0xff]
    %v1600 = vld [vmem:[#allocation6 + $0xdc0] sm:$0xff]
    %v1601 = vld [vmem:[#allocation6 + $0xdc8] sm:$0xff]
    %v1602 = vld [vmem:[#allocation6 + $0xdd0] sm:$0xff]
    %v1603 = vld [vmem:[#allocation6 + $0xdd8] sm:$0xff]
    %v1604 = vld [vmem:[#allocation6 + $0xde0] sm:$0xff]
    %v1605 = vld [vmem:[#allocation6 + $0xde8] sm:$0xff]
    %v1606 = vld [vmem:[#allocation6 + $0xdf0] sm:$0xff]
    %v1607 = vld [vmem:[#allocation6 + $0xdf8] sm:$0xff]
    %v1608 = vld [vmem:[#allocation6 + $0xe00] sm:$0xff]
    %v1609 = vld [vmem:[#allocation6 + $0xe08] sm:$0xff]
    %v1610 = vld [vmem:[#allocation6 + $0xe10] sm:$0xff]
    %v1611 = vld [vmem:[#allocation6 + $0xe18] sm:$0xff]
    %v1612 = vld [vmem:[#allocation6 + $0xe20] sm:$0xff]
    %v1613 = vld [vmem:[#allocation6 + $0xe28] sm:$0xff]
    %v1614 = vld [vmem:[#allocation6 + $0xe30] sm:$0xff]
    %v1615 = vld [vmem:[#allocation6 + $0xe38] sm:$0xff]
    %v1616 = vld [vmem:[#allocation6 + $0xe40] sm:$0xff]
    %v1617 = vld [vmem:[#allocation6 + $0xe48] sm:$0xff]
    %v1618 = vld [vmem:[#allocation6 + $0xe50] sm:$0xff]
    %v1619 = vld [vmem:[#allocation6 + $0xe58] sm:$0xff]
    %v1620 = vld [vmem:[#allocation6 + $0xe60] sm:$0xff]
    %v1621 = vld [vmem:[#allocation6 + $0xe68] sm:$0xff]
    %v1622 = vld [vmem:[#allocation6 + $0xe70] sm:$0xff]
    %v1623 = vld [vmem:[#allocation6 + $0xe78] sm:$0xff]
    %v1624 = vld [vmem:[#allocation6 + $0xe80] sm:$0xff]
    %v1625 = vld [vmem:[#allocation6 + $0xe88] sm:$0xff]
    %v1626 = vld [vmem:[#allocation6 + $0xe90] sm:$0xff]
    %v1627 = vld [vmem:[#allocation6 + $0xe98] sm:$0xff]
    %v1628 = vld [vmem:[#allocation6 + $0xea0] sm:$0xff]
    %v1629 = vld [vmem:[#allocation6 + $0xea8] sm:$0xff]
    %v1630 = vld [vmem:[#allocation6 + $0xeb0] sm:$0xff]
    %v1631 = vld [vmem:[#allocation6 + $0xeb8] sm:$0xff]
    %v1632 = vld [vmem:[#allocation6 + $0xec0] sm:$0xff]
    %v1633 = vld [vmem:[#allocation6 + $0xec8] sm:$0xff]
    %v1634 = vld [vmem:[#allocation6 + $0xed0] sm:$0xff]
    %v1635 = vld [vmem:[#allocation6 + $0xed8] sm:$0xff]
    %v1636 = vld [vmem:[#allocation6 + $0xee0] sm:$0xff]
    %v1637 = vld [vmem:[#allocation6 + $0xee8] sm:$0xff]
    %v1638 = vld [vmem:[#allocation6 + $0xef0] sm:$0xff]
    %v1639 = vld [vmem:[#allocation6 + $0xef8] sm:$0xff]
    %v1640 = vld [vmem:[#allocation6 + $0xf00] sm:$0xff]
    %v1641 = vld [vmem:[#allocation6 + $0xf08] sm:$0xff]
    %v1642 = vld [vmem:[#allocation6 + $0xf10] sm:$0xff]
    %v1643 = vld [vmem:[#allocation6 + $0xf18] sm:$0xff]
    %v1644 = vld [vmem:[#allocation6 + $0xf20] sm:$0xff]
    %v1645 = vld [vmem:[#allocation6 + $0xf28] sm:$0xff]
    %v1646 = vld [vmem:[#allocation6 + $0xf30] sm:$0xff]
    %v1647 = vld [vmem:[#allocation6 + $0xf38] sm:$0xff]
    %v1648 = vld [vmem:[#allocation6 + $0xf40] sm:$0xff]
    %v1649 = vld [vmem:[#allocation6 + $0xf48] sm:$0xff]
    %v1650 = vld [vmem:[#allocation6 + $0xf50] sm:$0xff]
    %v1651 = vld [vmem:[#allocation6 + $0xf58] sm:$0xff]
    %v1652 = vld [vmem:[#allocation6 + $0xf60] sm:$0xff]
    %v1653 = vld [vmem:[#allocation6 + $0xf68] sm:$0xff]
    %v1654 = vld [vmem:[#allocation6 + $0xf70] sm:$0xff]
    %v1655 = vld [vmem:[#allocation6 + $0xf78] sm:$0xff]
    %v1656 = vld [vmem:[#allocation6 + $0xf80] sm:$0xff]
    %v1657 = vld [vmem:[#allocation6 + $0xf88] sm:$0xff]
    %v1658 = vld [vmem:[#allocation6 + $0xf90] sm:$0xff]
    %v1659 = vld [vmem:[#allocation6 + $0xf98] sm:$0xff]
    %v1660 = vld [vmem:[#allocation6 + $0xfa0] sm:$0xff]
    %v1661 = vld [vmem:[#allocation6 + $0xfa8] sm:$0xff]
    %v1662 = vld [vmem:[#allocation6 + $0xfb0] sm:$0xff]
    %v1663 = vld [vmem:[#allocation6 + $0xfb8] sm:$0xff]
    %v1664 = vld [vmem:[#allocation6 + $0xfc0] sm:$0xff]
    %v1665 = vld [vmem:[#allocation6 + $0xfc8] sm:$0xff]
    %v1666 = vld [vmem:[#allocation6 + $0xfd0] sm:$0xff]
    %v1667 = vld [vmem:[#allocation6 + $0xfd8] sm:$0xff]
    %v1668 = vld [vmem:[#allocation6 + $0xfe0] sm:$0xff]
    %v1669 = vld [vmem:[#allocation6 + $0xfe8] sm:$0xff]
    %v1670 = vld [vmem:[#allocation6 + $0xff0] sm:$0xff]
    %v1671 = vld [vmem:[#allocation6 + $0xff8] sm:$0xff]
    %v1672 = vld [vmem:[#allocation6 + $0x1000] sm:$0xff]
    %v1673 = vld [vmem:[#allocation6 + $0x1008] sm:$0xff]
    %v1674 = vld [vmem:[#allocation6 + $0x1010] sm:$0xff]
    %v1675 = vld [vmem:[#allocation6 + $0x1018] sm:$0xff]
    %v1676 = vld [vmem:[#allocation6 + $0x1020] sm:$0xff]
    %v1677 = vld [vmem:[#allocation6 + $0x1028] sm:$0xff]
    %v1678 = vld [vmem:[#allocation6 + $0x1030] sm:$0xff]
    %v1679 = vld [vmem:[#allocation6 + $0x1038] sm:$0xff]
    %v1680 = vld [vmem:[#allocation6 + $0x1040] sm:$0xff]
    %v1681 = vld [vmem:[#allocation6 + $0x1048] sm:$0xff]
    %v1682 = vld [vmem:[#allocation6 + $0x1050] sm:$0xff]
    %v1683 = vld [vmem:[#allocation6 + $0x1058] sm:$0xff]
    %v1684 = vld [vmem:[#allocation6 + $0x1060] sm:$0xff]
    %v1685 = vld [vmem:[#allocation6 + $0x1068] sm:$0xff]
    %v1686 = vld [vmem:[#allocation6 + $0x1070] sm:$0xff]
    %v1687 = vld [vmem:[#allocation6 + $0x1078] sm:$0xff]
    %v1688 = vld [vmem:[#allocation6 + $0x1080] sm:$0xff]
    %v1689 = vld [vmem:[#allocation6 + $0x1088] sm:$0xff]
    %v1690 = vld [vmem:[#allocation6 + $0x1090] sm:$0xff]
    %v1691 = vld [vmem:[#allocation6 + $0x1098] sm:$0xff]
    %v1692 = vld [vmem:[#allocation6 + $0x10a0] sm:$0xff]
    %v1693 = vld [vmem:[#allocation6 + $0x10a8] sm:$0xff]
    %v1694 = vld [vmem:[#allocation6 + $0x10b0] sm:$0xff]
    %v1695 = vld [vmem:[#allocation6 + $0x10b8] sm:$0xff]
    %v1696 = vld [vmem:[#allocation6 + $0x10c0] sm:$0xff]
    %v1697 = vld [vmem:[#allocation6 + $0x10c8] sm:$0xff]
    %v1698 = vld [vmem:[#allocation6 + $0x10d0] sm:$0xff]
    %v1699 = vld [vmem:[#allocation6 + $0x10d8] sm:$0xff]
    %v1700 = vld [vmem:[#allocation6 + $0x10e0] sm:$0xff]
    %v1701 = vld [vmem:[#allocation6 + $0x10e8] sm:$0xff]
    %v1702 = vld [vmem:[#allocation6 + $0x10f0] sm:$0xff]
    %v1703 = vld [vmem:[#allocation6 + $0x10f8] sm:$0xff]
    %v1704 = vld [vmem:[#allocation6 + $0x1100] sm:$0xff]
    %v1705 = vld [vmem:[#allocation6 + $0x1108] sm:$0xff]
    %v1706 = vld [vmem:[#allocation6 + $0x1110] sm:$0xff]
    %v1707 = vld [vmem:[#allocation6 + $0x1118] sm:$0xff]
    %v1708 = vld [vmem:[#allocation6 + $0x1120] sm:$0xff]
    %v1709 = vld [vmem:[#allocation6 + $0x1128] sm:$0xff]
    %v1710 = vld [vmem:[#allocation6 + $0x1130] sm:$0xff]
    %v1711 = vld [vmem:[#allocation6 + $0x1138] sm:$0xff]
    %v1712 = vld [vmem:[#allocation6 + $0x1140] sm:$0xff]
    %v1713 = vld [vmem:[#allocation6 + $0x1148] sm:$0xff]
    %v1714 = vld [vmem:[#allocation6 + $0x1150] sm:$0xff]
    %v1715 = vld [vmem:[#allocation6 + $0x1158] sm:$0xff]
    %v1716 = vld [vmem:[#allocation6 + $0x1160] sm:$0xff]
    %v1717 = vld [vmem:[#allocation6 + $0x1168] sm:$0xff]
    %v1718 = vld [vmem:[#allocation6 + $0x1170] sm:$0xff]
    %v1719 = vld [vmem:[#allocation6 + $0x1178] sm:$0xff]
    %v1720 = vld [vmem:[#allocation6 + $0x1180] sm:$0xff]
    %v1721 = vld [vmem:[#allocation6 + $0x1188] sm:$0xff]
    %v1722 = vld [vmem:[#allocation6 + $0x1190] sm:$0xff]
    %v1723 = vld [vmem:[#allocation6 + $0x1198] sm:$0xff]
    %v1724 = vld [vmem:[#allocation6 + $0x11a0] sm:$0xff]
    %v1725 = vld [vmem:[#allocation6 + $0x11a8] sm:$0xff]
    %v1726 = vld [vmem:[#allocation6 + $0x11b0] sm:$0xff]
    %v1727 = vld [vmem:[#allocation6 + $0x11b8] sm:$0xff]
    %v1728 = vld [vmem:[#allocation6 + $0x11c0] sm:$0xff]
    %v1729 = vld [vmem:[#allocation6 + $0x11c8] sm:$0xff]
    %v1730 = vld [vmem:[#allocation6 + $0x11d0] sm:$0xff]
    %v1731 = vld [vmem:[#allocation6 + $0x11d8] sm:$0xff]
    %v1732 = vld [vmem:[#allocation6 + $0x11e0] sm:$0xff]
    %v1733 = vld [vmem:[#allocation6 + $0x11e8] sm:$0xff]
    %v1734 = vld [vmem:[#allocation6 + $0x11f0] sm:$0xff]
    %v1735 = vld [vmem:[#allocation6 + $0x11f8] sm:$0xff]
    %v1736 = vunpack.c.l.s8.bf16 %v1416
    %v1737 = vunpack.c.l.s8.bf16 %v1417
    %v1738 = vunpack.c.l.s8.bf16 %v1418
    %v1739 = vunpack.c.l.s8.bf16 %v1419
    %v1740 = vunpack.c.l.s8.bf16 %v1420
    %v1741 = vunpack.c.l.s8.bf16 %v1421
    %v1742 = vunpack.c.l.s8.bf16 %v1422
    %v1743 = vunpack.c.l.s8.bf16 %v1423
    %v1744 = vunpack.c.h.s8.bf16 %v1416
    %v1745 = vunpack.c.h.s8.bf16 %v1417
    %v1746 = vunpack.c.h.s8.bf16 %v1418
    %v1747 = vunpack.c.h.s8.bf16 %v1419
    %v1748 = vunpack.c.h.s8.bf16 %v1420
    %v1749 = vunpack.c.h.s8.bf16 %v1421
    %v1750 = vunpack.c.h.s8.bf16 %v1422
    %v1751 = vunpack.c.h.s8.bf16 %v1423
    %v1752 = vunpack.c.l.s8.bf16 %v1424
    %v1753 = vunpack.c.l.s8.bf16 %v1425
    %v1754 = vunpack.c.l.s8.bf16 %v1426
    %v1755 = vunpack.c.l.s8.bf16 %v1427
    %v1756 = vunpack.c.l.s8.bf16 %v1428
    %v1757 = vunpack.c.l.s8.bf16 %v1429
    %v1758 = vunpack.c.l.s8.bf16 %v1430
    %v1759 = vunpack.c.l.s8.bf16 %v1431
    %v1760 = vunpack.c.h.s8.bf16 %v1424
    %v1761 = vunpack.c.h.s8.bf16 %v1425
    %v1762 = vunpack.c.h.s8.bf16 %v1426
    %v1763 = vunpack.c.h.s8.bf16 %v1427
    %v1764 = vunpack.c.h.s8.bf16 %v1428
    %v1765 = vunpack.c.h.s8.bf16 %v1429
    %v1766 = vunpack.c.h.s8.bf16 %v1430
    %v1767 = vunpack.c.h.s8.bf16 %v1431
    %v1768 = vunpack.c.l.s8.bf16 %v1432
    %v1769 = vunpack.c.l.s8.bf16 %v1433
    %v1770 = vunpack.c.l.s8.bf16 %v1434
    %v1771 = vunpack.c.l.s8.bf16 %v1435
    %v1772 = vunpack.c.l.s8.bf16 %v1436
    %v1773 = vunpack.c.l.s8.bf16 %v1437
    %v1774 = vunpack.c.l.s8.bf16 %v1438
    %v1775 = vunpack.c.l.s8.bf16 %v1439
    %v1776 = vunpack.c.h.s8.bf16 %v1432
    %v1777 = vunpack.c.h.s8.bf16 %v1433
    %v1778 = vunpack.c.h.s8.bf16 %v1434
    %v1779 = vunpack.c.h.s8.bf16 %v1435
    %v1780 = vunpack.c.h.s8.bf16 %v1436
    %v1781 = vunpack.c.h.s8.bf16 %v1437
    %v1782 = vunpack.c.h.s8.bf16 %v1438
    %v1783 = vunpack.c.h.s8.bf16 %v1439
    %v1784 = vunpack.c.l.s8.bf16 %v1440
    %v1785 = vunpack.c.l.s8.bf16 %v1441
    %v1786 = vunpack.c.l.s8.bf16 %v1442
    %v1787 = vunpack.c.l.s8.bf16 %v1443
    %v1788 = vunpack.c.l.s8.bf16 %v1444
    %v1789 = vunpack.c.l.s8.bf16 %v1445
    %v1790 = vunpack.c.l.s8.bf16 %v1446
    %v1791 = vunpack.c.l.s8.bf16 %v1447
    %v1792 = vunpack.c.h.s8.bf16 %v1440
    %v1793 = vunpack.c.h.s8.bf16 %v1441
    %v1794 = vunpack.c.h.s8.bf16 %v1442
    %v1795 = vunpack.c.h.s8.bf16 %v1443
    %v1796 = vunpack.c.h.s8.bf16 %v1444
    %v1797 = vunpack.c.h.s8.bf16 %v1445
    %v1798 = vunpack.c.h.s8.bf16 %v1446
    %v1799 = vunpack.c.h.s8.bf16 %v1447
    %v1800 = vunpack.c.l.s8.bf16 %v1448
    %v1801 = vunpack.c.l.s8.bf16 %v1449
    %v1802 = vunpack.c.l.s8.bf16 %v1450
    %v1803 = vunpack.c.l.s8.bf16 %v1451
    %v1804 = vunpack.c.l.s8.bf16 %v1452
    %v1805 = vunpack.c.l.s8.bf16 %v1453
    %v1806 = vunpack.c.l.s8.bf16 %v1454
    %v1807 = vunpack.c.l.s8.bf16 %v1455
    %v1808 = vunpack.c.h.s8.bf16 %v1448
    %v1809 = vunpack.c.h.s8.bf16 %v1449
    %v1810 = vunpack.c.h.s8.bf16 %v1450
    %v1811 = vunpack.c.h.s8.bf16 %v1451
    %v1812 = vunpack.c.h.s8.bf16 %v1452
    %v1813 = vunpack.c.h.s8.bf16 %v1453
    %v1814 = vunpack.c.h.s8.bf16 %v1454
    %v1815 = vunpack.c.h.s8.bf16 %v1455
    %v1816 = vunpack.c.l.s8.bf16 %v1456
    %v1817 = vunpack.c.l.s8.bf16 %v1457
    %v1818 = vunpack.c.l.s8.bf16 %v1458
    %v1819 = vunpack.c.l.s8.bf16 %v1459
    %v1820 = vunpack.c.l.s8.bf16 %v1460
    %v1821 = vunpack.c.l.s8.bf16 %v1461
    %v1822 = vunpack.c.l.s8.bf16 %v1462
    %v1823 = vunpack.c.l.s8.bf16 %v1463
    %v1824 = vunpack.c.h.s8.bf16 %v1456
    %v1825 = vunpack.c.h.s8.bf16 %v1457
    %v1826 = vunpack.c.h.s8.bf16 %v1458
    %v1827 = vunpack.c.h.s8.bf16 %v1459
    %v1828 = vunpack.c.h.s8.bf16 %v1460
    %v1829 = vunpack.c.h.s8.bf16 %v1461
    %v1830 = vunpack.c.h.s8.bf16 %v1462
    %v1831 = vunpack.c.h.s8.bf16 %v1463
    %v1832 = vunpack.c.l.s8.bf16 %v1464
    %v1833 = vunpack.c.l.s8.bf16 %v1465
    %v1834 = vunpack.c.l.s8.bf16 %v1466
    %v1835 = vunpack.c.l.s8.bf16 %v1467
    %v1836 = vunpack.c.l.s8.bf16 %v1468
    %v1837 = vunpack.c.l.s8.bf16 %v1469
    %v1838 = vunpack.c.l.s8.bf16 %v1470
    %v1839 = vunpack.c.l.s8.bf16 %v1471
    %v1840 = vunpack.c.h.s8.bf16 %v1464
    %v1841 = vunpack.c.h.s8.bf16 %v1465
    %v1842 = vunpack.c.h.s8.bf16 %v1466
    %v1843 = vunpack.c.h.s8.bf16 %v1467
    %v1844 = vunpack.c.h.s8.bf16 %v1468
    %v1845 = vunpack.c.h.s8.bf16 %v1469
    %v1846 = vunpack.c.h.s8.bf16 %v1470
    %v1847 = vunpack.c.h.s8.bf16 %v1471
    %v1848 = vunpack.c.l.s8.bf16 %v1472
    %v1849 = vunpack.c.l.s8.bf16 %v1473
    %v1850 = vunpack.c.l.s8.bf16 %v1474
    %v1851 = vunpack.c.l.s8.bf16 %v1475
    %v1852 = vunpack.c.l.s8.bf16 %v1476
    %v1853 = vunpack.c.l.s8.bf16 %v1477
    %v1854 = vunpack.c.l.s8.bf16 %v1478
    %v1855 = vunpack.c.l.s8.bf16 %v1479
    %v1856 = vunpack.c.h.s8.bf16 %v1472
    %v1857 = vunpack.c.h.s8.bf16 %v1473
    %v1858 = vunpack.c.h.s8.bf16 %v1474
    %v1859 = vunpack.c.h.s8.bf16 %v1475
    %v1860 = vunpack.c.h.s8.bf16 %v1476
    %v1861 = vunpack.c.h.s8.bf16 %v1477
    %v1862 = vunpack.c.h.s8.bf16 %v1478
    %v1863 = vunpack.c.h.s8.bf16 %v1479
    %v1864 = vunpack.c.l.s8.bf16 %v1480
    %v1865 = vunpack.c.l.s8.bf16 %v1481
    %v1866 = vunpack.c.l.s8.bf16 %v1482
    %v1867 = vunpack.c.l.s8.bf16 %v1483
    %v1868 = vunpack.c.l.s8.bf16 %v1484
    %v1869 = vunpack.c.l.s8.bf16 %v1485
    %v1870 = vunpack.c.l.s8.bf16 %v1486
    %v1871 = vunpack.c.l.s8.bf16 %v1487
    %v1872 = vunpack.c.h.s8.bf16 %v1480
    %v1873 = vunpack.c.h.s8.bf16 %v1481
    %v1874 = vunpack.c.h.s8.bf16 %v1482
    %v1875 = vunpack.c.h.s8.bf16 %v1483
    %v1876 = vunpack.c.h.s8.bf16 %v1484
    %v1877 = vunpack.c.h.s8.bf16 %v1485
    %v1878 = vunpack.c.h.s8.bf16 %v1486
    %v1879 = vunpack.c.h.s8.bf16 %v1487
    %v1880 = vunpack.c.l.s8.bf16 %v1488
    %v1881 = vunpack.c.l.s8.bf16 %v1489
    %v1882 = vunpack.c.l.s8.bf16 %v1490
    %v1883 = vunpack.c.l.s8.bf16 %v1491
    %v1884 = vunpack.c.l.s8.bf16 %v1492
    %v1885 = vunpack.c.l.s8.bf16 %v1493
    %v1886 = vunpack.c.l.s8.bf16 %v1494
    %v1887 = vunpack.c.l.s8.bf16 %v1495
    %v1888 = vunpack.c.h.s8.bf16 %v1488
    %v1889 = vunpack.c.h.s8.bf16 %v1489
    %v1890 = vunpack.c.h.s8.bf16 %v1490
    %v1891 = vunpack.c.h.s8.bf16 %v1491
    %v1892 = vunpack.c.h.s8.bf16 %v1492
    %v1893 = vunpack.c.h.s8.bf16 %v1493
    %v1894 = vunpack.c.h.s8.bf16 %v1494
    %v1895 = vunpack.c.h.s8.bf16 %v1495
    %v1896 = vunpack.c.l.s8.bf16 %v1496
    %v1897 = vunpack.c.l.s8.bf16 %v1497
    %v1898 = vunpack.c.l.s8.bf16 %v1498
    %v1899 = vunpack.c.l.s8.bf16 %v1499
    %v1900 = vunpack.c.l.s8.bf16 %v1500
    %v1901 = vunpack.c.l.s8.bf16 %v1501
    %v1902 = vunpack.c.l.s8.bf16 %v1502
    %v1903 = vunpack.c.l.s8.bf16 %v1503
    %v1904 = vunpack.c.h.s8.bf16 %v1496
    %v1905 = vunpack.c.h.s8.bf16 %v1497
    %v1906 = vunpack.c.h.s8.bf16 %v1498
    %v1907 = vunpack.c.h.s8.bf16 %v1499
    %v1908 = vunpack.c.h.s8.bf16 %v1500
    %v1909 = vunpack.c.h.s8.bf16 %v1501
    %v1910 = vunpack.c.h.s8.bf16 %v1502
    %v1911 = vunpack.c.h.s8.bf16 %v1503
    %v1912 = vunpack.c.l.s8.bf16 %v1504
    %v1913 = vunpack.c.l.s8.bf16 %v1505
    %v1914 = vunpack.c.l.s8.bf16 %v1506
    %v1915 = vunpack.c.l.s8.bf16 %v1507
    %v1916 = vunpack.c.l.s8.bf16 %v1508
    %v1917 = vunpack.c.l.s8.bf16 %v1509
    %v1918 = vunpack.c.l.s8.bf16 %v1510
    %v1919 = vunpack.c.l.s8.bf16 %v1511
    %v1920 = vunpack.c.h.s8.bf16 %v1504
    %v1921 = vunpack.c.h.s8.bf16 %v1505
    %v1922 = vunpack.c.h.s8.bf16 %v1506
    %v1923 = vunpack.c.h.s8.bf16 %v1507
    %v1924 = vunpack.c.h.s8.bf16 %v1508
    %v1925 = vunpack.c.h.s8.bf16 %v1509
    %v1926 = vunpack.c.h.s8.bf16 %v1510
    %v1927 = vunpack.c.h.s8.bf16 %v1511
    %v1928 = vunpack.c.l.s8.bf16 %v1512
    %v1929 = vunpack.c.l.s8.bf16 %v1513
    %v1930 = vunpack.c.l.s8.bf16 %v1514
    %v1931 = vunpack.c.l.s8.bf16 %v1515
    %v1932 = vunpack.c.l.s8.bf16 %v1516
    %v1933 = vunpack.c.l.s8.bf16 %v1517
    %v1934 = vunpack.c.l.s8.bf16 %v1518
    %v1935 = vunpack.c.l.s8.bf16 %v1519
    %v1936 = vunpack.c.h.s8.bf16 %v1512
    %v1937 = vunpack.c.h.s8.bf16 %v1513
    %v1938 = vunpack.c.h.s8.bf16 %v1514
    %v1939 = vunpack.c.h.s8.bf16 %v1515
    %v1940 = vunpack.c.h.s8.bf16 %v1516
    %v1941 = vunpack.c.h.s8.bf16 %v1517
    %v1942 = vunpack.c.h.s8.bf16 %v1518
    %v1943 = vunpack.c.h.s8.bf16 %v1519
    %v1944 = vunpack.c.l.s8.bf16 %v1520
    %v1945 = vunpack.c.l.s8.bf16 %v1521
    %v1946 = vunpack.c.l.s8.bf16 %v1522
    %v1947 = vunpack.c.l.s8.bf16 %v1523
    %v1948 = vunpack.c.l.s8.bf16 %v1524
    %v1949 = vunpack.c.l.s8.bf16 %v1525
    %v1950 = vunpack.c.l.s8.bf16 %v1526
    %v1951 = vunpack.c.l.s8.bf16 %v1527
    %v1952 = vunpack.c.h.s8.bf16 %v1520
    %v1953 = vunpack.c.h.s8.bf16 %v1521
    %v1954 = vunpack.c.h.s8.bf16 %v1522
    %v1955 = vunpack.c.h.s8.bf16 %v1523
    %v1956 = vunpack.c.h.s8.bf16 %v1524
    %v1957 = vunpack.c.h.s8.bf16 %v1525
    %v1958 = vunpack.c.h.s8.bf16 %v1526
    %v1959 = vunpack.c.h.s8.bf16 %v1527
    %v1960 = vunpack.c.l.s8.bf16 %v1528
    %v1961 = vunpack.c.l.s8.bf16 %v1529
    %v1962 = vunpack.c.l.s8.bf16 %v1530
    %v1963 = vunpack.c.l.s8.bf16 %v1531
    %v1964 = vunpack.c.l.s8.bf16 %v1532
    %v1965 = vunpack.c.l.s8.bf16 %v1533
    %v1966 = vunpack.c.l.s8.bf16 %v1534
    %v1967 = vunpack.c.l.s8.bf16 %v1535
    %v1968 = vunpack.c.h.s8.bf16 %v1528
    %v1969 = vunpack.c.h.s8.bf16 %v1529
    %v1970 = vunpack.c.h.s8.bf16 %v1530
    %v1971 = vunpack.c.h.s8.bf16 %v1531
    %v1972 = vunpack.c.h.s8.bf16 %v1532
    %v1973 = vunpack.c.h.s8.bf16 %v1533
    %v1974 = vunpack.c.h.s8.bf16 %v1534
    %v1975 = vunpack.c.h.s8.bf16 %v1535
    %v1976 = vunpack.c.l.s8.bf16 %v1536
    %v1977 = vunpack.c.l.s8.bf16 %v1537
    %v1978 = vunpack.c.l.s8.bf16 %v1538
    %v1979 = vunpack.c.l.s8.bf16 %v1539
    %v1980 = vunpack.c.l.s8.bf16 %v1540
    %v1981 = vunpack.c.l.s8.bf16 %v1541
    %v1982 = vunpack.c.l.s8.bf16 %v1542
    %v1983 = vunpack.c.l.s8.bf16 %v1543
    %v1984 = vunpack.c.h.s8.bf16 %v1536
    %v1985 = vunpack.c.h.s8.bf16 %v1537
    %v1986 = vunpack.c.h.s8.bf16 %v1538
    %v1987 = vunpack.c.h.s8.bf16 %v1539
    %v1988 = vunpack.c.h.s8.bf16 %v1540
    %v1989 = vunpack.c.h.s8.bf16 %v1541
    %v1990 = vunpack.c.h.s8.bf16 %v1542
    %v1991 = vunpack.c.h.s8.bf16 %v1543
    %v1992 = vunpack.c.l.s8.bf16 %v1544
    %v1993 = vunpack.c.l.s8.bf16 %v1545
    %v1994 = vunpack.c.l.s8.bf16 %v1546
    %v1995 = vunpack.c.l.s8.bf16 %v1547
    %v1996 = vunpack.c.l.s8.bf16 %v1548
    %v1997 = vunpack.c.l.s8.bf16 %v1549
    %v1998 = vunpack.c.l.s8.bf16 %v1550
    %v1999 = vunpack.c.l.s8.bf16 %v1551
    %v2000 = vunpack.c.h.s8.bf16 %v1544
    %v2001 = vunpack.c.h.s8.bf16 %v1545
    %v2002 = vunpack.c.h.s8.bf16 %v1546
    %v2003 = vunpack.c.h.s8.bf16 %v1547
    %v2004 = vunpack.c.h.s8.bf16 %v1548
    %v2005 = vunpack.c.h.s8.bf16 %v1549
    %v2006 = vunpack.c.h.s8.bf16 %v1550
    %v2007 = vunpack.c.h.s8.bf16 %v1551
    %v2008 = vunpack.c.l.s8.bf16 %v1552
    %v2009 = vunpack.c.l.s8.bf16 %v1553
    %v2010 = vunpack.c.l.s8.bf16 %v1554
    %v2011 = vunpack.c.l.s8.bf16 %v1555
    %v2012 = vunpack.c.l.s8.bf16 %v1556
    %v2013 = vunpack.c.l.s8.bf16 %v1557
    %v2014 = vunpack.c.l.s8.bf16 %v1558
    %v2015 = vunpack.c.l.s8.bf16 %v1559
    %v2016 = vunpack.c.h.s8.bf16 %v1552
    %v2017 = vunpack.c.h.s8.bf16 %v1553
    %v2018 = vunpack.c.h.s8.bf16 %v1554
    %v2019 = vunpack.c.h.s8.bf16 %v1555
    %v2020 = vunpack.c.h.s8.bf16 %v1556
    %v2021 = vunpack.c.h.s8.bf16 %v1557
    %v2022 = vunpack.c.h.s8.bf16 %v1558
    %v2023 = vunpack.c.h.s8.bf16 %v1559
    %v2024 = vunpack.c.l.s8.bf16 %v1560
    %v2025 = vunpack.c.l.s8.bf16 %v1561
    %v2026 = vunpack.c.l.s8.bf16 %v1562
    %v2027 = vunpack.c.l.s8.bf16 %v1563
    %v2028 = vunpack.c.l.s8.bf16 %v1564
    %v2029 = vunpack.c.l.s8.bf16 %v1565
    %v2030 = vunpack.c.l.s8.bf16 %v1566
    %v2031 = vunpack.c.l.s8.bf16 %v1567
    %v2032 = vunpack.c.h.s8.bf16 %v1560
    %v2033 = vunpack.c.h.s8.bf16 %v1561
    %v2034 = vunpack.c.h.s8.bf16 %v1562
    %v2035 = vunpack.c.h.s8.bf16 %v1563
    %v2036 = vunpack.c.h.s8.bf16 %v1564
    %v2037 = vunpack.c.h.s8.bf16 %v1565
    %v2038 = vunpack.c.h.s8.bf16 %v1566
    %v2039 = vunpack.c.h.s8.bf16 %v1567
    %v2040 = vunpack.c.l.s8.bf16 %v1568
    %v2041 = vunpack.c.l.s8.bf16 %v1569
    %v2042 = vunpack.c.l.s8.bf16 %v1570
    %v2043 = vunpack.c.l.s8.bf16 %v1571
    %v2044 = vunpack.c.l.s8.bf16 %v1572
    %v2045 = vunpack.c.l.s8.bf16 %v1573
    %v2046 = vunpack.c.l.s8.bf16 %v1574
    %v2047 = vunpack.c.l.s8.bf16 %v1575
    %v2048 = vunpack.c.h.s8.bf16 %v1568
    %v2049 = vunpack.c.h.s8.bf16 %v1569
    %v2050 = vunpack.c.h.s8.bf16 %v1570
    %v2051 = vunpack.c.h.s8.bf16 %v1571
    %v2052 = vunpack.c.h.s8.bf16 %v1572
    %v2053 = vunpack.c.h.s8.bf16 %v1573
    %v2054 = vunpack.c.h.s8.bf16 %v1574
    %v2055 = vunpack.c.h.s8.bf16 %v1575
    %v2056 = vunpack.c.l.s8.bf16 %v1576
    %v2057 = vunpack.c.l.s8.bf16 %v1577
    %v2058 = vunpack.c.l.s8.bf16 %v1578
    %v2059 = vunpack.c.l.s8.bf16 %v1579
    %v2060 = vunpack.c.l.s8.bf16 %v1580
    %v2061 = vunpack.c.l.s8.bf16 %v1581
    %v2062 = vunpack.c.l.s8.bf16 %v1582
    %v2063 = vunpack.c.l.s8.bf16 %v1583
    %v2064 = vunpack.c.h.s8.bf16 %v1576
    %v2065 = vunpack.c.h.s8.bf16 %v1577
    %v2066 = vunpack.c.h.s8.bf16 %v1578
    %v2067 = vunpack.c.h.s8.bf16 %v1579
    %v2068 = vunpack.c.h.s8.bf16 %v1580
    %v2069 = vunpack.c.h.s8.bf16 %v1581
    %v2070 = vunpack.c.h.s8.bf16 %v1582
    %v2071 = vunpack.c.h.s8.bf16 %v1583
    %v2072 = vunpack.c.l.s8.bf16 %v1584
    %v2073 = vunpack.c.l.s8.bf16 %v1585
    %v2074 = vunpack.c.l.s8.bf16 %v1586
    %v2075 = vunpack.c.l.s8.bf16 %v1587
    %v2076 = vunpack.c.l.s8.bf16 %v1588
    %v2077 = vunpack.c.l.s8.bf16 %v1589
    %v2078 = vunpack.c.l.s8.bf16 %v1590
    %v2079 = vunpack.c.l.s8.bf16 %v1591
    %v2080 = vunpack.c.h.s8.bf16 %v1584
    %v2081 = vunpack.c.h.s8.bf16 %v1585
    %v2082 = vunpack.c.h.s8.bf16 %v1586
    %v2083 = vunpack.c.h.s8.bf16 %v1587
    %v2084 = vunpack.c.h.s8.bf16 %v1588
    %v2085 = vunpack.c.h.s8.bf16 %v1589
    %v2086 = vunpack.c.h.s8.bf16 %v1590
    %v2087 = vunpack.c.h.s8.bf16 %v1591
    %v2088 = vunpack.c.l.s8.bf16 %v1592
    %v2089 = vunpack.c.l.s8.bf16 %v1593
    %v2090 = vunpack.c.l.s8.bf16 %v1594
    %v2091 = vunpack.c.l.s8.bf16 %v1595
    %v2092 = vunpack.c.l.s8.bf16 %v1596
    %v2093 = vunpack.c.l.s8.bf16 %v1597
    %v2094 = vunpack.c.l.s8.bf16 %v1598
    %v2095 = vunpack.c.l.s8.bf16 %v1599
    %v2096 = vunpack.c.h.s8.bf16 %v1592
    %v2097 = vunpack.c.h.s8.bf16 %v1593
    %v2098 = vunpack.c.h.s8.bf16 %v1594
    %v2099 = vunpack.c.h.s8.bf16 %v1595
    %v2100 = vunpack.c.h.s8.bf16 %v1596
    %v2101 = vunpack.c.h.s8.bf16 %v1597
    %v2102 = vunpack.c.h.s8.bf16 %v1598
    %v2103 = vunpack.c.h.s8.bf16 %v1599
    %v2104 = vunpack.c.l.s8.bf16 %v1600
    %v2105 = vunpack.c.l.s8.bf16 %v1601
    %v2106 = vunpack.c.l.s8.bf16 %v1602
    %v2107 = vunpack.c.l.s8.bf16 %v1603
    %v2108 = vunpack.c.l.s8.bf16 %v1604
    %v2109 = vunpack.c.l.s8.bf16 %v1605
    %v2110 = vunpack.c.l.s8.bf16 %v1606
    %v2111 = vunpack.c.l.s8.bf16 %v1607
    %v2112 = vunpack.c.h.s8.bf16 %v1600
    %v2113 = vunpack.c.h.s8.bf16 %v1601
    %v2114 = vunpack.c.h.s8.bf16 %v1602
    %v2115 = vunpack.c.h.s8.bf16 %v1603
    %v2116 = vunpack.c.h.s8.bf16 %v1604
    %v2117 = vunpack.c.h.s8.bf16 %v1605
    %v2118 = vunpack.c.h.s8.bf16 %v1606
    %v2119 = vunpack.c.h.s8.bf16 %v1607
    %v2120 = vunpack.c.l.s8.bf16 %v1608
    %v2121 = vunpack.c.l.s8.bf16 %v1609
    %v2122 = vunpack.c.l.s8.bf16 %v1610
    %v2123 = vunpack.c.l.s8.bf16 %v1611
    %v2124 = vunpack.c.l.s8.bf16 %v1612
    %v2125 = vunpack.c.l.s8.bf16 %v1613
    %v2126 = vunpack.c.l.s8.bf16 %v1614
    %v2127 = vunpack.c.l.s8.bf16 %v1615
    %v2128 = vunpack.c.h.s8.bf16 %v1608
    %v2129 = vunpack.c.h.s8.bf16 %v1609
    %v2130 = vunpack.c.h.s8.bf16 %v1610
    %v2131 = vunpack.c.h.s8.bf16 %v1611
    %v2132 = vunpack.c.h.s8.bf16 %v1612
    %v2133 = vunpack.c.h.s8.bf16 %v1613
    %v2134 = vunpack.c.h.s8.bf16 %v1614
    %v2135 = vunpack.c.h.s8.bf16 %v1615
    %v2136 = vunpack.c.l.s8.bf16 %v1616
    %v2137 = vunpack.c.l.s8.bf16 %v1617
    %v2138 = vunpack.c.l.s8.bf16 %v1618
    %v2139 = vunpack.c.l.s8.bf16 %v1619
    %v2140 = vunpack.c.l.s8.bf16 %v1620
    %v2141 = vunpack.c.l.s8.bf16 %v1621
    %v2142 = vunpack.c.l.s8.bf16 %v1622
    %v2143 = vunpack.c.l.s8.bf16 %v1623
    %v2144 = vunpack.c.h.s8.bf16 %v1616
    %v2145 = vunpack.c.h.s8.bf16 %v1617
    %v2146 = vunpack.c.h.s8.bf16 %v1618
    %v2147 = vunpack.c.h.s8.bf16 %v1619
    %v2148 = vunpack.c.h.s8.bf16 %v1620
    %v2149 = vunpack.c.h.s8.bf16 %v1621
    %v2150 = vunpack.c.h.s8.bf16 %v1622
    %v2151 = vunpack.c.h.s8.bf16 %v1623
    %v2152 = vunpack.c.l.s8.bf16 %v1624
    %v2153 = vunpack.c.l.s8.bf16 %v1625
    %v2154 = vunpack.c.l.s8.bf16 %v1626
    %v2155 = vunpack.c.l.s8.bf16 %v1627
    %v2156 = vunpack.c.l.s8.bf16 %v1628
    %v2157 = vunpack.c.l.s8.bf16 %v1629
    %v2158 = vunpack.c.l.s8.bf16 %v1630
    %v2159 = vunpack.c.l.s8.bf16 %v1631
    %v2160 = vunpack.c.h.s8.bf16 %v1624
    %v2161 = vunpack.c.h.s8.bf16 %v1625
    %v2162 = vunpack.c.h.s8.bf16 %v1626
    %v2163 = vunpack.c.h.s8.bf16 %v1627
    %v2164 = vunpack.c.h.s8.bf16 %v1628
    %v2165 = vunpack.c.h.s8.bf16 %v1629
    %v2166 = vunpack.c.h.s8.bf16 %v1630
    %v2167 = vunpack.c.h.s8.bf16 %v1631
    %v2168 = vunpack.c.l.s8.bf16 %v1632
    %v2169 = vunpack.c.l.s8.bf16 %v1633
    %v2170 = vunpack.c.l.s8.bf16 %v1634
    %v2171 = vunpack.c.l.s8.bf16 %v1635
    %v2172 = vunpack.c.l.s8.bf16 %v1636
    %v2173 = vunpack.c.l.s8.bf16 %v1637
    %v2174 = vunpack.c.l.s8.bf16 %v1638
    %v2175 = vunpack.c.l.s8.bf16 %v1639
    %v2176 = vunpack.c.h.s8.bf16 %v1632
    %v2177 = vunpack.c.h.s8.bf16 %v1633
    %v2178 = vunpack.c.h.s8.bf16 %v1634
    %v2179 = vunpack.c.h.s8.bf16 %v1635
    %v2180 = vunpack.c.h.s8.bf16 %v1636
    %v2181 = vunpack.c.h.s8.bf16 %v1637
    %v2182 = vunpack.c.h.s8.bf16 %v1638
    %v2183 = vunpack.c.h.s8.bf16 %v1639
    %v2184 = vunpack.c.l.s8.bf16 %v1640
    %v2185 = vunpack.c.l.s8.bf16 %v1641
    %v2186 = vunpack.c.l.s8.bf16 %v1642
    %v2187 = vunpack.c.l.s8.bf16 %v1643
    %v2188 = vunpack.c.l.s8.bf16 %v1644
    %v2189 = vunpack.c.l.s8.bf16 %v1645
    %v2190 = vunpack.c.l.s8.bf16 %v1646
    %v2191 = vunpack.c.l.s8.bf16 %v1647
    %v2192 = vunpack.c.h.s8.bf16 %v1640
    %v2193 = vunpack.c.h.s8.bf16 %v1641
    %v2194 = vunpack.c.h.s8.bf16 %v1642
    %v2195 = vunpack.c.h.s8.bf16 %v1643
    %v2196 = vunpack.c.h.s8.bf16 %v1644
    %v2197 = vunpack.c.h.s8.bf16 %v1645
    %v2198 = vunpack.c.h.s8.bf16 %v1646
    %v2199 = vunpack.c.h.s8.bf16 %v1647
    %v2200 = vunpack.c.l.s8.bf16 %v1648
    %v2201 = vunpack.c.l.s8.bf16 %v1649
    %v2202 = vunpack.c.l.s8.bf16 %v1650
    %v2203 = vunpack.c.l.s8.bf16 %v1651
    %v2204 = vunpack.c.l.s8.bf16 %v1652
    %v2205 = vunpack.c.l.s8.bf16 %v1653
    %v2206 = vunpack.c.l.s8.bf16 %v1654
    %v2207 = vunpack.c.l.s8.bf16 %v1655
    %v2208 = vunpack.c.h.s8.bf16 %v1648
    %v2209 = vunpack.c.h.s8.bf16 %v1649
    %v2210 = vunpack.c.h.s8.bf16 %v1650
    %v2211 = vunpack.c.h.s8.bf16 %v1651
    %v2212 = vunpack.c.h.s8.bf16 %v1652
    %v2213 = vunpack.c.h.s8.bf16 %v1653
    %v2214 = vunpack.c.h.s8.bf16 %v1654
    %v2215 = vunpack.c.h.s8.bf16 %v1655
    %v2216 = vunpack.c.l.s8.bf16 %v1656
    %v2217 = vunpack.c.l.s8.bf16 %v1657
    %v2218 = vunpack.c.l.s8.bf16 %v1658
    %v2219 = vunpack.c.l.s8.bf16 %v1659
    %v2220 = vunpack.c.l.s8.bf16 %v1660
    %v2221 = vunpack.c.l.s8.bf16 %v1661
    %v2222 = vunpack.c.l.s8.bf16 %v1662
    %v2223 = vunpack.c.l.s8.bf16 %v1663
    %v2224 = vunpack.c.h.s8.bf16 %v1656
    %v2225 = vunpack.c.h.s8.bf16 %v1657
    %v2226 = vunpack.c.h.s8.bf16 %v1658
    %v2227 = vunpack.c.h.s8.bf16 %v1659
    %v2228 = vunpack.c.h.s8.bf16 %v1660
    %v2229 = vunpack.c.h.s8.bf16 %v1661
    %v2230 = vunpack.c.h.s8.bf16 %v1662
    %v2231 = vunpack.c.h.s8.bf16 %v1663
    %v2232 = vunpack.c.l.s8.bf16 %v1664
    %v2233 = vunpack.c.l.s8.bf16 %v1665
    %v2234 = vunpack.c.l.s8.bf16 %v1666
    %v2235 = vunpack.c.l.s8.bf16 %v1667
    %v2236 = vunpack.c.l.s8.bf16 %v1668
    %v2237 = vunpack.c.l.s8.bf16 %v1669
    %v2238 = vunpack.c.l.s8.bf16 %v1670
    %v2239 = vunpack.c.l.s8.bf16 %v1671
    %v2240 = vunpack.c.h.s8.bf16 %v1664
    %v2241 = vunpack.c.h.s8.bf16 %v1665
    %v2242 = vunpack.c.h.s8.bf16 %v1666
    %v2243 = vunpack.c.h.s8.bf16 %v1667
    %v2244 = vunpack.c.h.s8.bf16 %v1668
    %v2245 = vunpack.c.h.s8.bf16 %v1669
    %v2246 = vunpack.c.h.s8.bf16 %v1670
    %v2247 = vunpack.c.h.s8.bf16 %v1671
    %v2248 = vunpack.c.l.s8.bf16 %v1672
    %v2249 = vunpack.c.l.s8.bf16 %v1673
    %v2250 = vunpack.c.l.s8.bf16 %v1674
    %v2251 = vunpack.c.l.s8.bf16 %v1675
    %v2252 = vunpack.c.l.s8.bf16 %v1676
    %v2253 = vunpack.c.l.s8.bf16 %v1677
    %v2254 = vunpack.c.l.s8.bf16 %v1678
    %v2255 = vunpack.c.l.s8.bf16 %v1679
    %v2256 = vunpack.c.h.s8.bf16 %v1672
    %v2257 = vunpack.c.h.s8.bf16 %v1673
    %v2258 = vunpack.c.h.s8.bf16 %v1674
    %v2259 = vunpack.c.h.s8.bf16 %v1675
    %v2260 = vunpack.c.h.s8.bf16 %v1676
    %v2261 = vunpack.c.h.s8.bf16 %v1677
    %v2262 = vunpack.c.h.s8.bf16 %v1678
    %v2263 = vunpack.c.h.s8.bf16 %v1679
    %v2264 = vunpack.c.l.s8.bf16 %v1680
    %v2265 = vunpack.c.l.s8.bf16 %v1681
    %v2266 = vunpack.c.l.s8.bf16 %v1682
    %v2267 = vunpack.c.l.s8.bf16 %v1683
    %v2268 = vunpack.c.l.s8.bf16 %v1684
    %v2269 = vunpack.c.l.s8.bf16 %v1685
    %v2270 = vunpack.c.l.s8.bf16 %v1686
    %v2271 = vunpack.c.l.s8.bf16 %v1687
    %v2272 = vunpack.c.h.s8.bf16 %v1680
    %v2273 = vunpack.c.h.s8.bf16 %v1681
    %v2274 = vunpack.c.h.s8.bf16 %v1682
    %v2275 = vunpack.c.h.s8.bf16 %v1683
    %v2276 = vunpack.c.h.s8.bf16 %v1684
    %v2277 = vunpack.c.h.s8.bf16 %v1685
    %v2278 = vunpack.c.h.s8.bf16 %v1686
    %v2279 = vunpack.c.h.s8.bf16 %v1687
    %v2280 = vunpack.c.l.s8.bf16 %v1688
    %v2281 = vunpack.c.l.s8.bf16 %v1689
    %v2282 = vunpack.c.l.s8.bf16 %v1690
    %v2283 = vunpack.c.l.s8.bf16 %v1691
    %v2284 = vunpack.c.l.s8.bf16 %v1692
    %v2285 = vunpack.c.l.s8.bf16 %v1693
    %v2286 = vunpack.c.l.s8.bf16 %v1694
    %v2287 = vunpack.c.l.s8.bf16 %v1695
    %v2288 = vunpack.c.h.s8.bf16 %v1688
    %v2289 = vunpack.c.h.s8.bf16 %v1689
    %v2290 = vunpack.c.h.s8.bf16 %v1690
    %v2291 = vunpack.c.h.s8.bf16 %v1691
    %v2292 = vunpack.c.h.s8.bf16 %v1692
    %v2293 = vunpack.c.h.s8.bf16 %v1693
    %v2294 = vunpack.c.h.s8.bf16 %v1694
    %v2295 = vunpack.c.h.s8.bf16 %v1695
    %v2296 = vunpack.c.l.s8.bf16 %v1696
    %v2297 = vunpack.c.l.s8.bf16 %v1697
    %v2298 = vunpack.c.l.s8.bf16 %v1698
    %v2299 = vunpack.c.l.s8.bf16 %v1699
    %v2300 = vunpack.c.l.s8.bf16 %v1700
    %v2301 = vunpack.c.l.s8.bf16 %v1701
    %v2302 = vunpack.c.l.s8.bf16 %v1702
    %v2303 = vunpack.c.l.s8.bf16 %v1703
    %v2304 = vunpack.c.h.s8.bf16 %v1696
    %v2305 = vunpack.c.h.s8.bf16 %v1697
    %v2306 = vunpack.c.h.s8.bf16 %v1698
    %v2307 = vunpack.c.h.s8.bf16 %v1699
    %v2308 = vunpack.c.h.s8.bf16 %v1700
    %v2309 = vunpack.c.h.s8.bf16 %v1701
    %v2310 = vunpack.c.h.s8.bf16 %v1702
    %v2311 = vunpack.c.h.s8.bf16 %v1703
    %v2312 = vunpack.c.l.s8.bf16 %v1704
    %v2313 = vunpack.c.l.s8.bf16 %v1705
    %v2314 = vunpack.c.l.s8.bf16 %v1706
    %v2315 = vunpack.c.l.s8.bf16 %v1707
    %v2316 = vunpack.c.l.s8.bf16 %v1708
    %v2317 = vunpack.c.l.s8.bf16 %v1709
    %v2318 = vunpack.c.l.s8.bf16 %v1710
    %v2319 = vunpack.c.l.s8.bf16 %v1711
    %v2320 = vunpack.c.h.s8.bf16 %v1704
    %v2321 = vunpack.c.h.s8.bf16 %v1705
    %v2322 = vunpack.c.h.s8.bf16 %v1706
    %v2323 = vunpack.c.h.s8.bf16 %v1707
    %v2324 = vunpack.c.h.s8.bf16 %v1708
    %v2325 = vunpack.c.h.s8.bf16 %v1709
    %v2326 = vunpack.c.h.s8.bf16 %v1710
    %v2327 = vunpack.c.h.s8.bf16 %v1711
    %v2328 = vunpack.c.l.s8.bf16 %v1712
    %v2329 = vunpack.c.l.s8.bf16 %v1713
    %v2330 = vunpack.c.l.s8.bf16 %v1714
    %v2331 = vunpack.c.l.s8.bf16 %v1715
    %v2332 = vunpack.c.l.s8.bf16 %v1716
    %v2333 = vunpack.c.l.s8.bf16 %v1717
    %v2334 = vunpack.c.l.s8.bf16 %v1718
    %v2335 = vunpack.c.l.s8.bf16 %v1719
    %v2336 = vunpack.c.h.s8.bf16 %v1712
    %v2337 = vunpack.c.h.s8.bf16 %v1713
    %v2338 = vunpack.c.h.s8.bf16 %v1714
    %v2339 = vunpack.c.h.s8.bf16 %v1715
    %v2340 = vunpack.c.h.s8.bf16 %v1716
    %v2341 = vunpack.c.h.s8.bf16 %v1717
    %v2342 = vunpack.c.h.s8.bf16 %v1718
    %v2343 = vunpack.c.h.s8.bf16 %v1719
    %v2344 = vunpack.c.l.s8.bf16 %v1720
    %v2345 = vunpack.c.l.s8.bf16 %v1721
    %v2346 = vunpack.c.l.s8.bf16 %v1722
    %v2347 = vunpack.c.l.s8.bf16 %v1723
    %v2348 = vunpack.c.l.s8.bf16 %v1724
    %v2349 = vunpack.c.l.s8.bf16 %v1725
    %v2350 = vunpack.c.l.s8.bf16 %v1726
    %v2351 = vunpack.c.l.s8.bf16 %v1727
    %v2352 = vunpack.c.h.s8.bf16 %v1720
    %v2353 = vunpack.c.h.s8.bf16 %v1721
    %v2354 = vunpack.c.h.s8.bf16 %v1722
    %v2355 = vunpack.c.h.s8.bf16 %v1723
    %v2356 = vunpack.c.h.s8.bf16 %v1724
    %v2357 = vunpack.c.h.s8.bf16 %v1725
    %v2358 = vunpack.c.h.s8.bf16 %v1726
    %v2359 = vunpack.c.h.s8.bf16 %v1727
    %v2360 = vunpack.c.l.s8.bf16 %v1728
    %v2361 = vunpack.c.l.s8.bf16 %v1729
    %v2362 = vunpack.c.l.s8.bf16 %v1730
    %v2363 = vunpack.c.l.s8.bf16 %v1731
    %v2364 = vunpack.c.l.s8.bf16 %v1732
    %v2365 = vunpack.c.l.s8.bf16 %v1733
    %v2366 = vunpack.c.l.s8.bf16 %v1734
    %v2367 = vunpack.c.l.s8.bf16 %v1735
    %v2368 = vunpack.c.h.s8.bf16 %v1728
    %v2369 = vunpack.c.h.s8.bf16 %v1729
    %v2370 = vunpack.c.h.s8.bf16 %v1730
    %v2371 = vunpack.c.h.s8.bf16 %v1731
    %v2372 = vunpack.c.h.s8.bf16 %v1732
    %v2373 = vunpack.c.h.s8.bf16 %v1733
    %v2374 = vunpack.c.h.s8.bf16 %v1734
    %v2375 = vunpack.c.h.s8.bf16 %v1735
    %v2396 = vunpack.c.l.b16 %v574
    %v2397 = vunpack.c.l.b16 %v575
    %v2398 = vunpack.c.l.b16 %v576
    %v2399 = vunpack.c.l.b16 %v577
    %v2400 = vunpack.c.l.b16 %v578
    %v2401 = vunpack.c.l.b16 %v579
    %v2402 = vunpack.c.l.b16 %v580
    %v2403 = vunpack.c.l.b16 %v581
    %v2404 = vunpack.c.l.b16 %v582
    %v2405 = vunpack.c.l.b16 %v583
    %v2406 = vunpack.c.l.b16 %v584
    %v2407 = vunpack.c.l.b16 %v585
    %v2408 = vunpack.c.l.b16 %v586
    %v2409 = vunpack.c.l.b16 %v587
    %v2410 = vunpack.c.l.b16 %v588
    %v2411 = vunpack.c.l.b16 %v589
    %v2412 = vunpack.c.l.b16 %v590
    %v2413 = vunpack.c.l.b16 %v591
    %v2414 = vunpack.c.l.b16 %v592
    %v2415 = vunpack.c.l.b16 %v593
    %v2416 = vrot.slane %v2406, 7
    %vm2417 = vcmask 1041409
    %v2418 = vsel %vm2417, %v2416, %v2396
    %v2419 = vrot.slane %v2407, 7
    %v2420 = vsel %vm2417, %v2419, %v2397
    %v2421 = vrot.slane %v2408, 7
    %v2422 = vsel %vm2417, %v2421, %v2398
    %v2423 = vrot.slane %v2409, 7
    %v2424 = vsel %vm2417, %v2423, %v2399
    %v2425 = vrot.slane %v2410, 7
    %v2426 = vsel %vm2417, %v2425, %v2400
    %v2427 = vrot.slane %v2411, 7
    %v2428 = vsel %vm2417, %v2427, %v2401
    %v2429 = vrot.slane %v2412, 7
    %v2430 = vsel %vm2417, %v2429, %v2402
    %v2431 = vrot.slane %v2413, 7
    %v2432 = vsel %vm2417, %v2431, %v2403
    %v2433 = vrot.slane %v2414, 7
    %v2434 = vsel %vm2417, %v2433, %v2404
    %v2435 = vrot.slane %v2415, 7
    %v2436 = vsel %vm2417, %v2435, %v2405
    %v2437 = vpack.c.b16 %v2418, %v2418
    %v2438 = vpack.c.b16 %v2420, %v2420
    %v2439 = vpack.c.b16 %v2422, %v2422
    %v2440 = vpack.c.b16 %v2424, %v2424
    %v2441 = vpack.c.b16 %v2426, %v2426
    %v2442 = vpack.c.b16 %v2428, %v2428
    %v2443 = vpack.c.b16 %v2430, %v2430
    %v2444 = vpack.c.b16 %v2432, %v2432
    %v2445 = vpack.c.b16 %v2434, %v2434
    %v2446 = vpack.c.b16 %v2436, %v2436
    %2457 = vmatprep.subr.bf16.mxu0 %v1737
    %2458 = vmatpush1.bf16.msra.mxu0 %v1736
    %2459 = vmatprep.subr.bf16.mxu0 %v1745
    %2460 = vmatpush1.bf16.msra.mxu0 %v1744
    %2461 = vmatprep.subr.bf16.mxu0 %v1753
    %2462 = vmatpush1.bf16.msra.mxu0 %v1752
    %2463 = vmatprep.subr.bf16.mxu0 %v1761
    %2464 = vmatpush1.bf16.msra.mxu0 %v1760
    %2465 = vmatprep.subr.bf16.mxu0 %v1769
    %2466 = vmatpush1.bf16.msra.mxu0 %v1768
    %2467 = vmatprep.subr.bf16.mxu0 %v1777
    %2468 = vmatpush1.bf16.msra.mxu0 %v1776
    %2469 = vmatprep.subr.bf16.mxu0 %v1785
    %2470 = vmatpush1.bf16.msra.mxu0 %v1784
    %2471 = vmatprep.subr.bf16.mxu0 %v1793
    %2472 = vmatpush1.bf16.msra.mxu0 %v1792
    %2473 = vmatprep.subr.bf16.mxu0 %v1801
    %2474 = vmatpush1.bf16.msra.mxu0 %v1800
    %2475 = vmatprep.subr.bf16.mxu0 %v1809
    %2476 = vmatpush1.bf16.msra.mxu0 %v1808
    %2477 = vmatprep.subr.bf16.mxu0 %v1817
    %2478 = vmatpush1.bf16.msra.mxu0 %v1816
    %2479 = vmatprep.subr.bf16.mxu0 %v1825
    %2480 = vmatpush1.bf16.msra.mxu0 %v1824
    %2481 = vmatprep.subr.bf16.mxu0 %v1833
    %2482 = vmatpush1.bf16.msra.mxu0 %v1832
    %2483 = vmatprep.subr.bf16.mxu0 %v1841
    %2484 = vmatpush1.bf16.msra.mxu0 %v1840
    %2485 = vmatprep.subr.bf16.mxu0 %v1849
    %2486 = vmatpush1.bf16.msra.mxu0 %v1848
    %2487 = vmatprep.subr.bf16.mxu0 %v1857
    %2488 = vmatpush1.bf16.msra.mxu0 %v1856
    %2489 = vmatprep.mubr.bf16.mxu0 %v2438
    %2490 = vmatmul.mubr.bf16.gmra.mrb[0].mxu0 %v2437
    %v2491 = vpop.f32.mrb[0].mxu0
    %v2492 = vadd.f32 0.0, %v2491
    %v2493 = vpop.f32.mrb[0].mxu0
    %v2494 = vadd.f32 0.0, %v2493
    %v2495 = vpop.f32.mrb[0].mxu0
    %v2496 = vpop.f32.mrb[0].mxu0
    %2497 = vdwg.mxu0
    %2498 = vmatprep.subr.bf16.mxu0 %v1865
    %2499 = vmatpush1.bf16.msra.mxu0 %v1864
    %2500 = vmatprep.subr.bf16.mxu0 %v1873
    %2501 = vmatpush1.bf16.msra.mxu0 %v1872
    %2502 = vmatprep.subr.bf16.mxu0 %v1881
    %2503 = vmatpush1.bf16.msra.mxu0 %v1880
    %2504 = vmatprep.subr.bf16.mxu0 %v1889
    %2505 = vmatpush1.bf16.msra.mxu0 %v1888
    %2506 = vmatprep.subr.bf16.mxu0 %v1897
    %2507 = vmatpush1.bf16.msra.mxu0 %v1896
    %2508 = vmatprep.subr.bf16.mxu0 %v1905
    %2509 = vmatpush1.bf16.msra.mxu0 %v1904
    %2510 = vmatprep.subr.bf16.mxu0 %v1913
    %2511 = vmatpush1.bf16.msra.mxu0 %v1912
    %2512 = vmatprep.subr.bf16.mxu0 %v1921
    %2513 = vmatpush1.bf16.msra.mxu0 %v1920
    %2514 = vmatprep.subr.bf16.mxu0 %v1929
    %2515 = vmatpush1.bf16.msra.mxu0 %v1928
    %2516 = vmatprep.subr.bf16.mxu0 %v1937
    %2517 = vmatpush1.bf16.msra.mxu0 %v1936
    %2518 = vmatprep.subr.bf16.mxu0 %v1945
    %2519 = vmatpush1.bf16.msra.mxu0 %v1944
    %2520 = vmatprep.subr.bf16.mxu0 %v1953
    %2521 = vmatpush1.bf16.msra.mxu0 %v1952
    %2522 = vmatprep.subr.bf16.mxu0 %v1961
    %2523 = vmatpush1.bf16.msra.mxu0 %v1960
    %2524 = vmatprep.subr.bf16.mxu0 %v1969
    %2525 = vmatpush1.bf16.msra.mxu0 %v1968
    %2526 = vmatprep.subr.bf16.mxu0 %v1977
    %2527 = vmatpush1.bf16.msra.mxu0 %v1976
    %2528 = vmatprep.subr.bf16.mxu0 %v1985
    %2529 = vmatpush1.bf16.msra.mxu0 %v1984
    %2530 = vmatprep.mubr.bf16.mxu0 %v2440
    %2531 = vmatmul.mubr.bf16.gmra.mrb[0].mxu0 %v2439
    %v2532 = vpop.f32.mrb[0].mxu0
    %v2533 = vadd.f32 %v2492, %v2532
    %v2534 = vpop.f32.mrb[0].mxu0
    %v2535 = vadd.f32 %v2494, %v2534
    %v2536 = vpop.f32.mrb[0].mxu0
    %v2537 = vpop.f32.mrb[0].mxu0
    %2538 = vdwg.mxu0
    %2539 = vmatprep.subr.bf16.mxu0 %v1993
    %2540 = vmatpush1.bf16.msra.mxu0 %v1992
    %2541 = vmatprep.subr.bf16.mxu0 %v2001
    %2542 = vmatpush1.bf16.msra.mxu0 %v2000
    %2543 = vmatprep.subr.bf16.mxu0 %v2009
    %2544 = vmatpush1.bf16.msra.mxu0 %v2008
    %2545 = vmatprep.subr.bf16.mxu0 %v2017
    %2546 = vmatpush1.bf16.msra.mxu0 %v2016
    %2547 = vmatprep.subr.bf16.mxu0 %v2025
    %2548 = vmatpush1.bf16.msra.mxu0 %v2024
    %2549 = vmatprep.subr.bf16.mxu0 %v2033
    %2550 = vmatpush1.bf16.msra.mxu0 %v2032
    %2551 = vmatprep.subr.bf16.mxu0 %v2041
    %2552 = vmatpush1.bf16.msra.mxu0 %v2040
    %2553 = vmatprep.subr.bf16.mxu0 %v2049
    %2554 = vmatpush1.bf16.msra.mxu0 %v2048
    %2555 = vmatprep.subr.bf16.mxu0 %v2057
    %2556 = vmatpush1.bf16.msra.mxu0 %v2056
    %2557 = vmatprep.subr.bf16.mxu0 %v2065
    %2558 = vmatpush1.bf16.msra.mxu0 %v2064
    %2559 = vmatprep.subr.bf16.mxu0 %v2073
    %2560 = vmatpush1.bf16.msra.mxu0 %v2072
    %2561 = vmatprep.subr.bf16.mxu0 %v2081
    %2562 = vmatpush1.bf16.msra.mxu0 %v2080
    %2563 = vmatprep.subr.bf16.mxu0 %v2089
    %2564 = vmatpush1.bf16.msra.mxu0 %v2088
    %2565 = vmatprep.subr.bf16.mxu0 %v2097
    %2566 = vmatpush1.bf16.msra.mxu0 %v2096
    %2567 = vmatprep.subr.bf16.mxu0 %v2105
    %2568 = vmatpush1.bf16.msra.mxu0 %v2104
    %2569 = vmatprep.subr.bf16.mxu0 %v2113
    %2570 = vmatpush1.bf16.msra.mxu0 %v2112
    %2571 = vmatprep.mubr.bf16.mxu0 %v2442
    %2572 = vmatmul.mubr.bf16.gmra.mrb[0].mxu0 %v2441
    %v2573 = vpop.f32.mrb[0].mxu0
    %v2574 = vadd.f32 %v2533, %v2573
    %v2575 = vpop.f32.mrb[0].mxu0
    %v2576 = vadd.f32 %v2535, %v2575
    %v2577 = vpop.f32.mrb[0].mxu0
    %v2578 = vpop.f32.mrb[0].mxu0
    %2579 = vdwg.mxu0
    %2580 = vmatprep.subr.bf16.mxu0 %v2121
    %2581 = vmatpush1.bf16.msra.mxu0 %v2120
    %2582 = vmatprep.subr.bf16.mxu0 %v2129
    %2583 = vmatpush1.bf16.msra.mxu0 %v2128
    %2584 = vmatprep.subr.bf16.mxu0 %v2137
    %2585 = vmatpush1.bf16.msra.mxu0 %v2136
    %2586 = vmatprep.subr.bf16.mxu0 %v2145
    %2587 = vmatpush1.bf16.msra.mxu0 %v2144
    %2588 = vmatprep.subr.bf16.mxu0 %v2153
    %2589 = vmatpush1.bf16.msra.mxu0 %v2152
    %2590 = vmatprep.subr.bf16.mxu0 %v2161
    %2591 = vmatpush1.bf16.msra.mxu0 %v2160
    %2592 = vmatprep.subr.bf16.mxu0 %v2169
    %2593 = vmatpush1.bf16.msra.mxu0 %v2168
    %2594 = vmatprep.subr.bf16.mxu0 %v2177
    %2595 = vmatpush1.bf16.msra.mxu0 %v2176
    %2596 = vmatprep.subr.bf16.mxu0 %v2185
    %2597 = vmatpush1.bf16.msra.mxu0 %v2184
    %2598 = vmatprep.subr.bf16.mxu0 %v2193
    %2599 = vmatpush1.bf16.msra.mxu0 %v2192
    %2600 = vmatprep.subr.bf16.mxu0 %v2201
    %2601 = vmatpush1.bf16.msra.mxu0 %v2200
    %2602 = vmatprep.subr.bf16.mxu0 %v2209
    %2603 = vmatpush1.bf16.msra.mxu0 %v2208
    %2604 = vmatprep.subr.bf16.mxu0 %v2217
    %2605 = vmatpush1.bf16.msra.mxu0 %v2216
    %2606 = vmatprep.subr.bf16.mxu0 %v2225
    %2607 = vmatpush1.bf16.msra.mxu0 %v2224
    %2608 = vmatprep.subr.bf16.mxu0 %v2233
    %2609 = vmatpush1.bf16.msra.mxu0 %v2232
    %2610 = vmatprep.subr.bf16.mxu0 %v2241
    %2611 = vmatpush1.bf16.msra.mxu0 %v2240
    %2612 = vmatprep.mubr.bf16.mxu0 %v2444
    %2613 = vmatmul.mubr.bf16.gmra.mrb[0].mxu0 %v2443
    %v2614 = vpop.f32.mrb[0].mxu0
    %v2615 = vadd.f32 %v2574, %v2614
    %v2616 = vpop.f32.mrb[0].mxu0
    %v2617 = vadd.f32 %v2576, %v2616
    %v2618 = vpop.f32.mrb[0].mxu0
    %v2619 = vpop.f32.mrb[0].mxu0
    %2620 = vdwg.mxu0
    %2621 = vmatprep.subr.bf16.mxu0 %v2249
    %2622 = vmatpush1.bf16.msra.mxu0 %v2248
    %2623 = vmatprep.subr.bf16.mxu0 %v2257
    %2624 = vmatpush1.bf16.msra.mxu0 %v2256
    %2625 = vmatprep.subr.bf16.mxu0 %v2265
    %2626 = vmatpush1.bf16.msra.mxu0 %v2264
    %2627 = vmatprep.subr.bf16.mxu0 %v2273
    %2628 = vmatpush1.bf16.msra.mxu0 %v2272
    %2629 = vmatprep.subr.bf16.mxu0 %v2281
    %2630 = vmatpush1.bf16.msra.mxu0 %v2280
    %2631 = vmatprep.subr.bf16.mxu0 %v2289
    %2632 = vmatpush1.bf16.msra.mxu0 %v2288
    %2633 = vmatprep.subr.bf16.mxu0 %v2297
    %2634 = vmatpush1.bf16.msra.mxu0 %v2296
    %2635 = vmatprep.subr.bf16.mxu0 %v2305
    %2636 = vmatpush1.bf16.msra.mxu0 %v2304
    %2637 = vmatprep.subr.bf16.mxu0 %v2313
    %2638 = vmatpush1.bf16.msra.mxu0 %v2312
    %2639 = vmatprep.subr.bf16.mxu0 %v2321
    %2640 = vmatpush1.bf16.msra.mxu0 %v2320
    %2641 = vmatprep.subr.bf16.mxu0 %v2329
    %2642 = vmatpush1.bf16.msra.mxu0 %v2328
    %2643 = vmatprep.subr.bf16.mxu0 %v2337
    %2644 = vmatpush1.bf16.msra.mxu0 %v2336
    %2645 = vmatprep.subr.bf16.mxu0 %v2345
    %2646 = vmatpush1.bf16.msra.mxu0 %v2344
    %2647 = vmatprep.subr.bf16.mxu0 %v2353
    %2648 = vmatpush1.bf16.msra.mxu0 %v2352
    %2649 = vmatprep.subr.bf16.mxu0 %v2361
    %2650 = vmatpush1.bf16.msra.mxu0 %v2360
    %2651 = vmatprep.subr.bf16.mxu0 %v2369
    %2652 = vmatpush1.bf16.msra.mxu0 %v2368
    %2653 = vmatprep.mubr.bf16.mxu0 %v2446
    %2654 = vmatmul.mubr.bf16.gmra.mrb[0].mxu0 %v2445
    %v2655 = vpop.f32.mrb[0].mxu0
    %v2656 = vadd.f32 %v2615, %v2655
    %v2657 = vpop.f32.mrb[0].mxu0
    %v2658 = vadd.f32 %v2617, %v2657
    %v2659 = vpop.f32.mrb[0].mxu0
    %v2660 = vpop.f32.mrb[0].mxu0
    %2661 = vdwg.mxu0
    %2662 = vmatprep.subr.bf16.mxu0 %v1739
    %2663 = vmatpush1.bf16.msra.mxu0 %v1738
    %2664 = vmatprep.subr.bf16.mxu0 %v1747
    %2665 = vmatpush1.bf16.msra.mxu0 %v1746
    %2666 = vmatprep.subr.bf16.mxu0 %v1755
    %2667 = vmatpush1.bf16.msra.mxu0 %v1754
    %2668 = vmatprep.subr.bf16.mxu0 %v1763
    %2669 = vmatpush1.bf16.msra.mxu0 %v1762
    %2670 = vmatprep.subr.bf16.mxu0 %v1771
    %2671 = vmatpush1.bf16.msra.mxu0 %v1770
    %2672 = vmatprep.subr.bf16.mxu0 %v1779
    %2673 = vmatpush1.bf16.msra.mxu0 %v1778
    %2674 = vmatprep.subr.bf16.mxu0 %v1787
    %2675 = vmatpush1.bf16.msra.mxu0 %v1786
    %2676 = vmatprep.subr.bf16.mxu0 %v1795
    %2677 = vmatpush1.bf16.msra.mxu0 %v1794
    %2678 = vmatprep.subr.bf16.mxu0 %v1803
    %2679 = vmatpush1.bf16.msra.mxu0 %v1802
    %2680 = vmatprep.subr.bf16.mxu0 %v1811
    %2681 = vmatpush1.bf16.msra.mxu0 %v1810
    %2682 = vmatprep.subr.bf16.mxu0 %v1819
    %2683 = vmatpush1.bf16.msra.mxu0 %v1818
    %2684 = vmatprep.subr.bf16.mxu0 %v1827
    %2685 = vmatpush1.bf16.msra.mxu0 %v1826
    %2686 = vmatprep.subr.bf16.mxu0 %v1835
    %2687 = vmatpush1.bf16.msra.mxu0 %v1834
    %2688 = vmatprep.subr.bf16.mxu0 %v1843
    %2689 = vmatpush1.bf16.msra.mxu0 %v1842
    %2690 = vmatprep.subr.bf16.mxu0 %v1851
    %2691 = vmatpush1.bf16.msra.mxu0 %v1850
    %2692 = vmatprep.subr.bf16.mxu0 %v1859
    %2693 = vmatpush1.bf16.msra.mxu0 %v1858
    %2694 = vmatprep.mubr.bf16.mxu0 %v2438
    %2695 = vmatmul.mubr.bf16.gmra.mrb[0].mxu0 %v2437
    %v2696 = vpop.f32.mrb[0].mxu0
    %v2697 = vadd.f32 0.0, %v2696
    %v2698 = vpop.f32.mrb[0].mxu0
    %v2699 = vadd.f32 0.0, %v2698
    %v2700 = vpop.f32.mrb[0].mxu0
    %v2701 = vpop.f32.mrb[0].mxu0
    %2702 = vdwg.mxu0
    %2703 = vmatprep.subr.bf16.mxu0 %v1867
    %2704 = vmatpush1.bf16.msra.mxu0 %v1866
    %2705 = vmatprep.subr.bf16.mxu0 %v1875
    %2706 = vmatpush1.bf16.msra.mxu0 %v1874
    %2707 = vmatprep.subr.bf16.mxu0 %v1883
    %2708 = vmatpush1.bf16.msra.mxu0 %v1882
    %2709 = vmatprep.subr.bf16.mxu0 %v1891
    %2710 = vmatpush1.bf16.msra.mxu0 %v1890
    %2711 = vmatprep.subr.bf16.mxu0 %v1899
    %2712 = vmatpush1.bf16.msra.mxu0 %v1898
    %2713 = vmatprep.subr.bf16.mxu0 %v1907
    %2714 = vmatpush1.bf16.msra.mxu0 %v1906
    %2715 = vmatprep.subr.bf16.mxu0 %v1915
    %2716 = vmatpush1.bf16.msra.mxu0 %v1914
    %2717 = vmatprep.subr.bf16.mxu0 %v1923
    %2718 = vmatpush1.bf16.msra.mxu0 %v1922
    %2719 = vmatprep.subr.bf16.mxu0 %v1931
    %2720 = vmatpush1.bf16.msra.mxu0 %v1930
    %2721 = vmatprep.subr.bf16.mxu0 %v1939
    %2722 = vmatpush1.bf16.msra.mxu0 %v1938
    %2723 = vmatprep.subr.bf16.mxu0 %v1947
    %2724 = vmatpush1.bf16.msra.mxu0 %v1946
    %2725 = vmatprep.subr.bf16.mxu0 %v1955
    %2726 = vmatpush1.bf16.msra.mxu0 %v1954
    %2727 = vmatprep.subr.bf16.mxu0 %v1963
    %2728 = vmatpush1.bf16.msra.mxu0 %v1962
    %2729 = vmatprep.subr.bf16.mxu0 %v1971
    %2730 = vmatpush1.bf16.msra.mxu0 %v1970
    %2731 = vmatprep.subr.bf16.mxu0 %v1979
    %2732 = vmatpush1.bf16.msra.mxu0 %v1978
    %2733 = vmatprep.subr.bf16.mxu0 %v1987
    %2734 = vmatpush1.bf16.msra.mxu0 %v1986
    %2735 = vmatprep.mubr.bf16.mxu0 %v2440
    %2736 = vmatmul.mubr.bf16.gmra.mrb[0].mxu0 %v2439
    %v2737 = vpop.f32.mrb[0].mxu0
    %v2738 = vadd.f32 %v2697, %v2737
    %v2739 = vpop.f32.mrb[0].mxu0
    %v2740 = vadd.f32 %v2699, %v2739
    %v2741 = vpop.f32.mrb[0].mxu0
    %v2742 = vpop.f32.mrb[0].mxu0
    %2743 = vdwg.mxu0
    %2744 = vmatprep.subr.bf16.mxu0 %v1995
    %2745 = vmatpush1.bf16.msra.mxu0 %v1994
    %2746 = vmatprep.subr.bf16.mxu0 %v2003
    %2747 = vmatpush1.bf16.msra.mxu0 %v2002
    %2748 = vmatprep.subr.bf16.mxu0 %v2011
    %2749 = vmatpush1.bf16.msra.mxu0 %v2010
    %2750 = vmatprep.subr.bf16.mxu0 %v2019
    %2751 = vmatpush1.bf16.msra.mxu0 %v2018
    %2752 = vmatprep.subr.bf16.mxu0 %v2027
    %2753 = vmatpush1.bf16.msra.mxu0 %v2026
    %2754 = vmatprep.subr.bf16.mxu0 %v2035
    %2755 = vmatpush1.bf16.msra.mxu0 %v2034
    %2756 = vmatprep.subr.bf16.mxu0 %v2043
    %2757 = vmatpush1.bf16.msra.mxu0 %v2042
    %2758 = vmatprep.subr.bf16.mxu0 %v2051
    %2759 = vmatpush1.bf16.msra.mxu0 %v2050
    %2760 = vmatprep.subr.bf16.mxu0 %v2059
    %2761 = vmatpush1.bf16.msra.mxu0 %v2058
    %2762 = vmatprep.subr.bf16.mxu0 %v2067
    %2763 = vmatpush1.bf16.msra.mxu0 %v2066
    %2764 = vmatprep.subr.bf16.mxu0 %v2075
    %2765 = vmatpush1.bf16.msra.mxu0 %v2074
    %2766 = vmatprep.subr.bf16.mxu0 %v2083
    %2767 = vmatpush1.bf16.msra.mxu0 %v2082
    %2768 = vmatprep.subr.bf16.mxu0 %v2091
    %2769 = vmatpush1.bf16.msra.mxu0 %v2090
    %2770 = vmatprep.subr.bf16.mxu0 %v2099
    %2771 = vmatpush1.bf16.msra.mxu0 %v2098
    %2772 = vmatprep.subr.bf16.mxu0 %v2107
    %2773 = vmatpush1.bf16.msra.mxu0 %v2106
    %2774 = vmatprep.subr.bf16.mxu0 %v2115
    %2775 = vmatpush1.bf16.msra.mxu0 %v2114
    %2776 = vmatprep.mubr.bf16.mxu0 %v2442
    %2777 = vmatmul.mubr.bf16.gmra.mrb[0].mxu0 %v2441
    %v2778 = vpop.f32.mrb[0].mxu0
    %v2779 = vadd.f32 %v2738, %v2778
    %v2780 = vpop.f32.mrb[0].mxu0
    %v2781 = vadd.f32 %v2740, %v2780
    %v2782 = vpop.f32.mrb[0].mxu0
    %v2783 = vpop.f32.mrb[0].mxu0
    %2784 = vdwg.mxu0
    %2785 = vmatprep.subr.bf16.mxu0 %v2123
    %2786 = vmatpush1.bf16.msra.mxu0 %v2122
    %2787 = vmatprep.subr.bf16.mxu0 %v2131
    %2788 = vmatpush1.bf16.msra.mxu0 %v2130
    %2789 = vmatprep.subr.bf16.mxu0 %v2139
    %2790 = vmatpush1.bf16.msra.mxu0 %v2138
    %2791 = vmatprep.subr.bf16.mxu0 %v2147
    %2792 = vmatpush1.bf16.msra.mxu0 %v2146
    %2793 = vmatprep.subr.bf16.mxu0 %v2155
    %2794 = vmatpush1.bf16.msra.mxu0 %v2154
    %2795 = vmatprep.subr.bf16.mxu0 %v2163
    %2796 = vmatpush1.bf16.msra.mxu0 %v2162
    %2797 = vmatprep.subr.bf16.mxu0 %v2171
    %2798 = vmatpush1.bf16.msra.mxu0 %v2170
    %2799 = vmatprep.subr.bf16.mxu0 %v2179
    %2800 = vmatpush1.bf16.msra.mxu0 %v2178
    %2801 = vmatprep.subr.bf16.mxu0 %v2187
    %2802 = vmatpush1.bf16.msra.mxu0 %v2186
    %2803 = vmatprep.subr.bf16.mxu0 %v2195
    %2804 = vmatpush1.bf16.msra.mxu0 %v2194
    %2805 = vmatprep.subr.bf16.mxu0 %v2203
    %2806 = vmatpush1.bf16.msra.mxu0 %v2202
    %2807 = vmatprep.subr.bf16.mxu0 %v2211
    %2808 = vmatpush1.bf16.msra.mxu0 %v2210
    %2809 = vmatprep.subr.bf16.mxu0 %v2219
    %2810 = vmatpush1.bf16.msra.mxu0 %v2218
    %2811 = vmatprep.subr.bf16.mxu0 %v2227
    %2812 = vmatpush1.bf16.msra.mxu0 %v2226
    %2813 = vmatprep.subr.bf16.mxu0 %v2235
    %2814 = vmatpush1.bf16.msra.mxu0 %v2234
    %2815 = vmatprep.subr.bf16.mxu0 %v2243
    %2816 = vmatpush1.bf16.msra.mxu0 %v2242
    %2817 = vmatprep.mubr.bf16.mxu0 %v2444
    %2818 = vmatmul.mubr.bf16.gmra.mrb[0].mxu0 %v2443
    %v2819 = vpop.f32.mrb[0].mxu0
    %v2820 = vadd.f32 %v2779, %v2819
    %v2821 = vpop.f32.mrb[0].mxu0
    %v2822 = vadd.f32 %v2781, %v2821
    %v2823 = vpop.f32.mrb[0].mxu0
    %v2824 = vpop.f32.mrb[0].mxu0
    %2825 = vdwg.mxu0
    %2826 = vmatprep.subr.bf16.mxu0 %v2251
    %2827 = vmatpush1.bf16.msra.mxu0 %v2250
    %2828 = vmatprep.subr.bf16.mxu0 %v2259
    %2829 = vmatpush1.bf16.msra.mxu0 %v2258
    %2830 = vmatprep.subr.bf16.mxu0 %v2267
    %2831 = vmatpush1.bf16.msra.mxu0 %v2266
    %2832 = vmatprep.subr.bf16.mxu0 %v2275
    %2833 = vmatpush1.bf16.msra.mxu0 %v2274
    %2834 = vmatprep.subr.bf16.mxu0 %v2283
    %2835 = vmatpush1.bf16.msra.mxu0 %v2282
    %2836 = vmatprep.subr.bf16.mxu0 %v2291
    %2837 = vmatpush1.bf16.msra.mxu0 %v2290
    %2838 = vmatprep.subr.bf16.mxu0 %v2299
    %2839 = vmatpush1.bf16.msra.mxu0 %v2298
    %2840 = vmatprep.subr.bf16.mxu0 %v2307
    %2841 = vmatpush1.bf16.msra.mxu0 %v2306
    %2842 = vmatprep.subr.bf16.mxu0 %v2315
    %2843 = vmatpush1.bf16.msra.mxu0 %v2314
    %2844 = vmatprep.subr.bf16.mxu0 %v2323
    %2845 = vmatpush1.bf16.msra.mxu0 %v2322
    %2846 = vmatprep.subr.bf16.mxu0 %v2331
    %2847 = vmatpush1.bf16.msra.mxu0 %v2330
    %2848 = vmatprep.subr.bf16.mxu0 %v2339
    %2849 = vmatpush1.bf16.msra.mxu0 %v2338
    %2850 = vmatprep.subr.bf16.mxu0 %v2347
    %2851 = vmatpush1.bf16.msra.mxu0 %v2346
    %2852 = vmatprep.subr.bf16.mxu0 %v2355
    %2853 = vmatpush1.bf16.msra.mxu0 %v2354
    %2854 = vmatprep.subr.bf16.mxu0 %v2363
    %2855 = vmatpush1.bf16.msra.mxu0 %v2362
    %2856 = vmatprep.subr.bf16.mxu0 %v2371
    %2857 = vmatpush1.bf16.msra.mxu0 %v2370
    %2858 = vmatprep.mubr.bf16.mxu0 %v2446
    %2859 = vmatmul.mubr.bf16.gmra.mrb[0].mxu0 %v2445
    %v2860 = vpop.f32.mrb[0].mxu0
    %v2861 = vadd.f32 %v2820, %v2860
    %v2862 = vpop.f32.mrb[0].mxu0
    %v2863 = vadd.f32 %v2822, %v2862
    %v2864 = vpop.f32.mrb[0].mxu0
    %v2865 = vpop.f32.mrb[0].mxu0
    %2866 = vdwg.mxu0
    %2867 = vmatprep.subr.bf16.mxu0 %v1741
    %2868 = vmatpush1.bf16.msra.mxu0 %v1740
    %2869 = vmatprep.subr.bf16.mxu0 %v1749
    %2870 = vmatpush1.bf16.msra.mxu0 %v1748
    %2871 = vmatprep.subr.bf16.mxu0 %v1757
    %2872 = vmatpush1.bf16.msra.mxu0 %v1756
    %2873 = vmatprep.subr.bf16.mxu0 %v1765
    %2874 = vmatpush1.bf16.msra.mxu0 %v1764
    %2875 = vmatprep.subr.bf16.mxu0 %v1773
    %2876 = vmatpush1.bf16.msra.mxu0 %v1772
    %2877 = vmatprep.subr.bf16.mxu0 %v1781
    %2878 = vmatpush1.bf16.msra.mxu0 %v1780
    %2879 = vmatprep.subr.bf16.mxu0 %v1789
    %2880 = vmatpush1.bf16.msra.mxu0 %v1788
    %2881 = vmatprep.subr.bf16.mxu0 %v1797
    %2882 = vmatpush1.bf16.msra.mxu0 %v1796
    %2883 = vmatprep.subr.bf16.mxu0 %v1805
    %2884 = vmatpush1.bf16.msra.mxu0 %v1804
    %2885 = vmatprep.subr.bf16.mxu0 %v1813
    %2886 = vmatpush1.bf16.msra.mxu0 %v1812
    %2887 = vmatprep.subr.bf16.mxu0 %v1821
    %2888 = vmatpush1.bf16.msra.mxu0 %v1820
    %2889 = vmatprep.subr.bf16.mxu0 %v1829
    %2890 = vmatpush1.bf16.msra.mxu0 %v1828
    %2891 = vmatprep.subr.bf16.mxu0 %v1837
    %2892 = vmatpush1.bf16.msra.mxu0 %v1836
    %2893 = vmatprep.subr.bf16.mxu0 %v1845
    %2894 = vmatpush1.bf16.msra.mxu0 %v1844
    %2895 = vmatprep.subr.bf16.mxu0 %v1853
    %2896 = vmatpush1.bf16.msra.mxu0 %v1852
    %2897 = vmatprep.subr.bf16.mxu0 %v1861
    %2898 = vmatpush1.bf16.msra.mxu0 %v1860
    %2899 = vmatprep.mubr.bf16.mxu0 %v2438
    %2900 = vmatmul.mubr.bf16.gmra.mrb[0].mxu0 %v2437
    %v2901 = vpop.f32.mrb[0].mxu0
    %v2902 = vadd.f32 0.0, %v2901
    %v2903 = vpop.f32.mrb[0].mxu0
    %v2904 = vadd.f32 0.0, %v2903
    %v2905 = vpop.f32.mrb[0].mxu0
    %v2906 = vpop.f32.mrb[0].mxu0
    %2907 = vdwg.mxu0
    %2908 = vmatprep.subr.bf16.mxu0 %v1869
    %2909 = vmatpush1.bf16.msra.mxu0 %v1868
    %2910 = vmatprep.subr.bf16.mxu0 %v1877
    %2911 = vmatpush1.bf16.msra.mxu0 %v1876
    %2912 = vmatprep.subr.bf16.mxu0 %v1885
    %2913 = vmatpush1.bf16.msra.mxu0 %v1884
    %2914 = vmatprep.subr.bf16.mxu0 %v1893
    %2915 = vmatpush1.bf16.msra.mxu0 %v1892
    %2916 = vmatprep.subr.bf16.mxu0 %v1901
    %2917 = vmatpush1.bf16.msra.mxu0 %v1900
    %2918 = vmatprep.subr.bf16.mxu0 %v1909
    %2919 = vmatpush1.bf16.msra.mxu0 %v1908
    %2920 = vmatprep.subr.bf16.mxu0 %v1917
    %2921 = vmatpush1.bf16.msra.mxu0 %v1916
    %2922 = vmatprep.subr.bf16.mxu0 %v1925
    %2923 = vmatpush1.bf16.msra.mxu0 %v1924
    %2924 = vmatprep.subr.bf16.mxu0 %v1933
    %2925 = vmatpush1.bf16.msra.mxu0 %v1932
    %2926 = vmatprep.subr.bf16.mxu0 %v1941
    %2927 = vmatpush1.bf16.msra.mxu0 %v1940
    %2928 = vmatprep.subr.bf16.mxu0 %v1949
    %2929 = vmatpush1.bf16.msra.mxu0 %v1948
    %2930 = vmatprep.subr.bf16.mxu0 %v1957
    %2931 = vmatpush1.bf16.msra.mxu0 %v1956
    %2932 = vmatprep.subr.bf16.mxu0 %v1965
    %2933 = vmatpush1.bf16.msra.mxu0 %v1964
    %2934 = vmatprep.subr.bf16.mxu0 %v1973
    %2935 = vmatpush1.bf16.msra.mxu0 %v1972
    %2936 = vmatprep.subr.bf16.mxu0 %v1981
    %2937 = vmatpush1.bf16.msra.mxu0 %v1980
    %2938 = vmatprep.subr.bf16.mxu0 %v1989
    %2939 = vmatpush1.bf16.msra.mxu0 %v1988
    %2940 = vmatprep.mubr.bf16.mxu0 %v2440
    %2941 = vmatmul.mubr.bf16.gmra.mrb[0].mxu0 %v2439
    %v2942 = vpop.f32.mrb[0].mxu0
    %v2943 = vadd.f32 %v2902, %v2942
    %v2944 = vpop.f32.mrb[0].mxu0
    %v2945 = vadd.f32 %v2904, %v2944
    %v2946 = vpop.f32.mrb[0].mxu0
    %v2947 = vpop.f32.mrb[0].mxu0
    %2948 = vdwg.mxu0
    %2949 = vmatprep.subr.bf16.mxu0 %v1997
    %2950 = vmatpush1.bf16.msra.mxu0 %v1996
    %2951 = vmatprep.subr.bf16.mxu0 %v2005
    %2952 = vmatpush1.bf16.msra.mxu0 %v2004
    %2953 = vmatprep.subr.bf16.mxu0 %v2013
    %2954 = vmatpush1.bf16.msra.mxu0 %v2012
    %2955 = vmatprep.subr.bf16.mxu0 %v2021
    %2956 = vmatpush1.bf16.msra.mxu0 %v2020
    %2957 = vmatprep.subr.bf16.mxu0 %v2029
    %2958 = vmatpush1.bf16.msra.mxu0 %v2028
    %2959 = vmatprep.subr.bf16.mxu0 %v2037
    %2960 = vmatpush1.bf16.msra.mxu0 %v2036
    %2961 = vmatprep.subr.bf16.mxu0 %v2045
    %2962 = vmatpush1.bf16.msra.mxu0 %v2044
    %2963 = vmatprep.subr.bf16.mxu0 %v2053
    %2964 = vmatpush1.bf16.msra.mxu0 %v2052
    %2965 = vmatprep.subr.bf16.mxu0 %v2061
    %2966 = vmatpush1.bf16.msra.mxu0 %v2060
    %2967 = vmatprep.subr.bf16.mxu0 %v2069
    %2968 = vmatpush1.bf16.msra.mxu0 %v2068
    %2969 = vmatprep.subr.bf16.mxu0 %v2077
    %2970 = vmatpush1.bf16.msra.mxu0 %v2076
    %2971 = vmatprep.subr.bf16.mxu0 %v2085
    %2972 = vmatpush1.bf16.msra.mxu0 %v2084
    %2973 = vmatprep.subr.bf16.mxu0 %v2093
    %2974 = vmatpush1.bf16.msra.mxu0 %v2092
    %2975 = vmatprep.subr.bf16.mxu0 %v2101
    %2976 = vmatpush1.bf16.msra.mxu0 %v2100
    %2977 = vmatprep.subr.bf16.mxu0 %v2109
    %2978 = vmatpush1.bf16.msra.mxu0 %v2108
    %2979 = vmatprep.subr.bf16.mxu0 %v2117
    %2980 = vmatpush1.bf16.msra.mxu0 %v2116
    %2981 = vmatprep.mubr.bf16.mxu0 %v2442
    %2982 = vmatmul.mubr.bf16.gmra.mrb[0].mxu0 %v2441
    %v2983 = vpop.f32.mrb[0].mxu0
    %v2984 = vadd.f32 %v2943, %v2983
    %v2985 = vpop.f32.mrb[0].mxu0
    %v2986 = vadd.f32 %v2945, %v2985
    %v2987 = vpop.f32.mrb[0].mxu0
    %v2988 = vpop.f32.mrb[0].mxu0
    %2989 = vdwg.mxu0
    %2990 = vmatprep.subr.bf16.mxu0 %v2125
    %2991 = vmatpush1.bf16.msra.mxu0 %v2124
    %2992 = vmatprep.subr.bf16.mxu0 %v2133
    %2993 = vmatpush1.bf16.msra.mxu0 %v2132
    %2994 = vmatprep.subr.bf16.mxu0 %v2141
    %2995 = vmatpush1.bf16.msra.mxu0 %v2140
    %2996 = vmatprep.subr.bf16.mxu0 %v2149
    %2997 = vmatpush1.bf16.msra.mxu0 %v2148
    %2998 = vmatprep.subr.bf16.mxu0 %v2157
    %2999 = vmatpush1.bf16.msra.mxu0 %v2156
    %3000 = vmatprep.subr.bf16.mxu0 %v2165
    %3001 = vmatpush1.bf16.msra.mxu0 %v2164
    %3002 = vmatprep.subr.bf16.mxu0 %v2173
    %3003 = vmatpush1.bf16.msra.mxu0 %v2172
    %3004 = vmatprep.subr.bf16.mxu0 %v2181
    %3005 = vmatpush1.bf16.msra.mxu0 %v2180
    %3006 = vmatprep.subr.bf16.mxu0 %v2189
    %3007 = vmatpush1.bf16.msra.mxu0 %v2188
    %3008 = vmatprep.subr.bf16.mxu0 %v2197
    %3009 = vmatpush1.bf16.msra.mxu0 %v2196
    %3010 = vmatprep.subr.bf16.mxu0 %v2205
    %3011 = vmatpush1.bf16.msra.mxu0 %v2204
    %3012 = vmatprep.subr.bf16.mxu0 %v2213
    %3013 = vmatpush1.bf16.msra.mxu0 %v2212
    %3014 = vmatprep.subr.bf16.mxu0 %v2221
    %3015 = vmatpush1.bf16.msra.mxu0 %v2220
    %3016 = vmatprep.subr.bf16.mxu0 %v2229
    %3017 = vmatpush1.bf16.msra.mxu0 %v2228
    %3018 = vmatprep.subr.bf16.mxu0 %v2237
    %3019 = vmatpush1.bf16.msra.mxu0 %v2236
    %3020 = vmatprep.subr.bf16.mxu0 %v2245
    %3021 = vmatpush1.bf16.msra.mxu0 %v2244
    %3022 = vmatprep.mubr.bf16.mxu0 %v2444
    %3023 = vmatmul.mubr.bf16.gmra.mrb[0].mxu0 %v2443
    %v3024 = vpop.f32.mrb[0].mxu0
    %v3025 = vadd.f32 %v2984, %v3024
    %v3026 = vpop.f32.mrb[0].mxu0
    %v3027 = vadd.f32 %v2986, %v3026
    %v3028 = vpop.f32.mrb[0].mxu0
    %v3029 = vpop.f32.mrb[0].mxu0
    %3030 = vdwg.mxu0
    %3031 = vmatprep.subr.bf16.mxu0 %v2253
    %3032 = vmatpush1.bf16.msra.mxu0 %v2252
    %3033 = vmatprep.subr.bf16.mxu0 %v2261
    %3034 = vmatpush1.bf16.msra.mxu0 %v2260
    %3035 = vmatprep.subr.bf16.mxu0 %v2269
    %3036 = vmatpush1.bf16.msra.mxu0 %v2268
    %3037 = vmatprep.subr.bf16.mxu0 %v2277
    %3038 = vmatpush1.bf16.msra.mxu0 %v2276
    %3039 = vmatprep.subr.bf16.mxu0 %v2285
    %3040 = vmatpush1.bf16.msra.mxu0 %v2284
    %3041 = vmatprep.subr.bf16.mxu0 %v2293
    %3042 = vmatpush1.bf16.msra.mxu0 %v2292
    %3043 = vmatprep.subr.bf16.mxu0 %v2301
    %3044 = vmatpush1.bf16.msra.mxu0 %v2300
    %3045 = vmatprep.subr.bf16.mxu0 %v2309
    %3046 = vmatpush1.bf16.msra.mxu0 %v2308
    %3047 = vmatprep.subr.bf16.mxu0 %v2317
    %3048 = vmatpush1.bf16.msra.mxu0 %v2316
    %3049 = vmatprep.subr.bf16.mxu0 %v2325
    %3050 = vmatpush1.bf16.msra.mxu0 %v2324
    %3051 = vmatprep.subr.bf16.mxu0 %v2333
    %3052 = vmatpush1.bf16.msra.mxu0 %v2332
    %3053 = vmatprep.subr.bf16.mxu0 %v2341
    %3054 = vmatpush1.bf16.msra.mxu0 %v2340
    %3055 = vmatprep.subr.bf16.mxu0 %v2349
    %3056 = vmatpush1.bf16.msra.mxu0 %v2348
    %3057 = vmatprep.subr.bf16.mxu0 %v2357
    %3058 = vmatpush1.bf16.msra.mxu0 %v2356
    %3059 = vmatprep.subr.bf16.mxu0 %v2365
    %3060 = vmatpush1.bf16.msra.mxu0 %v2364
    %3061 = vmatprep.subr.bf16.mxu0 %v2373
    %3062 = vmatpush1.bf16.msra.mxu0 %v2372
    %3063 = vmatprep.mubr.bf16.mxu0 %v2446
    %3064 = vmatmul.mubr.bf16.gmra.mrb[0].mxu0 %v2445
    %v3065 = vpop.f32.mrb[0].mxu0
    %v3066 = vadd.f32 %v3025, %v3065
    %v3067 = vpop.f32.mrb[0].mxu0
    %v3068 = vadd.f32 %v3027, %v3067
    %v3069 = vpop.f32.mrb[0].mxu0
    %v3070 = vpop.f32.mrb[0].mxu0
    %3071 = vdwg.mxu0
    %3072 = vmatprep.subr.bf16.mxu0 %v1743
    %3073 = vmatpush1.bf16.msra.mxu0 %v1742
    %3074 = vmatprep.subr.bf16.mxu0 %v1751
    %3075 = vmatpush1.bf16.msra.mxu0 %v1750
    %3076 = vmatprep.subr.bf16.mxu0 %v1759
    %3077 = vmatpush1.bf16.msra.mxu0 %v1758
    %3078 = vmatprep.subr.bf16.mxu0 %v1767
    %3079 = vmatpush1.bf16.msra.mxu0 %v1766
    %3080 = vmatprep.subr.bf16.mxu0 %v1775
    %3081 = vmatpush1.bf16.msra.mxu0 %v1774
    %3082 = vmatprep.subr.bf16.mxu0 %v1783
    %3083 = vmatpush1.bf16.msra.mxu0 %v1782
    %3084 = vmatprep.subr.bf16.mxu0 %v1791
    %3085 = vmatpush1.bf16.msra.mxu0 %v1790
    %3086 = vmatprep.subr.bf16.mxu0 %v1799
    %3087 = vmatpush1.bf16.msra.mxu0 %v1798
    %3088 = vmatprep.subr.bf16.mxu0 %v1807
    %3089 = vmatpush1.bf16.msra.mxu0 %v1806
    %3090 = vmatprep.subr.bf16.mxu0 %v1815
    %3091 = vmatpush1.bf16.msra.mxu0 %v1814
    %3092 = vmatprep.subr.bf16.mxu0 %v1823
    %3093 = vmatpush1.bf16.msra.mxu0 %v1822
    %3094 = vmatprep.subr.bf16.mxu0 %v1831
    %3095 = vmatpush1.bf16.msra.mxu0 %v1830
    %3096 = vmatprep.subr.bf16.mxu0 %v1839
    %3097 = vmatpush1.bf16.msra.mxu0 %v1838
    %3098 = vmatprep.subr.bf16.mxu0 %v1847
    %3099 = vmatpush1.bf16.msra.mxu0 %v1846
    %3100 = vmatprep.subr.bf16.mxu0 %v1855
    %3101 = vmatpush1.bf16.msra.mxu0 %v1854
    %3102 = vmatprep.subr.bf16.mxu0 %v1863
    %3103 = vmatpush1.bf16.msra.mxu0 %v1862
    %3104 = vmatprep.mubr.bf16.mxu0 %v2438
    %3105 = vmatmul.mubr.bf16.gmra.mrb[0].mxu0 %v2437
    %v3106 = vpop.f32.mrb[0].mxu0
    %v3107 = vadd.f32 0.0, %v3106
    %v3108 = vpop.f32.mrb[0].mxu0
    %v3109 = vadd.f32 0.0, %v3108
    %v3110 = vpop.f32.mrb[0].mxu0
    %v3111 = vpop.f32.mrb[0].mxu0
    %3112 = vdwg.mxu0
    %3113 = vmatprep.subr.bf16.mxu0 %v1871
    %3114 = vmatpush1.bf16.msra.mxu0 %v1870
    %3115 = vmatprep.subr.bf16.mxu0 %v1879
    %3116 = vmatpush1.bf16.msra.mxu0 %v1878
    %3117 = vmatprep.subr.bf16.mxu0 %v1887
    %3118 = vmatpush1.bf16.msra.mxu0 %v1886
    %3119 = vmatprep.subr.bf16.mxu0 %v1895
    %3120 = vmatpush1.bf16.msra.mxu0 %v1894
    %3121 = vmatprep.subr.bf16.mxu0 %v1903
    %3122 = vmatpush1.bf16.msra.mxu0 %v1902
    %3123 = vmatprep.subr.bf16.mxu0 %v1911
    %3124 = vmatpush1.bf16.msra.mxu0 %v1910
    %3125 = vmatprep.subr.bf16.mxu0 %v1919
    %3126 = vmatpush1.bf16.msra.mxu0 %v1918
    %3127 = vmatprep.subr.bf16.mxu0 %v1927
    %3128 = vmatpush1.bf16.msra.mxu0 %v1926
    %3129 = vmatprep.subr.bf16.mxu0 %v1935
    %3130 = vmatpush1.bf16.msra.mxu0 %v1934
    %3131 = vmatprep.subr.bf16.mxu0 %v1943
    %3132 = vmatpush1.bf16.msra.mxu0 %v1942
    %3133 = vmatprep.subr.bf16.mxu0 %v1951
    %3134 = vmatpush1.bf16.msra.mxu0 %v1950
    %3135 = vmatprep.subr.bf16.mxu0 %v1959
    %3136 = vmatpush1.bf16.msra.mxu0 %v1958
    %3137 = vmatprep.subr.bf16.mxu0 %v1967
    %3138 = vmatpush1.bf16.msra.mxu0 %v1966
    %3139 = vmatprep.subr.bf16.mxu0 %v1975
    %3140 = vmatpush1.bf16.msra.mxu0 %v1974
    %3141 = vmatprep.subr.bf16.mxu0 %v1983
    %3142 = vmatpush1.bf16.msra.mxu0 %v1982
    %3143 = vmatprep.subr.bf16.mxu0 %v1991
    %3144 = vmatpush1.bf16.msra.mxu0 %v1990
    %3145 = vmatprep.mubr.bf16.mxu0 %v2440
    %3146 = vmatmul.mubr.bf16.gmra.mrb[0].mxu0 %v2439
    %v3147 = vpop.f32.mrb[0].mxu0
    %v3148 = vadd.f32 %v3107, %v3147
    %v3149 = vpop.f32.mrb[0].mxu0
    %v3150 = vadd.f32 %v3109, %v3149
    %v3151 = vpop.f32.mrb[0].mxu0
    %v3152 = vpop.f32.mrb[0].mxu0
    %3153 = vdwg.mxu0
    %3154 = vmatprep.subr.bf16.mxu0 %v1999
    %3155 = vmatpush1.bf16.msra.mxu0 %v1998
    %3156 = vmatprep.subr.bf16.mxu0 %v2007
    %3157 = vmatpush1.bf16.msra.mxu0 %v2006
    %3158 = vmatprep.subr.bf16.mxu0 %v2015
    %3159 = vmatpush1.bf16.msra.mxu0 %v2014
    %3160 = vmatprep.subr.bf16.mxu0 %v2023
    %3161 = vmatpush1.bf16.msra.mxu0 %v2022
    %3162 = vmatprep.subr.bf16.mxu0 %v2031
    %3163 = vmatpush1.bf16.msra.mxu0 %v2030
    %3164 = vmatprep.subr.bf16.mxu0 %v2039
    %3165 = vmatpush1.bf16.msra.mxu0 %v2038
    %3166 = vmatprep.subr.bf16.mxu0 %v2047
    %3167 = vmatpush1.bf16.msra.mxu0 %v2046
    %3168 = vmatprep.subr.bf16.mxu0 %v2055
    %3169 = vmatpush1.bf16.msra.mxu0 %v2054
    %3170 = vmatprep.subr.bf16.mxu0 %v2063
    %3171 = vmatpush1.bf16.msra.mxu0 %v2062
    %3172 = vmatprep.subr.bf16.mxu0 %v2071
    %3173 = vmatpush1.bf16.msra.mxu0 %v2070
    %3174 = vmatprep.subr.bf16.mxu0 %v2079
    %3175 = vmatpush1.bf16.msra.mxu0 %v2078
    %3176 = vmatprep.subr.bf16.mxu0 %v2087
    %3177 = vmatpush1.bf16.msra.mxu0 %v2086
    %3178 = vmatprep.subr.bf16.mxu0 %v2095
    %3179 = vmatpush1.bf16.msra.mxu0 %v2094
    %3180 = vmatprep.subr.bf16.mxu0 %v2103
    %3181 = vmatpush1.bf16.msra.mxu0 %v2102
    %3182 = vmatprep.subr.bf16.mxu0 %v2111
    %3183 = vmatpush1.bf16.msra.mxu0 %v2110
    %3184 = vmatprep.subr.bf16.mxu0 %v2119
    %3185 = vmatpush1.bf16.msra.mxu0 %v2118
    %3186 = vmatprep.mubr.bf16.mxu0 %v2442
    %3187 = vmatmul.mubr.bf16.gmra.mrb[0].mxu0 %v2441
    %v3188 = vpop.f32.mrb[0].mxu0
    %v3189 = vadd.f32 %v3148, %v3188
    %v3190 = vpop.f32.mrb[0].mxu0
    %v3191 = vadd.f32 %v3150, %v3190
    %v3192 = vpop.f32.mrb[0].mxu0
    %v3193 = vpop.f32.mrb[0].mxu0
    %3194 = vdwg.mxu0
    %3195 = vmatprep.subr.bf16.mxu0 %v2127
    %3196 = vmatpush1.bf16.msra.mxu0 %v2126
    %3197 = vmatprep.subr.bf16.mxu0 %v2135
    %3198 = vmatpush1.bf16.msra.mxu0 %v2134
    %3199 = vmatprep.subr.bf16.mxu0 %v2143
    %3200 = vmatpush1.bf16.msra.mxu0 %v2142
    %3201 = vmatprep.subr.bf16.mxu0 %v2151
    %3202 = vmatpush1.bf16.msra.mxu0 %v2150
    %3203 = vmatprep.subr.bf16.mxu0 %v2159
    %3204 = vmatpush1.bf16.msra.mxu0 %v2158
    %3205 = vmatprep.subr.bf16.mxu0 %v2167
    %3206 = vmatpush1.bf16.msra.mxu0 %v2166
    %3207 = vmatprep.subr.bf16.mxu0 %v2175
    %3208 = vmatpush1.bf16.msra.mxu0 %v2174
    %3209 = vmatprep.subr.bf16.mxu0 %v2183
    %3210 = vmatpush1.bf16.msra.mxu0 %v2182
    %3211 = vmatprep.subr.bf16.mxu0 %v2191
    %3212 = vmatpush1.bf16.msra.mxu0 %v2190
    %3213 = vmatprep.subr.bf16.mxu0 %v2199
    %3214 = vmatpush1.bf16.msra.mxu0 %v2198
    %3215 = vmatprep.subr.bf16.mxu0 %v2207
    %3216 = vmatpush1.bf16.msra.mxu0 %v2206
    %3217 = vmatprep.subr.bf16.mxu0 %v2215
    %3218 = vmatpush1.bf16.msra.mxu0 %v2214
    %3219 = vmatprep.subr.bf16.mxu0 %v2223
    %3220 = vmatpush1.bf16.msra.mxu0 %v2222
    %3221 = vmatprep.subr.bf16.mxu0 %v2231
    %3222 = vmatpush1.bf16.msra.mxu0 %v2230
    %3223 = vmatprep.subr.bf16.mxu0 %v2239
    %3224 = vmatpush1.bf16.msra.mxu0 %v2238
    %3225 = vmatprep.subr.bf16.mxu0 %v2247
    %3226 = vmatpush1.bf16.msra.mxu0 %v2246
    %3227 = vmatprep.mubr.bf16.mxu0 %v2444
    %3228 = vmatmul.mubr.bf16.gmra.mrb[0].mxu0 %v2443
    %v3229 = vpop.f32.mrb[0].mxu0
    %v3230 = vadd.f32 %v3189, %v3229
    %v3231 = vpop.f32.mrb[0].mxu0
    %v3232 = vadd.f32 %v3191, %v3231
    %v3233 = vpop.f32.mrb[0].mxu0
    %v3234 = vpop.f32.mrb[0].mxu0
    %3235 = vdwg.mxu0
    %3236 = vmatprep.subr.bf16.mxu0 %v2255
    %3237 = vmatpush1.bf16.msra.mxu0 %v2254
    %3238 = vmatprep.subr.bf16.mxu0 %v2263
    %3239 = vmatpush1.bf16.msra.mxu0 %v2262
    %3240 = vmatprep.subr.bf16.mxu0 %v2271
    %3241 = vmatpush1.bf16.msra.mxu0 %v2270
    %3242 = vmatprep.subr.bf16.mxu0 %v2279
    %3243 = vmatpush1.bf16.msra.mxu0 %v2278
    %3244 = vmatprep.subr.bf16.mxu0 %v2287
    %3245 = vmatpush1.bf16.msra.mxu0 %v2286
    %3246 = vmatprep.subr.bf16.mxu0 %v2295
    %3247 = vmatpush1.bf16.msra.mxu0 %v2294
    %3248 = vmatprep.subr.bf16.mxu0 %v2303
    %3249 = vmatpush1.bf16.msra.mxu0 %v2302
    %3250 = vmatprep.subr.bf16.mxu0 %v2311
    %3251 = vmatpush1.bf16.msra.mxu0 %v2310
    %3252 = vmatprep.subr.bf16.mxu0 %v2319
    %3253 = vmatpush1.bf16.msra.mxu0 %v2318
    %3254 = vmatprep.subr.bf16.mxu0 %v2327
    %3255 = vmatpush1.bf16.msra.mxu0 %v2326
    %3256 = vmatprep.subr.bf16.mxu0 %v2335
    %3257 = vmatpush1.bf16.msra.mxu0 %v2334
    %3258 = vmatprep.subr.bf16.mxu0 %v2343
    %3259 = vmatpush1.bf16.msra.mxu0 %v2342
    %3260 = vmatprep.subr.bf16.mxu0 %v2351
    %3261 = vmatpush1.bf16.msra.mxu0 %v2350
    %3262 = vmatprep.subr.bf16.mxu0 %v2359
    %3263 = vmatpush1.bf16.msra.mxu0 %v2358
    %3264 = vmatprep.subr.bf16.mxu0 %v2367
    %3265 = vmatpush1.bf16.msra.mxu0 %v2366
    %3266 = vmatprep.subr.bf16.mxu0 %v2375
    %3267 = vmatpush1.bf16.msra.mxu0 %v2374
    %3268 = vmatprep.mubr.bf16.mxu0 %v2446
    %3269 = vmatmul.mubr.bf16.gmra.mrb[0].mxu0 %v2445
    %v3270 = vpop.f32.mrb[0].mxu0
    %v3271 = vadd.f32 %v3230, %v3270
    %v3272 = vpop.f32.mrb[0].mxu0
    %v3273 = vadd.f32 %v3232, %v3272
    %v3274 = vpop.f32.mrb[0].mxu0
    %v3275 = vpop.f32.mrb[0].mxu0
    %3276 = vdwg.mxu0
    %3277 = vmatprep.subr.bf16.mxu0 %v905
    %3278 = vmatpush1.bf16.msra.mxu0 %v904
    %3279 = vmatprep.subr.bf16.mxu0 %v913
    %3280 = vmatpush1.bf16.msra.mxu0 %v912
    %3281 = vmatprep.subr.bf16.mxu0 %v921
    %3282 = vmatpush1.bf16.msra.mxu0 %v920
    %3283 = vmatprep.subr.bf16.mxu0 %v929
    %3284 = vmatpush1.bf16.msra.mxu0 %v928
    %3285 = vmatprep.subr.bf16.mxu0 %v937
    %3286 = vmatpush1.bf16.msra.mxu0 %v936
    %3287 = vmatprep.subr.bf16.mxu0 %v945
    %3288 = vmatpush1.bf16.msra.mxu0 %v944
    %3289 = vmatprep.subr.bf16.mxu0 %v953
    %3290 = vmatpush1.bf16.msra.mxu0 %v952
    %3291 = vmatprep.subr.bf16.mxu0 %v961
    %3292 = vmatpush1.bf16.msra.mxu0 %v960
    %3293 = vmatprep.subr.bf16.mxu0 %v969
    %3294 = vmatpush1.bf16.msra.mxu0 %v968
    %3295 = vmatprep.subr.bf16.mxu0 %v977
    %3296 = vmatpush1.bf16.msra.mxu0 %v976
    %3297 = vmatprep.subr.bf16.mxu0 %v985
    %3298 = vmatpush1.bf16.msra.mxu0 %v984
    %3299 = vmatprep.subr.bf16.mxu0 %v993
    %3300 = vmatpush1.bf16.msra.mxu0 %v992
    %3301 = vmatprep.subr.bf16.mxu0 %v1001
    %3302 = vmatpush1.bf16.msra.mxu0 %v1000
    %3303 = vmatprep.subr.bf16.mxu0 %v1009
    %3304 = vmatpush1.bf16.msra.mxu0 %v1008
    %3305 = vmatprep.subr.bf16.mxu0 %v1017
    %3306 = vmatpush1.bf16.msra.mxu0 %v1016
    %3307 = vmatprep.subr.bf16.mxu0 %v1025
    %3308 = vmatpush1.bf16.msra.mxu0 %v1024
    %3309 = vmatprep.mubr.bf16.mxu0 %v463
    %3310 = vmatmul.mubr.bf16.gmra.mrb[0].mxu0 %v462
    %v3311 = vpop.f32.mrb[0].mxu0
    %v3312 = vadd.f32 %v2656, %v3311
    %v3313 = vpop.f32.mrb[0].mxu0
    %v3314 = vadd.f32 %v2658, %v3313
    %v3315 = vpop.f32.mrb[0].mxu0
    %v3316 = vpop.f32.mrb[0].mxu0
    %3317 = vdwg.mxu0
    %3318 = vmatprep.subr.bf16.mxu0 %v1033
    %3319 = vmatpush1.bf16.msra.mxu0 %v1032
    %3320 = vmatprep.subr.bf16.mxu0 %v1041
    %3321 = vmatpush1.bf16.msra.mxu0 %v1040
    %3322 = vmatprep.subr.bf16.mxu0 %v1049
    %3323 = vmatpush1.bf16.msra.mxu0 %v1048
    %3324 = vmatprep.subr.bf16.mxu0 %v1057
    %3325 = vmatpush1.bf16.msra.mxu0 %v1056
    %3326 = vmatprep.subr.bf16.mxu0 %v1065
    %3327 = vmatpush1.bf16.msra.mxu0 %v1064
    %3328 = vmatprep.subr.bf16.mxu0 %v1073
    %3329 = vmatpush1.bf16.msra.mxu0 %v1072
    %3330 = vmatprep.subr.bf16.mxu0 %v1081
    %3331 = vmatpush1.bf16.msra.mxu0 %v1080
    %3332 = vmatprep.subr.bf16.mxu0 %v1089
    %3333 = vmatpush1.bf16.msra.mxu0 %v1088
    %3334 = vmatprep.subr.bf16.mxu0 %v1097
    %3335 = vmatpush1.bf16.msra.mxu0 %v1096
    %3336 = vmatprep.subr.bf16.mxu0 %v1105
    %3337 = vmatpush1.bf16.msra.mxu0 %v1104
    %3338 = vmatprep.subr.bf16.mxu0 %v1113
    %3339 = vmatpush1.bf16.msra.mxu0 %v1112
    %3340 = vmatprep.subr.bf16.mxu0 %v1121
    %3341 = vmatpush1.bf16.msra.mxu0 %v1120
    %3342 = vmatprep.subr.bf16.mxu0 %v1129
    %3343 = vmatpush1.bf16.msra.mxu0 %v1128
    %3344 = vmatprep.subr.bf16.mxu0 %v1137
    %3345 = vmatpush1.bf16.msra.mxu0 %v1136
    %3346 = vmatprep.subr.bf16.mxu0 %v1145
    %3347 = vmatpush1.bf16.msra.mxu0 %v1144
    %3348 = vmatprep.subr.bf16.mxu0 %v1153
    %3349 = vmatpush1.bf16.msra.mxu0 %v1152
    %3350 = vmatprep.mubr.bf16.mxu0 %v465
    %3351 = vmatmul.mubr.bf16.gmra.mrb[0].mxu0 %v464
    %v3352 = vpop.f32.mrb[0].mxu0
    %v3353 = vadd.f32 %v3312, %v3352
    %v3354 = vpop.f32.mrb[0].mxu0
    %v3355 = vadd.f32 %v3314, %v3354
    %v3356 = vpop.f32.mrb[0].mxu0
    %v3357 = vpop.f32.mrb[0].mxu0
    %3358 = vdwg.mxu0
    %3359 = vmatprep.subr.bf16.mxu0 %v1161
    %3360 = vmatpush1.bf16.msra.mxu0 %v1160
    %3361 = vmatprep.subr.bf16.mxu0 %v1169
    %3362 = vmatpush1.bf16.msra.mxu0 %v1168
    %3363 = vmatprep.subr.bf16.mxu0 %v1177
    %3364 = vmatpush1.bf16.msra.mxu0 %v1176
    %3365 = vmatprep.subr.bf16.mxu0 %v1185
    %3366 = vmatpush1.bf16.msra.mxu0 %v1184
    %3367 = vmatprep.subr.bf16.mxu0 %v1193
    %3368 = vmatpush1.bf16.msra.mxu0 %v1192
    %3369 = vmatprep.subr.bf16.mxu0 %v1201
    %3370 = vmatpush1.bf16.msra.mxu0 %v1200
    %3371 = vmatprep.subr.bf16.mxu0 %v1209
    %3372 = vmatpush1.bf16.msra.mxu0 %v1208
    %3373 = vmatprep.subr.bf16.mxu0 %v1217
    %3374 = vmatpush1.bf16.msra.mxu0 %v1216
    %3375 = vmatprep.subr.bf16.mxu0 %v1225
    %3376 = vmatpush1.bf16.msra.mxu0 %v1224
    %3377 = vmatprep.subr.bf16.mxu0 %v1233
    %3378 = vmatpush1.bf16.msra.mxu0 %v1232
    %3379 = vmatprep.subr.bf16.mxu0 %v1241
    %3380 = vmatpush1.bf16.msra.mxu0 %v1240
    %3381 = vmatprep.subr.bf16.mxu0 %v1249
    %3382 = vmatpush1.bf16.msra.mxu0 %v1248
    %3383 = vmatprep.subr.bf16.mxu0 %v1257
    %3384 = vmatpush1.bf16.msra.mxu0 %v1256
    %3385 = vmatprep.subr.bf16.mxu0 %v1265
    %3386 = vmatpush1.bf16.msra.mxu0 %v1264
    %3387 = vmatprep.subr.bf16.mxu0 %v1273
    %3388 = vmatpush1.bf16.msra.mxu0 %v1272
    %3389 = vmatprep.subr.bf16.mxu0 %v1281
    %3390 = vmatpush1.bf16.msra.mxu0 %v1280
    %3391 = vmatprep.mubr.bf16.mxu0 %v467
    %3392 = vmatmul.mubr.bf16.gmra.mrb[0].mxu0 %v466
    %v3393 = vpop.f32.mrb[0].mxu0
    %v3394 = vadd.f32 %v3353, %v3393
    %v3395 = vpop.f32.mrb[0].mxu0
    %v3396 = vadd.f32 %v3355, %v3395
    %v3397 = vpop.f32.mrb[0].mxu0
    %v3398 = vpop.f32.mrb[0].mxu0
    %3399 = vdwg.mxu0
    %3400 = vmatprep.subr.bf16.mxu0 %v1289
    %3401 = vmatpush1.bf16.msra.mxu0 %v1288
    %3402 = vmatprep.subr.bf16.mxu0 %v1297
    %3403 = vmatpush1.bf16.msra.mxu0 %v1296
    %3404 = vmatprep.subr.bf16.mxu0 %v1305
    %3405 = vmatpush1.bf16.msra.mxu0 %v1304
    %3406 = vmatprep.subr.bf16.mxu0 %v1313
    %3407 = vmatpush1.bf16.msra.mxu0 %v1312
    %3408 = vmatprep.subr.bf16.mxu0 %v1321
    %3409 = vmatpush1.bf16.msra.mxu0 %v1320
    %3410 = vmatprep.subr.bf16.mxu0 %v1329
    %3411 = vmatpush1.bf16.msra.mxu0 %v1328
    %3412 = vmatprep.subr.bf16.mxu0 %v1337
    %3413 = vmatpush1.bf16.msra.mxu0 %v1336
    %3414 = vmatprep.subr.bf16.mxu0 %v1345
    %3415 = vmatpush1.bf16.msra.mxu0 %v1344
    %3416 = vmatprep.subr.bf16.mxu0 %v1353
    %3417 = vmatpush1.bf16.msra.mxu0 %v1352
    %3418 = vmatprep.subr.bf16.mxu0 %v1361
    %3419 = vmatpush1.bf16.msra.mxu0 %v1360
    %3420 = vmatprep.subr.bf16.mxu0 %v1369
    %3421 = vmatpush1.bf16.msra.mxu0 %v1368
    %3422 = vmatprep.subr.bf16.mxu0 %v1377
    %3423 = vmatpush1.bf16.msra.mxu0 %v1376
    %3424 = vmatprep.subr.bf16.mxu0 %v1385
    %3425 = vmatpush1.bf16.msra.mxu0 %v1384
    %3426 = vmatprep.subr.bf16.mxu0 %v1393
    %3427 = vmatpush1.bf16.msra.mxu0 %v1392
    %3428 = vmatprep.subr.bf16.mxu0 %v1401
    %3429 = vmatpush1.bf16.msra.mxu0 %v1400
    %3430 = vmatprep.subr.bf16.mxu0 %v1409
    %3431 = vmatpush1.bf16.msra.mxu0 %v1408
    %3432 = vmatprep.mubr.bf16.mxu0 %v469
    %3433 = vmatmul.mubr.bf16.gmra.mrb[0].mxu0 %v468
    %v3434 = vpop.f32.mrb[0].mxu0
    %v3435 = vadd.f32 %v3394, %v3434
    %v3436 = vpop.f32.mrb[0].mxu0
    %v3437 = vadd.f32 %v3396, %v3436
    %v3438 = vpop.f32.mrb[0].mxu0
    %v3439 = vpop.f32.mrb[0].mxu0
    %3440 = vdwg.mxu0
    %3441 = vmatprep.subr.bf16.mxu0 %v907
    %3442 = vmatpush1.bf16.msra.mxu0 %v906
    %3443 = vmatprep.subr.bf16.mxu0 %v915
    %3444 = vmatpush1.bf16.msra.mxu0 %v914
    %3445 = vmatprep.subr.bf16.mxu0 %v923
    %3446 = vmatpush1.bf16.msra.mxu0 %v922
    %3447 = vmatprep.subr.bf16.mxu0 %v931
    %3448 = vmatpush1.bf16.msra.mxu0 %v930
    %3449 = vmatprep.subr.bf16.mxu0 %v939
    %3450 = vmatpush1.bf16.msra.mxu0 %v938
    %3451 = vmatprep.subr.bf16.mxu0 %v947
    %3452 = vmatpush1.bf16.msra.mxu0 %v946
    %3453 = vmatprep.subr.bf16.mxu0 %v955
    %3454 = vmatpush1.bf16.msra.mxu0 %v954
    %3455 = vmatprep.subr.bf16.mxu0 %v963
    %3456 = vmatpush1.bf16.msra.mxu0 %v962
    %3457 = vmatprep.subr.bf16.mxu0 %v971
    %3458 = vmatpush1.bf16.msra.mxu0 %v970
    %3459 = vmatprep.subr.bf16.mxu0 %v979
    %3460 = vmatpush1.bf16.msra.mxu0 %v978
    %3461 = vmatprep.subr.bf16.mxu0 %v987
    %3462 = vmatpush1.bf16.msra.mxu0 %v986
    %3463 = vmatprep.subr.bf16.mxu0 %v995
    %3464 = vmatpush1.bf16.msra.mxu0 %v994
    %3465 = vmatprep.subr.bf16.mxu0 %v1003
    %3466 = vmatpush1.bf16.msra.mxu0 %v1002
    %3467 = vmatprep.subr.bf16.mxu0 %v1011
    %3468 = vmatpush1.bf16.msra.mxu0 %v1010
    %3469 = vmatprep.subr.bf16.mxu0 %v1019
    %3470 = vmatpush1.bf16.msra.mxu0 %v1018
    %3471 = vmatprep.subr.bf16.mxu0 %v1027
    %3472 = vmatpush1.bf16.msra.mxu0 %v1026
    %3473 = vmatprep.mubr.bf16.mxu0 %v463
    %3474 = vmatmul.mubr.bf16.gmra.mrb[0].mxu0 %v462
    %v3475 = vpop.f32.mrb[0].mxu0
    %v3476 = vadd.f32 %v2861, %v3475
    %v3477 = vpop.f32.mrb[0].mxu0
    %v3478 = vadd.f32 %v2863, %v3477
    %v3479 = vpop.f32.mrb[0].mxu0
    %v3480 = vpop.f32.mrb[0].mxu0
    %3481 = vdwg.mxu0
    %3482 = vmatprep.subr.bf16.mxu0 %v1035
    %3483 = vmatpush1.bf16.msra.mxu0 %v1034
    %3484 = vmatprep.subr.bf16.mxu0 %v1043
    %3485 = vmatpush1.bf16.msra.mxu0 %v1042
    %3486 = vmatprep.subr.bf16.mxu0 %v1051
    %3487 = vmatpush1.bf16.msra.mxu0 %v1050
    %3488 = vmatprep.subr.bf16.mxu0 %v1059
    %3489 = vmatpush1.bf16.msra.mxu0 %v1058
    %3490 = vmatprep.subr.bf16.mxu0 %v1067
    %3491 = vmatpush1.bf16.msra.mxu0 %v1066
    %3492 = vmatprep.subr.bf16.mxu0 %v1075
    %3493 = vmatpush1.bf16.msra.mxu0 %v1074
    %3494 = vmatprep.subr.bf16.mxu0 %v1083
    %3495 = vmatpush1.bf16.msra.mxu0 %v1082
    %3496 = vmatprep.subr.bf16.mxu0 %v1091
    %3497 = vmatpush1.bf16.msra.mxu0 %v1090
    %3498 = vmatprep.subr.bf16.mxu0 %v1099
    %3499 = vmatpush1.bf16.msra.mxu0 %v1098
    %3500 = vmatprep.subr.bf16.mxu0 %v1107
    %3501 = vmatpush1.bf16.msra.mxu0 %v1106
    %3502 = vmatprep.subr.bf16.mxu0 %v1115
    %3503 = vmatpush1.bf16.msra.mxu0 %v1114
    %3504 = vmatprep.subr.bf16.mxu0 %v1123
    %3505 = vmatpush1.bf16.msra.mxu0 %v1122
    %3506 = vmatprep.subr.bf16.mxu0 %v1131
    %3507 = vmatpush1.bf16.msra.mxu0 %v1130
    %3508 = vmatprep.subr.bf16.mxu0 %v1139
    %3509 = vmatpush1.bf16.msra.mxu0 %v1138
    %3510 = vmatprep.subr.bf16.mxu0 %v1147
    %3511 = vmatpush1.bf16.msra.mxu0 %v1146
    %3512 = vmatprep.subr.bf16.mxu0 %v1155
    %3513 = vmatpush1.bf16.msra.mxu0 %v1154
    %3514 = vmatprep.mubr.bf16.mxu0 %v465
    %3515 = vmatmul.mubr.bf16.gmra.mrb[0].mxu0 %v464
    %v3516 = vpop.f32.mrb[0].mxu0
    %v3517 = vadd.f32 %v3476, %v3516
    %v3518 = vpop.f32.mrb[0].mxu0
    %v3519 = vadd.f32 %v3478, %v3518
    %v3520 = vpop.f32.mrb[0].mxu0
    %v3521 = vpop.f32.mrb[0].mxu0
    %3522 = vdwg.mxu0
    %3523 = vmatprep.subr.bf16.mxu0 %v1163
    %3524 = vmatpush1.bf16.msra.mxu0 %v1162
    %3525 = vmatprep.subr.bf16.mxu0 %v1171
    %3526 = vmatpush1.bf16.msra.mxu0 %v1170
    %3527 = vmatprep.subr.bf16.mxu0 %v1179
    %3528 = vmatpush1.bf16.msra.mxu0 %v1178
    %3529 = vmatprep.subr.bf16.mxu0 %v1187
    %3530 = vmatpush1.bf16.msra.mxu0 %v1186
    %3531 = vmatprep.subr.bf16.mxu0 %v1195
    %3532 = vmatpush1.bf16.msra.mxu0 %v1194
    %3533 = vmatprep.subr.bf16.mxu0 %v1203
    %3534 = vmatpush1.bf16.msra.mxu0 %v1202
    %3535 = vmatprep.subr.bf16.mxu0 %v1211
    %3536 = vmatpush1.bf16.msra.mxu0 %v1210
    %3537 = vmatprep.subr.bf16.mxu0 %v1219
    %3538 = vmatpush1.bf16.msra.mxu0 %v1218
    %3539 = vmatprep.subr.bf16.mxu0 %v1227
    %3540 = vmatpush1.bf16.msra.mxu0 %v1226
    %3541 = vmatprep.subr.bf16.mxu0 %v1235
    %3542 = vmatpush1.bf16.msra.mxu0 %v1234
    %3543 = vmatprep.subr.bf16.mxu0 %v1243
    %3544 = vmatpush1.bf16.msra.mxu0 %v1242
    %3545 = vmatprep.subr.bf16.mxu0 %v1251
    %3546 = vmatpush1.bf16.msra.mxu0 %v1250
    %3547 = vmatprep.subr.bf16.mxu0 %v1259
    %3548 = vmatpush1.bf16.msra.mxu0 %v1258
    %3549 = vmatprep.subr.bf16.mxu0 %v1267
    %3550 = vmatpush1.bf16.msra.mxu0 %v1266
    %3551 = vmatprep.subr.bf16.mxu0 %v1275
    %3552 = vmatpush1.bf16.msra.mxu0 %v1274
    %3553 = vmatprep.subr.bf16.mxu0 %v1283
    %3554 = vmatpush1.bf16.msra.mxu0 %v1282
    %3555 = vmatprep.mubr.bf16.mxu0 %v467
    %3556 = vmatmul.mubr.bf16.gmra.mrb[0].mxu0 %v466
    %v3557 = vpop.f32.mrb[0].mxu0
    %v3558 = vadd.f32 %v3517, %v3557
    %v3559 = vpop.f32.mrb[0].mxu0
    %v3560 = vadd.f32 %v3519, %v3559
    %v3561 = vpop.f32.mrb[0].mxu0
    %v3562 = vpop.f32.mrb[0].mxu0
    %3563 = vdwg.mxu0
    %3564 = vmatprep.subr.bf16.mxu0 %v1291
    %3565 = vmatpush1.bf16.msra.mxu0 %v1290
    %3566 = vmatprep.subr.bf16.mxu0 %v1299
    %3567 = vmatpush1.bf16.msra.mxu0 %v1298
    %3568 = vmatprep.subr.bf16.mxu0 %v1307
    %3569 = vmatpush1.bf16.msra.mxu0 %v1306
    %3570 = vmatprep.subr.bf16.mxu0 %v1315
    %3571 = vmatpush1.bf16.msra.mxu0 %v1314
    %3572 = vmatprep.subr.bf16.mxu0 %v1323
    %3573 = vmatpush1.bf16.msra.mxu0 %v1322
    %3574 = vmatprep.subr.bf16.mxu0 %v1331
    %3575 = vmatpush1.bf16.msra.mxu0 %v1330
    %3576 = vmatprep.subr.bf16.mxu0 %v1339
    %3577 = vmatpush1.bf16.msra.mxu0 %v1338
    %3578 = vmatprep.subr.bf16.mxu0 %v1347
    %3579 = vmatpush1.bf16.msra.mxu0 %v1346
    %3580 = vmatprep.subr.bf16.mxu0 %v1355
    %3581 = vmatpush1.bf16.msra.mxu0 %v1354
    %3582 = vmatprep.subr.bf16.mxu0 %v1363
    %3583 = vmatpush1.bf16.msra.mxu0 %v1362
    %3584 = vmatprep.subr.bf16.mxu0 %v1371
    %3585 = vmatpush1.bf16.msra.mxu0 %v1370
    %3586 = vmatprep.subr.bf16.mxu0 %v1379
    %3587 = vmatpush1.bf16.msra.mxu0 %v1378
    %3588 = vmatprep.subr.bf16.mxu0 %v1387
    %3589 = vmatpush1.bf16.msra.mxu0 %v1386
    %3590 = vmatprep.subr.bf16.mxu0 %v1395
    %3591 = vmatpush1.bf16.msra.mxu0 %v1394
    %3592 = vmatprep.subr.bf16.mxu0 %v1403
    %3593 = vmatpush1.bf16.msra.mxu0 %v1402
    %3594 = vmatprep.subr.bf16.mxu0 %v1411
    %3595 = vmatpush1.bf16.msra.mxu0 %v1410
    %3596 = vmatprep.mubr.bf16.mxu0 %v469
    %3597 = vmatmul.mubr.bf16.gmra.mrb[0].mxu0 %v468
    %v3598 = vpop.f32.mrb[0].mxu0
    %v3599 = vadd.f32 %v3558, %v3598
    %v3600 = vpop.f32.mrb[0].mxu0
    %v3601 = vadd.f32 %v3560, %v3600
    %v3602 = vpop.f32.mrb[0].mxu0
    %v3603 = vpop.f32.mrb[0].mxu0
    %3604 = vdwg.mxu0
    %3605 = vmatprep.subr.bf16.mxu0 %v909
    %3606 = vmatpush1.bf16.msra.mxu0 %v908
    %3607 = vmatprep.subr.bf16.mxu0 %v917
    %3608 = vmatpush1.bf16.msra.mxu0 %v916
    %3609 = vmatprep.subr.bf16.mxu0 %v925
    %3610 = vmatpush1.bf16.msra.mxu0 %v924
    %3611 = vmatprep.subr.bf16.mxu0 %v933
    %3612 = vmatpush1.bf16.msra.mxu0 %v932
    %3613 = vmatprep.subr.bf16.mxu0 %v941
    %3614 = vmatpush1.bf16.msra.mxu0 %v940
    %3615 = vmatprep.subr.bf16.mxu0 %v949
    %3616 = vmatpush1.bf16.msra.mxu0 %v948
    %3617 = vmatprep.subr.bf16.mxu0 %v957
    %3618 = vmatpush1.bf16.msra.mxu0 %v956
    %3619 = vmatprep.subr.bf16.mxu0 %v965
    %3620 = vmatpush1.bf16.msra.mxu0 %v964
    %3621 = vmatprep.subr.bf16.mxu0 %v973
    %3622 = vmatpush1.bf16.msra.mxu0 %v972
    %3623 = vmatprep.subr.bf16.mxu0 %v981
    %3624 = vmatpush1.bf16.msra.mxu0 %v980
    %3625 = vmatprep.subr.bf16.mxu0 %v989
    %3626 = vmatpush1.bf16.msra.mxu0 %v988
    %3627 = vmatprep.subr.bf16.mxu0 %v997
    %3628 = vmatpush1.bf16.msra.mxu0 %v996
    %3629 = vmatprep.subr.bf16.mxu0 %v1005
    %3630 = vmatpush1.bf16.msra.mxu0 %v1004
    %3631 = vmatprep.subr.bf16.mxu0 %v1013
    %3632 = vmatpush1.bf16.msra.mxu0 %v1012
    %3633 = vmatprep.subr.bf16.mxu0 %v1021
    %3634 = vmatpush1.bf16.msra.mxu0 %v1020
    %3635 = vmatprep.subr.bf16.mxu0 %v1029
    %3636 = vmatpush1.bf16.msra.mxu0 %v1028
    %3637 = vmatprep.mubr.bf16.mxu0 %v463
    %3638 = vmatmul.mubr.bf16.gmra.mrb[0].mxu0 %v462
    %v3639 = vpop.f32.mrb[0].mxu0
    %v3640 = vadd.f32 %v3066, %v3639
    %v3641 = vpop.f32.mrb[0].mxu0
    %v3642 = vadd.f32 %v3068, %v3641
    %v3643 = vpop.f32.mrb[0].mxu0
    %v3644 = vpop.f32.mrb[0].mxu0
    %3645 = vdwg.mxu0
    %3646 = vmatprep.subr.bf16.mxu0 %v1037
    %3647 = vmatpush1.bf16.msra.mxu0 %v1036
    %3648 = vmatprep.subr.bf16.mxu0 %v1045
    %3649 = vmatpush1.bf16.msra.mxu0 %v1044
    %3650 = vmatprep.subr.bf16.mxu0 %v1053
    %3651 = vmatpush1.bf16.msra.mxu0 %v1052
    %3652 = vmatprep.subr.bf16.mxu0 %v1061
    %3653 = vmatpush1.bf16.msra.mxu0 %v1060
    %3654 = vmatprep.subr.bf16.mxu0 %v1069
    %3655 = vmatpush1.bf16.msra.mxu0 %v1068
    %3656 = vmatprep.subr.bf16.mxu0 %v1077
    %3657 = vmatpush1.bf16.msra.mxu0 %v1076
    %3658 = vmatprep.subr.bf16.mxu0 %v1085
    %3659 = vmatpush1.bf16.msra.mxu0 %v1084
    %3660 = vmatprep.subr.bf16.mxu0 %v1093
    %3661 = vmatpush1.bf16.msra.mxu0 %v1092
    %3662 = vmatprep.subr.bf16.mxu0 %v1101
    %3663 = vmatpush1.bf16.msra.mxu0 %v1100
    %3664 = vmatprep.subr.bf16.mxu0 %v1109
    %3665 = vmatpush1.bf16.msra.mxu0 %v1108
    %3666 = vmatprep.subr.bf16.mxu0 %v1117
    %3667 = vmatpush1.bf16.msra.mxu0 %v1116
    %3668 = vmatprep.subr.bf16.mxu0 %v1125
    %3669 = vmatpush1.bf16.msra.mxu0 %v1124
    %3670 = vmatprep.subr.bf16.mxu0 %v1133
    %3671 = vmatpush1.bf16.msra.mxu0 %v1132
    %3672 = vmatprep.subr.bf16.mxu0 %v1141
    %3673 = vmatpush1.bf16.msra.mxu0 %v1140
    %3674 = vmatprep.subr.bf16.mxu0 %v1149
    %3675 = vmatpush1.bf16.msra.mxu0 %v1148
    %3676 = vmatprep.subr.bf16.mxu0 %v1157
    %3677 = vmatpush1.bf16.msra.mxu0 %v1156
    %3678 = vmatprep.mubr.bf16.mxu0 %v465
    %3679 = vmatmul.mubr.bf16.gmra.mrb[0].mxu0 %v464
    %v3680 = vpop.f32.mrb[0].mxu0
    %v3681 = vadd.f32 %v3640, %v3680
    %v3682 = vpop.f32.mrb[0].mxu0
    %v3683 = vadd.f32 %v3642, %v3682
    %v3684 = vpop.f32.mrb[0].mxu0
    %v3685 = vpop.f32.mrb[0].mxu0
    %3686 = vdwg.mxu0
    %3687 = vmatprep.subr.bf16.mxu0 %v1165
    %3688 = vmatpush1.bf16.msra.mxu0 %v1164
    %3689 = vmatprep.subr.bf16.mxu0 %v1173
    %3690 = vmatpush1.bf16.msra.mxu0 %v1172
    %3691 = vmatprep.subr.bf16.mxu0 %v1181
    %3692 = vmatpush1.bf16.msra.mxu0 %v1180
    %3693 = vmatprep.subr.bf16.mxu0 %v1189
    %3694 = vmatpush1.bf16.msra.mxu0 %v1188
    %3695 = vmatprep.subr.bf16.mxu0 %v1197
    %3696 = vmatpush1.bf16.msra.mxu0 %v1196
    %3697 = vmatprep.subr.bf16.mxu0 %v1205
    %3698 = vmatpush1.bf16.msra.mxu0 %v1204
    %3699 = vmatprep.subr.bf16.mxu0 %v1213
    %3700 = vmatpush1.bf16.msra.mxu0 %v1212
    %3701 = vmatprep.subr.bf16.mxu0 %v1221
    %3702 = vmatpush1.bf16.msra.mxu0 %v1220
    %3703 = vmatprep.subr.bf16.mxu0 %v1229
    %3704 = vmatpush1.bf16.msra.mxu0 %v1228
    %3705 = vmatprep.subr.bf16.mxu0 %v1237
    %3706 = vmatpush1.bf16.msra.mxu0 %v1236
    %3707 = vmatprep.subr.bf16.mxu0 %v1245
    %3708 = vmatpush1.bf16.msra.mxu0 %v1244
    %3709 = vmatprep.subr.bf16.mxu0 %v1253
    %3710 = vmatpush1.bf16.msra.mxu0 %v1252
    %3711 = vmatprep.subr.bf16.mxu0 %v1261
    %3712 = vmatpush1.bf16.msra.mxu0 %v1260
    %3713 = vmatprep.subr.bf16.mxu0 %v1269
    %3714 = vmatpush1.bf16.msra.mxu0 %v1268
    %3715 = vmatprep.subr.bf16.mxu0 %v1277
    %3716 = vmatpush1.bf16.msra.mxu0 %v1276
    %3717 = vmatprep.subr.bf16.mxu0 %v1285
    %3718 = vmatpush1.bf16.msra.mxu0 %v1284
    %3719 = vmatprep.mubr.bf16.mxu0 %v467
    %3720 = vmatmul.mubr.bf16.gmra.mrb[0].mxu0 %v466
    %v3721 = vpop.f32.mrb[0].mxu0
    %v3722 = vadd.f32 %v3681, %v3721
    %v3723 = vpop.f32.mrb[0].mxu0
    %v3724 = vadd.f32 %v3683, %v3723
    %v3725 = vpop.f32.mrb[0].mxu0
    %v3726 = vpop.f32.mrb[0].mxu0
    %3727 = vdwg.mxu0
    %3728 = vmatprep.subr.bf16.mxu0 %v1293
    %3729 = vmatpush1.bf16.msra.mxu0 %v1292
    %3730 = vmatprep.subr.bf16.mxu0 %v1301
    %3731 = vmatpush1.bf16.msra.mxu0 %v1300
    %3732 = vmatprep.subr.bf16.mxu0 %v1309
    %3733 = vmatpush1.bf16.msra.mxu0 %v1308
    %3734 = vmatprep.subr.bf16.mxu0 %v1317
    %3735 = vmatpush1.bf16.msra.mxu0 %v1316
    %3736 = vmatprep.subr.bf16.mxu0 %v1325
    %3737 = vmatpush1.bf16.msra.mxu0 %v1324
    %3738 = vmatprep.subr.bf16.mxu0 %v1333
    %3739 = vmatpush1.bf16.msra.mxu0 %v1332
    %3740 = vmatprep.subr.bf16.mxu0 %v1341
    %3741 = vmatpush1.bf16.msra.mxu0 %v1340
    %3742 = vmatprep.subr.bf16.mxu0 %v1349
    %3743 = vmatpush1.bf16.msra.mxu0 %v1348
    %3744 = vmatprep.subr.bf16.mxu0 %v1357
    %3745 = vmatpush1.bf16.msra.mxu0 %v1356
    %3746 = vmatprep.subr.bf16.mxu0 %v1365
    %3747 = vmatpush1.bf16.msra.mxu0 %v1364
    %3748 = vmatprep.subr.bf16.mxu0 %v1373
    %3749 = vmatpush1.bf16.msra.mxu0 %v1372
    %3750 = vmatprep.subr.bf16.mxu0 %v1381
    %3751 = vmatpush1.bf16.msra.mxu0 %v1380
    %3752 = vmatprep.subr.bf16.mxu0 %v1389
    %3753 = vmatpush1.bf16.msra.mxu0 %v1388
    %3754 = vmatprep.subr.bf16.mxu0 %v1397
    %3755 = vmatpush1.bf16.msra.mxu0 %v1396
    %3756 = vmatprep.subr.bf16.mxu0 %v1405
    %3757 = vmatpush1.bf16.msra.mxu0 %v1404
    %3758 = vmatprep.subr.bf16.mxu0 %v1413
    %3759 = vmatpush1.bf16.msra.mxu0 %v1412
    %3760 = vmatprep.mubr.bf16.mxu0 %v469
    %3761 = vmatmul.mubr.bf16.gmra.mrb[0].mxu0 %v468
    %v3762 = vpop.f32.mrb[0].mxu0
    %v3763 = vadd.f32 %v3722, %v3762
    %v3764 = vpop.f32.mrb[0].mxu0
    %v3765 = vadd.f32 %v3724, %v3764
    %v3766 = vpop.f32.mrb[0].mxu0
    %v3767 = vpop.f32.mrb[0].mxu0
    %3768 = vdwg.mxu0
    %3769 = vmatprep.subr.bf16.mxu0 %v911
    %3770 = vmatpush1.bf16.msra.mxu0 %v910
    %3771 = vmatprep.subr.bf16.mxu0 %v919
    %3772 = vmatpush1.bf16.msra.mxu0 %v918
    %3773 = vmatprep.subr.bf16.mxu0 %v927
    %3774 = vmatpush1.bf16.msra.mxu0 %v926
    %3775 = vmatprep.subr.bf16.mxu0 %v935
    %3776 = vmatpush1.bf16.msra.mxu0 %v934
    %3777 = vmatprep.subr.bf16.mxu0 %v943
    %3778 = vmatpush1.bf16.msra.mxu0 %v942
    %3779 = vmatprep.subr.bf16.mxu0 %v951
    %3780 = vmatpush1.bf16.msra.mxu0 %v950
    %3781 = vmatprep.subr.bf16.mxu0 %v959
    %3782 = vmatpush1.bf16.msra.mxu0 %v958
    %3783 = vmatprep.subr.bf16.mxu0 %v967
    %3784 = vmatpush1.bf16.msra.mxu0 %v966
    %3785 = vmatprep.subr.bf16.mxu0 %v975
    %3786 = vmatpush1.bf16.msra.mxu0 %v974
    %3787 = vmatprep.subr.bf16.mxu0 %v983
    %3788 = vmatpush1.bf16.msra.mxu0 %v982
    %3789 = vmatprep.subr.bf16.mxu0 %v991
    %3790 = vmatpush1.bf16.msra.mxu0 %v990
    %3791 = vmatprep.subr.bf16.mxu0 %v999
    %3792 = vmatpush1.bf16.msra.mxu0 %v998
    %3793 = vmatprep.subr.bf16.mxu0 %v1007
    %3794 = vmatpush1.bf16.msra.mxu0 %v1006
    %3795 = vmatprep.subr.bf16.mxu0 %v1015
    %3796 = vmatpush1.bf16.msra.mxu0 %v1014
    %3797 = vmatprep.subr.bf16.mxu0 %v1023
    %3798 = vmatpush1.bf16.msra.mxu0 %v1022
    %3799 = vmatprep.subr.bf16.mxu0 %v1031
    %3800 = vmatpush1.bf16.msra.mxu0 %v1030
    %3801 = vmatprep.mubr.bf16.mxu0 %v463
    %3802 = vmatmul.mubr.bf16.gmra.mrb[0].mxu0 %v462
    %v3803 = vpop.f32.mrb[0].mxu0
    %v3804 = vadd.f32 %v3271, %v3803
    %v3805 = vpop.f32.mrb[0].mxu0
    %v3806 = vadd.f32 %v3273, %v3805
    %v3807 = vpop.f32.mrb[0].mxu0
    %v3808 = vpop.f32.mrb[0].mxu0
    %3809 = vdwg.mxu0
    %3810 = vmatprep.subr.bf16.mxu0 %v1039
    %3811 = vmatpush1.bf16.msra.mxu0 %v1038
    %3812 = vmatprep.subr.bf16.mxu0 %v1047
    %3813 = vmatpush1.bf16.msra.mxu0 %v1046
    %3814 = vmatprep.subr.bf16.mxu0 %v1055
    %3815 = vmatpush1.bf16.msra.mxu0 %v1054
    %3816 = vmatprep.subr.bf16.mxu0 %v1063
    %3817 = vmatpush1.bf16.msra.mxu0 %v1062
    %3818 = vmatprep.subr.bf16.mxu0 %v1071
    %3819 = vmatpush1.bf16.msra.mxu0 %v1070
    %3820 = vmatprep.subr.bf16.mxu0 %v1079
    %3821 = vmatpush1.bf16.msra.mxu0 %v1078
    %3822 = vmatprep.subr.bf16.mxu0 %v1087
    %3823 = vmatpush1.bf16.msra.mxu0 %v1086
    %3824 = vmatprep.subr.bf16.mxu0 %v1095
    %3825 = vmatpush1.bf16.msra.mxu0 %v1094
    %3826 = vmatprep.subr.bf16.mxu0 %v1103
    %3827 = vmatpush1.bf16.msra.mxu0 %v1102
    %3828 = vmatprep.subr.bf16.mxu0 %v1111
    %3829 = vmatpush1.bf16.msra.mxu0 %v1110
    %3830 = vmatprep.subr.bf16.mxu0 %v1119
    %3831 = vmatpush1.bf16.msra.mxu0 %v1118
    %3832 = vmatprep.subr.bf16.mxu0 %v1127
    %3833 = vmatpush1.bf16.msra.mxu0 %v1126
    %3834 = vmatprep.subr.bf16.mxu0 %v1135
    %3835 = vmatpush1.bf16.msra.mxu0 %v1134
    %3836 = vmatprep.subr.bf16.mxu0 %v1143
    %3837 = vmatpush1.bf16.msra.mxu0 %v1142
    %3838 = vmatprep.subr.bf16.mxu0 %v1151
    %3839 = vmatpush1.bf16.msra.mxu0 %v1150
    %3840 = vmatprep.subr.bf16.mxu0 %v1159
    %3841 = vmatpush1.bf16.msra.mxu0 %v1158
    %3842 = vmatprep.mubr.bf16.mxu0 %v465
    %3843 = vmatmul.mubr.bf16.gmra.mrb[0].mxu0 %v464
    %v3844 = vpop.f32.mrb[0].mxu0
    %v3845 = vadd.f32 %v3804, %v3844
    %v3846 = vpop.f32.mrb[0].mxu0
    %v3847 = vadd.f32 %v3806, %v3846
    %v3848 = vpop.f32.mrb[0].mxu0
    %v3849 = vpop.f32.mrb[0].mxu0
    %3850 = vdwg.mxu0
    %3851 = vmatprep.subr.bf16.mxu0 %v1167
    %3852 = vmatpush1.bf16.msra.mxu0 %v1166
    %3853 = vmatprep.subr.bf16.mxu0 %v1175
    %3854 = vmatpush1.bf16.msra.mxu0 %v1174
    %3855 = vmatprep.subr.bf16.mxu0 %v1183
    %3856 = vmatpush1.bf16.msra.mxu0 %v1182
    %3857 = vmatprep.subr.bf16.mxu0 %v1191
    %3858 = vmatpush1.bf16.msra.mxu0 %v1190
    %3859 = vmatprep.subr.bf16.mxu0 %v1199
    %3860 = vmatpush1.bf16.msra.mxu0 %v1198
    %3861 = vmatprep.subr.bf16.mxu0 %v1207
    %3862 = vmatpush1.bf16.msra.mxu0 %v1206
    %3863 = vmatprep.subr.bf16.mxu0 %v1215
    %3864 = vmatpush1.bf16.msra.mxu0 %v1214
    %3865 = vmatprep.subr.bf16.mxu0 %v1223
    %3866 = vmatpush1.bf16.msra.mxu0 %v1222
    %3867 = vmatprep.subr.bf16.mxu0 %v1231
    %3868 = vmatpush1.bf16.msra.mxu0 %v1230
    %3869 = vmatprep.subr.bf16.mxu0 %v1239
    %3870 = vmatpush1.bf16.msra.mxu0 %v1238
    %3871 = vmatprep.subr.bf16.mxu0 %v1247
    %3872 = vmatpush1.bf16.msra.mxu0 %v1246
    %3873 = vmatprep.subr.bf16.mxu0 %v1255
    %3874 = vmatpush1.bf16.msra.mxu0 %v1254
    %3875 = vmatprep.subr.bf16.mxu0 %v1263
    %3876 = vmatpush1.bf16.msra.mxu0 %v1262
    %3877 = vmatprep.subr.bf16.mxu0 %v1271
    %3878 = vmatpush1.bf16.msra.mxu0 %v1270
    %3879 = vmatprep.subr.bf16.mxu0 %v1279
    %3880 = vmatpush1.bf16.msra.mxu0 %v1278
    %3881 = vmatprep.subr.bf16.mxu0 %v1287
    %3882 = vmatpush1.bf16.msra.mxu0 %v1286
    %3883 = vmatprep.mubr.bf16.mxu0 %v467
    %3884 = vmatmul.mubr.bf16.gmra.mrb[0].mxu0 %v466
    %v3885 = vpop.f32.mrb[0].mxu0
    %v3886 = vadd.f32 %v3845, %v3885
    %v3887 = vpop.f32.mrb[0].mxu0
    %v3888 = vadd.f32 %v3847, %v3887
    %v3889 = vpop.f32.mrb[0].mxu0
    %v3890 = vpop.f32.mrb[0].mxu0
    %3891 = vdwg.mxu0
    %3892 = vmatprep.subr.bf16.mxu0 %v1295
    %3893 = vmatpush1.bf16.msra.mxu0 %v1294
    %3894 = vmatprep.subr.bf16.mxu0 %v1303
    %3895 = vmatpush1.bf16.msra.mxu0 %v1302
    %3896 = vmatprep.subr.bf16.mxu0 %v1311
    %3897 = vmatpush1.bf16.msra.mxu0 %v1310
    %3898 = vmatprep.subr.bf16.mxu0 %v1319
    %3899 = vmatpush1.bf16.msra.mxu0 %v1318
    %3900 = vmatprep.subr.bf16.mxu0 %v1327
    %3901 = vmatpush1.bf16.msra.mxu0 %v1326
    %3902 = vmatprep.subr.bf16.mxu0 %v1335
    %3903 = vmatpush1.bf16.msra.mxu0 %v1334
    %3904 = vmatprep.subr.bf16.mxu0 %v1343
    %3905 = vmatpush1.bf16.msra.mxu0 %v1342
    %3906 = vmatprep.subr.bf16.mxu0 %v1351
    %3907 = vmatpush1.bf16.msra.mxu0 %v1350
    %3908 = vmatprep.subr.bf16.mxu0 %v1359
    %3909 = vmatpush1.bf16.msra.mxu0 %v1358
    %3910 = vmatprep.subr.bf16.mxu0 %v1367
    %3911 = vmatpush1.bf16.msra.mxu0 %v1366
    %3912 = vmatprep.subr.bf16.mxu0 %v1375
    %3913 = vmatpush1.bf16.msra.mxu0 %v1374
    %3914 = vmatprep.subr.bf16.mxu0 %v1383
    %3915 = vmatpush1.bf16.msra.mxu0 %v1382
    %3916 = vmatprep.subr.bf16.mxu0 %v1391
    %3917 = vmatpush1.bf16.msra.mxu0 %v1390
    %3918 = vmatprep.subr.bf16.mxu0 %v1399
    %3919 = vmatpush1.bf16.msra.mxu0 %v1398
    %3920 = vmatprep.subr.bf16.mxu0 %v1407
    %3921 = vmatpush1.bf16.msra.mxu0 %v1406
    %3922 = vmatprep.subr.bf16.mxu0 %v1415
    %3923 = vmatpush1.bf16.msra.mxu0 %v1414
    %3924 = vmatprep.mubr.bf16.mxu0 %v469
    %3925 = vmatmul.mubr.bf16.gmra.mrb[0].mxu0 %v468
    %v3926 = vpop.f32.mrb[0].mxu0
    %v3927 = vadd.f32 %v3886, %v3926
    %v3928 = vpop.f32.mrb[0].mxu0
    %v3929 = vadd.f32 %v3888, %v3928
    %v3930 = vpop.f32.mrb[0].mxu0
    %v3931 = vpop.f32.mrb[0].mxu0
    %3932 = vdwg.mxu0
    %v3933 = vld [vmem:[#allocation6 + $0x1200] sm:$0xff]
    %v3934 = vld [vmem:[#allocation6 + $0x1208] sm:$0xff]
    %v3935 = vld [vmem:[#allocation6 + $0x1210] sm:$0xff]
    %v3936 = vld [vmem:[#allocation6 + $0x1218] sm:$0xff]
    %v3937 = vld [vmem:[#allocation6 + $0x1220] sm:$0xff]
    %v3938 = vld [vmem:[#allocation6 + $0x1228] sm:$0xff]
    %v3939 = vld [vmem:[#allocation6 + $0x1230] sm:$0xff]
    %v3940 = vld [vmem:[#allocation6 + $0x1238] sm:$0xff]
    %v3941 = vld [vmem:[#allocation6 + $0x1240] sm:$0xff]
    %v3942 = vld [vmem:[#allocation6 + $0x1248] sm:$0xff]
    %v3943 = vld [vmem:[#allocation6 + $0x1250] sm:$0xff]
    %v3944 = vld [vmem:[#allocation6 + $0x1258] sm:$0xff]
    %v3945 = vld [vmem:[#allocation6 + $0x1260] sm:$0xff]
    %v3946 = vld [vmem:[#allocation6 + $0x1268] sm:$0xff]
    %v3947 = vld [vmem:[#allocation6 + $0x1270] sm:$0xff]
    %v3948 = vld [vmem:[#allocation6 + $0x1278] sm:$0xff]
    %v3949 = vld [vmem:[#allocation6 + $0x1280] sm:$0xff]
    %v3950 = vld [vmem:[#allocation6 + $0x1288] sm:$0xff]
    %v3951 = vld [vmem:[#allocation6 + $0x1290] sm:$0xff]
    %v3952 = vld [vmem:[#allocation6 + $0x1298] sm:$0xff]
    %v3953 = vld [vmem:[#allocation6 + $0x12a0] sm:$0xff]
    %v3954 = vld [vmem:[#allocation6 + $0x12a8] sm:$0xff]
    %v3955 = vld [vmem:[#allocation6 + $0x12b0] sm:$0xff]
    %v3956 = vld [vmem:[#allocation6 + $0x12b8] sm:$0xff]
    %v3957 = vld [vmem:[#allocation6 + $0x12c0] sm:$0xff]
    %v3958 = vld [vmem:[#allocation6 + $0x12c8] sm:$0xff]
    %v3959 = vld [vmem:[#allocation6 + $0x12d0] sm:$0xff]
    %v3960 = vld [vmem:[#allocation6 + $0x12d8] sm:$0xff]
    %v3961 = vld [vmem:[#allocation6 + $0x12e0] sm:$0xff]
    %v3962 = vld [vmem:[#allocation6 + $0x12e8] sm:$0xff]
    %v3963 = vld [vmem:[#allocation6 + $0x12f0] sm:$0xff]
    %v3964 = vld [vmem:[#allocation6 + $0x12f8] sm:$0xff]
    %v3965 = vld [vmem:[#allocation6 + $0x1300] sm:$0xff]
    %v3966 = vld [vmem:[#allocation6 + $0x1308] sm:$0xff]
    %v3967 = vld [vmem:[#allocation6 + $0x1310] sm:$0xff]
    %v3968 = vld [vmem:[#allocation6 + $0x1318] sm:$0xff]
    %v3969 = vld [vmem:[#allocation6 + $0x1320] sm:$0xff]
    %v3970 = vld [vmem:[#allocation6 + $0x1328] sm:$0xff]
    %v3971 = vld [vmem:[#allocation6 + $0x1330] sm:$0xff]
    %v3972 = vld [vmem:[#allocation6 + $0x1338] sm:$0xff]
    %v3973 = vld [vmem:[#allocation6 + $0x1340] sm:$0xff]
    %v3974 = vld [vmem:[#allocation6 + $0x1348] sm:$0xff]
    %v3975 = vld [vmem:[#allocation6 + $0x1350] sm:$0xff]
    %v3976 = vld [vmem:[#allocation6 + $0x1358] sm:$0xff]
    %v3977 = vld [vmem:[#allocation6 + $0x1360] sm:$0xff]
    %v3978 = vld [vmem:[#allocation6 + $0x1368] sm:$0xff]
    %v3979 = vld [vmem:[#allocation6 + $0x1370] sm:$0xff]
    %v3980 = vld [vmem:[#allocation6 + $0x1378] sm:$0xff]
    %v3981 = vld [vmem:[#allocation6 + $0x1380] sm:$0xff]
    %v3982 = vld [vmem:[#allocation6 + $0x1388] sm:$0xff]
    %v3983 = vld [vmem:[#allocation6 + $0x1390] sm:$0xff]
    %v3984 = vld [vmem:[#allocation6 + $0x1398] sm:$0xff]
    %v3985 = vld [vmem:[#allocation6 + $0x13a0] sm:$0xff]
    %v3986 = vld [vmem:[#allocation6 + $0x13a8] sm:$0xff]
    %v3987 = vld [vmem:[#allocation6 + $0x13b0] sm:$0xff]
    %v3988 = vld [vmem:[#allocation6 + $0x13b8] sm:$0xff]
    %v3989 = vld [vmem:[#allocation6 + $0x13c0] sm:$0xff]
    %v3990 = vld [vmem:[#allocation6 + $0x13c8] sm:$0xff]
    %v3991 = vld [vmem:[#allocation6 + $0x13d0] sm:$0xff]
    %v3992 = vld [vmem:[#allocation6 + $0x13d8] sm:$0xff]
    %v3993 = vld [vmem:[#allocation6 + $0x13e0] sm:$0xff]
    %v3994 = vld [vmem:[#allocation6 + $0x13e8] sm:$0xff]
    %v3995 = vld [vmem:[#allocation6 + $0x13f0] sm:$0xff]
    %v3996 = vld [vmem:[#allocation6 + $0x13f8] sm:$0xff]
    %v3997 = vld [vmem:[#allocation6 + $0x1400] sm:$0xff]
    %v3998 = vld [vmem:[#allocation6 + $0x1408] sm:$0xff]
    %v3999 = vld [vmem:[#allocation6 + $0x1410] sm:$0xff]
    %v4000 = vld [vmem:[#allocation6 + $0x1418] sm:$0xff]
    %v4001 = vld [vmem:[#allocation6 + $0x1420] sm:$0xff]
    %v4002 = vld [vmem:[#allocation6 + $0x1428] sm:$0xff]
    %v4003 = vld [vmem:[#allocation6 + $0x1430] sm:$0xff]
    %v4004 = vld [vmem:[#allocation6 + $0x1438] sm:$0xff]
    %v4005 = vld [vmem:[#allocation6 + $0x1440] sm:$0xff]
    %v4006 = vld [vmem:[#allocation6 + $0x1448] sm:$0xff]
    %v4007 = vld [vmem:[#allocation6 + $0x1450] sm:$0xff]
    %v4008 = vld [vmem:[#allocation6 + $0x1458] sm:$0xff]
    %v4009 = vld [vmem:[#allocation6 + $0x1460] sm:$0xff]
    %v4010 = vld [vmem:[#allocation6 + $0x1468] sm:$0xff]
    %v4011 = vld [vmem:[#allocation6 + $0x1470] sm:$0xff]
    %v4012 = vld [vmem:[#allocation6 + $0x1478] sm:$0xff]
    %v4013 = vld [vmem:[#allocation6 + $0x1480] sm:$0xff]
    %v4014 = vld [vmem:[#allocation6 + $0x1488] sm:$0xff]
    %v4015 = vld [vmem:[#allocation6 + $0x1490] sm:$0xff]
    %v4016 = vld [vmem:[#allocation6 + $0x1498] sm:$0xff]
    %v4017 = vld [vmem:[#allocation6 + $0x14a0] sm:$0xff]
    %v4018 = vld [vmem:[#allocation6 + $0x14a8] sm:$0xff]
    %v4019 = vld [vmem:[#allocation6 + $0x14b0] sm:$0xff]
    %v4020 = vld [vmem:[#allocation6 + $0x14b8] sm:$0xff]
    %v4021 = vld [vmem:[#allocation6 + $0x14c0] sm:$0xff]
    %v4022 = vld [vmem:[#allocation6 + $0x14c8] sm:$0xff]
    %v4023 = vld [vmem:[#allocation6 + $0x14d0] sm:$0xff]
    %v4024 = vld [vmem:[#allocation6 + $0x14d8] sm:$0xff]
    %v4025 = vld [vmem:[#allocation6 + $0x14e0] sm:$0xff]
    %v4026 = vld [vmem:[#allocation6 + $0x14e8] sm:$0xff]
    %v4027 = vld [vmem:[#allocation6 + $0x14f0] sm:$0xff]
    %v4028 = vld [vmem:[#allocation6 + $0x14f8] sm:$0xff]
    %v4029 = vld [vmem:[#allocation6 + $0x1500] sm:$0xff]
    %v4030 = vld [vmem:[#allocation6 + $0x1508] sm:$0xff]
    %v4031 = vld [vmem:[#allocation6 + $0x1510] sm:$0xff]
    %v4032 = vld [vmem:[#allocation6 + $0x1518] sm:$0xff]
    %v4033 = vld [vmem:[#allocation6 + $0x1520] sm:$0xff]
    %v4034 = vld [vmem:[#allocation6 + $0x1528] sm:$0xff]
    %v4035 = vld [vmem:[#allocation6 + $0x1530] sm:$0xff]
    %v4036 = vld [vmem:[#allocation6 + $0x1538] sm:$0xff]
    %v4037 = vld [vmem:[#allocation6 + $0x1540] sm:$0xff]
    %v4038 = vld [vmem:[#allocation6 + $0x1548] sm:$0xff]
    %v4039 = vld [vmem:[#allocation6 + $0x1550] sm:$0xff]
    %v4040 = vld [vmem:[#allocation6 + $0x1558] sm:$0xff]
    %v4041 = vld [vmem:[#allocation6 + $0x1560] sm:$0xff]
    %v4042 = vld [vmem:[#allocation6 + $0x1568] sm:$0xff]
    %v4043 = vld [vmem:[#allocation6 + $0x1570] sm:$0xff]
    %v4044 = vld [vmem:[#allocation6 + $0x1578] sm:$0xff]
    %v4045 = vld [vmem:[#allocation6 + $0x1580] sm:$0xff]
    %v4046 = vld [vmem:[#allocation6 + $0x1588] sm:$0xff]
    %v4047 = vld [vmem:[#allocation6 + $0x1590] sm:$0xff]
    %v4048 = vld [vmem:[#allocation6 + $0x1598] sm:$0xff]
    %v4049 = vld [vmem:[#allocation6 + $0x15a0] sm:$0xff]
    %v4050 = vld [vmem:[#allocation6 + $0x15a8] sm:$0xff]
    %v4051 = vld [vmem:[#allocation6 + $0x15b0] sm:$0xff]
    %v4052 = vld [vmem:[#allocation6 + $0x15b8] sm:$0xff]
    %v4053 = vld [vmem:[#allocation6 + $0x15c0] sm:$0xff]
    %v4054 = vld [vmem:[#allocation6 + $0x15c8] sm:$0xff]
    %v4055 = vld [vmem:[#allocation6 + $0x15d0] sm:$0xff]
    %v4056 = vld [vmem:[#allocation6 + $0x15d8] sm:$0xff]
    %v4057 = vld [vmem:[#allocation6 + $0x15e0] sm:$0xff]
    %v4058 = vld [vmem:[#allocation6 + $0x15e8] sm:$0xff]
    %v4059 = vld [vmem:[#allocation6 + $0x15f0] sm:$0xff]
    %v4060 = vld [vmem:[#allocation6 + $0x15f8] sm:$0xff]
    %v4061 = vld [vmem:[#allocation6 + $0x1600] sm:$0xff]
    %v4062 = vld [vmem:[#allocation6 + $0x1608] sm:$0xff]
    %v4063 = vld [vmem:[#allocation6 + $0x1610] sm:$0xff]
    %v4064 = vld [vmem:[#allocation6 + $0x1618] sm:$0xff]
    %v4065 = vld [vmem:[#allocation6 + $0x1620] sm:$0xff]
    %v4066 = vld [vmem:[#allocation6 + $0x1628] sm:$0xff]
    %v4067 = vld [vmem:[#allocation6 + $0x1630] sm:$0xff]
    %v4068 = vld [vmem:[#allocation6 + $0x1638] sm:$0xff]
    %v4069 = vld [vmem:[#allocation6 + $0x1640] sm:$0xff]
    %v4070 = vld [vmem:[#allocation6 + $0x1648] sm:$0xff]
    %v4071 = vld [vmem:[#allocation6 + $0x1650] sm:$0xff]
    %v4072 = vld [vmem:[#allocation6 + $0x1658] sm:$0xff]
    %v4073 = vld [vmem:[#allocation6 + $0x1660] sm:$0xff]
    %v4074 = vld [vmem:[#allocation6 + $0x1668] sm:$0xff]
    %v4075 = vld [vmem:[#allocation6 + $0x1670] sm:$0xff]
    %v4076 = vld [vmem:[#allocation6 + $0x1678] sm:$0xff]
    %v4077 = vld [vmem:[#allocation6 + $0x1680] sm:$0xff]
    %v4078 = vld [vmem:[#allocation6 + $0x1688] sm:$0xff]
    %v4079 = vld [vmem:[#allocation6 + $0x1690] sm:$0xff]
    %v4080 = vld [vmem:[#allocation6 + $0x1698] sm:$0xff]
    %v4081 = vld [vmem:[#allocation6 + $0x16a0] sm:$0xff]
    %v4082 = vld [vmem:[#allocation6 + $0x16a8] sm:$0xff]
    %v4083 = vld [vmem:[#allocation6 + $0x16b0] sm:$0xff]
    %v4084 = vld [vmem:[#allocation6 + $0x16b8] sm:$0xff]
    %v4085 = vld [vmem:[#allocation6 + $0x16c0] sm:$0xff]
    %v4086 = vld [vmem:[#allocation6 + $0x16c8] sm:$0xff]
    %v4087 = vld [vmem:[#allocation6 + $0x16d0] sm:$0xff]
    %v4088 = vld [vmem:[#allocation6 + $0x16d8] sm:$0xff]
    %v4089 = vld [vmem:[#allocation6 + $0x16e0] sm:$0xff]
    %v4090 = vld [vmem:[#allocation6 + $0x16e8] sm:$0xff]
    %v4091 = vld [vmem:[#allocation6 + $0x16f0] sm:$0xff]
    %v4092 = vld [vmem:[#allocation6 + $0x16f8] sm:$0xff]
    %v4093 = vld [vmem:[#allocation6 + $0x1700] sm:$0xff]
    %v4094 = vld [vmem:[#allocation6 + $0x1708] sm:$0xff]
    %v4095 = vld [vmem:[#allocation6 + $0x1710] sm:$0xff]
    %v4096 = vld [vmem:[#allocation6 + $0x1718] sm:$0xff]
    %v4097 = vld [vmem:[#allocation6 + $0x1720] sm:$0xff]
    %v4098 = vld [vmem:[#allocation6 + $0x1728] sm:$0xff]
    %v4099 = vld [vmem:[#allocation6 + $0x1730] sm:$0xff]
    %v4100 = vld [vmem:[#allocation6 + $0x1738] sm:$0xff]
    %v4101 = vld [vmem:[#allocation6 + $0x1740] sm:$0xff]
    %v4102 = vld [vmem:[#allocation6 + $0x1748] sm:$0xff]
    %v4103 = vld [vmem:[#allocation6 + $0x1750] sm:$0xff]
    %v4104 = vld [vmem:[#allocation6 + $0x1758] sm:$0xff]
    %v4105 = vld [vmem:[#allocation6 + $0x1760] sm:$0xff]
    %v4106 = vld [vmem:[#allocation6 + $0x1768] sm:$0xff]
    %v4107 = vld [vmem:[#allocation6 + $0x1770] sm:$0xff]
    %v4108 = vld [vmem:[#allocation6 + $0x1778] sm:$0xff]
    %v4109 = vld [vmem:[#allocation6 + $0x1780] sm:$0xff]
    %v4110 = vld [vmem:[#allocation6 + $0x1788] sm:$0xff]
    %v4111 = vld [vmem:[#allocation6 + $0x1790] sm:$0xff]
    %v4112 = vld [vmem:[#allocation6 + $0x1798] sm:$0xff]
    %v4113 = vld [vmem:[#allocation6 + $0x17a0] sm:$0xff]
    %v4114 = vld [vmem:[#allocation6 + $0x17a8] sm:$0xff]
    %v4115 = vld [vmem:[#allocation6 + $0x17b0] sm:$0xff]
    %v4116 = vld [vmem:[#allocation6 + $0x17b8] sm:$0xff]
    %v4117 = vld [vmem:[#allocation6 + $0x17c0] sm:$0xff]
    %v4118 = vld [vmem:[#allocation6 + $0x17c8] sm:$0xff]
    %v4119 = vld [vmem:[#allocation6 + $0x17d0] sm:$0xff]
    %v4120 = vld [vmem:[#allocation6 + $0x17d8] sm:$0xff]
    %v4121 = vld [vmem:[#allocation6 + $0x17e0] sm:$0xff]
    %v4122 = vld [vmem:[#allocation6 + $0x17e8] sm:$0xff]
    %v4123 = vld [vmem:[#allocation6 + $0x17f0] sm:$0xff]
    %v4124 = vld [vmem:[#allocation6 + $0x17f8] sm:$0xff]
    %v4125 = vld [vmem:[#allocation6 + $0x1800] sm:$0xff]
    %v4126 = vld [vmem:[#allocation6 + $0x1808] sm:$0xff]
    %v4127 = vld [vmem:[#allocation6 + $0x1810] sm:$0xff]
    %v4128 = vld [vmem:[#allocation6 + $0x1818] sm:$0xff]
    %v4129 = vld [vmem:[#allocation6 + $0x1820] sm:$0xff]
    %v4130 = vld [vmem:[#allocation6 + $0x1828] sm:$0xff]
    %v4131 = vld [vmem:[#allocation6 + $0x1830] sm:$0xff]
    %v4132 = vld [vmem:[#allocation6 + $0x1838] sm:$0xff]
    %v4133 = vld [vmem:[#allocation6 + $0x1840] sm:$0xff]
    %v4134 = vld [vmem:[#allocation6 + $0x1848] sm:$0xff]
    %v4135 = vld [vmem:[#allocation6 + $0x1850] sm:$0xff]
    %v4136 = vld [vmem:[#allocation6 + $0x1858] sm:$0xff]
    %v4137 = vld [vmem:[#allocation6 + $0x1860] sm:$0xff]
    %v4138 = vld [vmem:[#allocation6 + $0x1868] sm:$0xff]
    %v4139 = vld [vmem:[#allocation6 + $0x1870] sm:$0xff]
    %v4140 = vld [vmem:[#allocation6 + $0x1878] sm:$0xff]
    %v4141 = vld [vmem:[#allocation6 + $0x1880] sm:$0xff]
    %v4142 = vld [vmem:[#allocation6 + $0x1888] sm:$0xff]
    %v4143 = vld [vmem:[#allocation6 + $0x1890] sm:$0xff]
    %v4144 = vld [vmem:[#allocation6 + $0x1898] sm:$0xff]
    %v4145 = vld [vmem:[#allocation6 + $0x18a0] sm:$0xff]
    %v4146 = vld [vmem:[#allocation6 + $0x18a8] sm:$0xff]
    %v4147 = vld [vmem:[#allocation6 + $0x18b0] sm:$0xff]
    %v4148 = vld [vmem:[#allocation6 + $0x18b8] sm:$0xff]
    %v4149 = vld [vmem:[#allocation6 + $0x18c0] sm:$0xff]
    %v4150 = vld [vmem:[#allocation6 + $0x18c8] sm:$0xff]
    %v4151 = vld [vmem:[#allocation6 + $0x18d0] sm:$0xff]
    %v4152 = vld [vmem:[#allocation6 + $0x18d8] sm:$0xff]
    %v4153 = vld [vmem:[#allocation6 + $0x18e0] sm:$0xff]
    %v4154 = vld [vmem:[#allocation6 + $0x18e8] sm:$0xff]
    %v4155 = vld [vmem:[#allocation6 + $0x18f0] sm:$0xff]
    %v4156 = vld [vmem:[#allocation6 + $0x18f8] sm:$0xff]
    %v4157 = vld [vmem:[#allocation6 + $0x1900] sm:$0xff]
    %v4158 = vld [vmem:[#allocation6 + $0x1908] sm:$0xff]
    %v4159 = vld [vmem:[#allocation6 + $0x1910] sm:$0xff]
    %v4160 = vld [vmem:[#allocation6 + $0x1918] sm:$0xff]
    %v4161 = vld [vmem:[#allocation6 + $0x1920] sm:$0xff]
    %v4162 = vld [vmem:[#allocation6 + $0x1928] sm:$0xff]
    %v4163 = vld [vmem:[#allocation6 + $0x1930] sm:$0xff]
    %v4164 = vld [vmem:[#allocation6 + $0x1938] sm:$0xff]
    %v4165 = vld [vmem:[#allocation6 + $0x1940] sm:$0xff]
    %v4166 = vld [vmem:[#allocation6 + $0x1948] sm:$0xff]
    %v4167 = vld [vmem:[#allocation6 + $0x1950] sm:$0xff]
    %v4168 = vld [vmem:[#allocation6 + $0x1958] sm:$0xff]
    %v4169 = vld [vmem:[#allocation6 + $0x1960] sm:$0xff]
    %v4170 = vld [vmem:[#allocation6 + $0x1968] sm:$0xff]
    %v4171 = vld [vmem:[#allocation6 + $0x1970] sm:$0xff]
    %v4172 = vld [vmem:[#allocation6 + $0x1978] sm:$0xff]
    %v4173 = vld [vmem:[#allocation6 + $0x1980] sm:$0xff]
    %v4174 = vld [vmem:[#allocation6 + $0x1988] sm:$0xff]
    %v4175 = vld [vmem:[#allocation6 + $0x1990] sm:$0xff]
    %v4176 = vld [vmem:[#allocation6 + $0x1998] sm:$0xff]
    %v4177 = vld [vmem:[#allocation6 + $0x19a0] sm:$0xff]
    %v4178 = vld [vmem:[#allocation6 + $0x19a8] sm:$0xff]
    %v4179 = vld [vmem:[#allocation6 + $0x19b0] sm:$0xff]
    %v4180 = vld [vmem:[#allocation6 + $0x19b8] sm:$0xff]
    %v4181 = vld [vmem:[#allocation6 + $0x19c0] sm:$0xff]
    %v4182 = vld [vmem:[#allocation6 + $0x19c8] sm:$0xff]
    %v4183 = vld [vmem:[#allocation6 + $0x19d0] sm:$0xff]
    %v4184 = vld [vmem:[#allocation6 + $0x19d8] sm:$0xff]
    %v4185 = vld [vmem:[#allocation6 + $0x19e0] sm:$0xff]
    %v4186 = vld [vmem:[#allocation6 + $0x19e8] sm:$0xff]
    %v4187 = vld [vmem:[#allocation6 + $0x19f0] sm:$0xff]
    %v4188 = vld [vmem:[#allocation6 + $0x19f8] sm:$0xff]
    %v4189 = vunpack.c.l.s8.bf16 %v3933
    %v4190 = vunpack.c.l.s8.bf16 %v3934
    %v4191 = vunpack.c.l.s8.bf16 %v3935
    %v4192 = vunpack.c.l.s8.bf16 %v3936
    %v4193 = vunpack.c.l.s8.bf16 %v3937
    %v4194 = vunpack.c.l.s8.bf16 %v3938
    %v4195 = vunpack.c.l.s8.bf16 %v3939
    %v4196 = vunpack.c.l.s8.bf16 %v3940
    %v4197 = vunpack.c.h.s8.bf16 %v3933
    %v4198 = vunpack.c.h.s8.bf16 %v3934
    %v4199 = vunpack.c.h.s8.bf16 %v3935
    %v4200 = vunpack.c.h.s8.bf16 %v3936
    %v4201 = vunpack.c.h.s8.bf16 %v3937
    %v4202 = vunpack.c.h.s8.bf16 %v3938
    %v4203 = vunpack.c.h.s8.bf16 %v3939
    %v4204 = vunpack.c.h.s8.bf16 %v3940
    %v4205 = vunpack.c.l.s8.bf16 %v3941
    %v4206 = vunpack.c.l.s8.bf16 %v3942
    %v4207 = vunpack.c.l.s8.bf16 %v3943
    %v4208 = vunpack.c.l.s8.bf16 %v3944
    %v4209 = vunpack.c.l.s8.bf16 %v3945
    %v4210 = vunpack.c.l.s8.bf16 %v3946
    %v4211 = vunpack.c.l.s8.bf16 %v3947
    %v4212 = vunpack.c.l.s8.bf16 %v3948
    %v4213 = vunpack.c.h.s8.bf16 %v3941
    %v4214 = vunpack.c.h.s8.bf16 %v3942
    %v4215 = vunpack.c.h.s8.bf16 %v3943
    %v4216 = vunpack.c.h.s8.bf16 %v3944
    %v4217 = vunpack.c.h.s8.bf16 %v3945
    %v4218 = vunpack.c.h.s8.bf16 %v3946
    %v4219 = vunpack.c.h.s8.bf16 %v3947
    %v4220 = vunpack.c.h.s8.bf16 %v3948
    %v4221 = vunpack.c.l.s8.bf16 %v3949
    %v4222 = vunpack.c.l.s8.bf16 %v3950
    %v4223 = vunpack.c.l.s8.bf16 %v3951
    %v4224 = vunpack.c.l.s8.bf16 %v3952
    %v4225 = vunpack.c.l.s8.bf16 %v3953
    %v4226 = vunpack.c.l.s8.bf16 %v3954
    %v4227 = vunpack.c.l.s8.bf16 %v3955
    %v4228 = vunpack.c.l.s8.bf16 %v3956
    %v4229 = vunpack.c.h.s8.bf16 %v3949
    %v4230 = vunpack.c.h.s8.bf16 %v3950
    %v4231 = vunpack.c.h.s8.bf16 %v3951
    %v4232 = vunpack.c.h.s8.bf16 %v3952
    %v4233 = vunpack.c.h.s8.bf16 %v3953
    %v4234 = vunpack.c.h.s8.bf16 %v3954
    %v4235 = vunpack.c.h.s8.bf16 %v3955
    %v4236 = vunpack.c.h.s8.bf16 %v3956
    %v4237 = vunpack.c.l.s8.bf16 %v3957
    %v4238 = vunpack.c.l.s8.bf16 %v3958
    %v4239 = vunpack.c.l.s8.bf16 %v3959
    %v4240 = vunpack.c.l.s8.bf16 %v3960
    %v4241 = vunpack.c.l.s8.bf16 %v3961
    %v4242 = vunpack.c.l.s8.bf16 %v3962
    %v4243 = vunpack.c.l.s8.bf16 %v3963
    %v4244 = vunpack.c.l.s8.bf16 %v3964
    %v4245 = vunpack.c.h.s8.bf16 %v3957
    %v4246 = vunpack.c.h.s8.bf16 %v3958
    %v4247 = vunpack.c.h.s8.bf16 %v3959
    %v4248 = vunpack.c.h.s8.bf16 %v3960
    %v4249 = vunpack.c.h.s8.bf16 %v3961
    %v4250 = vunpack.c.h.s8.bf16 %v3962
    %v4251 = vunpack.c.h.s8.bf16 %v3963
    %v4252 = vunpack.c.h.s8.bf16 %v3964
    %v4253 = vunpack.c.l.s8.bf16 %v3965
    %v4254 = vunpack.c.l.s8.bf16 %v3966
    %v4255 = vunpack.c.l.s8.bf16 %v3967
    %v4256 = vunpack.c.l.s8.bf16 %v3968
    %v4257 = vunpack.c.l.s8.bf16 %v3969
    %v4258 = vunpack.c.l.s8.bf16 %v3970
    %v4259 = vunpack.c.l.s8.bf16 %v3971
    %v4260 = vunpack.c.l.s8.bf16 %v3972
    %v4261 = vunpack.c.h.s8.bf16 %v3965
    %v4262 = vunpack.c.h.s8.bf16 %v3966
    %v4263 = vunpack.c.h.s8.bf16 %v3967
    %v4264 = vunpack.c.h.s8.bf16 %v3968
    %v4265 = vunpack.c.h.s8.bf16 %v3969
    %v4266 = vunpack.c.h.s8.bf16 %v3970
    %v4267 = vunpack.c.h.s8.bf16 %v3971
    %v4268 = vunpack.c.h.s8.bf16 %v3972
    %v4269 = vunpack.c.l.s8.bf16 %v3973
    %v4270 = vunpack.c.l.s8.bf16 %v3974
    %v4271 = vunpack.c.l.s8.bf16 %v3975
    %v4272 = vunpack.c.l.s8.bf16 %v3976
    %v4273 = vunpack.c.l.s8.bf16 %v3977
    %v4274 = vunpack.c.l.s8.bf16 %v3978
    %v4275 = vunpack.c.l.s8.bf16 %v3979
    %v4276 = vunpack.c.l.s8.bf16 %v3980
    %v4277 = vunpack.c.h.s8.bf16 %v3973
    %v4278 = vunpack.c.h.s8.bf16 %v3974
    %v4279 = vunpack.c.h.s8.bf16 %v3975
    %v4280 = vunpack.c.h.s8.bf16 %v3976
    %v4281 = vunpack.c.h.s8.bf16 %v3977
    %v4282 = vunpack.c.h.s8.bf16 %v3978
    %v4283 = vunpack.c.h.s8.bf16 %v3979
    %v4284 = vunpack.c.h.s8.bf16 %v3980
    %v4285 = vunpack.c.l.s8.bf16 %v3981
    %v4286 = vunpack.c.l.s8.bf16 %v3982
    %v4287 = vunpack.c.l.s8.bf16 %v3983
    %v4288 = vunpack.c.l.s8.bf16 %v3984
    %v4289 = vunpack.c.l.s8.bf16 %v3985
    %v4290 = vunpack.c.l.s8.bf16 %v3986
    %v4291 = vunpack.c.l.s8.bf16 %v3987
    %v4292 = vunpack.c.l.s8.bf16 %v3988
    %v4293 = vunpack.c.h.s8.bf16 %v3981
    %v4294 = vunpack.c.h.s8.bf16 %v3982
    %v4295 = vunpack.c.h.s8.bf16 %v3983
    %v4296 = vunpack.c.h.s8.bf16 %v3984
    %v4297 = vunpack.c.h.s8.bf16 %v3985
    %v4298 = vunpack.c.h.s8.bf16 %v3986
    %v4299 = vunpack.c.h.s8.bf16 %v3987
    %v4300 = vunpack.c.h.s8.bf16 %v3988
    %v4301 = vunpack.c.l.s8.bf16 %v3989
    %v4302 = vunpack.c.l.s8.bf16 %v3990
    %v4303 = vunpack.c.l.s8.bf16 %v3991
    %v4304 = vunpack.c.l.s8.bf16 %v3992
    %v4305 = vunpack.c.l.s8.bf16 %v3993
    %v4306 = vunpack.c.l.s8.bf16 %v3994
    %v4307 = vunpack.c.l.s8.bf16 %v3995
    %v4308 = vunpack.c.l.s8.bf16 %v3996
    %v4309 = vunpack.c.h.s8.bf16 %v3989
    %v4310 = vunpack.c.h.s8.bf16 %v3990
    %v4311 = vunpack.c.h.s8.bf16 %v3991
    %v4312 = vunpack.c.h.s8.bf16 %v3992
    %v4313 = vunpack.c.h.s8.bf16 %v3993
    %v4314 = vunpack.c.h.s8.bf16 %v3994
    %v4315 = vunpack.c.h.s8.bf16 %v3995
    %v4316 = vunpack.c.h.s8.bf16 %v3996
    %v4317 = vunpack.c.l.s8.bf16 %v3997
    %v4318 = vunpack.c.l.s8.bf16 %v3998
    %v4319 = vunpack.c.l.s8.bf16 %v3999
    %v4320 = vunpack.c.l.s8.bf16 %v4000
    %v4321 = vunpack.c.l.s8.bf16 %v4001
    %v4322 = vunpack.c.l.s8.bf16 %v4002
    %v4323 = vunpack.c.l.s8.bf16 %v4003
    %v4324 = vunpack.c.l.s8.bf16 %v4004
    %v4325 = vunpack.c.h.s8.bf16 %v3997
    %v4326 = vunpack.c.h.s8.bf16 %v3998
    %v4327 = vunpack.c.h.s8.bf16 %v3999
    %v4328 = vunpack.c.h.s8.bf16 %v4000
    %v4329 = vunpack.c.h.s8.bf16 %v4001
    %v4330 = vunpack.c.h.s8.bf16 %v4002
    %v4331 = vunpack.c.h.s8.bf16 %v4003
    %v4332 = vunpack.c.h.s8.bf16 %v4004
    %v4333 = vunpack.c.l.s8.bf16 %v4005
    %v4334 = vunpack.c.l.s8.bf16 %v4006
    %v4335 = vunpack.c.l.s8.bf16 %v4007
    %v4336 = vunpack.c.l.s8.bf16 %v4008
    %v4337 = vunpack.c.l.s8.bf16 %v4009
    %v4338 = vunpack.c.l.s8.bf16 %v4010
    %v4339 = vunpack.c.l.s8.bf16 %v4011
    %v4340 = vunpack.c.l.s8.bf16 %v4012
    %v4341 = vunpack.c.h.s8.bf16 %v4005
    %v4342 = vunpack.c.h.s8.bf16 %v4006
    %v4343 = vunpack.c.h.s8.bf16 %v4007
    %v4344 = vunpack.c.h.s8.bf16 %v4008
    %v4345 = vunpack.c.h.s8.bf16 %v4009
    %v4346 = vunpack.c.h.s8.bf16 %v4010
    %v4347 = vunpack.c.h.s8.bf16 %v4011
    %v4348 = vunpack.c.h.s8.bf16 %v4012
    %v4349 = vunpack.c.l.s8.bf16 %v4013
    %v4350 = vunpack.c.l.s8.bf16 %v4014
    %v4351 = vunpack.c.l.s8.bf16 %v4015
    %v4352 = vunpack.c.l.s8.bf16 %v4016
    %v4353 = vunpack.c.l.s8.bf16 %v4017
    %v4354 = vunpack.c.l.s8.bf16 %v4018
    %v4355 = vunpack.c.l.s8.bf16 %v4019
    %v4356 = vunpack.c.l.s8.bf16 %v4020
    %v4357 = vunpack.c.h.s8.bf16 %v4013
    %v4358 = vunpack.c.h.s8.bf16 %v4014
    %v4359 = vunpack.c.h.s8.bf16 %v4015
    %v4360 = vunpack.c.h.s8.bf16 %v4016
    %v4361 = vunpack.c.h.s8.bf16 %v4017
    %v4362 = vunpack.c.h.s8.bf16 %v4018
    %v4363 = vunpack.c.h.s8.bf16 %v4019
    %v4364 = vunpack.c.h.s8.bf16 %v4020
    %v4365 = vunpack.c.l.s8.bf16 %v4021
    %v4366 = vunpack.c.l.s8.bf16 %v4022
    %v4367 = vunpack.c.l.s8.bf16 %v4023
    %v4368 = vunpack.c.l.s8.bf16 %v4024
    %v4369 = vunpack.c.l.s8.bf16 %v4025
    %v4370 = vunpack.c.l.s8.bf16 %v4026
    %v4371 = vunpack.c.l.s8.bf16 %v4027
    %v4372 = vunpack.c.l.s8.bf16 %v4028
    %v4373 = vunpack.c.h.s8.bf16 %v4021
    %v4374 = vunpack.c.h.s8.bf16 %v4022
    %v4375 = vunpack.c.h.s8.bf16 %v4023
    %v4376 = vunpack.c.h.s8.bf16 %v4024
    %v4377 = vunpack.c.h.s8.bf16 %v4025
    %v4378 = vunpack.c.h.s8.bf16 %v4026
    %v4379 = vunpack.c.h.s8.bf16 %v4027
    %v4380 = vunpack.c.h.s8.bf16 %v4028
    %v4381 = vunpack.c.l.s8.bf16 %v4029
    %v4382 = vunpack.c.l.s8.bf16 %v4030
    %v4383 = vunpack.c.l.s8.bf16 %v4031
    %v4384 = vunpack.c.l.s8.bf16 %v4032
    %v4385 = vunpack.c.l.s8.bf16 %v4033
    %v4386 = vunpack.c.l.s8.bf16 %v4034
    %v4387 = vunpack.c.l.s8.bf16 %v4035
    %v4388 = vunpack.c.l.s8.bf16 %v4036
    %v4389 = vunpack.c.h.s8.bf16 %v4029
    %v4390 = vunpack.c.h.s8.bf16 %v4030
    %v4391 = vunpack.c.h.s8.bf16 %v4031
    %v4392 = vunpack.c.h.s8.bf16 %v4032
    %v4393 = vunpack.c.h.s8.bf16 %v4033
    %v4394 = vunpack.c.h.s8.bf16 %v4034
    %v4395 = vunpack.c.h.s8.bf16 %v4035
    %v4396 = vunpack.c.h.s8.bf16 %v4036
    %v4397 = vunpack.c.l.s8.bf16 %v4037
    %v4398 = vunpack.c.l.s8.bf16 %v4038
    %v4399 = vunpack.c.l.s8.bf16 %v4039
    %v4400 = vunpack.c.l.s8.bf16 %v4040
    %v4401 = vunpack.c.l.s8.bf16 %v4041
    %v4402 = vunpack.c.l.s8.bf16 %v4042
    %v4403 = vunpack.c.l.s8.bf16 %v4043
    %v4404 = vunpack.c.l.s8.bf16 %v4044
    %v4405 = vunpack.c.h.s8.bf16 %v4037
    %v4406 = vunpack.c.h.s8.bf16 %v4038
    %v4407 = vunpack.c.h.s8.bf16 %v4039
    %v4408 = vunpack.c.h.s8.bf16 %v4040
    %v4409 = vunpack.c.h.s8.bf16 %v4041
    %v4410 = vunpack.c.h.s8.bf16 %v4042
    %v4411 = vunpack.c.h.s8.bf16 %v4043
    %v4412 = vunpack.c.h.s8.bf16 %v4044
    %v4413 = vunpack.c.l.s8.bf16 %v4045
    %v4414 = vunpack.c.l.s8.bf16 %v4046
    %v4415 = vunpack.c.l.s8.bf16 %v4047
    %v4416 = vunpack.c.l.s8.bf16 %v4048
    %v4417 = vunpack.c.l.s8.bf16 %v4049
    %v4418 = vunpack.c.l.s8.bf16 %v4050
    %v4419 = vunpack.c.l.s8.bf16 %v4051
    %v4420 = vunpack.c.l.s8.bf16 %v4052
    %v4421 = vunpack.c.h.s8.bf16 %v4045
    %v4422 = vunpack.c.h.s8.bf16 %v4046
    %v4423 = vunpack.c.h.s8.bf16 %v4047
    %v4424 = vunpack.c.h.s8.bf16 %v4048
    %v4425 = vunpack.c.h.s8.bf16 %v4049
    %v4426 = vunpack.c.h.s8.bf16 %v4050
    %v4427 = vunpack.c.h.s8.bf16 %v4051
    %v4428 = vunpack.c.h.s8.bf16 %v4052
    %v4429 = vunpack.c.l.s8.bf16 %v4053
    %v4430 = vunpack.c.l.s8.bf16 %v4054
    %v4431 = vunpack.c.l.s8.bf16 %v4055
    %v4432 = vunpack.c.l.s8.bf16 %v4056
    %v4433 = vunpack.c.l.s8.bf16 %v4057
    %v4434 = vunpack.c.l.s8.bf16 %v4058
    %v4435 = vunpack.c.l.s8.bf16 %v4059
    %v4436 = vunpack.c.l.s8.bf16 %v4060
    %v4437 = vunpack.c.h.s8.bf16 %v4053
    %v4438 = vunpack.c.h.s8.bf16 %v4054
    %v4439 = vunpack.c.h.s8.bf16 %v4055
    %v4440 = vunpack.c.h.s8.bf16 %v4056
    %v4441 = vunpack.c.h.s8.bf16 %v4057
    %v4442 = vunpack.c.h.s8.bf16 %v4058
    %v4443 = vunpack.c.h.s8.bf16 %v4059
    %v4444 = vunpack.c.h.s8.bf16 %v4060
    %v4445 = vunpack.c.l.s8.bf16 %v4061
    %v4446 = vunpack.c.l.s8.bf16 %v4062
    %v4447 = vunpack.c.l.s8.bf16 %v4063
    %v4448 = vunpack.c.l.s8.bf16 %v4064
    %v4449 = vunpack.c.l.s8.bf16 %v4065
    %v4450 = vunpack.c.l.s8.bf16 %v4066
    %v4451 = vunpack.c.l.s8.bf16 %v4067
    %v4452 = vunpack.c.l.s8.bf16 %v4068
    %v4453 = vunpack.c.h.s8.bf16 %v4061
    %v4454 = vunpack.c.h.s8.bf16 %v4062
    %v4455 = vunpack.c.h.s8.bf16 %v4063
    %v4456 = vunpack.c.h.s8.bf16 %v4064
    %v4457 = vunpack.c.h.s8.bf16 %v4065
    %v4458 = vunpack.c.h.s8.bf16 %v4066
    %v4459 = vunpack.c.h.s8.bf16 %v4067
    %v4460 = vunpack.c.h.s8.bf16 %v4068
    %v4461 = vunpack.c.l.s8.bf16 %v4069
    %v4462 = vunpack.c.l.s8.bf16 %v4070
    %v4463 = vunpack.c.l.s8.bf16 %v4071
    %v4464 = vunpack.c.l.s8.bf16 %v4072
    %v4465 = vunpack.c.l.s8.bf16 %v4073
    %v4466 = vunpack.c.l.s8.bf16 %v4074
    %v4467 = vunpack.c.l.s8.bf16 %v4075
    %v4468 = vunpack.c.l.s8.bf16 %v4076
    %v4469 = vunpack.c.h.s8.bf16 %v4069
    %v4470 = vunpack.c.h.s8.bf16 %v4070
    %v4471 = vunpack.c.h.s8.bf16 %v4071
    %v4472 = vunpack.c.h.s8.bf16 %v4072
    %v4473 = vunpack.c.h.s8.bf16 %v4073
    %v4474 = vunpack.c.h.s8.bf16 %v4074
    %v4475 = vunpack.c.h.s8.bf16 %v4075
    %v4476 = vunpack.c.h.s8.bf16 %v4076
    %v4477 = vunpack.c.l.s8.bf16 %v4077
    %v4478 = vunpack.c.l.s8.bf16 %v4078
    %v4479 = vunpack.c.l.s8.bf16 %v4079
    %v4480 = vunpack.c.l.s8.bf16 %v4080
    %v4481 = vunpack.c.l.s8.bf16 %v4081
    %v4482 = vunpack.c.l.s8.bf16 %v4082
    %v4483 = vunpack.c.l.s8.bf16 %v4083
    %v4484 = vunpack.c.l.s8.bf16 %v4084
    %v4485 = vunpack.c.h.s8.bf16 %v4077
    %v4486 = vunpack.c.h.s8.bf16 %v4078
    %v4487 = vunpack.c.h.s8.bf16 %v4079
    %v4488 = vunpack.c.h.s8.bf16 %v4080
    %v4489 = vunpack.c.h.s8.bf16 %v4081
    %v4490 = vunpack.c.h.s8.bf16 %v4082
    %v4491 = vunpack.c.h.s8.bf16 %v4083
    %v4492 = vunpack.c.h.s8.bf16 %v4084
    %v4493 = vunpack.c.l.s8.bf16 %v4085
    %v4494 = vunpack.c.l.s8.bf16 %v4086
    %v4495 = vunpack.c.l.s8.bf16 %v4087
    %v4496 = vunpack.c.l.s8.bf16 %v4088
    %v4497 = vunpack.c.l.s8.bf16 %v4089
    %v4498 = vunpack.c.l.s8.bf16 %v4090
    %v4499 = vunpack.c.l.s8.bf16 %v4091
    %v4500 = vunpack.c.l.s8.bf16 %v4092
    %v4501 = vunpack.c.h.s8.bf16 %v4085
    %v4502 = vunpack.c.h.s8.bf16 %v4086
    %v4503 = vunpack.c.h.s8.bf16 %v4087
    %v4504 = vunpack.c.h.s8.bf16 %v4088
    %v4505 = vunpack.c.h.s8.bf16 %v4089
    %v4506 = vunpack.c.h.s8.bf16 %v4090
    %v4507 = vunpack.c.h.s8.bf16 %v4091
    %v4508 = vunpack.c.h.s8.bf16 %v4092
    %v4509 = vunpack.c.l.s8.bf16 %v4093
    %v4510 = vunpack.c.l.s8.bf16 %v4094
    %v4511 = vunpack.c.l.s8.bf16 %v4095
    %v4512 = vunpack.c.l.s8.bf16 %v4096
    %v4513 = vunpack.c.l.s8.bf16 %v4097
    %v4514 = vunpack.c.l.s8.bf16 %v4098
    %v4515 = vunpack.c.l.s8.bf16 %v4099
    %v4516 = vunpack.c.l.s8.bf16 %v4100
    %v4517 = vunpack.c.h.s8.bf16 %v4093
    %v4518 = vunpack.c.h.s8.bf16 %v4094
    %v4519 = vunpack.c.h.s8.bf16 %v4095
    %v4520 = vunpack.c.h.s8.bf16 %v4096
    %v4521 = vunpack.c.h.s8.bf16 %v4097
    %v4522 = vunpack.c.h.s8.bf16 %v4098
    %v4523 = vunpack.c.h.s8.bf16 %v4099
    %v4524 = vunpack.c.h.s8.bf16 %v4100
    %v4525 = vunpack.c.l.s8.bf16 %v4101
    %v4526 = vunpack.c.l.s8.bf16 %v4102
    %v4527 = vunpack.c.l.s8.bf16 %v4103
    %v4528 = vunpack.c.l.s8.bf16 %v4104
    %v4529 = vunpack.c.l.s8.bf16 %v4105
    %v4530 = vunpack.c.l.s8.bf16 %v4106
    %v4531 = vunpack.c.l.s8.bf16 %v4107
    %v4532 = vunpack.c.l.s8.bf16 %v4108
    %v4533 = vunpack.c.h.s8.bf16 %v4101
    %v4534 = vunpack.c.h.s8.bf16 %v4102
    %v4535 = vunpack.c.h.s8.bf16 %v4103
    %v4536 = vunpack.c.h.s8.bf16 %v4104
    %v4537 = vunpack.c.h.s8.bf16 %v4105
    %v4538 = vunpack.c.h.s8.bf16 %v4106
    %v4539 = vunpack.c.h.s8.bf16 %v4107
    %v4540 = vunpack.c.h.s8.bf16 %v4108
    %v4541 = vunpack.c.l.s8.bf16 %v4109
    %v4542 = vunpack.c.l.s8.bf16 %v4110
    %v4543 = vunpack.c.l.s8.bf16 %v4111
    %v4544 = vunpack.c.l.s8.bf16 %v4112
    %v4545 = vunpack.c.l.s8.bf16 %v4113
    %v4546 = vunpack.c.l.s8.bf16 %v4114
    %v4547 = vunpack.c.l.s8.bf16 %v4115
    %v4548 = vunpack.c.l.s8.bf16 %v4116
    %v4549 = vunpack.c.h.s8.bf16 %v4109
    %v4550 = vunpack.c.h.s8.bf16 %v4110
    %v4551 = vunpack.c.h.s8.bf16 %v4111
    %v4552 = vunpack.c.h.s8.bf16 %v4112
    %v4553 = vunpack.c.h.s8.bf16 %v4113
    %v4554 = vunpack.c.h.s8.bf16 %v4114
    %v4555 = vunpack.c.h.s8.bf16 %v4115
    %v4556 = vunpack.c.h.s8.bf16 %v4116
    %v4557 = vunpack.c.l.s8.bf16 %v4117
    %v4558 = vunpack.c.l.s8.bf16 %v4118
    %v4559 = vunpack.c.l.s8.bf16 %v4119
    %v4560 = vunpack.c.l.s8.bf16 %v4120
    %v4561 = vunpack.c.l.s8.bf16 %v4121
    %v4562 = vunpack.c.l.s8.bf16 %v4122
    %v4563 = vunpack.c.l.s8.bf16 %v4123
    %v4564 = vunpack.c.l.s8.bf16 %v4124
    %v4565 = vunpack.c.h.s8.bf16 %v4117
    %v4566 = vunpack.c.h.s8.bf16 %v4118
    %v4567 = vunpack.c.h.s8.bf16 %v4119
    %v4568 = vunpack.c.h.s8.bf16 %v4120
    %v4569 = vunpack.c.h.s8.bf16 %v4121
    %v4570 = vunpack.c.h.s8.bf16 %v4122
    %v4571 = vunpack.c.h.s8.bf16 %v4123
    %v4572 = vunpack.c.h.s8.bf16 %v4124
    %v4573 = vunpack.c.l.s8.bf16 %v4125
    %v4574 = vunpack.c.l.s8.bf16 %v4126
    %v4575 = vunpack.c.l.s8.bf16 %v4127
    %v4576 = vunpack.c.l.s8.bf16 %v4128
    %v4577 = vunpack.c.l.s8.bf16 %v4129
    %v4578 = vunpack.c.l.s8.bf16 %v4130
    %v4579 = vunpack.c.l.s8.bf16 %v4131
    %v4580 = vunpack.c.l.s8.bf16 %v4132
    %v4581 = vunpack.c.h.s8.bf16 %v4125
    %v4582 = vunpack.c.h.s8.bf16 %v4126
    %v4583 = vunpack.c.h.s8.bf16 %v4127
    %v4584 = vunpack.c.h.s8.bf16 %v4128
    %v4585 = vunpack.c.h.s8.bf16 %v4129
    %v4586 = vunpack.c.h.s8.bf16 %v4130
    %v4587 = vunpack.c.h.s8.bf16 %v4131
    %v4588 = vunpack.c.h.s8.bf16 %v4132
    %v4589 = vunpack.c.l.s8.bf16 %v4133
    %v4590 = vunpack.c.l.s8.bf16 %v4134
    %v4591 = vunpack.c.l.s8.bf16 %v4135
    %v4592 = vunpack.c.l.s8.bf16 %v4136
    %v4593 = vunpack.c.l.s8.bf16 %v4137
    %v4594 = vunpack.c.l.s8.bf16 %v4138
    %v4595 = vunpack.c.l.s8.bf16 %v4139
    %v4596 = vunpack.c.l.s8.bf16 %v4140
    %v4597 = vunpack.c.h.s8.bf16 %v4133
    %v4598 = vunpack.c.h.s8.bf16 %v4134
    %v4599 = vunpack.c.h.s8.bf16 %v4135
    %v4600 = vunpack.c.h.s8.bf16 %v4136
    %v4601 = vunpack.c.h.s8.bf16 %v4137
    %v4602 = vunpack.c.h.s8.bf16 %v4138
    %v4603 = vunpack.c.h.s8.bf16 %v4139
    %v4604 = vunpack.c.h.s8.bf16 %v4140
    %v4605 = vunpack.c.l.s8.bf16 %v4141
    %v4606 = vunpack.c.l.s8.bf16 %v4142
    %v4607 = vunpack.c.l.s8.bf16 %v4143
    %v4608 = vunpack.c.l.s8.bf16 %v4144
    %v4609 = vunpack.c.l.s8.bf16 %v4145
    %v4610 = vunpack.c.l.s8.bf16 %v4146
    %v4611 = vunpack.c.l.s8.bf16 %v4147
    %v4612 = vunpack.c.l.s8.bf16 %v4148
    %v4613 = vunpack.c.h.s8.bf16 %v4141
    %v4614 = vunpack.c.h.s8.bf16 %v4142
    %v4615 = vunpack.c.h.s8.bf16 %v4143
    %v4616 = vunpack.c.h.s8.bf16 %v4144
    %v4617 = vunpack.c.h.s8.bf16 %v4145
    %v4618 = vunpack.c.h.s8.bf16 %v4146
    %v4619 = vunpack.c.h.s8.bf16 %v4147
    %v4620 = vunpack.c.h.s8.bf16 %v4148
    %v4621 = vunpack.c.l.s8.bf16 %v4149
    %v4622 = vunpack.c.l.s8.bf16 %v4150
    %v4623 = vunpack.c.l.s8.bf16 %v4151
    %v4624 = vunpack.c.l.s8.bf16 %v4152
    %v4625 = vunpack.c.l.s8.bf16 %v4153
    %v4626 = vunpack.c.l.s8.bf16 %v4154
    %v4627 = vunpack.c.l.s8.bf16 %v4155
    %v4628 = vunpack.c.l.s8.bf16 %v4156
    %v4629 = vunpack.c.h.s8.bf16 %v4149
    %v4630 = vunpack.c.h.s8.bf16 %v4150
    %v4631 = vunpack.c.h.s8.bf16 %v4151
    %v4632 = vunpack.c.h.s8.bf16 %v4152
    %v4633 = vunpack.c.h.s8.bf16 %v4153
    %v4634 = vunpack.c.h.s8.bf16 %v4154
    %v4635 = vunpack.c.h.s8.bf16 %v4155
    %v4636 = vunpack.c.h.s8.bf16 %v4156
    %v4637 = vunpack.c.l.s8.bf16 %v4157
    %v4638 = vunpack.c.l.s8.bf16 %v4158
    %v4639 = vunpack.c.l.s8.bf16 %v4159
    %v4640 = vunpack.c.l.s8.bf16 %v4160
    %v4641 = vunpack.c.l.s8.bf16 %v4161
    %v4642 = vunpack.c.l.s8.bf16 %v4162
    %v4643 = vunpack.c.l.s8.bf16 %v4163
    %v4644 = vunpack.c.l.s8.bf16 %v4164
    %v4645 = vunpack.c.h.s8.bf16 %v4157
    %v4646 = vunpack.c.h.s8.bf16 %v4158
    %v4647 = vunpack.c.h.s8.bf16 %v4159
    %v4648 = vunpack.c.h.s8.bf16 %v4160
    %v4649 = vunpack.c.h.s8.bf16 %v4161
    %v4650 = vunpack.c.h.s8.bf16 %v4162
    %v4651 = vunpack.c.h.s8.bf16 %v4163
    %v4652 = vunpack.c.h.s8.bf16 %v4164
    %v4653 = vunpack.c.l.s8.bf16 %v4165
    %v4654 = vunpack.c.l.s8.bf16 %v4166
    %v4655 = vunpack.c.l.s8.bf16 %v4167
    %v4656 = vunpack.c.l.s8.bf16 %v4168
    %v4657 = vunpack.c.l.s8.bf16 %v4169
    %v4658 = vunpack.c.l.s8.bf16 %v4170
    %v4659 = vunpack.c.l.s8.bf16 %v4171
    %v4660 = vunpack.c.l.s8.bf16 %v4172
    %v4661 = vunpack.c.h.s8.bf16 %v4165
    %v4662 = vunpack.c.h.s8.bf16 %v4166
    %v4663 = vunpack.c.h.s8.bf16 %v4167
    %v4664 = vunpack.c.h.s8.bf16 %v4168
    %v4665 = vunpack.c.h.s8.bf16 %v4169
    %v4666 = vunpack.c.h.s8.bf16 %v4170
    %v4667 = vunpack.c.h.s8.bf16 %v4171
    %v4668 = vunpack.c.h.s8.bf16 %v4172
    %v4669 = vunpack.c.l.s8.bf16 %v4173
    %v4670 = vunpack.c.l.s8.bf16 %v4174
    %v4671 = vunpack.c.l.s8.bf16 %v4175
    %v4672 = vunpack.c.l.s8.bf16 %v4176
    %v4673 = vunpack.c.l.s8.bf16 %v4177
    %v4674 = vunpack.c.l.s8.bf16 %v4178
    %v4675 = vunpack.c.l.s8.bf16 %v4179
    %v4676 = vunpack.c.l.s8.bf16 %v4180
    %v4677 = vunpack.c.h.s8.bf16 %v4173
    %v4678 = vunpack.c.h.s8.bf16 %v4174
    %v4679 = vunpack.c.h.s8.bf16 %v4175
    %v4680 = vunpack.c.h.s8.bf16 %v4176
    %v4681 = vunpack.c.h.s8.bf16 %v4177
    %v4682 = vunpack.c.h.s8.bf16 %v4178
    %v4683 = vunpack.c.h.s8.bf16 %v4179
    %v4684 = vunpack.c.h.s8.bf16 %v4180
    %v4685 = vunpack.c.l.s8.bf16 %v4181
    %v4686 = vunpack.c.l.s8.bf16 %v4182
    %v4687 = vunpack.c.l.s8.bf16 %v4183
    %v4688 = vunpack.c.l.s8.bf16 %v4184
    %v4689 = vunpack.c.l.s8.bf16 %v4185
    %v4690 = vunpack.c.l.s8.bf16 %v4186
    %v4691 = vunpack.c.l.s8.bf16 %v4187
    %v4692 = vunpack.c.l.s8.bf16 %v4188
    %v4693 = vunpack.c.h.s8.bf16 %v4181
    %v4694 = vunpack.c.h.s8.bf16 %v4182
    %v4695 = vunpack.c.h.s8.bf16 %v4183
    %v4696 = vunpack.c.h.s8.bf16 %v4184
    %v4697 = vunpack.c.h.s8.bf16 %v4185
    %v4698 = vunpack.c.h.s8.bf16 %v4186
    %v4699 = vunpack.c.h.s8.bf16 %v4187
    %v4700 = vunpack.c.h.s8.bf16 %v4188
    %4701 = vmatprep.subr.bf16.mxu0 %v4190
    %4702 = vmatpush1.bf16.msra.mxu0 %v4189
    %4703 = vmatprep.subr.bf16.mxu0 %v4198
    %4704 = vmatpush1.bf16.msra.mxu0 %v4197
    %4705 = vmatprep.subr.bf16.mxu0 %v4206
    %4706 = vmatpush1.bf16.msra.mxu0 %v4205
    %4707 = vmatprep.subr.bf16.mxu0 %v4214
    %4708 = vmatpush1.bf16.msra.mxu0 %v4213
    %4709 = vmatprep.subr.bf16.mxu0 %v4222
    %4710 = vmatpush1.bf16.msra.mxu0 %v4221
    %4711 = vmatprep.subr.bf16.mxu0 %v4230
    %4712 = vmatpush1.bf16.msra.mxu0 %v4229
    %4713 = vmatprep.subr.bf16.mxu0 %v4238
    %4714 = vmatpush1.bf16.msra.mxu0 %v4237
    %4715 = vmatprep.subr.bf16.mxu0 %v4246
    %4716 = vmatpush1.bf16.msra.mxu0 %v4245
    %4717 = vmatprep.subr.bf16.mxu0 %v4254
    %4718 = vmatpush1.bf16.msra.mxu0 %v4253
    %4719 = vmatprep.subr.bf16.mxu0 %v4262
    %4720 = vmatpush1.bf16.msra.mxu0 %v4261
    %4721 = vmatprep.subr.bf16.mxu0 %v4270
    %4722 = vmatpush1.bf16.msra.mxu0 %v4269
    %4723 = vmatprep.subr.bf16.mxu0 %v4278
    %4724 = vmatpush1.bf16.msra.mxu0 %v4277
    %4725 = vmatprep.subr.bf16.mxu0 %v4286
    %4726 = vmatpush1.bf16.msra.mxu0 %v4285
    %4727 = vmatprep.subr.bf16.mxu0 %v4294
    %4728 = vmatpush1.bf16.msra.mxu0 %v4293
    %4729 = vmatprep.subr.bf16.mxu0 %v4302
    %4730 = vmatpush1.bf16.msra.mxu0 %v4301
    %4731 = vmatprep.subr.bf16.mxu0 %v4310
    %4732 = vmatpush1.bf16.msra.mxu0 %v4309
    %4733 = vmatprep.mubr.bf16.mxu0 %v641
    %4734 = vmatmul.mubr.bf16.gmra.mrb[0].mxu0 %v640
    %v4735 = vpop.f32.mrb[0].mxu0
    %v4736 = vadd.f32 0.0, %v4735
    %v4737 = vpop.f32.mrb[0].mxu0
    %v4738 = vadd.f32 0.0, %v4737
    %v4739 = vpop.f32.mrb[0].mxu0
    %v4740 = vpop.f32.mrb[0].mxu0
    %4741 = vdwg.mxu0
    %4742 = vmatprep.subr.bf16.mxu0 %v4318
    %4743 = vmatpush1.bf16.msra.mxu0 %v4317
    %4744 = vmatprep.subr.bf16.mxu0 %v4326
    %4745 = vmatpush1.bf16.msra.mxu0 %v4325
    %4746 = vmatprep.subr.bf16.mxu0 %v4334
    %4747 = vmatpush1.bf16.msra.mxu0 %v4333
    %4748 = vmatprep.subr.bf16.mxu0 %v4342
    %4749 = vmatpush1.bf16.msra.mxu0 %v4341
    %4750 = vmatprep.subr.bf16.mxu0 %v4350
    %4751 = vmatpush1.bf16.msra.mxu0 %v4349
    %4752 = vmatprep.subr.bf16.mxu0 %v4358
    %4753 = vmatpush1.bf16.msra.mxu0 %v4357
    %4754 = vmatprep.subr.bf16.mxu0 %v4366
    %4755 = vmatpush1.bf16.msra.mxu0 %v4365
    %4756 = vmatprep.subr.bf16.mxu0 %v4374
    %4757 = vmatpush1.bf16.msra.mxu0 %v4373
    %4758 = vmatprep.subr.bf16.mxu0 %v4382
    %4759 = vmatpush1.bf16.msra.mxu0 %v4381
    %4760 = vmatprep.subr.bf16.mxu0 %v4390
    %4761 = vmatpush1.bf16.msra.mxu0 %v4389
    %4762 = vmatprep.subr.bf16.mxu0 %v4398
    %4763 = vmatpush1.bf16.msra.mxu0 %v4397
    %4764 = vmatprep.subr.bf16.mxu0 %v4406
    %4765 = vmatpush1.bf16.msra.mxu0 %v4405
    %4766 = vmatprep.subr.bf16.mxu0 %v4414
    %4767 = vmatpush1.bf16.msra.mxu0 %v4413
    %4768 = vmatprep.subr.bf16.mxu0 %v4422
    %4769 = vmatpush1.bf16.msra.mxu0 %v4421
    %4770 = vmatprep.subr.bf16.mxu0 %v4430
    %4771 = vmatpush1.bf16.msra.mxu0 %v4429
    %4772 = vmatprep.subr.bf16.mxu0 %v4438
    %4773 = vmatpush1.bf16.msra.mxu0 %v4437
    %4774 = vmatprep.mubr.bf16.mxu0 %v643
    %4775 = vmatmul.mubr.bf16.gmra.mrb[0].mxu0 %v642
    %v4776 = vpop.f32.mrb[0].mxu0
    %v4777 = vadd.f32 %v4736, %v4776
    %v4778 = vpop.f32.mrb[0].mxu0
    %v4779 = vadd.f32 %v4738, %v4778
    %v4780 = vpop.f32.mrb[0].mxu0
    %v4781 = vpop.f32.mrb[0].mxu0
    %4782 = vdwg.mxu0
    %4783 = vmatprep.subr.bf16.mxu0 %v4446
    %4784 = vmatpush1.bf16.msra.mxu0 %v4445
    %4785 = vmatprep.subr.bf16.mxu0 %v4454
    %4786 = vmatpush1.bf16.msra.mxu0 %v4453
    %4787 = vmatprep.subr.bf16.mxu0 %v4462
    %4788 = vmatpush1.bf16.msra.mxu0 %v4461
    %4789 = vmatprep.subr.bf16.mxu0 %v4470
    %4790 = vmatpush1.bf16.msra.mxu0 %v4469
    %4791 = vmatprep.subr.bf16.mxu0 %v4478
    %4792 = vmatpush1.bf16.msra.mxu0 %v4477
    %4793 = vmatprep.subr.bf16.mxu0 %v4486
    %4794 = vmatpush1.bf16.msra.mxu0 %v4485
    %4795 = vmatprep.subr.bf16.mxu0 %v4494
    %4796 = vmatpush1.bf16.msra.mxu0 %v4493
    %4797 = vmatprep.subr.bf16.mxu0 %v4502
    %4798 = vmatpush1.bf16.msra.mxu0 %v4501
    %4799 = vmatprep.subr.bf16.mxu0 %v4510
    %4800 = vmatpush1.bf16.msra.mxu0 %v4509
    %4801 = vmatprep.subr.bf16.mxu0 %v4518
    %4802 = vmatpush1.bf16.msra.mxu0 %v4517
    %4803 = vmatprep.subr.bf16.mxu0 %v4526
    %4804 = vmatpush1.bf16.msra.mxu0 %v4525
    %4805 = vmatprep.subr.bf16.mxu0 %v4534
    %4806 = vmatpush1.bf16.msra.mxu0 %v4533
    %4807 = vmatprep.subr.bf16.mxu0 %v4542
    %4808 = vmatpush1.bf16.msra.mxu0 %v4541
    %4809 = vmatprep.subr.bf16.mxu0 %v4550
    %4810 = vmatpush1.bf16.msra.mxu0 %v4549
    %4811 = vmatprep.subr.bf16.mxu0 %v4558
    %4812 = vmatpush1.bf16.msra.mxu0 %v4557
    %4813 = vmatprep.subr.bf16.mxu0 %v4566
    %4814 = vmatpush1.bf16.msra.mxu0 %v4565
    %4815 = vmatprep.mubr.bf16.mxu0 %v645
    %4816 = vmatmul.mubr.bf16.gmra.mrb[0].mxu0 %v644
    %v4817 = vpop.f32.mrb[0].mxu0
    %v4818 = vadd.f32 %v4777, %v4817
    %v4819 = vpop.f32.mrb[0].mxu0
    %v4820 = vadd.f32 %v4779, %v4819
    %v4821 = vpop.f32.mrb[0].mxu0
    %v4822 = vpop.f32.mrb[0].mxu0
    %4823 = vdwg.mxu0
    %4824 = vmatprep.subr.bf16.mxu0 %v4574
    %4825 = vmatpush1.bf16.msra.mxu0 %v4573
    %4826 = vmatprep.subr.bf16.mxu0 %v4582
    %4827 = vmatpush1.bf16.msra.mxu0 %v4581
    %4828 = vmatprep.subr.bf16.mxu0 %v4590
    %4829 = vmatpush1.bf16.msra.mxu0 %v4589
    %4830 = vmatprep.subr.bf16.mxu0 %v4598
    %4831 = vmatpush1.bf16.msra.mxu0 %v4597
    %4832 = vmatprep.subr.bf16.mxu0 %v4606
    %4833 = vmatpush1.bf16.msra.mxu0 %v4605
    %4834 = vmatprep.subr.bf16.mxu0 %v4614
    %4835 = vmatpush1.bf16.msra.mxu0 %v4613
    %4836 = vmatprep.subr.bf16.mxu0 %v4622
    %4837 = vmatpush1.bf16.msra.mxu0 %v4621
    %4838 = vmatprep.subr.bf16.mxu0 %v4630
    %4839 = vmatpush1.bf16.msra.mxu0 %v4629
    %4840 = vmatprep.subr.bf16.mxu0 %v4638
    %4841 = vmatpush1.bf16.msra.mxu0 %v4637
    %4842 = vmatprep.subr.bf16.mxu0 %v4646
    %4843 = vmatpush1.bf16.msra.mxu0 %v4645
    %4844 = vmatprep.subr.bf16.mxu0 %v4654
    %4845 = vmatpush1.bf16.msra.mxu0 %v4653
    %4846 = vmatprep.subr.bf16.mxu0 %v4662
    %4847 = vmatpush1.bf16.msra.mxu0 %v4661
    %4848 = vmatprep.subr.bf16.mxu0 %v4670
    %4849 = vmatpush1.bf16.msra.mxu0 %v4669
    %4850 = vmatprep.subr.bf16.mxu0 %v4678
    %4851 = vmatpush1.bf16.msra.mxu0 %v4677
    %4852 = vmatprep.subr.bf16.mxu0 %v4686
    %4853 = vmatpush1.bf16.msra.mxu0 %v4685
    %4854 = vmatprep.subr.bf16.mxu0 %v4694
    %4855 = vmatpush1.bf16.msra.mxu0 %v4693
    %4856 = vmatprep.mubr.bf16.mxu0 %v647
    %4857 = vmatmul.mubr.bf16.gmra.mrb[0].mxu0 %v646
    %v4858 = vpop.f32.mrb[0].mxu0
    %v4859 = vadd.f32 %v4818, %v4858
    %v4860 = vpop.f32.mrb[0].mxu0
    %v4861 = vadd.f32 %v4820, %v4860
    %v4862 = vpop.f32.mrb[0].mxu0
    %v4863 = vpop.f32.mrb[0].mxu0
    %4864 = vdwg.mxu0
    %4865 = vmatprep.subr.bf16.mxu0 %v4192
    %4866 = vmatpush1.bf16.msra.mxu0 %v4191
    %4867 = vmatprep.subr.bf16.mxu0 %v4200
    %4868 = vmatpush1.bf16.msra.mxu0 %v4199
    %4869 = vmatprep.subr.bf16.mxu0 %v4208
    %4870 = vmatpush1.bf16.msra.mxu0 %v4207
    %4871 = vmatprep.subr.bf16.mxu0 %v4216
    %4872 = vmatpush1.bf16.msra.mxu0 %v4215
    %4873 = vmatprep.subr.bf16.mxu0 %v4224
    %4874 = vmatpush1.bf16.msra.mxu0 %v4223
    %4875 = vmatprep.subr.bf16.mxu0 %v4232
    %4876 = vmatpush1.bf16.msra.mxu0 %v4231
    %4877 = vmatprep.subr.bf16.mxu0 %v4240
    %4878 = vmatpush1.bf16.msra.mxu0 %v4239
    %4879 = vmatprep.subr.bf16.mxu0 %v4248
    %4880 = vmatpush1.bf16.msra.mxu0 %v4247
    %4881 = vmatprep.subr.bf16.mxu0 %v4256
    %4882 = vmatpush1.bf16.msra.mxu0 %v4255
    %4883 = vmatprep.subr.bf16.mxu0 %v4264
    %4884 = vmatpush1.bf16.msra.mxu0 %v4263
    %4885 = vmatprep.subr.bf16.mxu0 %v4272
    %4886 = vmatpush1.bf16.msra.mxu0 %v4271
    %4887 = vmatprep.subr.bf16.mxu0 %v4280
    %4888 = vmatpush1.bf16.msra.mxu0 %v4279
    %4889 = vmatprep.subr.bf16.mxu0 %v4288
    %4890 = vmatpush1.bf16.msra.mxu0 %v4287
    %4891 = vmatprep.subr.bf16.mxu0 %v4296
    %4892 = vmatpush1.bf16.msra.mxu0 %v4295
    %4893 = vmatprep.subr.bf16.mxu0 %v4304
    %4894 = vmatpush1.bf16.msra.mxu0 %v4303
    %4895 = vmatprep.subr.bf16.mxu0 %v4312
    %4896 = vmatpush1.bf16.msra.mxu0 %v4311
    %4897 = vmatprep.mubr.bf16.mxu0 %v641
    %4898 = vmatmul.mubr.bf16.gmra.mrb[0].mxu0 %v640
    %v4899 = vpop.f32.mrb[0].mxu0
    %v4900 = vadd.f32 0.0, %v4899
    %v4901 = vpop.f32.mrb[0].mxu0
    %v4902 = vadd.f32 0.0, %v4901
    %v4903 = vpop.f32.mrb[0].mxu0
    %v4904 = vpop.f32.mrb[0].mxu0
    %4905 = vdwg.mxu0
    %4906 = vmatprep.subr.bf16.mxu0 %v4320
    %4907 = vmatpush1.bf16.msra.mxu0 %v4319
    %4908 = vmatprep.subr.bf16.mxu0 %v4328
    %4909 = vmatpush1.bf16.msra.mxu0 %v4327
    %4910 = vmatprep.subr.bf16.mxu0 %v4336
    %4911 = vmatpush1.bf16.msra.mxu0 %v4335
    %4912 = vmatprep.subr.bf16.mxu0 %v4344
    %4913 = vmatpush1.bf16.msra.mxu0 %v4343
    %4914 = vmatprep.subr.bf16.mxu0 %v4352
    %4915 = vmatpush1.bf16.msra.mxu0 %v4351
    %4916 = vmatprep.subr.bf16.mxu0 %v4360
    %4917 = vmatpush1.bf16.msra.mxu0 %v4359
    %4918 = vmatprep.subr.bf16.mxu0 %v4368
    %4919 = vmatpush1.bf16.msra.mxu0 %v4367
    %4920 = vmatprep.subr.bf16.mxu0 %v4376
    %4921 = vmatpush1.bf16.msra.mxu0 %v4375
    %4922 = vmatprep.subr.bf16.mxu0 %v4384
    %4923 = vmatpush1.bf16.msra.mxu0 %v4383
    %4924 = vmatprep.subr.bf16.mxu0 %v4392
    %4925 = vmatpush1.bf16.msra.mxu0 %v4391
    %4926 = vmatprep.subr.bf16.mxu0 %v4400
    %4927 = vmatpush1.bf16.msra.mxu0 %v4399
    %4928 = vmatprep.subr.bf16.mxu0 %v4408
    %4929 = vmatpush1.bf16.msra.mxu0 %v4407
    %4930 = vmatprep.subr.bf16.mxu0 %v4416
    %4931 = vmatpush1.bf16.msra.mxu0 %v4415
    %4932 = vmatprep.subr.bf16.mxu0 %v4424
    %4933 = vmatpush1.bf16.msra.mxu0 %v4423
    %4934 = vmatprep.subr.bf16.mxu0 %v4432
    %4935 = vmatpush1.bf16.msra.mxu0 %v4431
    %4936 = vmatprep.subr.bf16.mxu0 %v4440
    %4937 = vmatpush1.bf16.msra.mxu0 %v4439
    %4938 = vmatprep.mubr.bf16.mxu0 %v643
    %4939 = vmatmul.mubr.bf16.gmra.mrb[0].mxu0 %v642
    %v4940 = vpop.f32.mrb[0].mxu0
    %v4941 = vadd.f32 %v4900, %v4940
    %v4942 = vpop.f32.mrb[0].mxu0
    %v4943 = vadd.f32 %v4902, %v4942
    %v4944 = vpop.f32.mrb[0].mxu0
    %v4945 = vpop.f32.mrb[0].mxu0
    %4946 = vdwg.mxu0
    %4947 = vmatprep.subr.bf16.mxu0 %v4448
    %4948 = vmatpush1.bf16.msra.mxu0 %v4447
    %4949 = vmatprep.subr.bf16.mxu0 %v4456
    %4950 = vmatpush1.bf16.msra.mxu0 %v4455
    %4951 = vmatprep.subr.bf16.mxu0 %v4464
    %4952 = vmatpush1.bf16.msra.mxu0 %v4463
    %4953 = vmatprep.subr.bf16.mxu0 %v4472
    %4954 = vmatpush1.bf16.msra.mxu0 %v4471
    %4955 = vmatprep.subr.bf16.mxu0 %v4480
    %4956 = vmatpush1.bf16.msra.mxu0 %v4479
    %4957 = vmatprep.subr.bf16.mxu0 %v4488
    %4958 = vmatpush1.bf16.msra.mxu0 %v4487
    %4959 = vmatprep.subr.bf16.mxu0 %v4496
    %4960 = vmatpush1.bf16.msra.mxu0 %v4495
    %4961 = vmatprep.subr.bf16.mxu0 %v4504
    %4962 = vmatpush1.bf16.msra.mxu0 %v4503
    %4963 = vmatprep.subr.bf16.mxu0 %v4512
    %4964 = vmatpush1.bf16.msra.mxu0 %v4511
    %4965 = vmatprep.subr.bf16.mxu0 %v4520
    %4966 = vmatpush1.bf16.msra.mxu0 %v4519
    %4967 = vmatprep.subr.bf16.mxu0 %v4528
    %4968 = vmatpush1.bf16.msra.mxu0 %v4527
    %4969 = vmatprep.subr.bf16.mxu0 %v4536
    %4970 = vmatpush1.bf16.msra.mxu0 %v4535
    %4971 = vmatprep.subr.bf16.mxu0 %v4544
    %4972 = vmatpush1.bf16.msra.mxu0 %v4543
    %4973 = vmatprep.subr.bf16.mxu0 %v4552
    %4974 = vmatpush1.bf16.msra.mxu0 %v4551
    %4975 = vmatprep.subr.bf16.mxu0 %v4560
    %4976 = vmatpush1.bf16.msra.mxu0 %v4559
    %4977 = vmatprep.subr.bf16.mxu0 %v4568
    %4978 = vmatpush1.bf16.msra.mxu0 %v4567
    %4979 = vmatprep.mubr.bf16.mxu0 %v645
    %4980 = vmatmul.mubr.bf16.gmra.mrb[0].mxu0 %v644
    %v4981 = vpop.f32.mrb[0].mxu0
    %v4982 = vadd.f32 %v4941, %v4981
    %v4983 = vpop.f32.mrb[0].mxu0
    %v4984 = vadd.f32 %v4943, %v4983
    %v4985 = vpop.f32.mrb[0].mxu0
    %v4986 = vpop.f32.mrb[0].mxu0
    %4987 = vdwg.mxu0
    %4988 = vmatprep.subr.bf16.mxu0 %v4576
    %4989 = vmatpush1.bf16.msra.mxu0 %v4575
    %4990 = vmatprep.subr.bf16.mxu0 %v4584
    %4991 = vmatpush1.bf16.msra.mxu0 %v4583
    %4992 = vmatprep.subr.bf16.mxu0 %v4592
    %4993 = vmatpush1.bf16.msra.mxu0 %v4591
    %4994 = vmatprep.subr.bf16.mxu0 %v4600
    %4995 = vmatpush1.bf16.msra.mxu0 %v4599
    %4996 = vmatprep.subr.bf16.mxu0 %v4608
    %4997 = vmatpush1.bf16.msra.mxu0 %v4607
    %4998 = vmatprep.subr.bf16.mxu0 %v4616
    %4999 = vmatpush1.bf16.msra.mxu0 %v4615
    %5000 = vmatprep.subr.bf16.mxu0 %v4624
    %5001 = vmatpush1.bf16.msra.mxu0 %v4623
    %5002 = vmatprep.subr.bf16.mxu0 %v4632
    %5003 = vmatpush1.bf16.msra.mxu0 %v4631
    %5004 = vmatprep.subr.bf16.mxu0 %v4640
    %5005 = vmatpush1.bf16.msra.mxu0 %v4639
    %5006 = vmatprep.subr.bf16.mxu0 %v4648
    %5007 = vmatpush1.bf16.msra.mxu0 %v4647
    %5008 = vmatprep.subr.bf16.mxu0 %v4656
    %5009 = vmatpush1.bf16.msra.mxu0 %v4655
    %5010 = vmatprep.subr.bf16.mxu0 %v4664
    %5011 = vmatpush1.bf16.msra.mxu0 %v4663
    %5012 = vmatprep.subr.bf16.mxu0 %v4672
    %5013 = vmatpush1.bf16.msra.mxu0 %v4671
    %5014 = vmatprep.subr.bf16.mxu0 %v4680
    %5015 = vmatpush1.bf16.msra.mxu0 %v4679
    %5016 = vmatprep.subr.bf16.mxu0 %v4688
    %5017 = vmatpush1.bf16.msra.mxu0 %v4687
    %5018 = vmatprep.subr.bf16.mxu0 %v4696
    %5019 = vmatpush1.bf16.msra.mxu0 %v4695
    %5020 = vmatprep.mubr.bf16.mxu0 %v647
    %5021 = vmatmul.mubr.bf16.gmra.mrb[0].mxu0 %v646
    %v5022 = vpop.f32.mrb[0].mxu0
    %v5023 = vadd.f32 %v4982, %v5022
    %v5024 = vpop.f32.mrb[0].mxu0
    %v5025 = vadd.f32 %v4984, %v5024
    %v5026 = vpop.f32.mrb[0].mxu0
    %v5027 = vpop.f32.mrb[0].mxu0
    %5028 = vdwg.mxu0
    %5029 = vmatprep.subr.bf16.mxu0 %v4194
    %5030 = vmatpush1.bf16.msra.mxu0 %v4193
    %5031 = vmatprep.subr.bf16.mxu0 %v4202
    %5032 = vmatpush1.bf16.msra.mxu0 %v4201
    %5033 = vmatprep.subr.bf16.mxu0 %v4210
    %5034 = vmatpush1.bf16.msra.mxu0 %v4209
    %5035 = vmatprep.subr.bf16.mxu0 %v4218
    %5036 = vmatpush1.bf16.msra.mxu0 %v4217
    %5037 = vmatprep.subr.bf16.mxu0 %v4226
    %5038 = vmatpush1.bf16.msra.mxu0 %v4225
    %5039 = vmatprep.subr.bf16.mxu0 %v4234
    %5040 = vmatpush1.bf16.msra.mxu0 %v4233
    %5041 = vmatprep.subr.bf16.mxu0 %v4242
    %5042 = vmatpush1.bf16.msra.mxu0 %v4241
    %5043 = vmatprep.subr.bf16.mxu0 %v4250
    %5044 = vmatpush1.bf16.msra.mxu0 %v4249
    %5045 = vmatprep.subr.bf16.mxu0 %v4258
    %5046 = vmatpush1.bf16.msra.mxu0 %v4257
    %5047 = vmatprep.subr.bf16.mxu0 %v4266
    %5048 = vmatpush1.bf16.msra.mxu0 %v4265
    %5049 = vmatprep.subr.bf16.mxu0 %v4274
    %5050 = vmatpush1.bf16.msra.mxu0 %v4273
    %5051 = vmatprep.subr.bf16.mxu0 %v4282
    %5052 = vmatpush1.bf16.msra.mxu0 %v4281
    %5053 = vmatprep.subr.bf16.mxu0 %v4290
    %5054 = vmatpush1.bf16.msra.mxu0 %v4289
    %5055 = vmatprep.subr.bf16.mxu0 %v4298
    %5056 = vmatpush1.bf16.msra.mxu0 %v4297
    %5057 = vmatprep.subr.bf16.mxu0 %v4306
    %5058 = vmatpush1.bf16.msra.mxu0 %v4305
    %5059 = vmatprep.subr.bf16.mxu0 %v4314
    %5060 = vmatpush1.bf16.msra.mxu0 %v4313
    %5061 = vmatprep.mubr.bf16.mxu0 %v641
    %5062 = vmatmul.mubr.bf16.gmra.mrb[0].mxu0 %v640
    %v5063 = vpop.f32.mrb[0].mxu0
    %v5064 = vadd.f32 0.0, %v5063
    %v5065 = vpop.f32.mrb[0].mxu0
    %v5066 = vadd.f32 0.0, %v5065
    %v5067 = vpop.f32.mrb[0].mxu0
    %v5068 = vpop.f32.mrb[0].mxu0
    %5069 = vdwg.mxu0
    %5070 = vmatprep.subr.bf16.mxu0 %v4322
    %5071 = vmatpush1.bf16.msra.mxu0 %v4321
    %5072 = vmatprep.subr.bf16.mxu0 %v4330
    %5073 = vmatpush1.bf16.msra.mxu0 %v4329
    %5074 = vmatprep.subr.bf16.mxu0 %v4338
    %5075 = vmatpush1.bf16.msra.mxu0 %v4337
    %5076 = vmatprep.subr.bf16.mxu0 %v4346
    %5077 = vmatpush1.bf16.msra.mxu0 %v4345
    %5078 = vmatprep.subr.bf16.mxu0 %v4354
    %5079 = vmatpush1.bf16.msra.mxu0 %v4353
    %5080 = vmatprep.subr.bf16.mxu0 %v4362
    %5081 = vmatpush1.bf16.msra.mxu0 %v4361
    %5082 = vmatprep.subr.bf16.mxu0 %v4370
    %5083 = vmatpush1.bf16.msra.mxu0 %v4369
    %5084 = vmatprep.subr.bf16.mxu0 %v4378
    %5085 = vmatpush1.bf16.msra.mxu0 %v4377
    %5086 = vmatprep.subr.bf16.mxu0 %v4386
    %5087 = vmatpush1.bf16.msra.mxu0 %v4385
    %5088 = vmatprep.subr.bf16.mxu0 %v4394
    %5089 = vmatpush1.bf16.msra.mxu0 %v4393
    %5090 = vmatprep.subr.bf16.mxu0 %v4402
    %5091 = vmatpush1.bf16.msra.mxu0 %v4401
    %5092 = vmatprep.subr.bf16.mxu0 %v4410
    %5093 = vmatpush1.bf16.msra.mxu0 %v4409
    %5094 = vmatprep.subr.bf16.mxu0 %v4418
    %5095 = vmatpush1.bf16.msra.mxu0 %v4417
    %5096 = vmatprep.subr.bf16.mxu0 %v4426
    %5097 = vmatpush1.bf16.msra.mxu0 %v4425
    %5098 = vmatprep.subr.bf16.mxu0 %v4434
    %5099 = vmatpush1.bf16.msra.mxu0 %v4433
    %5100 = vmatprep.subr.bf16.mxu0 %v4442
    %5101 = vmatpush1.bf16.msra.mxu0 %v4441
    %5102 = vmatprep.mubr.bf16.mxu0 %v643
    %5103 = vmatmul.mubr.bf16.gmra.mrb[0].mxu0 %v642
    %v5104 = vpop.f32.mrb[0].mxu0
    %v5105 = vadd.f32 %v5064, %v5104
    %v5106 = vpop.f32.mrb[0].mxu0
    %v5107 = vadd.f32 %v5066, %v5106
    %v5108 = vpop.f32.mrb[0].mxu0
    %v5109 = vpop.f32.mrb[0].mxu0
    %5110 = vdwg.mxu0
    %5111 = vmatprep.subr.bf16.mxu0 %v4450
    %5112 = vmatpush1.bf16.msra.mxu0 %v4449
    %5113 = vmatprep.subr.bf16.mxu0 %v4458
    %5114 = vmatpush1.bf16.msra.mxu0 %v4457
    %5115 = vmatprep.subr.bf16.mxu0 %v4466
    %5116 = vmatpush1.bf16.msra.mxu0 %v4465
    %5117 = vmatprep.subr.bf16.mxu0 %v4474
    %5118 = vmatpush1.bf16.msra.mxu0 %v4473
    %5119 = vmatprep.subr.bf16.mxu0 %v4482
    %5120 = vmatpush1.bf16.msra.mxu0 %v4481
    %5121 = vmatprep.subr.bf16.mxu0 %v4490
    %5122 = vmatpush1.bf16.msra.mxu0 %v4489
    %5123 = vmatprep.subr.bf16.mxu0 %v4498
    %5124 = vmatpush1.bf16.msra.mxu0 %v4497
    %5125 = vmatprep.subr.bf16.mxu0 %v4506
    %5126 = vmatpush1.bf16.msra.mxu0 %v4505
    %5127 = vmatprep.subr.bf16.mxu0 %v4514
    %5128 = vmatpush1.bf16.msra.mxu0 %v4513
    %5129 = vmatprep.subr.bf16.mxu0 %v4522
    %5130 = vmatpush1.bf16.msra.mxu0 %v4521
    %5131 = vmatprep.subr.bf16.mxu0 %v4530
    %5132 = vmatpush1.bf16.msra.mxu0 %v4529
    %5133 = vmatprep.subr.bf16.mxu0 %v4538
    %5134 = vmatpush1.bf16.msra.mxu0 %v4537
    %5135 = vmatprep.subr.bf16.mxu0 %v4546
    %5136 = vmatpush1.bf16.msra.mxu0 %v4545
    %5137 = vmatprep.subr.bf16.mxu0 %v4554
    %5138 = vmatpush1.bf16.msra.mxu0 %v4553
    %5139 = vmatprep.subr.bf16.mxu0 %v4562
    %5140 = vmatpush1.bf16.msra.mxu0 %v4561
    %5141 = vmatprep.subr.bf16.mxu0 %v4570
    %5142 = vmatpush1.bf16.msra.mxu0 %v4569
    %5143 = vmatprep.mubr.bf16.mxu0 %v645
    %5144 = vmatmul.mubr.bf16.gmra.mrb[0].mxu0 %v644
    %v5145 = vpop.f32.mrb[0].mxu0
    %v5146 = vadd.f32 %v5105, %v5145
    %v5147 = vpop.f32.mrb[0].mxu0
    %v5148 = vadd.f32 %v5107, %v5147
    %v5149 = vpop.f32.mrb[0].mxu0
    %v5150 = vpop.f32.mrb[0].mxu0
    %5151 = vdwg.mxu0
    %5152 = vmatprep.subr.bf16.mxu0 %v4578
    %5153 = vmatpush1.bf16.msra.mxu0 %v4577
    %5154 = vmatprep.subr.bf16.mxu0 %v4586
    %5155 = vmatpush1.bf16.msra.mxu0 %v4585
    %5156 = vmatprep.subr.bf16.mxu0 %v4594
    %5157 = vmatpush1.bf16.msra.mxu0 %v4593
    %5158 = vmatprep.subr.bf16.mxu0 %v4602
    %5159 = vmatpush1.bf16.msra.mxu0 %v4601
    %5160 = vmatprep.subr.bf16.mxu0 %v4610
    %5161 = vmatpush1.bf16.msra.mxu0 %v4609
    %5162 = vmatprep.subr.bf16.mxu0 %v4618
    %5163 = vmatpush1.bf16.msra.mxu0 %v4617
    %5164 = vmatprep.subr.bf16.mxu0 %v4626
    %5165 = vmatpush1.bf16.msra.mxu0 %v4625
    %5166 = vmatprep.subr.bf16.mxu0 %v4634
    %5167 = vmatpush1.bf16.msra.mxu0 %v4633
    %5168 = vmatprep.subr.bf16.mxu0 %v4642
    %5169 = vmatpush1.bf16.msra.mxu0 %v4641
    %5170 = vmatprep.subr.bf16.mxu0 %v4650
    %5171 = vmatpush1.bf16.msra.mxu0 %v4649
    %5172 = vmatprep.subr.bf16.mxu0 %v4658
    %5173 = vmatpush1.bf16.msra.mxu0 %v4657
    %5174 = vmatprep.subr.bf16.mxu0 %v4666
    %5175 = vmatpush1.bf16.msra.mxu0 %v4665
    %5176 = vmatprep.subr.bf16.mxu0 %v4674
    %5177 = vmatpush1.bf16.msra.mxu0 %v4673
    %5178 = vmatprep.subr.bf16.mxu0 %v4682
    %5179 = vmatpush1.bf16.msra.mxu0 %v4681
    %5180 = vmatprep.subr.bf16.mxu0 %v4690
    %5181 = vmatpush1.bf16.msra.mxu0 %v4689
    %5182 = vmatprep.subr.bf16.mxu0 %v4698
    %5183 = vmatpush1.bf16.msra.mxu0 %v4697
    %5184 = vmatprep.mubr.bf16.mxu0 %v647
    %5185 = vmatmul.mubr.bf16.gmra.mrb[0].mxu0 %v646
    %v5186 = vpop.f32.mrb[0].mxu0
    %v5187 = vadd.f32 %v5146, %v5186
    %v5188 = vpop.f32.mrb[0].mxu0
    %v5189 = vadd.f32 %v5148, %v5188
    %v5190 = vpop.f32.mrb[0].mxu0
    %v5191 = vpop.f32.mrb[0].mxu0
    %5192 = vdwg.mxu0
    %5193 = vmatprep.subr.bf16.mxu0 %v4196
    %5194 = vmatpush1.bf16.msra.mxu0 %v4195
    %5195 = vmatprep.subr.bf16.mxu0 %v4204
    %5196 = vmatpush1.bf16.msra.mxu0 %v4203
    %5197 = vmatprep.subr.bf16.mxu0 %v4212
    %5198 = vmatpush1.bf16.msra.mxu0 %v4211
    %5199 = vmatprep.subr.bf16.mxu0 %v4220
    %5200 = vmatpush1.bf16.msra.mxu0 %v4219
    %5201 = vmatprep.subr.bf16.mxu0 %v4228
    %5202 = vmatpush1.bf16.msra.mxu0 %v4227
    %5203 = vmatprep.subr.bf16.mxu0 %v4236
    %5204 = vmatpush1.bf16.msra.mxu0 %v4235
    %5205 = vmatprep.subr.bf16.mxu0 %v4244
    %5206 = vmatpush1.bf16.msra.mxu0 %v4243
    %5207 = vmatprep.subr.bf16.mxu0 %v4252
    %5208 = vmatpush1.bf16.msra.mxu0 %v4251
    %5209 = vmatprep.subr.bf16.mxu0 %v4260
    %5210 = vmatpush1.bf16.msra.mxu0 %v4259
    %5211 = vmatprep.subr.bf16.mxu0 %v4268
    %5212 = vmatpush1.bf16.msra.mxu0 %v4267
    %5213 = vmatprep.subr.bf16.mxu0 %v4276
    %5214 = vmatpush1.bf16.msra.mxu0 %v4275
    %5215 = vmatprep.subr.bf16.mxu0 %v4284
    %5216 = vmatpush1.bf16.msra.mxu0 %v4283
    %5217 = vmatprep.subr.bf16.mxu0 %v4292
    %5218 = vmatpush1.bf16.msra.mxu0 %v4291
    %5219 = vmatprep.subr.bf16.mxu0 %v4300
    %5220 = vmatpush1.bf16.msra.mxu0 %v4299
    %5221 = vmatprep.subr.bf16.mxu0 %v4308
    %5222 = vmatpush1.bf16.msra.mxu0 %v4307
    %5223 = vmatprep.subr.bf16.mxu0 %v4316
    %5224 = vmatpush1.bf16.msra.mxu0 %v4315
    %5225 = vmatprep.mubr.bf16.mxu0 %v641
    %5226 = vmatmul.mubr.bf16.gmra.mrb[0].mxu0 %v640
    %v5227 = vpop.f32.mrb[0].mxu0
    %v5228 = vadd.f32 0.0, %v5227
    %v5229 = vpop.f32.mrb[0].mxu0
    %v5230 = vadd.f32 0.0, %v5229
    %v5231 = vpop.f32.mrb[0].mxu0
    %v5232 = vpop.f32.mrb[0].mxu0
    %5233 = vdwg.mxu0
    %5234 = vmatprep.subr.bf16.mxu0 %v4324
    %5235 = vmatpush1.bf16.msra.mxu0 %v4323
    %5236 = vmatprep.subr.bf16.mxu0 %v4332
    %5237 = vmatpush1.bf16.msra.mxu0 %v4331
    %5238 = vmatprep.subr.bf16.mxu0 %v4340
    %5239 = vmatpush1.bf16.msra.mxu0 %v4339
    %5240 = vmatprep.subr.bf16.mxu0 %v4348
    %5241 = vmatpush1.bf16.msra.mxu0 %v4347
    %5242 = vmatprep.subr.bf16.mxu0 %v4356
    %5243 = vmatpush1.bf16.msra.mxu0 %v4355
    %5244 = vmatprep.subr.bf16.mxu0 %v4364
    %5245 = vmatpush1.bf16.msra.mxu0 %v4363
    %5246 = vmatprep.subr.bf16.mxu0 %v4372
    %5247 = vmatpush1.bf16.msra.mxu0 %v4371
    %5248 = vmatprep.subr.bf16.mxu0 %v4380
    %5249 = vmatpush1.bf16.msra.mxu0 %v4379
    %5250 = vmatprep.subr.bf16.mxu0 %v4388
    %5251 = vmatpush1.bf16.msra.mxu0 %v4387
    %5252 = vmatprep.subr.bf16.mxu0 %v4396
    %5253 = vmatpush1.bf16.msra.mxu0 %v4395
    %5254 = vmatprep.subr.bf16.mxu0 %v4404
    %5255 = vmatpush1.bf16.msra.mxu0 %v4403
    %5256 = vmatprep.subr.bf16.mxu0 %v4412
    %5257 = vmatpush1.bf16.msra.mxu0 %v4411
    %5258 = vmatprep.subr.bf16.mxu0 %v4420
    %5259 = vmatpush1.bf16.msra.mxu0 %v4419
    %5260 = vmatprep.subr.bf16.mxu0 %v4428
    %5261 = vmatpush1.bf16.msra.mxu0 %v4427
    %5262 = vmatprep.subr.bf16.mxu0 %v4436
    %5263 = vmatpush1.bf16.msra.mxu0 %v4435
    %5264 = vmatprep.subr.bf16.mxu0 %v4444
    %5265 = vmatpush1.bf16.msra.mxu0 %v4443
    %5266 = vmatprep.mubr.bf16.mxu0 %v643
    %5267 = vmatmul.mubr.bf16.gmra.mrb[0].mxu0 %v642
    %v5268 = vpop.f32.mrb[0].mxu0
    %v5269 = vadd.f32 %v5228, %v5268
    %v5270 = vpop.f32.mrb[0].mxu0
    %v5271 = vadd.f32 %v5230, %v5270
    %v5272 = vpop.f32.mrb[0].mxu0
    %v5273 = vpop.f32.mrb[0].mxu0
    %5274 = vdwg.mxu0
    %5275 = vmatprep.subr.bf16.mxu0 %v4452
    %5276 = vmatpush1.bf16.msra.mxu0 %v4451
    %5277 = vmatprep.subr.bf16.mxu0 %v4460
    %5278 = vmatpush1.bf16.msra.mxu0 %v4459
    %5279 = vmatprep.subr.bf16.mxu0 %v4468
    %5280 = vmatpush1.bf16.msra.mxu0 %v4467
    %5281 = vmatprep.subr.bf16.mxu0 %v4476
    %5282 = vmatpush1.bf16.msra.mxu0 %v4475
    %5283 = vmatprep.subr.bf16.mxu0 %v4484
    %5284 = vmatpush1.bf16.msra.mxu0 %v4483
    %5285 = vmatprep.subr.bf16.mxu0 %v4492
    %5286 = vmatpush1.bf16.msra.mxu0 %v4491
    %5287 = vmatprep.subr.bf16.mxu0 %v4500
    %5288 = vmatpush1.bf16.msra.mxu0 %v4499
    %5289 = vmatprep.subr.bf16.mxu0 %v4508
    %5290 = vmatpush1.bf16.msra.mxu0 %v4507
    %5291 = vmatprep.subr.bf16.mxu0 %v4516
    %5292 = vmatpush1.bf16.msra.mxu0 %v4515
    %5293 = vmatprep.subr.bf16.mxu0 %v4524
    %5294 = vmatpush1.bf16.msra.mxu0 %v4523
    %5295 = vmatprep.subr.bf16.mxu0 %v4532
    %5296 = vmatpush1.bf16.msra.mxu0 %v4531
    %5297 = vmatprep.subr.bf16.mxu0 %v4540
    %5298 = vmatpush1.bf16.msra.mxu0 %v4539
    %5299 = vmatprep.subr.bf16.mxu0 %v4548
    %5300 = vmatpush1.bf16.msra.mxu0 %v4547
    %5301 = vmatprep.subr.bf16.mxu0 %v4556
    %5302 = vmatpush1.bf16.msra.mxu0 %v4555
    %5303 = vmatprep.subr.bf16.mxu0 %v4564
    %5304 = vmatpush1.bf16.msra.mxu0 %v4563
    %5305 = vmatprep.subr.bf16.mxu0 %v4572
    %5306 = vmatpush1.bf16.msra.mxu0 %v4571
    %5307 = vmatprep.mubr.bf16.mxu0 %v645
    %5308 = vmatmul.mubr.bf16.gmra.mrb[0].mxu0 %v644
    %v5309 = vpop.f32.mrb[0].mxu0
    %v5310 = vadd.f32 %v5269, %v5309
    %v5311 = vpop.f32.mrb[0].mxu0
    %v5312 = vadd.f32 %v5271, %v5311
    %v5313 = vpop.f32.mrb[0].mxu0
    %v5314 = vpop.f32.mrb[0].mxu0
    %5315 = vdwg.mxu0
    %5316 = vmatprep.subr.bf16.mxu0 %v4580
    %5317 = vmatpush1.bf16.msra.mxu0 %v4579
    %5318 = vmatprep.subr.bf16.mxu0 %v4588
    %5319 = vmatpush1.bf16.msra.mxu0 %v4587
    %5320 = vmatprep.subr.bf16.mxu0 %v4596
    %5321 = vmatpush1.bf16.msra.mxu0 %v4595
    %5322 = vmatprep.subr.bf16.mxu0 %v4604
    %5323 = vmatpush1.bf16.msra.mxu0 %v4603
    %5324 = vmatprep.subr.bf16.mxu0 %v4612
    %5325 = vmatpush1.bf16.msra.mxu0 %v4611
    %5326 = vmatprep.subr.bf16.mxu0 %v4620
    %5327 = vmatpush1.bf16.msra.mxu0 %v4619
    %5328 = vmatprep.subr.bf16.mxu0 %v4628
    %5329 = vmatpush1.bf16.msra.mxu0 %v4627
    %5330 = vmatprep.subr.bf16.mxu0 %v4636
    %5331 = vmatpush1.bf16.msra.mxu0 %v4635
    %5332 = vmatprep.subr.bf16.mxu0 %v4644
    %5333 = vmatpush1.bf16.msra.mxu0 %v4643
    %5334 = vmatprep.subr.bf16.mxu0 %v4652
    %5335 = vmatpush1.bf16.msra.mxu0 %v4651
    %5336 = vmatprep.subr.bf16.mxu0 %v4660
    %5337 = vmatpush1.bf16.msra.mxu0 %v4659
    %5338 = vmatprep.subr.bf16.mxu0 %v4668
    %5339 = vmatpush1.bf16.msra.mxu0 %v4667
    %5340 = vmatprep.subr.bf16.mxu0 %v4676
    %5341 = vmatpush1.bf16.msra.mxu0 %v4675
    %5342 = vmatprep.subr.bf16.mxu0 %v4684
    %5343 = vmatpush1.bf16.msra.mxu0 %v4683
    %5344 = vmatprep.subr.bf16.mxu0 %v4692
    %5345 = vmatpush1.bf16.msra.mxu0 %v4691
    %5346 = vmatprep.subr.bf16.mxu0 %v4700
    %5347 = vmatpush1.bf16.msra.mxu0 %v4699
    %5348 = vmatprep.mubr.bf16.mxu0 %v647
    %5349 = vmatmul.mubr.bf16.gmra.mrb[0].mxu0 %v646
    %v5350 = vpop.f32.mrb[0].mxu0
    %v5351 = vadd.f32 %v5310, %v5350
    %v5352 = vpop.f32.mrb[0].mxu0
    %v5353 = vadd.f32 %v5312, %v5352
    %v5354 = vpop.f32.mrb[0].mxu0
    %v5355 = vpop.f32.mrb[0].mxu0
    %5356 = vdwg.mxu0
    %v5357 = vadd.f32 %v3435, %v4859
    %v5358 = vadd.f32 %v3437, %v4861
    %v5359 = vadd.f32 %v3599, %v5023
    %v5360 = vadd.f32 %v3601, %v5025
    %v5361 = vadd.f32 %v3763, %v5187
    %v5362 = vadd.f32 %v3765, %v5189
    %v5363 = vadd.f32 %v3927, %v5351
    %v5364 = vadd.f32 %v3929, %v5353
    %v5365 = vld [vmem:[#allocation7] sm:$0xff]
    %v5367 = vlaneseq
    %v5368 = vshrl.u32 %v5367, 7
    %v5369 = vsub.s32 0, %v5368
    %v5370 = vrot.slane %v5365, %v5369
    %v5371 = vlaneseq
    %v5372 = vshrl.u32 %v5371, 7
    %v5373 = vsub.s32 1, %v5372
    %v5374 = vrot.slane %v5365, %v5373
    %v5375 = vlaneseq
    %v5376 = vshrl.u32 %v5375, 7
    %v5377 = vsub.s32 2, %v5376
    %v5378 = vrot.slane %v5365, %v5377
    %v5379 = vlaneseq
    %v5380 = vshrl.u32 %v5379, 7
    %v5381 = vsub.s32 3, %v5380
    %v5382 = vrot.slane %v5365, %v5381
    %v5383 = vlaneseq
    %v5384 = vshrl.u32 %v5383, 7
    %v5385 = vsub.s32 4, %v5384
    %v5386 = vrot.slane %v5365, %v5385
    %v5387 = vlaneseq
    %v5388 = vshrl.u32 %v5387, 7
    %v5389 = vsub.s32 5, %v5388
    %v5390 = vrot.slane %v5365, %v5389
    %v5391 = vlaneseq
    %v5392 = vshrl.u32 %v5391, 7
    %v5393 = vsub.s32 6, %v5392
    %v5394 = vrot.slane %v5365, %v5393
    %v5395 = vlaneseq
    %v5396 = vshrl.u32 %v5395, 7
    %v5397 = vsub.s32 7, %v5396
    %v5398 = vrot.slane %v5365, %v5397
    %v5407 = vmul.f32 %v5357, %v5370
    %v5408 = vmul.f32 %v5358, %v5374
    %v5409 = vmul.f32 %v5359, %v5378
    %v5410 = vmul.f32 %v5360, %v5382
    %v5411 = vmul.f32 %v5361, %v5386
    %v5412 = vmul.f32 %v5362, %v5390
    %v5413 = vmul.f32 %v5363, %v5394
    %v5414 = vmul.f32 %v5364, %v5398
    %v5415 = vld [vmem:[#allocation9] sm:$0xff]
    %v5417 = vlaneseq
    %v5418 = vshrl.u32 %v5417, 7
    %v5419 = vsub.s32 0, %v5418
    %v5420 = vrot.slane %v5415, %v5419
    %v5421 = vlaneseq
    %v5422 = vshrl.u32 %v5421, 7
    %v5423 = vsub.s32 1, %v5422
    %v5424 = vrot.slane %v5415, %v5423
    %v5425 = vlaneseq
    %v5426 = vshrl.u32 %v5425, 7
    %v5427 = vsub.s32 2, %v5426
    %v5428 = vrot.slane %v5415, %v5427
    %v5429 = vlaneseq
    %v5430 = vshrl.u32 %v5429, 7
    %v5431 = vsub.s32 3, %v5430
    %v5432 = vrot.slane %v5415, %v5431
    %v5433 = vlaneseq
    %v5434 = vshrl.u32 %v5433, 7
    %v5435 = vsub.s32 4, %v5434
    %v5436 = vrot.slane %v5415, %v5435
    %v5437 = vlaneseq
    %v5438 = vshrl.u32 %v5437, 7
    %v5439 = vsub.s32 5, %v5438
    %v5440 = vrot.slane %v5415, %v5439
    %v5441 = vlaneseq
    %v5442 = vshrl.u32 %v5441, 7
    %v5443 = vsub.s32 6, %v5442
    %v5444 = vrot.slane %v5415, %v5443
    %v5445 = vlaneseq
    %v5446 = vshrl.u32 %v5445, 7
    %v5447 = vsub.s32 7, %v5446
    %v5448 = vrot.slane %v5415, %v5447
    %v5457 = vadd.f32 %v5407, %v5420
    %v5458 = vadd.f32 %v5408, %v5424
    %v5459 = vadd.f32 %v5409, %v5428
    %v5460 = vadd.f32 %v5410, %v5432
    %v5461 = vadd.f32 %v5411, %v5436
    %v5462 = vadd.f32 %v5412, %v5440
    %v5463 = vadd.f32 %v5413, %v5444
    %v5464 = vadd.f32 %v5414, %v5448
    %v5465 = vmax.f32 %v5457, 0.0
    %v5466 = vmax.f32 %v5458, 0.0
    %v5467 = vmax.f32 %v5459, 0.0
    %v5468 = vmax.f32 %v5460, 0.0
    %v5469 = vmax.f32 %v5461, 0.0
    %v5470 = vmax.f32 %v5462, 0.0
    %v5471 = vmax.f32 %v5463, 0.0
    %v5472 = vmax.f32 %v5464, 0.0
    %v5473 = vpack.c.bf16 %v5465, %v5465
    %v5474 = vpack.c.bf16 %v5466, %v5466
    %v5475 = vpack.c.bf16 %v5467, %v5467
    %v5476 = vpack.c.bf16 %v5468, %v5468
    %v5477 = vpack.c.bf16 %v5469, %v5469
    %v5478 = vpack.c.bf16 %v5470, %v5470
    %v5479 = vpack.c.bf16 %v5471, %v5471
    %v5480 = vpack.c.bf16 %v5472, %v5472
    %v5481 = vld [vmem:[#allocation10] sm:$0xff]
    %v5482 = vld [vmem:[#allocation10 + $0x8] sm:$0xff]
    %v5483 = vld [vmem:[#allocation10 + $0x10] sm:$0xff]
    %v5484 = vld [vmem:[#allocation10 + $0x18] sm:$0xff]
    %v5485 = vld [vmem:[#allocation10 + $0x20] sm:$0xff]
    %v5486 = vld [vmem:[#allocation10 + $0x28] sm:$0xff]
    %v5487 = vld [vmem:[#allocation10 + $0x30] sm:$0xff]
    %v5488 = vld [vmem:[#allocation10 + $0x38] sm:$0xff]
    %v5489 = vld [vmem:[#allocation10 + $0x40] sm:$0xff]
    %v5490 = vld [vmem:[#allocation10 + $0x48] sm:$0xff]
    %v5491 = vld [vmem:[#allocation10 + $0x50] sm:$0xff]
    %v5492 = vld [vmem:[#allocation10 + $0x58] sm:$0xff]
    %v5493 = vld [vmem:[#allocation10 + $0x60] sm:$0xff]
    %v5494 = vld [vmem:[#allocation10 + $0x68] sm:$0xff]
    %v5495 = vld [vmem:[#allocation10 + $0x70] sm:$0xff]
    %v5496 = vld [vmem:[#allocation10 + $0x78] sm:$0xff]
    %v5497 = vld [vmem:[#allocation10 + $0x80] sm:$0xff]
    %v5498 = vld [vmem:[#allocation10 + $0x88] sm:$0xff]
    %v5499 = vld [vmem:[#allocation10 + $0x90] sm:$0xff]
    %v5500 = vld [vmem:[#allocation10 + $0x98] sm:$0xff]
    %v5501 = vld [vmem:[#allocation10 + $0xa0] sm:$0xff]
    %v5502 = vld [vmem:[#allocation10 + $0xa8] sm:$0xff]
    %v5503 = vld [vmem:[#allocation10 + $0xb0] sm:$0xff]
    %v5504 = vld [vmem:[#allocation10 + $0xb8] sm:$0xff]
    %v5505 = vld [vmem:[#allocation10 + $0xc0] sm:$0xff]
    %v5506 = vld [vmem:[#allocation10 + $0xc8] sm:$0xff]
    %v5507 = vld [vmem:[#allocation10 + $0xd0] sm:$0xff]
    %v5508 = vld [vmem:[#allocation10 + $0xd8] sm:$0xff]
    %v5509 = vld [vmem:[#allocation10 + $0xe0] sm:$0xff]
    %v5510 = vld [vmem:[#allocation10 + $0xe8] sm:$0xff]
    %v5511 = vld [vmem:[#allocation10 + $0xf0] sm:$0xff]
    %v5512 = vld [vmem:[#allocation10 + $0xf8] sm:$0xff]
    %v5513 = vld [vmem:[#allocation10 + $0x100] sm:$0xff]
    %v5514 = vld [vmem:[#allocation10 + $0x108] sm:$0xff]
    %v5515 = vld [vmem:[#allocation10 + $0x110] sm:$0xff]
    %v5516 = vld [vmem:[#allocation10 + $0x118] sm:$0xff]
    %v5517 = vld [vmem:[#allocation10 + $0x120] sm:$0xff]
    %v5518 = vld [vmem:[#allocation10 + $0x128] sm:$0xff]
    %v5519 = vld [vmem:[#allocation10 + $0x130] sm:$0xff]
    %v5520 = vld [vmem:[#allocation10 + $0x138] sm:$0xff]
    %v5521 = vld [vmem:[#allocation10 + $0x140] sm:$0xff]
    %v5522 = vld [vmem:[#allocation10 + $0x148] sm:$0xff]
    %v5523 = vld [vmem:[#allocation10 + $0x150] sm:$0xff]
    %v5524 = vld [vmem:[#allocation10 + $0x158] sm:$0xff]
    %v5525 = vld [vmem:[#allocation10 + $0x160] sm:$0xff]
    %v5526 = vld [vmem:[#allocation10 + $0x168] sm:$0xff]
    %v5527 = vld [vmem:[#allocation10 + $0x170] sm:$0xff]
    %v5528 = vld [vmem:[#allocation10 + $0x178] sm:$0xff]
    %v5529 = vld [vmem:[#allocation10 + $0x180] sm:$0xff]
    %v5530 = vld [vmem:[#allocation10 + $0x188] sm:$0xff]
    %v5531 = vld [vmem:[#allocation10 + $0x190] sm:$0xff]
    %v5532 = vld [vmem:[#allocation10 + $0x198] sm:$0xff]
    %v5533 = vld [vmem:[#allocation10 + $0x1a0] sm:$0xff]
    %v5534 = vld [vmem:[#allocation10 + $0x1a8] sm:$0xff]
    %v5535 = vld [vmem:[#allocation10 + $0x1b0] sm:$0xff]
    %v5536 = vld [vmem:[#allocation10 + $0x1b8] sm:$0xff]
    %v5537 = vld [vmem:[#allocation10 + $0x1c0] sm:$0xff]
    %v5538 = vld [vmem:[#allocation10 + $0x1c8] sm:$0xff]
    %v5539 = vld [vmem:[#allocation10 + $0x1d0] sm:$0xff]
    %v5540 = vld [vmem:[#allocation10 + $0x1d8] sm:$0xff]
    %v5541 = vld [vmem:[#allocation10 + $0x1e0] sm:$0xff]
    %v5542 = vld [vmem:[#allocation10 + $0x1e8] sm:$0xff]
    %v5543 = vld [vmem:[#allocation10 + $0x1f0] sm:$0xff]
    %v5544 = vld [vmem:[#allocation10 + $0x1f8] sm:$0xff]
    %v5545 = vld [vmem:[#allocation10 + $0x200] sm:$0xff]
    %v5546 = vld [vmem:[#allocation10 + $0x208] sm:$0xff]
    %v5547 = vld [vmem:[#allocation10 + $0x210] sm:$0xff]
    %v5548 = vld [vmem:[#allocation10 + $0x218] sm:$0xff]
    %v5549 = vld [vmem:[#allocation10 + $0x220] sm:$0xff]
    %v5550 = vld [vmem:[#allocation10 + $0x228] sm:$0xff]
    %v5551 = vld [vmem:[#allocation10 + $0x230] sm:$0xff]
    %v5552 = vld [vmem:[#allocation10 + $0x238] sm:$0xff]
    %v5553 = vld [vmem:[#allocation10 + $0x240] sm:$0xff]
    %v5554 = vld [vmem:[#allocation10 + $0x248] sm:$0xff]
    %v5555 = vld [vmem:[#allocation10 + $0x250] sm:$0xff]
    %v5556 = vld [vmem:[#allocation10 + $0x258] sm:$0xff]
    %v5557 = vld [vmem:[#allocation10 + $0x260] sm:$0xff]
    %v5558 = vld [vmem:[#allocation10 + $0x268] sm:$0xff]
    %v5559 = vld [vmem:[#allocation10 + $0x270] sm:$0xff]
    %v5560 = vld [vmem:[#allocation10 + $0x278] sm:$0xff]
    %v5561 = vld [vmem:[#allocation10 + $0x280] sm:$0xff]
    %v5562 = vld [vmem:[#allocation10 + $0x288] sm:$0xff]
    %v5563 = vld [vmem:[#allocation10 + $0x290] sm:$0xff]
    %v5564 = vld [vmem:[#allocation10 + $0x298] sm:$0xff]
    %v5565 = vld [vmem:[#allocation10 + $0x2a0] sm:$0xff]
    %v5566 = vld [vmem:[#allocation10 + $0x2a8] sm:$0xff]
    %v5567 = vld [vmem:[#allocation10 + $0x2b0] sm:$0xff]
    %v5568 = vld [vmem:[#allocation10 + $0x2b8] sm:$0xff]
    %v5569 = vld [vmem:[#allocation10 + $0x2c0] sm:$0xff]
    %v5570 = vld [vmem:[#allocation10 + $0x2c8] sm:$0xff]
    %v5571 = vld [vmem:[#allocation10 + $0x2d0] sm:$0xff]
    %v5572 = vld [vmem:[#allocation10 + $0x2d8] sm:$0xff]
    %v5573 = vld [vmem:[#allocation10 + $0x2e0] sm:$0xff]
    %v5574 = vld [vmem:[#allocation10 + $0x2e8] sm:$0xff]
    %v5575 = vld [vmem:[#allocation10 + $0x2f0] sm:$0xff]
    %v5576 = vld [vmem:[#allocation10 + $0x2f8] sm:$0xff]
    %v5577 = vld [vmem:[#allocation10 + $0x300] sm:$0xff]
    %v5578 = vld [vmem:[#allocation10 + $0x308] sm:$0xff]
    %v5579 = vld [vmem:[#allocation10 + $0x310] sm:$0xff]
    %v5580 = vld [vmem:[#allocation10 + $0x318] sm:$0xff]
    %v5581 = vld [vmem:[#allocation10 + $0x320] sm:$0xff]
    %v5582 = vld [vmem:[#allocation10 + $0x328] sm:$0xff]
    %v5583 = vld [vmem:[#allocation10 + $0x330] sm:$0xff]
    %v5584 = vld [vmem:[#allocation10 + $0x338] sm:$0xff]
    %v5585 = vld [vmem:[#allocation10 + $0x340] sm:$0xff]
    %v5586 = vld [vmem:[#allocation10 + $0x348] sm:$0xff]
    %v5587 = vld [vmem:[#allocation10 + $0x350] sm:$0xff]
    %v5588 = vld [vmem:[#allocation10 + $0x358] sm:$0xff]
    %v5589 = vld [vmem:[#allocation10 + $0x360] sm:$0xff]
    %v5590 = vld [vmem:[#allocation10 + $0x368] sm:$0xff]
    %v5591 = vld [vmem:[#allocation10 + $0x370] sm:$0xff]
    %v5592 = vld [vmem:[#allocation10 + $0x378] sm:$0xff]
    %v5593 = vld [vmem:[#allocation10 + $0x380] sm:$0xff]
    %v5594 = vld [vmem:[#allocation10 + $0x388] sm:$0xff]
    %v5595 = vld [vmem:[#allocation10 + $0x390] sm:$0xff]
    %v5596 = vld [vmem:[#allocation10 + $0x398] sm:$0xff]
    %v5597 = vld [vmem:[#allocation10 + $0x3a0] sm:$0xff]
    %v5598 = vld [vmem:[#allocation10 + $0x3a8] sm:$0xff]
    %v5599 = vld [vmem:[#allocation10 + $0x3b0] sm:$0xff]
    %v5600 = vld [vmem:[#allocation10 + $0x3b8] sm:$0xff]
    %v5601 = vld [vmem:[#allocation10 + $0x3c0] sm:$0xff]
    %v5602 = vld [vmem:[#allocation10 + $0x3c8] sm:$0xff]
    %v5603 = vld [vmem:[#allocation10 + $0x3d0] sm:$0xff]
    %v5604 = vld [vmem:[#allocation10 + $0x3d8] sm:$0xff]
    %v5605 = vld [vmem:[#allocation10 + $0x3e0] sm:$0xff]
    %v5606 = vld [vmem:[#allocation10 + $0x3e8] sm:$0xff]
    %v5607 = vld [vmem:[#allocation10 + $0x3f0] sm:$0xff]
    %v5608 = vld [vmem:[#allocation10 + $0x3f8] sm:$0xff]
    %v5609 = vunpack.c.l.s8.bf16 %v5481
    %v5610 = vunpack.c.l.s8.bf16 %v5482
    %v5611 = vunpack.c.l.s8.bf16 %v5483
    %v5612 = vunpack.c.l.s8.bf16 %v5484
    %v5613 = vunpack.c.h.s8.bf16 %v5481
    %v5614 = vunpack.c.h.s8.bf16 %v5482
    %v5615 = vunpack.c.h.s8.bf16 %v5483
    %v5616 = vunpack.c.h.s8.bf16 %v5484
    %v5617 = vunpack.c.l.s8.bf16 %v5485
    %v5618 = vunpack.c.l.s8.bf16 %v5486
    %v5619 = vunpack.c.l.s8.bf16 %v5487
    %v5620 = vunpack.c.l.s8.bf16 %v5488
    %v5621 = vunpack.c.h.s8.bf16 %v5485
    %v5622 = vunpack.c.h.s8.bf16 %v5486
    %v5623 = vunpack.c.h.s8.bf16 %v5487
    %v5624 = vunpack.c.h.s8.bf16 %v5488
    %v5625 = vunpack.c.l.s8.bf16 %v5489
    %v5626 = vunpack.c.l.s8.bf16 %v5490
    %v5627 = vunpack.c.l.s8.bf16 %v5491
    %v5628 = vunpack.c.l.s8.bf16 %v5492
    %v5629 = vunpack.c.h.s8.bf16 %v5489
    %v5630 = vunpack.c.h.s8.bf16 %v5490
    %v5631 = vunpack.c.h.s8.bf16 %v5491
    %v5632 = vunpack.c.h.s8.bf16 %v5492
    %v5633 = vunpack.c.l.s8.bf16 %v5493
    %v5634 = vunpack.c.l.s8.bf16 %v5494
    %v5635 = vunpack.c.l.s8.bf16 %v5495
    %v5636 = vunpack.c.l.s8.bf16 %v5496
    %v5637 = vunpack.c.h.s8.bf16 %v5493
    %v5638 = vunpack.c.h.s8.bf16 %v5494
    %v5639 = vunpack.c.h.s8.bf16 %v5495
    %v5640 = vunpack.c.h.s8.bf16 %v5496
    %v5641 = vunpack.c.l.s8.bf16 %v5497
    %v5642 = vunpack.c.l.s8.bf16 %v5498
    %v5643 = vunpack.c.l.s8.bf16 %v5499
    %v5644 = vunpack.c.l.s8.bf16 %v5500
    %v5645 = vunpack.c.h.s8.bf16 %v5497
    %v5646 = vunpack.c.h.s8.bf16 %v5498
    %v5647 = vunpack.c.h.s8.bf16 %v5499
    %v5648 = vunpack.c.h.s8.bf16 %v5500
    %v5649 = vunpack.c.l.s8.bf16 %v5501
    %v5650 = vunpack.c.l.s8.bf16 %v5502
    %v5651 = vunpack.c.l.s8.bf16 %v5503
    %v5652 = vunpack.c.l.s8.bf16 %v5504
    %v5653 = vunpack.c.h.s8.bf16 %v5501
    %v5654 = vunpack.c.h.s8.bf16 %v5502
    %v5655 = vunpack.c.h.s8.bf16 %v5503
    %v5656 = vunpack.c.h.s8.bf16 %v5504
    %v5657 = vunpack.c.l.s8.bf16 %v5505
    %v5658 = vunpack.c.l.s8.bf16 %v5506
    %v5659 = vunpack.c.l.s8.bf16 %v5507
    %v5660 = vunpack.c.l.s8.bf16 %v5508
    %v5661 = vunpack.c.h.s8.bf16 %v5505
    %v5662 = vunpack.c.h.s8.bf16 %v5506
    %v5663 = vunpack.c.h.s8.bf16 %v5507
    %v5664 = vunpack.c.h.s8.bf16 %v5508
    %v5665 = vunpack.c.l.s8.bf16 %v5509
    %v5666 = vunpack.c.l.s8.bf16 %v5510
    %v5667 = vunpack.c.l.s8.bf16 %v5511
    %v5668 = vunpack.c.l.s8.bf16 %v5512
    %v5669 = vunpack.c.h.s8.bf16 %v5509
    %v5670 = vunpack.c.h.s8.bf16 %v5510
    %v5671 = vunpack.c.h.s8.bf16 %v5511
    %v5672 = vunpack.c.h.s8.bf16 %v5512
    %v5673 = vunpack.c.l.s8.bf16 %v5513
    %v5674 = vunpack.c.l.s8.bf16 %v5514
    %v5675 = vunpack.c.l.s8.bf16 %v5515
    %v5676 = vunpack.c.l.s8.bf16 %v5516
    %v5677 = vunpack.c.h.s8.bf16 %v5513
    %v5678 = vunpack.c.h.s8.bf16 %v5514
    %v5679 = vunpack.c.h.s8.bf16 %v5515
    %v5680 = vunpack.c.h.s8.bf16 %v5516
    %v5681 = vunpack.c.l.s8.bf16 %v5517
    %v5682 = vunpack.c.l.s8.bf16 %v5518
    %v5683 = vunpack.c.l.s8.bf16 %v5519
    %v5684 = vunpack.c.l.s8.bf16 %v5520
    %v5685 = vunpack.c.h.s8.bf16 %v5517
    %v5686 = vunpack.c.h.s8.bf16 %v5518
    %v5687 = vunpack.c.h.s8.bf16 %v5519
    %v5688 = vunpack.c.h.s8.bf16 %v5520
    %v5689 = vunpack.c.l.s8.bf16 %v5521
    %v5690 = vunpack.c.l.s8.bf16 %v5522
    %v5691 = vunpack.c.l.s8.bf16 %v5523
    %v5692 = vunpack.c.l.s8.bf16 %v5524
    %v5693 = vunpack.c.h.s8.bf16 %v5521
    %v5694 = vunpack.c.h.s8.bf16 %v5522
    %v5695 = vunpack.c.h.s8.bf16 %v5523
    %v5696 = vunpack.c.h.s8.bf16 %v5524
    %v5697 = vunpack.c.l.s8.bf16 %v5525
    %v5698 = vunpack.c.l.s8.bf16 %v5526
    %v5699 = vunpack.c.l.s8.bf16 %v5527
    %v5700 = vunpack.c.l.s8.bf16 %v5528
    %v5701 = vunpack.c.h.s8.bf16 %v5525
    %v5702 = vunpack.c.h.s8.bf16 %v5526
    %v5703 = vunpack.c.h.s8.bf16 %v5527
    %v5704 = vunpack.c.h.s8.bf16 %v5528
    %v5705 = vunpack.c.l.s8.bf16 %v5529
    %v5706 = vunpack.c.l.s8.bf16 %v5530
    %v5707 = vunpack.c.l.s8.bf16 %v5531
    %v5708 = vunpack.c.l.s8.bf16 %v5532
    %v5709 = vunpack.c.h.s8.bf16 %v5529
    %v5710 = vunpack.c.h.s8.bf16 %v5530
    %v5711 = vunpack.c.h.s8.bf16 %v5531
    %v5712 = vunpack.c.h.s8.bf16 %v5532
    %v5713 = vunpack.c.l.s8.bf16 %v5533
    %v5714 = vunpack.c.l.s8.bf16 %v5534
    %v5715 = vunpack.c.l.s8.bf16 %v5535
    %v5716 = vunpack.c.l.s8.bf16 %v5536
    %v5717 = vunpack.c.h.s8.bf16 %v5533
    %v5718 = vunpack.c.h.s8.bf16 %v5534
    %v5719 = vunpack.c.h.s8.bf16 %v5535
    %v5720 = vunpack.c.h.s8.bf16 %v5536
    %v5721 = vunpack.c.l.s8.bf16 %v5537
    %v5722 = vunpack.c.l.s8.bf16 %v5538
    %v5723 = vunpack.c.l.s8.bf16 %v5539
    %v5724 = vunpack.c.l.s8.bf16 %v5540
    %v5725 = vunpack.c.h.s8.bf16 %v5537
    %v5726 = vunpack.c.h.s8.bf16 %v5538
    %v5727 = vunpack.c.h.s8.bf16 %v5539
    %v5728 = vunpack.c.h.s8.bf16 %v5540
    %v5729 = vunpack.c.l.s8.bf16 %v5541
    %v5730 = vunpack.c.l.s8.bf16 %v5542
    %v5731 = vunpack.c.l.s8.bf16 %v5543
    %v5732 = vunpack.c.l.s8.bf16 %v5544
    %v5733 = vunpack.c.h.s8.bf16 %v5541
    %v5734 = vunpack.c.h.s8.bf16 %v5542
    %v5735 = vunpack.c.h.s8.bf16 %v5543
    %v5736 = vunpack.c.h.s8.bf16 %v5544
    %v5737 = vunpack.c.l.s8.bf16 %v5545
    %v5738 = vunpack.c.l.s8.bf16 %v5546
    %v5739 = vunpack.c.l.s8.bf16 %v5547
    %v5740 = vunpack.c.l.s8.bf16 %v5548
    %v5741 = vunpack.c.h.s8.bf16 %v5545
    %v5742 = vunpack.c.h.s8.bf16 %v5546
    %v5743 = vunpack.c.h.s8.bf16 %v5547
    %v5744 = vunpack.c.h.s8.bf16 %v5548
    %v5745 = vunpack.c.l.s8.bf16 %v5549
    %v5746 = vunpack.c.l.s8.bf16 %v5550
    %v5747 = vunpack.c.l.s8.bf16 %v5551
    %v5748 = vunpack.c.l.s8.bf16 %v5552
    %v5749 = vunpack.c.h.s8.bf16 %v5549
    %v5750 = vunpack.c.h.s8.bf16 %v5550
    %v5751 = vunpack.c.h.s8.bf16 %v5551
    %v5752 = vunpack.c.h.s8.bf16 %v5552
    %v5753 = vunpack.c.l.s8.bf16 %v5553
    %v5754 = vunpack.c.l.s8.bf16 %v5554
    %v5755 = vunpack.c.l.s8.bf16 %v5555
    %v5756 = vunpack.c.l.s8.bf16 %v5556
    %v5757 = vunpack.c.h.s8.bf16 %v5553
    %v5758 = vunpack.c.h.s8.bf16 %v5554
    %v5759 = vunpack.c.h.s8.bf16 %v5555
    %v5760 = vunpack.c.h.s8.bf16 %v5556
    %v5761 = vunpack.c.l.s8.bf16 %v5557
    %v5762 = vunpack.c.l.s8.bf16 %v5558
    %v5763 = vunpack.c.l.s8.bf16 %v5559
    %v5764 = vunpack.c.l.s8.bf16 %v5560
    %v5765 = vunpack.c.h.s8.bf16 %v5557
    %v5766 = vunpack.c.h.s8.bf16 %v5558
    %v5767 = vunpack.c.h.s8.bf16 %v5559
    %v5768 = vunpack.c.h.s8.bf16 %v5560
    %v5769 = vunpack.c.l.s8.bf16 %v5561
    %v5770 = vunpack.c.l.s8.bf16 %v5562
    %v5771 = vunpack.c.l.s8.bf16 %v5563
    %v5772 = vunpack.c.l.s8.bf16 %v5564
    %v5773 = vunpack.c.h.s8.bf16 %v5561
    %v5774 = vunpack.c.h.s8.bf16 %v5562
    %v5775 = vunpack.c.h.s8.bf16 %v5563
    %v5776 = vunpack.c.h.s8.bf16 %v5564
    %v5777 = vunpack.c.l.s8.bf16 %v5565
    %v5778 = vunpack.c.l.s8.bf16 %v5566
    %v5779 = vunpack.c.l.s8.bf16 %v5567
    %v5780 = vunpack.c.l.s8.bf16 %v5568
    %v5781 = vunpack.c.h.s8.bf16 %v5565
    %v5782 = vunpack.c.h.s8.bf16 %v5566
    %v5783 = vunpack.c.h.s8.bf16 %v5567
    %v5784 = vunpack.c.h.s8.bf16 %v5568
    %v5785 = vunpack.c.l.s8.bf16 %v5569
    %v5786 = vunpack.c.l.s8.bf16 %v5570
    %v5787 = vunpack.c.l.s8.bf16 %v5571
    %v5788 = vunpack.c.l.s8.bf16 %v5572
    %v5789 = vunpack.c.h.s8.bf16 %v5569
    %v5790 = vunpack.c.h.s8.bf16 %v5570
    %v5791 = vunpack.c.h.s8.bf16 %v5571
    %v5792 = vunpack.c.h.s8.bf16 %v5572
    %v5793 = vunpack.c.l.s8.bf16 %v5573
    %v5794 = vunpack.c.l.s8.bf16 %v5574
    %v5795 = vunpack.c.l.s8.bf16 %v5575
    %v5796 = vunpack.c.l.s8.bf16 %v5576
    %v5797 = vunpack.c.h.s8.bf16 %v5573
    %v5798 = vunpack.c.h.s8.bf16 %v5574
    %v5799 = vunpack.c.h.s8.bf16 %v5575
    %v5800 = vunpack.c.h.s8.bf16 %v5576
    %v5801 = vunpack.c.l.s8.bf16 %v5577
    %v5802 = vunpack.c.l.s8.bf16 %v5578
    %v5803 = vunpack.c.l.s8.bf16 %v5579
    %v5804 = vunpack.c.l.s8.bf16 %v5580
    %v5805 = vunpack.c.h.s8.bf16 %v5577
    %v5806 = vunpack.c.h.s8.bf16 %v5578
    %v5807 = vunpack.c.h.s8.bf16 %v5579
    %v5808 = vunpack.c.h.s8.bf16 %v5580
    %v5809 = vunpack.c.l.s8.bf16 %v5581
    %v5810 = vunpack.c.l.s8.bf16 %v5582
    %v5811 = vunpack.c.l.s8.bf16 %v5583
    %v5812 = vunpack.c.l.s8.bf16 %v5584
    %v5813 = vunpack.c.h.s8.bf16 %v5581
    %v5814 = vunpack.c.h.s8.bf16 %v5582
    %v5815 = vunpack.c.h.s8.bf16 %v5583
    %v5816 = vunpack.c.h.s8.bf16 %v5584
    %v5817 = vunpack.c.l.s8.bf16 %v5585
    %v5818 = vunpack.c.l.s8.bf16 %v5586
    %v5819 = vunpack.c.l.s8.bf16 %v5587
    %v5820 = vunpack.c.l.s8.bf16 %v5588
    %v5821 = vunpack.c.h.s8.bf16 %v5585
    %v5822 = vunpack.c.h.s8.bf16 %v5586
    %v5823 = vunpack.c.h.s8.bf16 %v5587
    %v5824 = vunpack.c.h.s8.bf16 %v5588
    %v5825 = vunpack.c.l.s8.bf16 %v5589
    %v5826 = vunpack.c.l.s8.bf16 %v5590
    %v5827 = vunpack.c.l.s8.bf16 %v5591
    %v5828 = vunpack.c.l.s8.bf16 %v5592
    %v5829 = vunpack.c.h.s8.bf16 %v5589
    %v5830 = vunpack.c.h.s8.bf16 %v5590
    %v5831 = vunpack.c.h.s8.bf16 %v5591
    %v5832 = vunpack.c.h.s8.bf16 %v5592
    %v5833 = vunpack.c.l.s8.bf16 %v5593
    %v5834 = vunpack.c.l.s8.bf16 %v5594
    %v5835 = vunpack.c.l.s8.bf16 %v5595
    %v5836 = vunpack.c.l.s8.bf16 %v5596
    %v5837 = vunpack.c.h.s8.bf16 %v5593
    %v5838 = vunpack.c.h.s8.bf16 %v5594
    %v5839 = vunpack.c.h.s8.bf16 %v5595
    %v5840 = vunpack.c.h.s8.bf16 %v5596
    %v5841 = vunpack.c.l.s8.bf16 %v5597
    %v5842 = vunpack.c.l.s8.bf16 %v5598
    %v5843 = vunpack.c.l.s8.bf16 %v5599
    %v5844 = vunpack.c.l.s8.bf16 %v5600
    %v5845 = vunpack.c.h.s8.bf16 %v5597
    %v5846 = vunpack.c.h.s8.bf16 %v5598
    %v5847 = vunpack.c.h.s8.bf16 %v5599
    %v5848 = vunpack.c.h.s8.bf16 %v5600
    %v5849 = vunpack.c.l.s8.bf16 %v5601
    %v5850 = vunpack.c.l.s8.bf16 %v5602
    %v5851 = vunpack.c.l.s8.bf16 %v5603
    %v5852 = vunpack.c.l.s8.bf16 %v5604
    %v5853 = vunpack.c.h.s8.bf16 %v5601
    %v5854 = vunpack.c.h.s8.bf16 %v5602
    %v5855 = vunpack.c.h.s8.bf16 %v5603
    %v5856 = vunpack.c.h.s8.bf16 %v5604
    %v5857 = vunpack.c.l.s8.bf16 %v5605
    %v5858 = vunpack.c.l.s8.bf16 %v5606
    %v5859 = vunpack.c.l.s8.bf16 %v5607
    %v5860 = vunpack.c.l.s8.bf16 %v5608
    %v5861 = vunpack.c.h.s8.bf16 %v5605
    %v5862 = vunpack.c.h.s8.bf16 %v5606
    %v5863 = vunpack.c.h.s8.bf16 %v5607
    %v5864 = vunpack.c.h.s8.bf16 %v5608
    %5865 = vmatprep.subr.bf16.mxu0 %v5610
    %5866 = vmatpush1.bf16.msra.mxu0 %v5609
    %5867 = vmatprep.subr.bf16.mxu0 %v5614
    %5868 = vmatpush1.bf16.msra.mxu0 %v5613
    %5869 = vmatprep.subr.bf16.mxu0 %v5618
    %5870 = vmatpush1.bf16.msra.mxu0 %v5617
    %5871 = vmatprep.subr.bf16.mxu0 %v5622
    %5872 = vmatpush1.bf16.msra.mxu0 %v5621
    %5873 = vmatprep.subr.bf16.mxu0 %v5626
    %5874 = vmatpush1.bf16.msra.mxu0 %v5625
    %5875 = vmatprep.subr.bf16.mxu0 %v5630
    %5876 = vmatpush1.bf16.msra.mxu0 %v5629
    %5877 = vmatprep.subr.bf16.mxu0 %v5634
    %5878 = vmatpush1.bf16.msra.mxu0 %v5633
    %5879 = vmatprep.subr.bf16.mxu0 %v5638
    %5880 = vmatpush1.bf16.msra.mxu0 %v5637
    %5881 = vmatprep.subr.bf16.mxu0 %v5642
    %5882 = vmatpush1.bf16.msra.mxu0 %v5641
    %5883 = vmatprep.subr.bf16.mxu0 %v5646
    %5884 = vmatpush1.bf16.msra.mxu0 %v5645
    %5885 = vmatprep.subr.bf16.mxu0 %v5650
    %5886 = vmatpush1.bf16.msra.mxu0 %v5649
    %5887 = vmatprep.subr.bf16.mxu0 %v5654
    %5888 = vmatpush1.bf16.msra.mxu0 %v5653
    %5889 = vmatprep.subr.bf16.mxu0 %v5658
    %5890 = vmatpush1.bf16.msra.mxu0 %v5657
    %5891 = vmatprep.subr.bf16.mxu0 %v5662
    %5892 = vmatpush1.bf16.msra.mxu0 %v5661
    %5893 = vmatprep.subr.bf16.mxu0 %v5666
    %5894 = vmatpush1.bf16.msra.mxu0 %v5665
    %5895 = vmatprep.subr.bf16.mxu0 %v5670
    %5896 = vmatpush1.bf16.msra.mxu0 %v5669
    %5897 = vmatprep.mubr.bf16.mxu0 %v5474
    %5898 = vmatmul.mubr.bf16.gmra.mrb[0].mxu0 %v5473
    %v5899 = vpop.f32.mrb[0].mxu0
    %v5900 = vadd.f32 0.0, %v5899
    %v5901 = vpop.f32.mrb[0].mxu0
    %v5902 = vadd.f32 0.0, %v5901
    %v5903 = vpop.f32.mrb[0].mxu0
    %v5904 = vpop.f32.mrb[0].mxu0
    %5905 = vdwg.mxu0
    %5906 = vmatprep.subr.bf16.mxu0 %v5674
    %5907 = vmatpush1.bf16.msra.mxu0 %v5673
    %5908 = vmatprep.subr.bf16.mxu0 %v5678
    %5909 = vmatpush1.bf16.msra.mxu0 %v5677
    %5910 = vmatprep.subr.bf16.mxu0 %v5682
    %5911 = vmatpush1.bf16.msra.mxu0 %v5681
    %5912 = vmatprep.subr.bf16.mxu0 %v5686
    %5913 = vmatpush1.bf16.msra.mxu0 %v5685
    %5914 = vmatprep.subr.bf16.mxu0 %v5690
    %5915 = vmatpush1.bf16.msra.mxu0 %v5689
    %5916 = vmatprep.subr.bf16.mxu0 %v5694
    %5917 = vmatpush1.bf16.msra.mxu0 %v5693
    %5918 = vmatprep.subr.bf16.mxu0 %v5698
    %5919 = vmatpush1.bf16.msra.mxu0 %v5697
    %5920 = vmatprep.subr.bf16.mxu0 %v5702
    %5921 = vmatpush1.bf16.msra.mxu0 %v5701
    %5922 = vmatprep.subr.bf16.mxu0 %v5706
    %5923 = vmatpush1.bf16.msra.mxu0 %v5705
    %5924 = vmatprep.subr.bf16.mxu0 %v5710
    %5925 = vmatpush1.bf16.msra.mxu0 %v5709
    %5926 = vmatprep.subr.bf16.mxu0 %v5714
    %5927 = vmatpush1.bf16.msra.mxu0 %v5713
    %5928 = vmatprep.subr.bf16.mxu0 %v5718
    %5929 = vmatpush1.bf16.msra.mxu0 %v5717
    %5930 = vmatprep.subr.bf16.mxu0 %v5722
    %5931 = vmatpush1.bf16.msra.mxu0 %v5721
    %5932 = vmatprep.subr.bf16.mxu0 %v5726
    %5933 = vmatpush1.bf16.msra.mxu0 %v5725
    %5934 = vmatprep.subr.bf16.mxu0 %v5730
    %5935 = vmatpush1.bf16.msra.mxu0 %v5729
    %5936 = vmatprep.subr.bf16.mxu0 %v5734
    %5937 = vmatpush1.bf16.msra.mxu0 %v5733
    %5938 = vmatprep.mubr.bf16.mxu0 %v5476
    %5939 = vmatmul.mubr.bf16.gmra.mrb[0].mxu0 %v5475
    %v5940 = vpop.f32.mrb[0].mxu0
    %v5941 = vadd.f32 %v5900, %v5940
    %v5942 = vpop.f32.mrb[0].mxu0
    %v5943 = vadd.f32 %v5902, %v5942
    %v5944 = vpop.f32.mrb[0].mxu0
    %v5945 = vpop.f32.mrb[0].mxu0
    %5946 = vdwg.mxu0
    %5947 = vmatprep.subr.bf16.mxu0 %v5738
    %5948 = vmatpush1.bf16.msra.mxu0 %v5737
    %5949 = vmatprep.subr.bf16.mxu0 %v5742
    %5950 = vmatpush1.bf16.msra.mxu0 %v5741
    %5951 = vmatprep.subr.bf16.mxu0 %v5746
    %5952 = vmatpush1.bf16.msra.mxu0 %v5745
    %5953 = vmatprep.subr.bf16.mxu0 %v5750
    %5954 = vmatpush1.bf16.msra.mxu0 %v5749
    %5955 = vmatprep.subr.bf16.mxu0 %v5754
    %5956 = vmatpush1.bf16.msra.mxu0 %v5753
    %5957 = vmatprep.subr.bf16.mxu0 %v5758
    %5958 = vmatpush1.bf16.msra.mxu0 %v5757
    %5959 = vmatprep.subr.bf16.mxu0 %v5762
    %5960 = vmatpush1.bf16.msra.mxu0 %v5761
    %5961 = vmatprep.subr.bf16.mxu0 %v5766
    %5962 = vmatpush1.bf16.msra.mxu0 %v5765
    %5963 = vmatprep.subr.bf16.mxu0 %v5770
    %5964 = vmatpush1.bf16.msra.mxu0 %v5769
    %5965 = vmatprep.subr.bf16.mxu0 %v5774
    %5966 = vmatpush1.bf16.msra.mxu0 %v5773
    %5967 = vmatprep.subr.bf16.mxu0 %v5778
    %5968 = vmatpush1.bf16.msra.mxu0 %v5777
    %5969 = vmatprep.subr.bf16.mxu0 %v5782
    %5970 = vmatpush1.bf16.msra.mxu0 %v5781
    %5971 = vmatprep.subr.bf16.mxu0 %v5786
    %5972 = vmatpush1.bf16.msra.mxu0 %v5785
    %5973 = vmatprep.subr.bf16.mxu0 %v5790
    %5974 = vmatpush1.bf16.msra.mxu0 %v5789
    %5975 = vmatprep.subr.bf16.mxu0 %v5794
    %5976 = vmatpush1.bf16.msra.mxu0 %v5793
    %5977 = vmatprep.subr.bf16.mxu0 %v5798
    %5978 = vmatpush1.bf16.msra.mxu0 %v5797
    %5979 = vmatprep.mubr.bf16.mxu0 %v5478
    %5980 = vmatmul.mubr.bf16.gmra.mrb[0].mxu0 %v5477
    %v5981 = vpop.f32.mrb[0].mxu0
    %v5982 = vadd.f32 %v5941, %v5981
    %v5983 = vpop.f32.mrb[0].mxu0
    %v5984 = vadd.f32 %v5943, %v5983
    %v5985 = vpop.f32.mrb[0].mxu0
    %v5986 = vpop.f32.mrb[0].mxu0
    %5987 = vdwg.mxu0
    %5988 = vmatprep.subr.bf16.mxu0 %v5802
    %5989 = vmatpush1.bf16.msra.mxu0 %v5801
    %5990 = vmatprep.subr.bf16.mxu0 %v5806
    %5991 = vmatpush1.bf16.msra.mxu0 %v5805
    %5992 = vmatprep.subr.bf16.mxu0 %v5810
    %5993 = vmatpush1.bf16.msra.mxu0 %v5809
    %5994 = vmatprep.subr.bf16.mxu0 %v5814
    %5995 = vmatpush1.bf16.msra.mxu0 %v5813
    %5996 = vmatprep.subr.bf16.mxu0 %v5818
    %5997 = vmatpush1.bf16.msra.mxu0 %v5817
    %5998 = vmatprep.subr.bf16.mxu0 %v5822
    %5999 = vmatpush1.bf16.msra.mxu0 %v5821
    %6000 = vmatprep.subr.bf16.mxu0 %v5826
    %6001 = vmatpush1.bf16.msra.mxu0 %v5825
    %6002 = vmatprep.subr.bf16.mxu0 %v5830
    %6003 = vmatpush1.bf16.msra.mxu0 %v5829
    %6004 = vmatprep.subr.bf16.mxu0 %v5834
    %6005 = vmatpush1.bf16.msra.mxu0 %v5833
    %6006 = vmatprep.subr.bf16.mxu0 %v5838
    %6007 = vmatpush1.bf16.msra.mxu0 %v5837
    %6008 = vmatprep.subr.bf16.mxu0 %v5842
    %6009 = vmatpush1.bf16.msra.mxu0 %v5841
    %6010 = vmatprep.subr.bf16.mxu0 %v5846
    %6011 = vmatpush1.bf16.msra.mxu0 %v5845
    %6012 = vmatprep.subr.bf16.mxu0 %v5850
    %6013 = vmatpush1.bf16.msra.mxu0 %v5849
    %6014 = vmatprep.subr.bf16.mxu0 %v5854
    %6015 = vmatpush1.bf16.msra.mxu0 %v5853
    %6016 = vmatprep.subr.bf16.mxu0 %v5858
    %6017 = vmatpush1.bf16.msra.mxu0 %v5857
    %6018 = vmatprep.subr.bf16.mxu0 %v5862
    %6019 = vmatpush1.bf16.msra.mxu0 %v5861
    %6020 = vmatprep.mubr.bf16.mxu0 %v5480
    %6021 = vmatmul.mubr.bf16.gmra.mrb[0].mxu0 %v5479
    %v6022 = vpop.f32.mrb[0].mxu0
    %v6023 = vadd.f32 %v5982, %v6022
    %v6024 = vpop.f32.mrb[0].mxu0
    %v6025 = vadd.f32 %v5984, %v6024
    %v6026 = vpop.f32.mrb[0].mxu0
    %v6027 = vpop.f32.mrb[0].mxu0
    %6028 = vdwg.mxu0
    %6029 = vmatprep.subr.bf16.mxu0 %v5612
    %6030 = vmatpush1.bf16.msra.mxu0 %v5611
    %6031 = vmatprep.subr.bf16.mxu0 %v5616
    %6032 = vmatpush1.bf16.msra.mxu0 %v5615
    %6033 = vmatprep.subr.bf16.mxu0 %v5620
    %6034 = vmatpush1.bf16.msra.mxu0 %v5619
    %6035 = vmatprep.subr.bf16.mxu0 %v5624
    %6036 = vmatpush1.bf16.msra.mxu0 %v5623
    %6037 = vmatprep.subr.bf16.mxu0 %v5628
    %6038 = vmatpush1.bf16.msra.mxu0 %v5627
    %6039 = vmatprep.subr.bf16.mxu0 %v5632
    %6040 = vmatpush1.bf16.msra.mxu0 %v5631
    %6041 = vmatprep.subr.bf16.mxu0 %v5636
    %6042 = vmatpush1.bf16.msra.mxu0 %v5635
    %6043 = vmatprep.subr.bf16.mxu0 %v5640
    %6044 = vmatpush1.bf16.msra.mxu0 %v5639
    %6045 = vmatprep.subr.bf16.mxu0 %v5644
    %6046 = vmatpush1.bf16.msra.mxu0 %v5643
    %6047 = vmatprep.subr.bf16.mxu0 %v5648
    %6048 = vmatpush1.bf16.msra.mxu0 %v5647
    %6049 = vmatprep.subr.bf16.mxu0 %v5652
    %6050 = vmatpush1.bf16.msra.mxu0 %v5651
    %6051 = vmatprep.subr.bf16.mxu0 %v5656
    %6052 = vmatpush1.bf16.msra.mxu0 %v5655
    %6053 = vmatprep.subr.bf16.mxu0 %v5660
    %6054 = vmatpush1.bf16.msra.mxu0 %v5659
    %6055 = vmatprep.subr.bf16.mxu0 %v5664
    %6056 = vmatpush1.bf16.msra.mxu0 %v5663
    %6057 = vmatprep.subr.bf16.mxu0 %v5668
    %6058 = vmatpush1.bf16.msra.mxu0 %v5667
    %6059 = vmatprep.subr.bf16.mxu0 %v5672
    %6060 = vmatpush1.bf16.msra.mxu0 %v5671
    %6061 = vmatprep.mubr.bf16.mxu0 %v5474
    %6062 = vmatmul.mubr.bf16.gmra.mrb[0].mxu0 %v5473
    %v6063 = vpop.f32.mrb[0].mxu0
    %v6064 = vadd.f32 0.0, %v6063
    %v6065 = vpop.f32.mrb[0].mxu0
    %v6066 = vadd.f32 0.0, %v6065
    %v6067 = vpop.f32.mrb[0].mxu0
    %v6068 = vpop.f32.mrb[0].mxu0
    %6069 = vdwg.mxu0
    %6070 = vmatprep.subr.bf16.mxu0 %v5676
    %6071 = vmatpush1.bf16.msra.mxu0 %v5675
    %6072 = vmatprep.subr.bf16.mxu0 %v5680
    %6073 = vmatpush1.bf16.msra.mxu0 %v5679
    %6074 = vmatprep.subr.bf16.mxu0 %v5684
    %6075 = vmatpush1.bf16.msra.mxu0 %v5683
    %6076 = vmatprep.subr.bf16.mxu0 %v5688
    %6077 = vmatpush1.bf16.msra.mxu0 %v5687
    %6078 = vmatprep.subr.bf16.mxu0 %v5692
    %6079 = vmatpush1.bf16.msra.mxu0 %v5691
    %6080 = vmatprep.subr.bf16.mxu0 %v5696
    %6081 = vmatpush1.bf16.msra.mxu0 %v5695
    %6082 = vmatprep.subr.bf16.mxu0 %v5700
    %6083 = vmatpush1.bf16.msra.mxu0 %v5699
    %6084 = vmatprep.subr.bf16.mxu0 %v5704
    %6085 = vmatpush1.bf16.msra.mxu0 %v5703
    %6086 = vmatprep.subr.bf16.mxu0 %v5708
    %6087 = vmatpush1.bf16.msra.mxu0 %v5707
    %6088 = vmatprep.subr.bf16.mxu0 %v5712
    %6089 = vmatpush1.bf16.msra.mxu0 %v5711
    %6090 = vmatprep.subr.bf16.mxu0 %v5716
    %6091 = vmatpush1.bf16.msra.mxu0 %v5715
    %6092 = vmatprep.subr.bf16.mxu0 %v5720
    %6093 = vmatpush1.bf16.msra.mxu0 %v5719
    %6094 = vmatprep.subr.bf16.mxu0 %v5724
    %6095 = vmatpush1.bf16.msra.mxu0 %v5723
    %6096 = vmatprep.subr.bf16.mxu0 %v5728
    %6097 = vmatpush1.bf16.msra.mxu0 %v5727
    %6098 = vmatprep.subr.bf16.mxu0 %v5732
    %6099 = vmatpush1.bf16.msra.mxu0 %v5731
    %6100 = vmatprep.subr.bf16.mxu0 %v5736
    %6101 = vmatpush1.bf16.msra.mxu0 %v5735
    %6102 = vmatprep.mubr.bf16.mxu0 %v5476
    %6103 = vmatmul.mubr.bf16.gmra.mrb[0].mxu0 %v5475
    %v6104 = vpop.f32.mrb[0].mxu0
    %v6105 = vadd.f32 %v6064, %v6104
    %v6106 = vpop.f32.mrb[0].mxu0
    %v6107 = vadd.f32 %v6066, %v6106
    %v6108 = vpop.f32.mrb[0].mxu0
    %v6109 = vpop.f32.mrb[0].mxu0
    %6110 = vdwg.mxu0
    %6111 = vmatprep.subr.bf16.mxu0 %v5740
    %6112 = vmatpush1.bf16.msra.mxu0 %v5739
    %6113 = vmatprep.subr.bf16.mxu0 %v5744
    %6114 = vmatpush1.bf16.msra.mxu0 %v5743
    %6115 = vmatprep.subr.bf16.mxu0 %v5748
    %6116 = vmatpush1.bf16.msra.mxu0 %v5747
    %6117 = vmatprep.subr.bf16.mxu0 %v5752
    %6118 = vmatpush1.bf16.msra.mxu0 %v5751
    %6119 = vmatprep.subr.bf16.mxu0 %v5756
    %6120 = vmatpush1.bf16.msra.mxu0 %v5755
    %6121 = vmatprep.subr.bf16.mxu0 %v5760
    %6122 = vmatpush1.bf16.msra.mxu0 %v5759
    %6123 = vmatprep.subr.bf16.mxu0 %v5764
    %6124 = vmatpush1.bf16.msra.mxu0 %v5763
    %6125 = vmatprep.subr.bf16.mxu0 %v5768
    %6126 = vmatpush1.bf16.msra.mxu0 %v5767
    %6127 = vmatprep.subr.bf16.mxu0 %v5772
    %6128 = vmatpush1.bf16.msra.mxu0 %v5771
    %6129 = vmatprep.subr.bf16.mxu0 %v5776
    %6130 = vmatpush1.bf16.msra.mxu0 %v5775
    %6131 = vmatprep.subr.bf16.mxu0 %v5780
    %6132 = vmatpush1.bf16.msra.mxu0 %v5779
    %6133 = vmatprep.subr.bf16.mxu0 %v5784
    %6134 = vmatpush1.bf16.msra.mxu0 %v5783
    %6135 = vmatprep.subr.bf16.mxu0 %v5788
    %6136 = vmatpush1.bf16.msra.mxu0 %v5787
    %6137 = vmatprep.subr.bf16.mxu0 %v5792
    %6138 = vmatpush1.bf16.msra.mxu0 %v5791
    %6139 = vmatprep.subr.bf16.mxu0 %v5796
    %6140 = vmatpush1.bf16.msra.mxu0 %v5795
    %6141 = vmatprep.subr.bf16.mxu0 %v5800
    %6142 = vmatpush1.bf16.msra.mxu0 %v5799
    %6143 = vmatprep.mubr.bf16.mxu0 %v5478
    %6144 = vmatmul.mubr.bf16.gmra.mrb[0].mxu0 %v5477
    %v6145 = vpop.f32.mrb[0].mxu0
    %v6146 = vadd.f32 %v6105, %v6145
    %v6147 = vpop.f32.mrb[0].mxu0
    %v6148 = vadd.f32 %v6107, %v6147
    %v6149 = vpop.f32.mrb[0].mxu0
    %v6150 = vpop.f32.mrb[0].mxu0
    %6151 = vdwg.mxu0
    %6152 = vmatprep.subr.bf16.mxu0 %v5804
    %6153 = vmatpush1.bf16.msra.mxu0 %v5803
    %6154 = vmatprep.subr.bf16.mxu0 %v5808
    %6155 = vmatpush1.bf16.msra.mxu0 %v5807
    %6156 = vmatprep.subr.bf16.mxu0 %v5812
    %6157 = vmatpush1.bf16.msra.mxu0 %v5811
    %6158 = vmatprep.subr.bf16.mxu0 %v5816
    %6159 = vmatpush1.bf16.msra.mxu0 %v5815
    %6160 = vmatprep.subr.bf16.mxu0 %v5820
    %6161 = vmatpush1.bf16.msra.mxu0 %v5819
    %6162 = vmatprep.subr.bf16.mxu0 %v5824
    %6163 = vmatpush1.bf16.msra.mxu0 %v5823
    %6164 = vmatprep.subr.bf16.mxu0 %v5828
    %6165 = vmatpush1.bf16.msra.mxu0 %v5827
    %6166 = vmatprep.subr.bf16.mxu0 %v5832
    %6167 = vmatpush1.bf16.msra.mxu0 %v5831
    %6168 = vmatprep.subr.bf16.mxu0 %v5836
    %6169 = vmatpush1.bf16.msra.mxu0 %v5835
    %6170 = vmatprep.subr.bf16.mxu0 %v5840
    %6171 = vmatpush1.bf16.msra.mxu0 %v5839
    %6172 = vmatprep.subr.bf16.mxu0 %v5844
    %6173 = vmatpush1.bf16.msra.mxu0 %v5843
    %6174 = vmatprep.subr.bf16.mxu0 %v5848
    %6175 = vmatpush1.bf16.msra.mxu0 %v5847
    %6176 = vmatprep.subr.bf16.mxu0 %v5852
    %6177 = vmatpush1.bf16.msra.mxu0 %v5851
    %6178 = vmatprep.subr.bf16.mxu0 %v5856
    %6179 = vmatpush1.bf16.msra.mxu0 %v5855
    %6180 = vmatprep.subr.bf16.mxu0 %v5860
    %6181 = vmatpush1.bf16.msra.mxu0 %v5859
    %6182 = vmatprep.subr.bf16.mxu0 %v5864
    %6183 = vmatpush1.bf16.msra.mxu0 %v5863
    %6184 = vmatprep.mubr.bf16.mxu0 %v5480
    %6185 = vmatmul.mubr.bf16.gmra.mrb[0].mxu0 %v5479
    %v6186 = vpop.f32.mrb[0].mxu0
    %v6187 = vadd.f32 %v6146, %v6186
    %v6188 = vpop.f32.mrb[0].mxu0
    %v6189 = vadd.f32 %v6148, %v6188
    %v6190 = vpop.f32.mrb[0].mxu0
    %v6191 = vpop.f32.mrb[0].mxu0
    %6192 = vdwg.mxu0
    %v6193 = vld [vmem:[#allocation12] sm:$0xf]
    %v6195 = vlaneseq
    %v6196 = vshrl.u32 %v6195, 7
    %v6197 = vsub.s32 0, %v6196
    %v6198 = vrot.slane %v6193, %v6197
    %v6199 = vlaneseq
    %v6200 = vshrl.u32 %v6199, 7
    %v6201 = vsub.s32 1, %v6200
    %v6202 = vrot.slane %v6193, %v6201
    %v6203 = vlaneseq
    %v6204 = vshrl.u32 %v6203, 7
    %v6205 = vsub.s32 2, %v6204
    %v6206 = vrot.slane %v6193, %v6205
    %v6207 = vlaneseq
    %v6208 = vshrl.u32 %v6207, 7
    %v6209 = vsub.s32 3, %v6208
    %v6210 = vrot.slane %v6193, %v6209
    %v6215 = vmul.f32 %v6023, %v6198
    %v6216 = vmul.f32 %v6025, %v6202
    %v6217 = vmul.f32 %v6187, %v6206
    %v6218 = vmul.f32 %v6189, %v6210
    %v6219 = vld [vmem:[#allocation13] sm:$0xf]
    %v6221 = vlaneseq
    %v6222 = vshrl.u32 %v6221, 7
    %v6223 = vsub.s32 0, %v6222
    %v6224 = vrot.slane %v6219, %v6223
    %v6225 = vlaneseq
    %v6226 = vshrl.u32 %v6225, 7
    %v6227 = vsub.s32 1, %v6226
    %v6228 = vrot.slane %v6219, %v6227
    %v6229 = vlaneseq
    %v6230 = vshrl.u32 %v6229, 7
    %v6231 = vsub.s32 2, %v6230
    %v6232 = vrot.slane %v6219, %v6231
    %v6233 = vlaneseq
    %v6234 = vshrl.u32 %v6233, 7
    %v6235 = vsub.s32 3, %v6234
    %v6236 = vrot.slane %v6219, %v6235
    %v6241 = vadd.f32 %v6215, %v6224
    %v6242 = vadd.f32 %v6216, %v6228
    %v6243 = vadd.f32 %v6217, %v6232
    %v6244 = vadd.f32 %v6218, %v6236
    %v6245 = vmax.f32 %v6241, 0.0
    %v6246 = vmax.f32 %v6242, 0.0
    %v6247 = vmax.f32 %v6243, 0.0
    %v6248 = vmax.f32 %v6244, 0.0
    %v6249 = vpack.c.bf16 %v6245, %v6245
    %v6250 = vpack.c.bf16 %v6246, %v6246
    %v6251 = vpack.c.bf16 %v6247, %v6247
    %v6252 = vpack.c.bf16 %v6248, %v6248
    %v6253 = vld [vmem:[%s10] sm:$0xf]
    %v6254 = vld [vmem:[%s10 + $0x4] sm:$0xf]
    %v6255 = vld [vmem:[%s10 + $0x8] sm:$0xf]
    %v6256 = vld [vmem:[%s10 + $0xc] sm:$0xf]
    %v6257 = vld [vmem:[%s10 + $0x10] sm:$0xf]
    %v6258 = vld [vmem:[%s10 + $0x14] sm:$0xf]
    %v6259 = vld [vmem:[%s10 + $0x18] sm:$0xf]
    %v6260 = vld [vmem:[%s10 + $0x1c] sm:$0xf]
    %v6261 = vld [vmem:[%s10 + $0x20] sm:$0xf]
    %v6262 = vld [vmem:[%s10 + $0x24] sm:$0xf]
    %v6263 = vld [vmem:[%s10 + $0x28] sm:$0xf]
    %v6264 = vld [vmem:[%s10 + $0x2c] sm:$0xf]
    %v6265 = vld [vmem:[%s10 + $0x30] sm:$0xf]
    %v6266 = vld [vmem:[%s10 + $0x34] sm:$0xf]
    %v6267 = vld [vmem:[%s10 + $0x38] sm:$0xf]
    %v6268 = vld [vmem:[%s10 + $0x3c] sm:$0xf]
    %v6269 = vld [vmem:[%s10 + $0x40] sm:$0xf]
    %v6270 = vld [vmem:[%s10 + $0x44] sm:$0xf]
    %v6271 = vld [vmem:[%s10 + $0x48] sm:$0xf]
    %v6272 = vld [vmem:[%s10 + $0x4c] sm:$0xf]
    %v6273 = vld [vmem:[%s10 + $0x50] sm:$0xf]
    %v6274 = vld [vmem:[%s10 + $0x54] sm:$0xf]
    %v6275 = vld [vmem:[%s10 + $0x58] sm:$0xf]
    %v6276 = vld [vmem:[%s10 + $0x5c] sm:$0xf]
    %v6277 = vld [vmem:[%s10 + $0x60] sm:$0xf]
    %v6278 = vld [vmem:[%s10 + $0x64] sm:$0xf]
    %v6279 = vld [vmem:[%s10 + $0x68] sm:$0xf]
    %v6280 = vld [vmem:[%s10 + $0x6c] sm:$0xf]
    %v6281 = vld [vmem:[%s10 + $0x70] sm:$0xf]
    %v6282 = vld [vmem:[%s10 + $0x74] sm:$0xf]
    %v6283 = vld [vmem:[%s10 + $0x78] sm:$0xf]
    %v6284 = vld [vmem:[%s10 + $0x7c] sm:$0xf]
    %v6285 = vld [vmem:[%s10 + $0x80] sm:$0xf]
    %v6286 = vld [vmem:[%s10 + $0x84] sm:$0xf]
    %v6287 = vld [vmem:[%s10 + $0x88] sm:$0xf]
    %v6288 = vld [vmem:[%s10 + $0x8c] sm:$0xf]
    %v6289 = vld [vmem:[%s10 + $0x90] sm:$0xf]
    %v6290 = vld [vmem:[%s10 + $0x94] sm:$0xf]
    %v6291 = vld [vmem:[%s10 + $0x98] sm:$0xf]
    %v6292 = vld [vmem:[%s10 + $0x9c] sm:$0xf]
    %v6293 = vld [vmem:[%s10 + $0xa0] sm:$0xf]
    %v6294 = vld [vmem:[%s10 + $0xa4] sm:$0xf]
    %v6295 = vld [vmem:[%s10 + $0xa8] sm:$0xf]
    %v6296 = vld [vmem:[%s10 + $0xac] sm:$0xf]
    %v6297 = vld [vmem:[%s10 + $0xb0] sm:$0xf]
    %v6298 = vld [vmem:[%s10 + $0xb4] sm:$0xf]
    %v6299 = vld [vmem:[%s10 + $0xb8] sm:$0xf]
    %v6300 = vld [vmem:[%s10 + $0xbc] sm:$0xf]
    %v6301 = vld [vmem:[%s10 + $0xc0] sm:$0xf]
    %v6302 = vld [vmem:[%s10 + $0xc4] sm:$0xf]
    %v6303 = vld [vmem:[%s10 + $0xc8] sm:$0xf]
    %v6304 = vld [vmem:[%s10 + $0xcc] sm:$0xf]
    %v6305 = vld [vmem:[%s10 + $0xd0] sm:$0xf]
    %v6306 = vld [vmem:[%s10 + $0xd4] sm:$0xf]
    %v6307 = vld [vmem:[%s10 + $0xd8] sm:$0xf]
    %v6308 = vld [vmem:[%s10 + $0xdc] sm:$0xf]
    %v6309 = vld [vmem:[%s10 + $0xe0] sm:$0xf]
    %v6310 = vld [vmem:[%s10 + $0xe4] sm:$0xf]
    %v6311 = vld [vmem:[%s10 + $0xe8] sm:$0xf]
    %v6312 = vld [vmem:[%s10 + $0xec] sm:$0xf]
    %v6313 = vld [vmem:[%s10 + $0xf0] sm:$0xf]
    %v6314 = vld [vmem:[%s10 + $0xf4] sm:$0xf]
    %v6315 = vld [vmem:[%s10 + $0xf8] sm:$0xf]
    %v6316 = vld [vmem:[%s10 + $0xfc] sm:$0xf]
    %v6317 = vld [vmem:[#allocation2] sm:$0x1]
    %v6319 = vlaneseq
    %v6320 = vshrl.u32 %v6319, 7
    %v6321 = vsub.s32 0, %v6320
    %v6322 = vrot.slane %v6317, %v6321
    %v6388 = vunpack.c.l.b16 %v6253
    %v6389 = vunpack.c.l.b16 %v6254
    %v6390 = vunpack.c.l.b16 %v6255
    %v6391 = vunpack.c.l.b16 %v6256
    %v6392 = vunpack.c.l.b16 %v6257
    %v6393 = vunpack.c.l.b16 %v6258
    %v6394 = vunpack.c.l.b16 %v6259
    %v6395 = vunpack.c.l.b16 %v6260
    %v6396 = vunpack.c.l.b16 %v6261
    %v6397 = vunpack.c.l.b16 %v6262
    %v6398 = vunpack.c.l.b16 %v6263
    %v6399 = vunpack.c.l.b16 %v6264
    %v6400 = vunpack.c.l.b16 %v6265
    %v6401 = vunpack.c.l.b16 %v6266
    %v6402 = vunpack.c.l.b16 %v6267
    %v6403 = vunpack.c.l.b16 %v6268
    %v6404 = vunpack.c.l.b16 %v6269
    %v6405 = vunpack.c.l.b16 %v6270
    %v6406 = vunpack.c.l.b16 %v6271
    %v6407 = vunpack.c.l.b16 %v6272
    %v6408 = vunpack.c.l.b16 %v6273
    %v6409 = vunpack.c.l.b16 %v6274
    %v6410 = vunpack.c.l.b16 %v6275
    %v6411 = vunpack.c.l.b16 %v6276
    %v6412 = vunpack.c.l.b16 %v6277
    %v6413 = vunpack.c.l.b16 %v6278
    %v6414 = vunpack.c.l.b16 %v6279
    %v6415 = vunpack.c.l.b16 %v6280
    %v6416 = vunpack.c.l.b16 %v6281
    %v6417 = vunpack.c.l.b16 %v6282
    %v6418 = vunpack.c.l.b16 %v6283
    %v6419 = vunpack.c.l.b16 %v6284
    %v6420 = vunpack.c.l.b16 %v6285
    %v6421 = vunpack.c.l.b16 %v6286
    %v6422 = vunpack.c.l.b16 %v6287
    %v6423 = vunpack.c.l.b16 %v6288
    %v6424 = vunpack.c.l.b16 %v6289
    %v6425 = vunpack.c.l.b16 %v6290
    %v6426 = vunpack.c.l.b16 %v6291
    %v6427 = vunpack.c.l.b16 %v6292
    %v6428 = vunpack.c.l.b16 %v6293
    %v6429 = vunpack.c.l.b16 %v6294
    %v6430 = vunpack.c.l.b16 %v6295
    %v6431 = vunpack.c.l.b16 %v6296
    %v6432 = vunpack.c.l.b16 %v6297
    %v6433 = vunpack.c.l.b16 %v6298
    %v6434 = vunpack.c.l.b16 %v6299
    %v6435 = vunpack.c.l.b16 %v6300
    %v6436 = vunpack.c.l.b16 %v6301
    %v6437 = vunpack.c.l.b16 %v6302
    %v6438 = vunpack.c.l.b16 %v6303
    %v6439 = vunpack.c.l.b16 %v6304
    %v6440 = vunpack.c.l.b16 %v6305
    %v6441 = vunpack.c.l.b16 %v6306
    %v6442 = vunpack.c.l.b16 %v6307
    %v6443 = vunpack.c.l.b16 %v6308
    %v6444 = vunpack.c.l.b16 %v6309
    %v6445 = vunpack.c.l.b16 %v6310
    %v6446 = vunpack.c.l.b16 %v6311
    %v6447 = vunpack.c.l.b16 %v6312
    %v6448 = vunpack.c.l.b16 %v6313
    %v6449 = vunpack.c.l.b16 %v6314
    %v6450 = vunpack.c.l.b16 %v6315
    %v6451 = vunpack.c.l.b16 %v6316
    %v6452 = vpack.c.b16 %v6389, %v6388
    %v6453 = vpack.c.b16 %v6391, %v6390
    %v6454 = vpack.c.b16 %v6393, %v6392
    %v6455 = vpack.c.b16 %v6395, %v6394
    %v6456 = vpack.c.b16 %v6397, %v6396
    %v6457 = vpack.c.b16 %v6399, %v6398
    %v6458 = vpack.c.b16 %v6401, %v6400
    %v6459 = vpack.c.b16 %v6403, %v6402
    %v6460 = vpack.c.b16 %v6405, %v6404
    %v6461 = vpack.c.b16 %v6407, %v6406
    %v6462 = vpack.c.b16 %v6409, %v6408
    %v6463 = vpack.c.b16 %v6411, %v6410
    %v6464 = vpack.c.b16 %v6413, %v6412
    %v6465 = vpack.c.b16 %v6415, %v6414
    %v6466 = vpack.c.b16 %v6417, %v6416
    %v6467 = vpack.c.b16 %v6419, %v6418
    %v6468 = vpack.c.b16 %v6421, %v6420
    %v6469 = vpack.c.b16 %v6423, %v6422
    %v6470 = vpack.c.b16 %v6425, %v6424
    %v6471 = vpack.c.b16 %v6427, %v6426
    %v6472 = vpack.c.b16 %v6429, %v6428
    %v6473 = vpack.c.b16 %v6431, %v6430
    %v6474 = vpack.c.b16 %v6433, %v6432
    %v6475 = vpack.c.b16 %v6435, %v6434
    %v6476 = vpack.c.b16 %v6437, %v6436
    %v6477 = vpack.c.b16 %v6439, %v6438
    %v6478 = vpack.c.b16 %v6441, %v6440
    %v6479 = vpack.c.b16 %v6443, %v6442
    %v6480 = vpack.c.b16 %v6445, %v6444
    %v6481 = vpack.c.b16 %v6447, %v6446
    %v6482 = vpack.c.b16 %v6449, %v6448
    %v6483 = vpack.c.b16 %v6451, %v6450
    %6516 = vmatprep.subr.bf16.mxu0 0
    %6517 = vmatpush1.bf16.msra.mxu0 %v6452
    %6518 = vmatprep.subr.bf16.mxu0 0
    %6519 = vmatpush1.bf16.msra.mxu0 %v6453
    %6520 = vmatprep.subr.bf16.mxu0 0
    %6521 = vmatpush1.bf16.msra.mxu0 %v6454
    %6522 = vmatprep.subr.bf16.mxu0 0
    %6523 = vmatpush1.bf16.msra.mxu0 %v6455
    %6524 = vmatprep.subr.bf16.mxu0 0
    %6525 = vmatpush1.bf16.msra.mxu0 %v6456
    %6526 = vmatprep.subr.bf16.mxu0 0
    %6527 = vmatpush1.bf16.msra.mxu0 %v6457
    %6528 = vmatprep.subr.bf16.mxu0 0
    %6529 = vmatpush1.bf16.msra.mxu0 %v6458
    %6530 = vmatprep.subr.bf16.mxu0 0
    %6531 = vmatpush1.bf16.msra.mxu0 %v6459
    %6532 = vmatprep.subr.bf16.mxu0 0
    %6533 = vmatpush1.bf16.msra.mxu0 %v6460
    %6534 = vmatprep.subr.bf16.mxu0 0
    %6535 = vmatpush1.bf16.msra.mxu0 %v6461
    %6536 = vmatprep.subr.bf16.mxu0 0
    %6537 = vmatpush1.bf16.msra.mxu0 %v6462
    %6538 = vmatprep.subr.bf16.mxu0 0
    %6539 = vmatpush1.bf16.msra.mxu0 %v6463
    %6540 = vmatprep.subr.bf16.mxu0 0
    %6541 = vmatpush1.bf16.msra.mxu0 %v6464
    %6542 = vmatprep.subr.bf16.mxu0 0
    %6543 = vmatpush1.bf16.msra.mxu0 %v6465
    %6544 = vmatprep.subr.bf16.mxu0 0
    %6545 = vmatpush1.bf16.msra.mxu0 %v6466
    %6546 = vmatprep.subr.bf16.mxu0 0
    %6547 = vmatpush1.bf16.msra.mxu0 %v6467
    %6548 = vmatprep.mubr.bf16.mxu0 %v6250
    %6549 = vmatmul.mubr.bf16.gmra.mrb[0].mxu0 %v6249
    %v6550 = vpop.f32.mrb[0].mxu0
    %v6551 = vadd.f32 %v6322, %v6550
    %v6552 = vpop.f32.mrb[0].mxu0
    %v6553 = vpop.f32.mrb[0].mxu0
    %v6554 = vpop.f32.mrb[0].mxu0
    %6555 = vdwg.mxu0
    %6556 = vmatprep.subr.bf16.mxu0 0
    %6557 = vmatpush1.bf16.msra.mxu0 %v6468
    %6558 = vmatprep.subr.bf16.mxu0 0
    %6559 = vmatpush1.bf16.msra.mxu0 %v6469
    %6560 = vmatprep.subr.bf16.mxu0 0
    %6561 = vmatpush1.bf16.msra.mxu0 %v6470
    %6562 = vmatprep.subr.bf16.mxu0 0
    %6563 = vmatpush1.bf16.msra.mxu0 %v6471
    %6564 = vmatprep.subr.bf16.mxu0 0
    %6565 = vmatpush1.bf16.msra.mxu0 %v6472
    %6566 = vmatprep.subr.bf16.mxu0 0
    %6567 = vmatpush1.bf16.msra.mxu0 %v6473
    %6568 = vmatprep.subr.bf16.mxu0 0
    %6569 = vmatpush1.bf16.msra.mxu0 %v6474
    %6570 = vmatprep.subr.bf16.mxu0 0
    %6571 = vmatpush1.bf16.msra.mxu0 %v6475
    %6572 = vmatprep.subr.bf16.mxu0 0
    %6573 = vmatpush1.bf16.msra.mxu0 %v6476
    %6574 = vmatprep.subr.bf16.mxu0 0
    %6575 = vmatpush1.bf16.msra.mxu0 %v6477
    %6576 = vmatprep.subr.bf16.mxu0 0
    %6577 = vmatpush1.bf16.msra.mxu0 %v6478
    %6578 = vmatprep.subr.bf16.mxu0 0
    %6579 = vmatpush1.bf16.msra.mxu0 %v6479
    %6580 = vmatprep.subr.bf16.mxu0 0
    %6581 = vmatpush1.bf16.msra.mxu0 %v6480
    %6582 = vmatprep.subr.bf16.mxu0 0
    %6583 = vmatpush1.bf16.msra.mxu0 %v6481
    %6584 = vmatprep.subr.bf16.mxu0 0
    %6585 = vmatpush1.bf16.msra.mxu0 %v6482
    %6586 = vmatprep.subr.bf16.mxu0 0
    %6587 = vmatpush1.bf16.msra.mxu0 %v6483
    %6588 = vmatprep.mubr.bf16.mxu0 %v6252
    %6589 = vmatmul.mubr.bf16.gmra.mrb[0].mxu0 %v6251
    %v6590 = vpop.f32.mrb[0].mxu0
    %v6591 = vadd.f32 %v6551, %v6590
    %v6592 = vpop.f32.mrb[0].mxu0
    %v6593 = vpop.f32.mrb[0].mxu0
    %v6594 = vpop.f32.mrb[0].mxu0
    %6595 = vdwg.mxu0
    %v6596 = vxor.u32 %v6591, 2147483648
    %v6597 = vmul.f32 %v6596, 1.442695
    %v6598 = vpow.pop %v6597
    %v6599 = vadd.f32 %v6598, 1.0
    %v6600 = vrcp.pop %v6599
    %v6601 = vmul.f32 1.0, %v6600
    %vm6602 = vcmask 1024
    %6603 = vst.msk [vmem:[%s12] sm:$0x3] %vm6602, %v6601
    // Predicated region
    $region78: #{music_model_forward.1} parent=1 // pred_check
      _
    $region79: #{music_model_forward.1} parent=1 // pred_check_branch
      %6605 = sbr.rel (0) target = $region81
    $region80: #{music_model_forward.1} parent=1 // pred_region
      _
    $region81: #{music_model_forward.1} parent=1 // pred_fallthru
      _
    // Predicated region
    $region82: #{music_model_forward.1} parent=1 // pred_check
      _
    $region83: #{music_model_forward.1} parent=1 // pred_check_branch
      %6607 = sbr.rel (0) target = $region85
    $region84: #{music_model_forward.1} parent=1 // pred_region
      _
    $region85: #{music_model_forward.1} parent=1 // pred_fallthru
      _
    %6608 = vsyncpa [#allocation4], 1
    %6609 = vsyncpa [#allocation8], 1
    %6610 = vsyncpa [#allocation11], 1
    %6611 = vsyncpa [#allocation14], 1
    %6612 = vsyncpa [#allocation5], 1

</llo_original>
